<compile_context>
chip_gen: v6e
topology: v6e:2x2x1
jax: 0.10.0
libtpu: 0.0.40
codegen_flags: <defaults>
</compile_context>

<pallas_src>
import jax
import jax.numpy as jnp
from jax.experimental import pallas as pl
from jax.experimental.pallas import tpu as pltpu

HIDDEN = 400          # logical hidden width (matches the PyTorch module)
HIDDEN_PAD = 512      # padded to a multiple of the 128-lane vreg width
N_LAYERS = 9          # 8 hidden (ReLU) + 1 output (linear)
N_HIDDEN_MM = 7       # hidden 512x512 Linears (layers 2..8)


def _round_up(x, m):
    return ((x + m - 1) // m) * m


def _num_tensorcores_per_chip():
    try:
        kind = jax.devices()[0].device_kind.lower()
    except Exception:
        return 1
    return 2 if ("v7" in kind or "7x" in kind) else 1


def _default_tile_m(batch, num_cores):
    """Rows per grid step."""
    if batch <= 128:
        return max(8, _round_up(batch, 8))          # one small tile -> streaming path
    # At least `num_cores` grid steps (megacore sharding on v7x), at most 512 rows per step
    # (amortizes per-step overhead on v6e/v5e; v5e's MXU makes step overhead negligible anyway).
    target = pl.cdiv(batch, max(num_cores, pl.cdiv(batch, 512)))
    return max(128, min(512, _round_up(target, 128)))


# ----------------------------------------------------------------------------
# Kernel bodies
# ----------------------------------------------------------------------------

def _final_layer(h_bf16, w9_ref, b9_ref, out_ref):
    # Linear(512 -> 1), no ReLU: VPU multiply + XLU lane reduction in f32.
    q = jnp.sum(h_bf16.astype(jnp.float32) * w9_ref[...], axis=-1, keepdims=True) + b9_ref[...]
    out_ref[...] = q.astype(out_ref.dtype)


def qnet_resident_kernel(xa_ref, w1_ref, b1_ref, wstack_ref, bstack_ref,
                         w9_ref, b9_ref, out_ref):
    """One batch tile; all weights VMEM-resident (constant index_maps)."""
    # Layer 1: merged [x, a] matmul, bf16 MXU, f32 acc; store bf16 activation.
    h = jnp.dot(xa_ref[...], w1_ref[...], preferred_element_type=jnp.float32)
    h = jnp.maximum(h + b1_ref[...], 0.0).astype(jnp.bfloat16)

    # Layers 2..8: Linear(512, 512) + ReLU, unrolled so the scheduler sees the
    # whole back-to-back matmul chain.
    for i in range(N_HIDDEN_MM):
        acc = jnp.dot(h, wstack_ref[i], preferred_element_type=jnp.float32)
        h = jnp.maximum(acc + bstack_ref[i], 0.0).astype(jnp.bfloat16)

    _final_layer(h, w9_ref, b9_ref, out_ref)


def qnet_stream_kernel(xa_ref, w1_ref, b1_ref, wstack_hbm, bstack_ref,
                       w9_ref, b9_ref, out_ref, wbuf, sem):
    """Single-tile path: hidden weights streamed HBM->VMEM with a 2-deep double buffer,
    so layer k+1's weight DMA overlaps layer k's matmul."""
    # Prime slot 0 with layer-2 weights; overlaps with the layer-1 matmul below.
    pltpu.make_async_copy(wstack_hbm.at[0], wbuf.at[0], sem.at[0]).start()

    h = jnp.dot(xa_ref[...], w1_ref[...], preferred_element_type=jnp.float32)
    h = jnp.maximum(h + b1_ref[...], 0.0).astype(jnp.bfloat16)

    for i in range(N_HIDDEN_MM):
        slot = i & 1
        pltpu.make_async_copy(wstack_hbm.at[i], wbuf.at[slot], sem.at[slot]).wait()
        if i + 1 < N_HIDDEN_MM:
            pltpu.make_async_copy(wstack_hbm.at[i + 1], wbuf.at[1 - slot],
                                  sem.at[1 - slot]).start()
        acc = jnp.dot(h, wbuf[slot], preferred_element_type=jnp.float32)
        h = jnp.maximum(acc + bstack_ref[i], 0.0).astype(jnp.bfloat16)

    _final_layer(h, w9_ref, b9_ref, out_ref)


# ----------------------------------------------------------------------------
# pallas_call wrappers
# ----------------------------------------------------------------------------

def _forward_stream(xa, kp):
    batch, in_pad = xa.shape
    w1, b1, wstack, bstack, w9, b9 = kp
    hp = wstack.shape[-1]

    def vmem_full(p):
        return pl.BlockSpec(p.shape, lambda i, nd=p.ndim: (0,) * nd)

    grid_spec = pltpu.PrefetchScalarGridSpec(
        num_scalar_prefetch=0,
        grid=(1,),
        in_specs=[vmem_full(xa), vmem_full(w1), vmem_full(b1),
                  pl.BlockSpec(memory_space=pl.ANY),     # hidden weights stay in HBM
                  vmem_full(bstack), vmem_full(w9), vmem_full(b9)],
        out_specs=pl.BlockSpec((batch, 1), lambda i: (0, 0)),
        scratch_shapes=[pltpu.VMEM((2, hp, hp), jnp.bfloat16),   # weight double buffer
                        pltpu.SemaphoreType.DMA((2,))],
    )
    return pl.pallas_call(
        qnet_stream_kernel,
        out_shape=jax.ShapeDtypeStruct((batch, 1), jnp.float32),
        grid_spec=grid_spec,
        compiler_params=pltpu.CompilerParams(dimension_semantics=("arbitrary",)),
    )(xa, *kp)


def _forward_resident(xa, kp, tm, single_buffer=True):
    batch, in_pad = xa.shape
    grid = (pl.cdiv(batch, tm),)

    def resident_spec(p):
        kwargs = {}
        if single_buffer and hasattr(pl, "Buffered"):
            # Constant index_map -> never re-fetched; the second pipeline buffer is dead VMEM.
            kwargs["pipeline_mode"] = pl.Buffered(1)
        return pl.BlockSpec(p.shape, lambda i, nd=p.ndim: (0,) * nd, **kwargs)

    grid_spec = pltpu.PrefetchScalarGridSpec(
        num_scalar_prefetch=0,
        grid=grid,
        in_specs=[pl.BlockSpec((tm, in_pad), lambda i: (i, 0))]
                 + [resident_spec(p) for p in kp],
        out_specs=pl.BlockSpec((tm, 1), lambda i: (i, 0)),
    )
    return pl.pallas_call(
        qnet_resident_kernel,
        out_shape=jax.ShapeDtypeStruct((batch, 1), jnp.float32),
        grid_spec=grid_spec,
        compiler_params=pltpu.CompilerParams(
            # "parallel" lets the batch axis shard across v7x's two TensorCores.
            dimension_semantics=("parallel",),
        ),
    )(xa, *kp)


def qnetwork_forward(x, a, kernel_params, *, tm=None):
    """x: (B, obs_dim) f32, a: (B, act_dim) f32 -> (B, 1) f32 Q-values."""
    batch = x.shape[0]
    in_pad = kernel_params[0].shape[0]

    # Merged + bf16 input on the wrapper side: one small-K MXU pass, no in-kernel casts,
    # and half the activation input DMA.
    xa = jnp.concatenate([x, a], axis=1)
    assert xa.shape[1] <= in_pad
    if xa.shape[1] < in_pad:
        xa = jnp.pad(xa, ((0, 0), (0, in_pad - xa.shape[1])))
    xa = xa.astype(jnp.bfloat16)

    if tm is None:
        tm = _default_tile_m(batch, _num_tensorcores_per_chip())

    if pl.cdiv(batch, tm) == 1:
        # Single tile: stream hidden weights (hides the ~3.6 MiB weight DMA behind compute).
        return _forward_stream(xa, kernel_params)
    try:
        return _forward_resident(xa, kernel_params, tm, single_buffer=True)
    except Exception:
        # Toolchain without pipeline_mode=pl.Buffered(1) support: fall back to default buffering.
        return _forward_resident(xa, kernel_params, tm, single_buffer=False)


# ----------------------------------------------------------------------------
# Parameter init / packing (mirrors layer_init: orthogonal weights, zero bias)
# ----------------------------------------------------------------------------

def init_params(key, obs_dim, n_actions):
    """Logical (unpadded, f32) params: list of (W, b), W in (in, out)."""
    dims = [obs_dim + n_actions] + [HIDDEN] * 8 + [1]
    stds = [2.0 ** 0.5] * 8 + [1.0]                 # last layer uses std=1.0
    keys = jax.random.split(key, N_LAYERS)
    params = []
    for i in range(N_LAYERS):
        w = jax.nn.initializers.orthogonal(scale=stds[i])(
            keys[i], (dims[i], dims[i + 1]), jnp.float32)
        b = jnp.zeros((1, dims[i + 1]), jnp.float32)
        params.append((w, b))
    return params


def prepare_kernel_params(params):
    """Pad hidden 400 -> 512, pad/stack hidden layers, cast matmul weights to bf16."""

    def pad2(arr, rows, cols):
        return jnp.pad(arr, ((0, rows - arr.shape[0]), (0, cols - arr.shape[1])))

    w1, b1 = params[0]
    in_pad = max(16, _round_up(w1.shape[0], 16))     # >= bf16 sublane tile of 16
    w1p = pad2(w1, in_pad, HIDDEN_PAD).astype(jnp.bfloat16)   # (in_pad, 512) bf16
    b1p = pad2(b1, 1, HIDDEN_PAD)                              # (1, 512) f32

    wstack = jnp.stack([pad2(w, HIDDEN_PAD, HIDDEN_PAD) for w, _ in params[1:-1]]
                       ).astype(jnp.bfloat16)                  # (7, 512, 512) bf16
    bstack = jnp.stack([pad2(b, 1, HIDDEN_PAD) for _, b in params[1:-1]])  # (7, 1, 512) f32

    w9, b9 = params[-1]
    w9_row = pad2(w9, HIDDEN_PAD, 1).T                         # (1, 512) f32
    return (w1p, b1p, wstack, bstack, w9_row, b9)


# ----------------------------------------------------------------------------
# References
# ----------------------------------------------------------------------------

def reference_forward_f32(x, a, params):
    """Plain-JAX f32 reference (exact module semantics)."""
    h = jnp.concatenate([x, a], axis=1)
    for i, (w, b) in enumerate(params):
        h = h @ w + b
        if i < len(params) - 1:
            h = jnp.maximum(h, 0.0)
    return h


def reference_forward_bf16(x, a, params):
    """Emulates the kernel's bf16-matmul / f32-accumulate arithmetic."""
    h = jnp.concatenate([x, a], axis=1).astype(jnp.bfloat16)
    for w, b in params[:-1]:
        acc = jnp.dot(h, w.astype(jnp.bfloat16), preferred_element_type=jnp.float32)
        h = jnp.maximum(acc + b, 0.0).astype(jnp.bfloat16)
    w9, b9 = params[-1]
    return h.astype(jnp.float32) @ w9 + b9


if __name__ == "__main__":
    key = jax.random.PRNGKey(0)
    k_p, k_x, k_a, k_x2, k_a2 = jax.random.split(key, 5)

    obs_dim, n_actions = 16, 4
    params = init_params(k_p, obs_dim, n_actions)
    kernel_params = prepare_kernel_params(params)

    # --- Path 1: single-tile call -> streaming kernel (weight DMA overlapped) ---
    batch1 = 8
    x = jax.random.normal(k_x, (batch1, obs_dim), jnp.float32)
    a = jax.nn.one_hot(jax.random.randint(k_a, (batch1,), 0, n_actions),
                       n_actions, dtype=jnp.float32)
    q = jax.block_until_ready(qnetwork_forward(x, a, kernel_params))
    assert q.shape == (batch1, 1)

    q_bf16 = reference_forward_bf16(x, a, params)
    q_f32 = reference_forward_f32(x, a, params)
    assert jnp.allclose(q, q_bf16, atol=2e-2, rtol=2e-2), (
        "stream kernel vs bf16 ref max |diff| = "
        f"{float(jnp.max(jnp.abs(q - q_bf16)))}")
    assert jnp.allclose(q, q_f32, atol=5e-2, rtol=5e-2), (
        "stream kernel vs f32 ref max |diff| = "
        f"{float(jnp.max(jnp.abs(q - q_f32)))}")

    # --- Path 2: multi-tile grid -> resident-weight kernel ("parallel" batch axis) ---
    batch2 = 48
    x2 = jax.random.normal(k_x2, (batch2, obs_dim), jnp.float32)
    a2 = jax.nn.one_hot(jax.random.randint(k_a2, (batch2,), 0, n_actions),
                        n_actions, dtype=jnp.float32)
    q2 = jax.block_until_ready(qnetwork_forward(x2, a2, kernel_params, tm=16))
    assert q2.shape == (batch2, 1)

    q2_bf16 = reference_forward_bf16(x2, a2, params)
    assert jnp.allclose(q2, q2_bf16, atol=2e-2, rtol=2e-2), (
        "resident kernel vs bf16 ref max |diff| = "
        f"{float(jnp.max(jnp.abs(q2 - q2_bf16)))}")

    print("KERNEL_OK")
</pallas_src>

<mosaic_0001>
module attributes {stable_mosaic.version = 11 : i64} {
  func.func @qnet_stream_kernel(%arg0: i32, %arg1: memref<8x32xbf16, #tpu.memory_space<vmem>>, %arg2: memref<32x512xbf16, #tpu.memory_space<vmem>>, %arg3: memref<1x512xf32, #tpu.memory_space<vmem>>, %arg4: memref<7x512x512xbf16, #tpu.memory_space<any>>, %arg5: memref<7x1x512xf32, #tpu.memory_space<vmem>>, %arg6: memref<1x512xf32, #tpu.memory_space<vmem>>, %arg7: memref<1x1xf32, #tpu.memory_space<vmem>>, %arg8: memref<8x1xf32, #tpu.memory_space<vmem>>, %arg9: memref<2x512x512xbf16, #tpu.memory_space<vmem>>, %arg10: memref<2x!tpu.dma_semaphore, #tpu.memory_space<semaphore_mem>>) attributes {dimension_semantics = [#tpu.dimension_semantics<arbitrary>], iteration_bounds = array<i64: 1>, scalar_prefetch = 0 : i64, scratch_operands = 2 : i64, tpu.core_type = #tpu.core_type<tc>, window_params = [{pipeline_mode = #tpu.pipeline_mode<synchronous>, transform_indices = @transform_0, window_bounds = array<i64: 8, 32>}, {pipeline_mode = #tpu.pipeline_mode<synchronous>, transform_indices = @transform_1, window_bounds = array<i64: 32, 512>}, {pipeline_mode = #tpu.pipeline_mode<synchronous>, transform_indices = @transform_2, window_bounds = array<i64: 1, 512>}, {}, {pipeline_mode = #tpu.pipeline_mode<synchronous>, transform_indices = @transform_4, window_bounds = array<i64: 7, 1, 512>}, {pipeline_mode = #tpu.pipeline_mode<synchronous>, transform_indices = @transform_5, window_bounds = array<i64: 1, 512>}, {pipeline_mode = #tpu.pipeline_mode<synchronous>, transform_indices = @transform_6, window_bounds = array<i64: 1, 1>}, {pipeline_mode = #tpu.pipeline_mode<synchronous>, transform_indices = @transform_7, window_bounds = array<i64: 8, 1>}]} {
    %c0_i32 = arith.constant 0 : i32
    %c0_i32_0 = arith.constant 0 : i32
    %c0_i32_1 = arith.constant 0 : i32
    %c0_i32_2 = arith.constant 0 : i32
    %c0_i32_3 = arith.constant 0 : i32
    %0 = tpu.memref_slice %arg4[%c0_i32, %c0_i32_2, %c0_i32_3] : memref<7x512x512xbf16, #tpu.memory_space<any>> -> memref<1x512x512xbf16, #tpu.memory_space<any>>
    %1 = tpu.memref_squeeze %0 : memref<1x512x512xbf16, #tpu.memory_space<any>> -> memref<512x512xbf16, #tpu.memory_space<any>>
    %c0_i32_4 = arith.constant 0 : i32
    %c0_i32_5 = arith.constant 0 : i32
    %2 = tpu.memref_slice %arg9[%c0_i32_0, %c0_i32_4, %c0_i32_5] : memref<2x512x512xbf16, #tpu.memory_space<vmem>> -> memref<1x512x512xbf16, #tpu.memory_space<vmem>>
    %3 = tpu.memref_squeeze %2 : memref<1x512x512xbf16, #tpu.memory_space<vmem>> -> memref<512x512xbf16, #tpu.memory_space<vmem>>
    %4 = tpu.memref_slice %arg10[%c0_i32_1] : memref<2x!tpu.dma_semaphore, #tpu.memory_space<semaphore_mem>> -> memref<1x!tpu.dma_semaphore, #tpu.memory_space<semaphore_mem>>
    %5 = tpu.memref_squeeze %4 : memref<1x!tpu.dma_semaphore, #tpu.memory_space<semaphore_mem>> -> memref<!tpu.dma_semaphore, #tpu.memory_space<semaphore_mem>>
    tpu.enqueue_dma source(%1 : memref<512x512xbf16, #tpu.memory_space<any>>) target(%3 : memref<512x512xbf16, #tpu.memory_space<vmem>>) target_semaphore(%5 : memref<!tpu.dma_semaphore, #tpu.memory_space<semaphore_mem>>)
    %c0 = arith.constant 0 : index
    %c0_6 = arith.constant 0 : index
    %6 = vector.load %arg1[%c0, %c0_6] : memref<8x32xbf16, #tpu.memory_space<vmem>>, vector<8x32xbf16>
    %c0_7 = arith.constant 0 : index
    %c0_8 = arith.constant 0 : index
    %7 = vector.load %arg2[%c0_7, %c0_8] : memref<32x512xbf16, #tpu.memory_space<vmem>>, vector<32x512xbf16>
    %cst = arith.constant dense<0.000000e+00> : vector<8x512xf32>
    %8 = tpu.matmul %6, %7, %cst {dimension_numbers = #tpu.dot_dimension_numbers<[1], [0], [0], [1], [0, 0, 1, 1], [], []>} : vector<8x32xbf16>, vector<32x512xbf16>, vector<8x512xf32> -> vector<8x512xf32>
    %c0_9 = arith.constant 0 : index
    %c0_10 = arith.constant 0 : index
    %9 = vector.load %arg3[%c0_9, %c0_10] : memref<1x512xf32, #tpu.memory_space<vmem>>, vector<1x512xf32>
    %10 = vector.broadcast %9 : vector<1x512xf32> to vector<8x512xf32>
    %11 = arith.addf %8, %10 : vector<8x512xf32>
    %cst_11 = arith.constant 0.000000e+00 : f32
    %12 = vector.broadcast %cst_11 : f32 to vector<8x512xf32>
    %13 = arith.maximumf %11, %12 : vector<8x512xf32>
    %14 = arith.truncf %13 : vector<8x512xf32> to vector<8x512xbf16>
    %c0_i32_12 = arith.constant 0 : i32
    %c0_i32_13 = arith.constant 0 : i32
    %c0_i32_14 = arith.constant 0 : i32
    %c0_i32_15 = arith.constant 0 : i32
    %c0_i32_16 = arith.constant 0 : i32
    %15 = tpu.memref_slice %arg4[%c0_i32_12, %c0_i32_15, %c0_i32_16] : memref<7x512x512xbf16, #tpu.memory_space<any>> -> memref<1x512x512xbf16, #tpu.memory_space<any>>
    %16 = tpu.memref_squeeze %15 : memref<1x512x512xbf16, #tpu.memory_space<any>> -> memref<512x512xbf16, #tpu.memory_space<any>>
    %c0_i32_17 = arith.constant 0 : i32
    %c0_i32_18 = arith.constant 0 : i32
    %17 = tpu.memref_slice %arg9[%c0_i32_13, %c0_i32_17, %c0_i32_18] : memref<2x512x512xbf16, #tpu.memory_space<vmem>> -> memref<1x512x512xbf16, #tpu.memory_space<vmem>>
    %18 = tpu.memref_squeeze %17 : memref<1x512x512xbf16, #tpu.memory_space<vmem>> -> memref<512x512xbf16, #tpu.memory_space<vmem>>
    %19 = tpu.memref_slice %arg10[%c0_i32_14] : memref<2x!tpu.dma_semaphore, #tpu.memory_space<semaphore_mem>> -> memref<1x!tpu.dma_semaphore, #tpu.memory_space<semaphore_mem>>
    %20 = tpu.memref_squeeze %19 : memref<1x!tpu.dma_semaphore, #tpu.memory_space<semaphore_mem>> -> memref<!tpu.dma_semaphore, #tpu.memory_space<semaphore_mem>>
    tpu.wait_dma2 semaphore(%20 : memref<!tpu.dma_semaphore, #tpu.memory_space<semaphore_mem>>) src(%16 : memref<512x512xbf16, #tpu.memory_space<any>>) dst(%18 : memref<512x512xbf16, #tpu.memory_space<vmem>>)
    %c1_i32 = arith.constant 1 : i32
    %c1_i32_19 = arith.constant 1 : i32
    %c1_i32_20 = arith.constant 1 : i32
    %c0_i32_21 = arith.constant 0 : i32
    %c0_i32_22 = arith.constant 0 : i32
    %21 = tpu.memref_slice %arg4[%c1_i32, %c0_i32_21, %c0_i32_22] : memref<7x512x512xbf16, #tpu.memory_space<any>> -> memref<1x512x512xbf16, #tpu.memory_space<any>>
    %22 = tpu.memref_squeeze %21 : memref<1x512x512xbf16, #tpu.memory_space<any>> -> memref<512x512xbf16, #tpu.memory_space<any>>
    %c0_i32_23 = arith.constant 0 : i32
    %c0_i32_24 = arith.constant 0 : i32
    %23 = tpu.memref_slice %arg9[%c1_i32_19, %c0_i32_23, %c0_i32_24] : memref<2x512x512xbf16, #tpu.memory_space<vmem>> -> memref<1x512x512xbf16, #tpu.memory_space<vmem>>
    %24 = tpu.memref_squeeze %23 : memref<1x512x512xbf16, #tpu.memory_space<vmem>> -> memref<512x512xbf16, #tpu.memory_space<vmem>>
    %25 = tpu.memref_slice %arg10[%c1_i32_20] : memref<2x!tpu.dma_semaphore, #tpu.memory_space<semaphore_mem>> -> memref<1x!tpu.dma_semaphore, #tpu.memory_space<semaphore_mem>>
    %26 = tpu.memref_squeeze %25 : memref<1x!tpu.dma_semaphore, #tpu.memory_space<semaphore_mem>> -> memref<!tpu.dma_semaphore, #tpu.memory_space<semaphore_mem>>
    tpu.enqueue_dma source(%22 : memref<512x512xbf16, #tpu.memory_space<any>>) target(%24 : memref<512x512xbf16, #tpu.memory_space<vmem>>) target_semaphore(%26 : memref<!tpu.dma_semaphore, #tpu.memory_space<semaphore_mem>>)
    %c0_25 = arith.constant 0 : index
    %c0_26 = arith.constant 0 : index
    %c0_27 = arith.constant 0 : index
    %27 = vector.load %arg9[%c0_25, %c0_26, %c0_27] : memref<2x512x512xbf16, #tpu.memory_space<vmem>>, vector<1x512x512xbf16>
    %28 = vector.shape_cast %27 : vector<1x512x512xbf16> to vector<512x512xbf16>
    %cst_28 = arith.constant dense<0.000000e+00> : vector<8x512xf32>
    %29 = tpu.matmul %14, %28, %cst_28 {dimension_numbers = #tpu.dot_dimension_numbers<[1], [0], [0], [1], [0, 0, 1, 1], [], []>} : vector<8x512xbf16>, vector<512x512xbf16>, vector<8x512xf32> -> vector<8x512xf32>
    %c0_29 = arith.constant 0 : index
    %c0_30 = arith.constant 0 : index
    %c0_31 = arith.constant 0 : index
    %30 = vector.load %arg5[%c0_29, %c0_30, %c0_31] : memref<7x1x512xf32, #tpu.memory_space<vmem>>, vector<1x1x512xf32>
    %31 = vector.shape_cast %30 : vector<1x1x512xf32> to vector<1x512xf32>
    %32 = vector.broadcast %31 : vector<1x512xf32> to vector<8x512xf32>
    %33 = arith.addf %29, %32 : vector<8x512xf32>
    %cst_32 = arith.constant 0.000000e+00 : f32
    %34 = vector.broadcast %cst_32 : f32 to vector<8x512xf32>
    %35 = arith.maximumf %33, %34 : vector<8x512xf32>
    %36 = arith.truncf %35 : vector<8x512xf32> to vector<8x512xbf16>
    %c1_i32_33 = arith.constant 1 : i32
    %c1_i32_34 = arith.constant 1 : i32
    %c1_i32_35 = arith.constant 1 : i32
    %c0_i32_36 = arith.constant 0 : i32
    %c0_i32_37 = arith.constant 0 : i32
    %37 = tpu.memref_slice %arg4[%c1_i32_33, %c0_i32_36, %c0_i32_37] : memref<7x512x512xbf16, #tpu.memory_space<any>> -> memref<1x512x512xbf16, #tpu.memory_space<any>>
    %38 = tpu.memref_squeeze %37 : memref<1x512x512xbf16, #tpu.memory_space<any>> -> memref<512x512xbf16, #tpu.memory_space<any>>
    %c0_i32_38 = arith.constant 0 : i32
    %c0_i32_39 = arith.constant 0 : i32
    %39 = tpu.memref_slice %arg9[%c1_i32_34, %c0_i32_38, %c0_i32_39] : memref<2x512x512xbf16, #tpu.memory_space<vmem>> -> memref<1x512x512xbf16, #tpu.memory_space<vmem>>
    %40 = tpu.memref_squeeze %39 : memref<1x512x512xbf16, #tpu.memory_space<vmem>> -> memref<512x512xbf16, #tpu.memory_space<vmem>>
    %41 = tpu.memref_slice %arg10[%c1_i32_35] : memref<2x!tpu.dma_semaphore, #tpu.memory_space<semaphore_mem>> -> memref<1x!tpu.dma_semaphore, #tpu.memory_space<semaphore_mem>>
    %42 = tpu.memref_squeeze %41 : memref<1x!tpu.dma_semaphore, #tpu.memory_space<semaphore_mem>> -> memref<!tpu.dma_semaphore, #tpu.memory_space<semaphore_mem>>
    tpu.wait_dma2 semaphore(%42 : memref<!tpu.dma_semaphore, #tpu.memory_space<semaphore_mem>>) src(%38 : memref<512x512xbf16, #tpu.memory_space<any>>) dst(%40 : memref<512x512xbf16, #tpu.memory_space<vmem>>)
    %c2_i32 = arith.constant 2 : i32
    %c0_i32_40 = arith.constant 0 : i32
    %c0_i32_41 = arith.constant 0 : i32
    %c0_i32_42 = arith.constant 0 : i32
    %c0_i32_43 = arith.constant 0 : i32
    %43 = tpu.memref_slice %arg4[%c2_i32, %c0_i32_42, %c0_i32_43] : memref<7x512x512xbf16, #tpu.memory_space<any>> -> memref<1x512x512xbf16, #tpu.memory_space<any>>
    %44 = tpu.memref_squeeze %43 : memref<1x512x512xbf16, #tpu.memory_space<any>> -> memref<512x512xbf16, #tpu.memory_space<any>>
    %c0_i32_44 = arith.constant 0 : i32
    %c0_i32_45 = arith.constant 0 : i32
    %45 = tpu.memref_slice %arg9[%c0_i32_40, %c0_i32_44, %c0_i32_45] : memref<2x512x512xbf16, #tpu.memory_space<vmem>> -> memref<1x512x512xbf16, #tpu.memory_space<vmem>>
    %46 = tpu.memref_squeeze %45 : memref<1x512x512xbf16, #tpu.memory_space<vmem>> -> memref<512x512xbf16, #tpu.memory_space<vmem>>
    %47 = tpu.memref_slice %arg10[%c0_i32_41] : memref<2x!tpu.dma_semaphore, #tpu.memory_space<semaphore_mem>> -> memref<1x!tpu.dma_semaphore, #tpu.memory_space<semaphore_mem>>
    %48 = tpu.memref_squeeze %47 : memref<1x!tpu.dma_semaphore, #tpu.memory_space<semaphore_mem>> -> memref<!tpu.dma_semaphore, #tpu.memory_space<semaphore_mem>>
    tpu.enqueue_dma source(%44 : memref<512x512xbf16, #tpu.memory_space<any>>) target(%46 : memref<512x512xbf16, #tpu.memory_space<vmem>>) target_semaphore(%48 : memref<!tpu.dma_semaphore, #tpu.memory_space<semaphore_mem>>)
    %c1 = arith.constant 1 : index
    %c0_46 = arith.constant 0 : index
    %c0_47 = arith.constant 0 : index
    %49 = vector.load %arg9[%c1, %c0_46, %c0_47] : memref<2x512x512xbf16, #tpu.memory_space<vmem>>, vector<1x512x512xbf16>
    %50 = vector.shape_cast %49 : vector<1x512x512xbf16> to vector<512x512xbf16>
    %cst_48 = arith.constant dense<0.000000e+00> : vector<8x512xf32>
    %51 = tpu.matmul %36, %50, %cst_48 {dimension_numbers = #tpu.dot_dimension_numbers<[1], [0], [0], [1], [0, 0, 1, 1], [], []>} : vector<8x512xbf16>, vector<512x512xbf16>, vector<8x512xf32> -> vector<8x512xf32>
    %c1_49 = arith.constant 1 : index
    %c0_50 = arith.constant 0 : index
    %c0_51 = arith.constant 0 : index
    %52 = vector.load %arg5[%c1_49, %c0_50, %c0_51] : memref<7x1x512xf32, #tpu.memory_space<vmem>>, vector<1x1x512xf32>
    %53 = vector.shape_cast %52 : vector<1x1x512xf32> to vector<1x512xf32>
    %54 = vector.broadcast %53 : vector<1x512xf32> to vector<8x512xf32>
    %55 = arith.addf %51, %54 : vector<8x512xf32>
    %cst_52 = arith.constant 0.000000e+00 : f32
    %56 = vector.broadcast %cst_52 : f32 to vector<8x512xf32>
    %57 = arith.maximumf %55, %56 : vector<8x512xf32>
    %58 = arith.truncf %57 : vector<8x512xf32> to vector<8x512xbf16>
    %c2_i32_53 = arith.constant 2 : i32
    %c0_i32_54 = arith.constant 0 : i32
    %c0_i32_55 = arith.constant 0 : i32
    %c0_i32_56 = arith.constant 0 : i32
    %c0_i32_57 = arith.constant 0 : i32
    %59 = tpu.memref_slice %arg4[%c2_i32_53, %c0_i32_56, %c0_i32_57] : memref<7x512x512xbf16, #tpu.memory_space<any>> -> memref<1x512x512xbf16, #tpu.memory_space<any>>
    %60 = tpu.memref_squeeze %59 : memref<1x512x512xbf16, #tpu.memory_space<any>> -> memref<512x512xbf16, #tpu.memory_space<any>>
    %c0_i32_58 = arith.constant 0 : i32
    %c0_i32_59 = arith.constant 0 : i32
    %61 = tpu.memref_slice %arg9[%c0_i32_54, %c0_i32_58, %c0_i32_59] : memref<2x512x512xbf16, #tpu.memory_space<vmem>> -> memref<1x512x512xbf16, #tpu.memory_space<vmem>>
    %62 = tpu.memref_squeeze %61 : memref<1x512x512xbf16, #tpu.memory_space<vmem>> -> memref<512x512xbf16, #tpu.memory_space<vmem>>
    %63 = tpu.memref_slice %arg10[%c0_i32_55] : memref<2x!tpu.dma_semaphore, #tpu.memory_space<semaphore_mem>> -> memref<1x!tpu.dma_semaphore, #tpu.memory_space<semaphore_mem>>
    %64 = tpu.memref_squeeze %63 : memref<1x!tpu.dma_semaphore, #tpu.memory_space<semaphore_mem>> -> memref<!tpu.dma_semaphore, #tpu.memory_space<semaphore_mem>>
    tpu.wait_dma2 semaphore(%64 : memref<!tpu.dma_semaphore, #tpu.memory_space<semaphore_mem>>) src(%60 : memref<512x512xbf16, #tpu.memory_space<any>>) dst(%62 : memref<512x512xbf16, #tpu.memory_space<vmem>>)
    %c3_i32 = arith.constant 3 : i32
    %c1_i32_60 = arith.constant 1 : i32
    %c1_i32_61 = arith.constant 1 : i32
    %c0_i32_62 = arith.constant 0 : i32
    %c0_i32_63 = arith.constant 0 : i32
    %65 = tpu.memref_slice %arg4[%c3_i32, %c0_i32_62, %c0_i32_63] : memref<7x512x512xbf16, #tpu.memory_space<any>> -> memref<1x512x512xbf16, #tpu.memory_space<any>>
    %66 = tpu.memref_squeeze %65 : memref<1x512x512xbf16, #tpu.memory_space<any>> -> memref<512x512xbf16, #tpu.memory_space<any>>
    %c0_i32_64 = arith.constant 0 : i32
    %c0_i32_65 = arith.constant 0 : i32
    %67 = tpu.memref_slice %arg9[%c1_i32_60, %c0_i32_64, %c0_i32_65] : memref<2x512x512xbf16, #tpu.memory_space<vmem>> -> memref<1x512x512xbf16, #tpu.memory_space<vmem>>
    %68 = tpu.memref_squeeze %67 : memref<1x512x512xbf16, #tpu.memory_space<vmem>> -> memref<512x512xbf16, #tpu.memory_space<vmem>>
    %69 = tpu.memref_slice %arg10[%c1_i32_61] : memref<2x!tpu.dma_semaphore, #tpu.memory_space<semaphore_mem>> -> memref<1x!tpu.dma_semaphore, #tpu.memory_space<semaphore_mem>>
    %70 = tpu.memref_squeeze %69 : memref<1x!tpu.dma_semaphore, #tpu.memory_space<semaphore_mem>> -> memref<!tpu.dma_semaphore, #tpu.memory_space<semaphore_mem>>
    tpu.enqueue_dma source(%66 : memref<512x512xbf16, #tpu.memory_space<any>>) target(%68 : memref<512x512xbf16, #tpu.memory_space<vmem>>) target_semaphore(%70 : memref<!tpu.dma_semaphore, #tpu.memory_space<semaphore_mem>>)
    %c0_66 = arith.constant 0 : index
    %c0_67 = arith.constant 0 : index
    %c0_68 = arith.constant 0 : index
    %71 = vector.load %arg9[%c0_66, %c0_67, %c0_68] : memref<2x512x512xbf16, #tpu.memory_space<vmem>>, vector<1x512x512xbf16>
    %72 = vector.shape_cast %71 : vector<1x512x512xbf16> to vector<512x512xbf16>
    %cst_69 = arith.constant dense<0.000000e+00> : vector<8x512xf32>
    %73 = tpu.matmul %58, %72, %cst_69 {dimension_numbers = #tpu.dot_dimension_numbers<[1], [0], [0], [1], [0, 0, 1, 1], [], []>} : vector<8x512xbf16>, vector<512x512xbf16>, vector<8x512xf32> -> vector<8x512xf32>
    %c2 = arith.constant 2 : index
    %c0_70 = arith.constant 0 : index
    %c0_71 = arith.constant 0 : index
    %74 = vector.load %arg5[%c2, %c0_70, %c0_71] : memref<7x1x512xf32, #tpu.memory_space<vmem>>, vector<1x1x512xf32>
    %75 = vector.shape_cast %74 : vector<1x1x512xf32> to vector<1x512xf32>
    %76 = vector.broadcast %75 : vector<1x512xf32> to vector<8x512xf32>
    %77 = arith.addf %73, %76 : vector<8x512xf32>
    %cst_72 = arith.constant 0.000000e+00 : f32
    %78 = vector.broadcast %cst_72 : f32 to vector<8x512xf32>
    %79 = arith.maximumf %77, %78 : vector<8x512xf32>
    %80 = arith.truncf %79 : vector<8x512xf32> to vector<8x512xbf16>
    %c3_i32_73 = arith.constant 3 : i32
    %c1_i32_74 = arith.constant 1 : i32
    %c1_i32_75 = arith.constant 1 : i32
    %c0_i32_76 = arith.constant 0 : i32
    %c0_i32_77 = arith.constant 0 : i32
    %81 = tpu.memref_slice %arg4[%c3_i32_73, %c0_i32_76, %c0_i32_77] : memref<7x512x512xbf16, #tpu.memory_space<any>> -> memref<1x512x512xbf16, #tpu.memory_space<any>>
    %82 = tpu.memref_squeeze %81 : memref<1x512x512xbf16, #tpu.memory_space<any>> -> memref<512x512xbf16, #tpu.memory_space<any>>
    %c0_i32_78 = arith.constant 0 : i32
    %c0_i32_79 = arith.constant 0 : i32
    %83 = tpu.memref_slice %arg9[%c1_i32_74, %c0_i32_78, %c0_i32_79] : memref<2x512x512xbf16, #tpu.memory_space<vmem>> -> memref<1x512x512xbf16, #tpu.memory_space<vmem>>
    %84 = tpu.memref_squeeze %83 : memref<1x512x512xbf16, #tpu.memory_space<vmem>> -> memref<512x512xbf16, #tpu.memory_space<vmem>>
    %85 = tpu.memref_slice %arg10[%c1_i32_75] : memref<2x!tpu.dma_semaphore, #tpu.memory_space<semaphore_mem>> -> memref<1x!tpu.dma_semaphore, #tpu.memory_space<semaphore_mem>>
    %86 = tpu.memref_squeeze %85 : memref<1x!tpu.dma_semaphore, #tpu.memory_space<semaphore_mem>> -> memref<!tpu.dma_semaphore, #tpu.memory_space<semaphore_mem>>
    tpu.wait_dma2 semaphore(%86 : memref<!tpu.dma_semaphore, #tpu.memory_space<semaphore_mem>>) src(%82 : memref<512x512xbf16, #tpu.memory_space<any>>) dst(%84 : memref<512x512xbf16, #tpu.memory_space<vmem>>)
    %c4_i32 = arith.constant 4 : i32
    %c0_i32_80 = arith.constant 0 : i32
    %c0_i32_81 = arith.constant 0 : i32
    %c0_i32_82 = arith.constant 0 : i32
    %c0_i32_83 = arith.constant 0 : i32
    %87 = tpu.memref_slice %arg4[%c4_i32, %c0_i32_82, %c0_i32_83] : memref<7x512x512xbf16, #tpu.memory_space<any>> -> memref<1x512x512xbf16, #tpu.memory_space<any>>
    %88 = tpu.memref_squeeze %87 : memref<1x512x512xbf16, #tpu.memory_space<any>> -> memref<512x512xbf16, #tpu.memory_space<any>>
    %c0_i32_84 = arith.constant 0 : i32
    %c0_i32_85 = arith.constant 0 : i32
    %89 = tpu.memref_slice %arg9[%c0_i32_80, %c0_i32_84, %c0_i32_85] : memref<2x512x512xbf16, #tpu.memory_space<vmem>> -> memref<1x512x512xbf16, #tpu.memory_space<vmem>>
    %90 = tpu.memref_squeeze %89 : memref<1x512x512xbf16, #tpu.memory_space<vmem>> -> memref<512x512xbf16, #tpu.memory_space<vmem>>
    %91 = tpu.memref_slice %arg10[%c0_i32_81] : memref<2x!tpu.dma_semaphore, #tpu.memory_space<semaphore_mem>> -> memref<1x!tpu.dma_semaphore, #tpu.memory_space<semaphore_mem>>
    %92 = tpu.memref_squeeze %91 : memref<1x!tpu.dma_semaphore, #tpu.memory_space<semaphore_mem>> -> memref<!tpu.dma_semaphore, #tpu.memory_space<semaphore_mem>>
    tpu.enqueue_dma source(%88 : memref<512x512xbf16, #tpu.memory_space<any>>) target(%90 : memref<512x512xbf16, #tpu.memory_space<vmem>>) target_semaphore(%92 : memref<!tpu.dma_semaphore, #tpu.memory_space<semaphore_mem>>)
    %c1_86 = arith.constant 1 : index
    %c0_87 = arith.constant 0 : index
    %c0_88 = arith.constant 0 : index
    %93 = vector.load %arg9[%c1_86, %c0_87, %c0_88] : memref<2x512x512xbf16, #tpu.memory_space<vmem>>, vector<1x512x512xbf16>
    %94 = vector.shape_cast %93 : vector<1x512x512xbf16> to vector<512x512xbf16>
    %cst_89 = arith.constant dense<0.000000e+00> : vector<8x512xf32>
    %95 = tpu.matmul %80, %94, %cst_89 {dimension_numbers = #tpu.dot_dimension_numbers<[1], [0], [0], [1], [0, 0, 1, 1], [], []>} : vector<8x512xbf16>, vector<512x512xbf16>, vector<8x512xf32> -> vector<8x512xf32>
    %c3 = arith.constant 3 : index
    %c0_90 = arith.constant 0 : index
    %c0_91 = arith.constant 0 : index
    %96 = vector.load %arg5[%c3, %c0_90, %c0_91] : memref<7x1x512xf32, #tpu.memory_space<vmem>>, vector<1x1x512xf32>
    %97 = vector.shape_cast %96 : vector<1x1x512xf32> to vector<1x512xf32>
    %98 = vector.broadcast %97 : vector<1x512xf32> to vector<8x512xf32>
    %99 = arith.addf %95, %98 : vector<8x512xf32>
    %cst_92 = arith.constant 0.000000e+00 : f32
    %100 = vector.broadcast %cst_92 : f32 to vector<8x512xf32>
    %101 = arith.maximumf %99, %100 : vector<8x512xf32>
    %102 = arith.truncf %101 : vector<8x512xf32> to vector<8x512xbf16>
    %c4_i32_93 = arith.constant 4 : i32
    %c0_i32_94 = arith.constant 0 : i32
    %c0_i32_95 = arith.constant 0 : i32
    %c0_i32_96 = arith.constant 0 : i32
    %c0_i32_97 = arith.constant 0 : i32
    %103 = tpu.memref_slice %arg4[%c4_i32_93, %c0_i32_96, %c0_i32_97] : memref<7x512x512xbf16, #tpu.memory_space<any>> -> memref<1x512x512xbf16, #tpu.memory_space<any>>
    %104 = tpu.memref_squeeze %103 : memref<1x512x512xbf16, #tpu.memory_space<any>> -> memref<512x512xbf16, #tpu.memory_space<any>>
    %c0_i32_98 = arith.constant 0 : i32
    %c0_i32_99 = arith.constant 0 : i32
    %105 = tpu.memref_slice %arg9[%c0_i32_94, %c0_i32_98, %c0_i32_99] : memref<2x512x512xbf16, #tpu.memory_space<vmem>> -> memref<1x512x512xbf16, #tpu.memory_space<vmem>>
    %106 = tpu.memref_squeeze %105 : memref<1x512x512xbf16, #tpu.memory_space<vmem>> -> memref<512x512xbf16, #tpu.memory_space<vmem>>
    %107 = tpu.memref_slice %arg10[%c0_i32_95] : memref<2x!tpu.dma_semaphore, #tpu.memory_space<semaphore_mem>> -> memref<1x!tpu.dma_semaphore, #tpu.memory_space<semaphore_mem>>
    %108 = tpu.memref_squeeze %107 : memref<1x!tpu.dma_semaphore, #tpu.memory_space<semaphore_mem>> -> memref<!tpu.dma_semaphore, #tpu.memory_space<semaphore_mem>>
    tpu.wait_dma2 semaphore(%108 : memref<!tpu.dma_semaphore, #tpu.memory_space<semaphore_mem>>) src(%104 : memref<512x512xbf16, #tpu.memory_space<any>>) dst(%106 : memref<512x512xbf16, #tpu.memory_space<vmem>>)
    %c5_i32 = arith.constant 5 : i32
    %c1_i32_100 = arith.constant 1 : i32
    %c1_i32_101 = arith.constant 1 : i32
    %c0_i32_102 = arith.constant 0 : i32
    %c0_i32_103 = arith.constant 0 : i32
    %109 = tpu.memref_slice %arg4[%c5_i32, %c0_i32_102, %c0_i32_103] : memref<7x512x512xbf16, #tpu.memory_space<any>> -> memref<1x512x512xbf16, #tpu.memory_space<any>>
    %110 = tpu.memref_squeeze %109 : memref<1x512x512xbf16, #tpu.memory_space<any>> -> memref<512x512xbf16, #tpu.memory_space<any>>
    %c0_i32_104 = arith.constant 0 : i32
    %c0_i32_105 = arith.constant 0 : i32
    %111 = tpu.memref_slice %arg9[%c1_i32_100, %c0_i32_104, %c0_i32_105] : memref<2x512x512xbf16, #tpu.memory_space<vmem>> -> memref<1x512x512xbf16, #tpu.memory_space<vmem>>
    %112 = tpu.memref_squeeze %111 : memref<1x512x512xbf16, #tpu.memory_space<vmem>> -> memref<512x512xbf16, #tpu.memory_space<vmem>>
    %113 = tpu.memref_slice %arg10[%c1_i32_101] : memref<2x!tpu.dma_semaphore, #tpu.memory_space<semaphore_mem>> -> memref<1x!tpu.dma_semaphore, #tpu.memory_space<semaphore_mem>>
    %114 = tpu.memref_squeeze %113 : memref<1x!tpu.dma_semaphore, #tpu.memory_space<semaphore_mem>> -> memref<!tpu.dma_semaphore, #tpu.memory_space<semaphore_mem>>
    tpu.enqueue_dma source(%110 : memref<512x512xbf16, #tpu.memory_space<any>>) target(%112 : memref<512x512xbf16, #tpu.memory_space<vmem>>) target_semaphore(%114 : memref<!tpu.dma_semaphore, #tpu.memory_space<semaphore_mem>>)
    %c0_106 = arith.constant 0 : index
    %c0_107 = arith.constant 0 : index
    %c0_108 = arith.constant 0 : index
    %115 = vector.load %arg9[%c0_106, %c0_107, %c0_108] : memref<2x512x512xbf16, #tpu.memory_space<vmem>>, vector<1x512x512xbf16>
    %116 = vector.shape_cast %115 : vector<1x512x512xbf16> to vector<512x512xbf16>
    %cst_109 = arith.constant dense<0.000000e+00> : vector<8x512xf32>
    %117 = tpu.matmul %102, %116, %cst_109 {dimension_numbers = #tpu.dot_dimension_numbers<[1], [0], [0], [1], [0, 0, 1, 1], [], []>} : vector<8x512xbf16>, vector<512x512xbf16>, vector<8x512xf32> -> vector<8x512xf32>
    %c4 = arith.constant 4 : index
    %c0_110 = arith.constant 0 : index
    %c0_111 = arith.constant 0 : index
    %118 = vector.load %arg5[%c4, %c0_110, %c0_111] : memref<7x1x512xf32, #tpu.memory_space<vmem>>, vector<1x1x512xf32>
    %119 = vector.shape_cast %118 : vector<1x1x512xf32> to vector<1x512xf32>
    %120 = vector.broadcast %119 : vector<1x512xf32> to vector<8x512xf32>
    %121 = arith.addf %117, %120 : vector<8x512xf32>
    %cst_112 = arith.constant 0.000000e+00 : f32
    %122 = vector.broadcast %cst_112 : f32 to vector<8x512xf32>
    %123 = arith.maximumf %121, %122 : vector<8x512xf32>
    %124 = arith.truncf %123 : vector<8x512xf32> to vector<8x512xbf16>
    %c5_i32_113 = arith.constant 5 : i32
    %c1_i32_114 = arith.constant 1 : i32
    %c1_i32_115 = arith.constant 1 : i32
    %c0_i32_116 = arith.constant 0 : i32
    %c0_i32_117 = arith.constant 0 : i32
    %125 = tpu.memref_slice %arg4[%c5_i32_113, %c0_i32_116, %c0_i32_117] : memref<7x512x512xbf16, #tpu.memory_space<any>> -> memref<1x512x512xbf16, #tpu.memory_space<any>>
    %126 = tpu.memref_squeeze %125 : memref<1x512x512xbf16, #tpu.memory_space<any>> -> memref<512x512xbf16, #tpu.memory_space<any>>
    %c0_i32_118 = arith.constant 0 : i32
    %c0_i32_119 = arith.constant 0 : i32
    %127 = tpu.memref_slice %arg9[%c1_i32_114, %c0_i32_118, %c0_i32_119] : memref<2x512x512xbf16, #tpu.memory_space<vmem>> -> memref<1x512x512xbf16, #tpu.memory_space<vmem>>
    %128 = tpu.memref_squeeze %127 : memref<1x512x512xbf16, #tpu.memory_space<vmem>> -> memref<512x512xbf16, #tpu.memory_space<vmem>>
    %129 = tpu.memref_slice %arg10[%c1_i32_115] : memref<2x!tpu.dma_semaphore, #tpu.memory_space<semaphore_mem>> -> memref<1x!tpu.dma_semaphore, #tpu.memory_space<semaphore_mem>>
    %130 = tpu.memref_squeeze %129 : memref<1x!tpu.dma_semaphore, #tpu.memory_space<semaphore_mem>> -> memref<!tpu.dma_semaphore, #tpu.memory_space<semaphore_mem>>
    tpu.wait_dma2 semaphore(%130 : memref<!tpu.dma_semaphore, #tpu.memory_space<semaphore_mem>>) src(%126 : memref<512x512xbf16, #tpu.memory_space<any>>) dst(%128 : memref<512x512xbf16, #tpu.memory_space<vmem>>)
    %c6_i32 = arith.constant 6 : i32
    %c0_i32_120 = arith.constant 0 : i32
    %c0_i32_121 = arith.constant 0 : i32
    %c0_i32_122 = arith.constant 0 : i32
    %c0_i32_123 = arith.constant 0 : i32
    %131 = tpu.memref_slice %arg4[%c6_i32, %c0_i32_122, %c0_i32_123] : memref<7x512x512xbf16, #tpu.memory_space<any>> -> memref<1x512x512xbf16, #tpu.memory_space<any>>
    %132 = tpu.memref_squeeze %131 : memref<1x512x512xbf16, #tpu.memory_space<any>> -> memref<512x512xbf16, #tpu.memory_space<any>>
    %c0_i32_124 = arith.constant 0 : i32
    %c0_i32_125 = arith.constant 0 : i32
    %133 = tpu.memref_slice %arg9[%c0_i32_120, %c0_i32_124, %c0_i32_125] : memref<2x512x512xbf16, #tpu.memory_space<vmem>> -> memref<1x512x512xbf16, #tpu.memory_space<vmem>>
    %134 = tpu.memref_squeeze %133 : memref<1x512x512xbf16, #tpu.memory_space<vmem>> -> memref<512x512xbf16, #tpu.memory_space<vmem>>
    %135 = tpu.memref_slice %arg10[%c0_i32_121] : memref<2x!tpu.dma_semaphore, #tpu.memory_space<semaphore_mem>> -> memref<1x!tpu.dma_semaphore, #tpu.memory_space<semaphore_mem>>
    %136 = tpu.memref_squeeze %135 : memref<1x!tpu.dma_semaphore, #tpu.memory_space<semaphore_mem>> -> memref<!tpu.dma_semaphore, #tpu.memory_space<semaphore_mem>>
    tpu.enqueue_dma source(%132 : memref<512x512xbf16, #tpu.memory_space<any>>) target(%134 : memref<512x512xbf16, #tpu.memory_space<vmem>>) target_semaphore(%136 : memref<!tpu.dma_semaphore, #tpu.memory_space<semaphore_mem>>)
    %c1_126 = arith.constant 1 : index
    %c0_127 = arith.constant 0 : index
    %c0_128 = arith.constant 0 : index
    %137 = vector.load %arg9[%c1_126, %c0_127, %c0_128] : memref<2x512x512xbf16, #tpu.memory_space<vmem>>, vector<1x512x512xbf16>
    %138 = vector.shape_cast %137 : vector<1x512x512xbf16> to vector<512x512xbf16>
    %cst_129 = arith.constant dense<0.000000e+00> : vector<8x512xf32>
    %139 = tpu.matmul %124, %138, %cst_129 {dimension_numbers = #tpu.dot_dimension_numbers<[1], [0], [0], [1], [0, 0, 1, 1], [], []>} : vector<8x512xbf16>, vector<512x512xbf16>, vector<8x512xf32> -> vector<8x512xf32>
    %c5 = arith.constant 5 : index
    %c0_130 = arith.constant 0 : index
    %c0_131 = arith.constant 0 : index
    %140 = vector.load %arg5[%c5, %c0_130, %c0_131] : memref<7x1x512xf32, #tpu.memory_space<vmem>>, vector<1x1x512xf32>
    %141 = vector.shape_cast %140 : vector<1x1x512xf32> to vector<1x512xf32>
    %142 = vector.broadcast %141 : vector<1x512xf32> to vector<8x512xf32>
    %143 = arith.addf %139, %142 : vector<8x512xf32>
    %cst_132 = arith.constant 0.000000e+00 : f32
    %144 = vector.broadcast %cst_132 : f32 to vector<8x512xf32>
    %145 = arith.maximumf %143, %144 : vector<8x512xf32>
    %146 = arith.truncf %145 : vector<8x512xf32> to vector<8x512xbf16>
    %c6_i32_133 = arith.constant 6 : i32
    %c0_i32_134 = arith.constant 0 : i32
    %c0_i32_135 = arith.constant 0 : i32
    %c0_i32_136 = arith.constant 0 : i32
    %c0_i32_137 = arith.constant 0 : i32
    %147 = tpu.memref_slice %arg4[%c6_i32_133, %c0_i32_136, %c0_i32_137] : memref<7x512x512xbf16, #tpu.memory_space<any>> -> memref<1x512x512xbf16, #tpu.memory_space<any>>
    %148 = tpu.memref_squeeze %147 : memref<1x512x512xbf16, #tpu.memory_space<any>> -> memref<512x512xbf16, #tpu.memory_space<any>>
    %c0_i32_138 = arith.constant 0 : i32
    %c0_i32_139 = arith.constant 0 : i32
    %149 = tpu.memref_slice %arg9[%c0_i32_134, %c0_i32_138, %c0_i32_139] : memref<2x512x512xbf16, #tpu.memory_space<vmem>> -> memref<1x512x512xbf16, #tpu.memory_space<vmem>>
    %150 = tpu.memref_squeeze %149 : memref<1x512x512xbf16, #tpu.memory_space<vmem>> -> memref<512x512xbf16, #tpu.memory_space<vmem>>
    %151 = tpu.memref_slice %arg10[%c0_i32_135] : memref<2x!tpu.dma_semaphore, #tpu.memory_space<semaphore_mem>> -> memref<1x!tpu.dma_semaphore, #tpu.memory_space<semaphore_mem>>
    %152 = tpu.memref_squeeze %151 : memref<1x!tpu.dma_semaphore, #tpu.memory_space<semaphore_mem>> -> memref<!tpu.dma_semaphore, #tpu.memory_space<semaphore_mem>>
    tpu.wait_dma2 semaphore(%152 : memref<!tpu.dma_semaphore, #tpu.memory_space<semaphore_mem>>) src(%148 : memref<512x512xbf16, #tpu.memory_space<any>>) dst(%150 : memref<512x512xbf16, #tpu.memory_space<vmem>>)
    %c0_140 = arith.constant 0 : index
    %c0_141 = arith.constant 0 : index
    %c0_142 = arith.constant 0 : index
    %153 = vector.load %arg9[%c0_140, %c0_141, %c0_142] : memref<2x512x512xbf16, #tpu.memory_space<vmem>>, vector<1x512x512xbf16>
    %154 = vector.shape_cast %153 : vector<1x512x512xbf16> to vector<512x512xbf16>
    %cst_143 = arith.constant dense<0.000000e+00> : vector<8x512xf32>
    %155 = tpu.matmul %146, %154, %cst_143 {dimension_numbers = #tpu.dot_dimension_numbers<[1], [0], [0], [1], [0, 0, 1, 1], [], []>} : vector<8x512xbf16>, vector<512x512xbf16>, vector<8x512xf32> -> vector<8x512xf32>
    %c6 = arith.constant 6 : index
    %c0_144 = arith.constant 0 : index
    %c0_145 = arith.constant 0 : index
    %156 = vector.load %arg5[%c6, %c0_144, %c0_145] : memref<7x1x512xf32, #tpu.memory_space<vmem>>, vector<1x1x512xf32>
    %157 = vector.shape_cast %156 : vector<1x1x512xf32> to vector<1x512xf32>
    %158 = vector.broadcast %157 : vector<1x512xf32> to vector<8x512xf32>
    %159 = arith.addf %155, %158 : vector<8x512xf32>
    %cst_146 = arith.constant 0.000000e+00 : f32
    %160 = vector.broadcast %cst_146 : f32 to vector<8x512xf32>
    %161 = arith.maximumf %159, %160 : vector<8x512xf32>
    %162 = arith.truncf %161 : vector<8x512xf32> to vector<8x512xbf16>
    %163 = arith.extf %162 : vector<8x512xbf16> to vector<8x512xf32>
    %c0_147 = arith.constant 0 : index
    %c0_148 = arith.constant 0 : index
    %164 = vector.load %arg6[%c0_147, %c0_148] : memref<1x512xf32, #tpu.memory_space<vmem>>, vector<1x512xf32>
    %165 = vector.broadcast %164 : vector<1x512xf32> to vector<8x512xf32>
    %166 = arith.mulf %163, %165 : vector<8x512xf32>
    %cst_149 = arith.constant dense<0.000000e+00> : vector<8xf32>
    %167 = vector.multi_reduction <add>, %166, %cst_149 [1] : vector<8x512xf32> to vector<8xf32>
    %168 = vector.shape_cast %167 : vector<8xf32> to vector<8x1xf32>
    %c0_150 = arith.constant 0 : index
    %c0_151 = arith.constant 0 : index
    %169 = vector.load %arg7[%c0_150, %c0_151] : memref<1x1xf32, #tpu.memory_space<vmem>>, vector<1x1xf32>
    %170 = vector.broadcast %169 : vector<1x1xf32> to vector<8x1xf32>
    %171 = arith.addf %168, %170 : vector<8x1xf32>
    %c0_152 = arith.constant 0 : index
    %c0_153 = arith.constant 0 : index
    %172 = vector.load %arg8[%c0_152, %c0_153] : memref<8x1xf32, #tpu.memory_space<vmem>>, vector<8x1xf32>
    tpu.vector_store %arg8[%c0_152, %c0_153], %171 {strides = array<i32>} : memref<8x1xf32, #tpu.memory_space<vmem>>, vector<8x1xf32>,
    return
  }
  func.func @transform_0(%arg0: i32) -> (i32, i32) {
    %c0_i32 = arith.constant 0 : i32
    %c0_i32_0 = arith.constant 0 : i32
    %c0_i32_1 = arith.constant 0 : i32
    return %c0_i32, %c0_i32_0 : i32, i32
  }
  func.func @transform_1(%arg0: i32) -> (i32, i32) {
    %c0_i32 = arith.constant 0 : i32
    %c0_i32_0 = arith.constant 0 : i32
    %c0_i32_1 = arith.constant 0 : i32
    return %c0_i32, %c0_i32_0 : i32, i32
  }
  func.func @transform_2(%arg0: i32) -> (i32, i32) {
    %c0_i32 = arith.constant 0 : i32
    %c0_i32_0 = arith.constant 0 : i32
    %c0_i32_1 = arith.constant 0 : i32
    return %c0_i32, %c0_i32_0 : i32, i32
  }
  func.func @transform_4(%arg0: i32) -> (i32, i32, i32) {
    %c0_i32 = arith.constant 0 : i32
    %c0_i32_0 = arith.constant 0 : i32
    %c0_i32_1 = arith.constant 0 : i32
    %c0_i32_2 = arith.constant 0 : i32
    return %c0_i32, %c0_i32_0, %c0_i32_1 : i32, i32, i32
  }
  func.func @transform_5(%arg0: i32) -> (i32, i32) {
    %c0_i32 = arith.constant 0 : i32
    %c0_i32_0 = arith.constant 0 : i32
    %c0_i32_1 = arith.constant 0 : i32
    return %c0_i32, %c0_i32_0 : i32, i32
  }
  func.func @transform_6(%arg0: i32) -> (i32, i32) {
    %c0_i32 = arith.constant 0 : i32
    %c0_i32_0 = arith.constant 0 : i32
    %c0_i32_1 = arith.constant 0 : i32
    return %c0_i32, %c0_i32_0 : i32, i32
  }
  func.func @transform_7(%arg0: i32) -> (i32, i32) {
    %c0_i32 = arith.constant 0 : i32
    %c0_i32_0 = arith.constant 0 : i32
    %c0_i32_1 = arith.constant 0 : i32
    return %c0_i32, %c0_i32_0 : i32, i32
  }
}

</mosaic_0001>

<llo_original>
// kernel: tpu_custom_call.1
$region0: #{tpu_custom_call.1}
  #allocation0 [shape = 'u32[]', space=smem, size = 0x4, offset = 0x4, fixed_abs, tag = 'smem constant byte address 0x4 - core index']
  #allocation1 [shape = 'u32[144,128]{1,0:T(1,128)}', space=vmem, size = 0x12000, scoped, tag = 'internal scratch']
  #allocation2 [shape = 'bf16[2,512,512]{2,1,0:T(8,128)(2,1)}', space=vmem, size = 0x100000, scoped, tag = 'scratch operand']
  #allocation3 [shape = 's32[2]{0}', space=sflag, size = 0x8, scoped, tag = 'scratch operand']
  #allocation4 [shape = 'f32[1,1]{1,0:T(1,128)S(1)}', space=vmem, size = 0x200, scoped, tag = 'scoped memory for tpu_custom_call.1']
  #allocation13 [shape = 's32[]', space=sflag, size = 0x4, offset = 0, fixed_abs, tag = 'sflag constant byte address 0x0 - dummy sync flag']
  #allocation14 [shape = 's32[]', space=sflag, size = 0x4, offset = 0, fixed_abs, tag = 'sflag constant byte address 0x0 - dummy sync flag']
  #allocation15 [shape = 'u32[]', space=smem, size = 0x4, offset = 0x44, fixed_abs, tag = 'smem constant byte address 0x44 - assertion arg 0']
  #allocation16 [shape = 'u32[]', space=smem, size = 0x4, offset = 0x48, fixed_abs, tag = 'smem constant byte address 0x48 - assertion arg 1']
  #allocation17 [shape = 's32[]', space=sflag, size = 0x4, offset = 0, fixed_abs, tag = 'sflag constant byte address 0x0 - dummy sync flag']
  #allocation18 [shape = 's32[]', space=sflag, size = 0x4, offset = 0, fixed_abs, tag = 'sflag constant byte address 0x0 - dummy sync flag']
  #allocation19 [shape = 's32[]', space=sflag, size = 0x4, offset = 0, fixed_abs, tag = 'sflag constant byte address 0x0 - dummy sync flag']
  #allocation20 [shape = 's32[]', space=sflag, size = 0x4, offset = 0, fixed_abs, tag = 'sflag constant byte address 0x0 - dummy sync flag']
  #allocation21 [shape = 's32[]', space=sflag, size = 0x4, offset = 0, fixed_abs, tag = 'sflag constant byte address 0x0 - dummy sync flag']
  #allocation22 [shape = 's32[]', space=sflag, size = 0x4, offset = 0, fixed_abs, tag = 'sflag constant byte address 0x0 - dummy sync flag']
  #allocation23 [shape = 's32[]', space=sflag, size = 0x4, offset = 0, fixed_abs, tag = 'sflag constant byte address 0x0 - dummy sync flag']
  #allocation24 [shape = 's32[]', space=sflag, size = 0x4, offset = 0, fixed_abs, tag = 'sflag constant byte address 0x0 - dummy sync flag']
  #allocation25 [shape = 's32[]', space=sflag, size = 0x4, offset = 0, fixed_abs, tag = 'sflag constant byte address 0x0 - dummy sync flag']
  #allocation26 [shape = 's32[]', space=sflag, size = 0x4, offset = 0, fixed_abs, tag = 'sflag constant byte address 0x0 - dummy sync flag']
  #allocation27 [shape = 's32[]', space=sflag, size = 0x4, offset = 0, fixed_abs, tag = 'sflag constant byte address 0x0 - dummy sync flag']
  #allocation28 [shape = 's32[]', space=sflag, size = 0x4, offset = 0, fixed_abs, tag = 'sflag constant byte address 0x0 - dummy sync flag']
  %s0 = inlined_call_operand.hbm [shape: bf16[8,32], index: 0, kind: input, shape index: {}]
  %s1 = inlined_call_operand.hbm [shape: bf16[32,512], index: 1, kind: input, shape index: {}]
  %s2 = inlined_call_operand.hbm [shape: f32[1,512], index: 2, kind: input, shape index: {}]
  %s3 = inlined_call_operand.hbm [shape: bf16[7,512,512], index: 3, kind: input, shape index: {}]
  %s4 = inlined_call_operand.hbm [shape: f32[7,1,512], index: 4, kind: input, shape index: {}]
  %s5 = inlined_call_operand.hbm [shape: f32[1,512], index: 5, kind: input, shape index: {}]
  %s6 = inlined_call_operand.<no memory space> [shape: f32[1,1], index: 6, kind: input, shape index: {}]
  %s7 = inlined_call_operand.vmem [shape: f32[8,1], index: 7, kind: output, shape index: {}]
  %s8 = sld [smem:[#allocation0]]
  $region82: #{tpu_custom_call.1} parent=0
    _
  %s10 = ssub.s32 1, %s8
  %s11 = scalar_select 0, %s10, %s8
  %v12 = vstv %s6
  %13 = vst [vmem:[#allocation4] sm:$0x1] %v12
  $region1: #{tpu_custom_call.1} parent=0
    #allocation5 [shape = 'u8[2048]{0}', space=vmem, size = 0x800, scoped, tag = 'input window, operand 0, single buffered']
    #allocation6 [shape = 's32[1]{0}', space=sflag, size = 0x4, scoped, tag = 'scoped memory for tpu_custom_call.1']
    #allocation7 [shape = 'u8[32768]{0}', space=vmem, size = 0x8000, scoped, tag = 'input window, operand 1, single buffered']
    #allocation8 [shape = 's32[1]{0}', space=sflag, size = 0x4, scoped, tag = 'scoped memory for tpu_custom_call.1']
    #allocation9 [shape = 'u8[2048]{0}', space=vmem, size = 0x800, scoped, tag = 'input window, operand 2, single buffered']
    #allocation10 [shape = 'u8[14336]{0}', space=vmem, size = 0x3800, scoped, tag = 'input window, operand 4, single buffered']
    #allocation11 [shape = 's32[1]{0}', space=sflag, size = 0x4, scoped, tag = 'scoped memory for tpu_custom_call.1']
    #allocation12 [shape = 'u8[2048]{0}', space=vmem, size = 0x800, scoped, tag = 'input window, operand 5, single buffered']
    %14 = vsyncpa [#allocation6], 0
    %15 = vsyncpa [#allocation8], 0
    %16 = vsyncpa [#allocation11], 0
    // Predicated region
    $region2: #{tpu_custom_call.1} parent=1 // pred_check
      _
    $region3: #{tpu_custom_call.1} parent=1 // pred_check_branch
      %18 = sbr.rel (0) target = $region5
    $region4: #{tpu_custom_call.1} parent=1 // pred_region
      %s20 = ssub.s32 64, 64
      %21 = vsyncadd [#allocation6], %s20
      %s23 = sshll.u32 [#allocation5], 4
      %s24 = int_to_ptr.vmem [resolvable:$true] %s23
      %26 = dma.hbm_to_vmem [thread:$0]  %s0, 64, %s24, [#allocation6]
    $region5: #{tpu_custom_call.1} parent=1 // pred_fallthru
      _
    // Predicated region
    $region6: #{tpu_custom_call.1} parent=1 // pred_check
      _
    $region7: #{tpu_custom_call.1} parent=1 // pred_check_branch
      %28 = sbr.rel (0) target = $region9
    $region8: #{tpu_custom_call.1} parent=1 // pred_region
      %s30 = ssub.s32 1024, 1024
      %31 = vsyncadd [#allocation8], %s30
      %s32 = sshll.u32 [#allocation7], 4
      %s33 = int_to_ptr.vmem [resolvable:$true] %s32
      %38 = dma.hbm_to_vmem [thread:$0]  %s1, 1024, %s33, [#allocation8], 256, 256, 16
    $region9: #{tpu_custom_call.1} parent=1 // pred_fallthru
      _
    // Predicated region
    $region10: #{tpu_custom_call.1} parent=1 // pred_check
      _
    $region11: #{tpu_custom_call.1} parent=1 // pred_check_branch
      %40 = sbr.rel (0) target = $region13
    $region12: #{tpu_custom_call.1} parent=1 // pred_region
      %s42 = ssub.s32 64, 64
      %43 = vsyncadd [#allocation8], %s42
      %s45 = sshll.u32 [#allocation9], 4
      %s46 = int_to_ptr.vmem [resolvable:$true] %s45
      %48 = dma.hbm_to_vmem [thread:$0]  %s2, 64, %s46, [#allocation8]
    $region13: #{tpu_custom_call.1} parent=1 // pred_fallthru
      _
    // Predicated region
    $region14: #{tpu_custom_call.1} parent=1 // pred_check
      _
    $region15: #{tpu_custom_call.1} parent=1 // pred_check_branch
      %50 = sbr.rel (0) target = $region17
    $region16: #{tpu_custom_call.1} parent=1 // pred_region
      %s52 = ssub.s32 448, 448
      %53 = vsyncadd [#allocation11], %s52
      %s54 = sshll.u32 [#allocation10], 4
      %s55 = int_to_ptr.vmem [resolvable:$true] %s54
      %60 = dma.hbm_to_vmem [thread:$0]  %s4, 448, %s55, [#allocation11], 64, 64, 4
    $region17: #{tpu_custom_call.1} parent=1 // pred_fallthru
      _
    // Predicated region
    $region18: #{tpu_custom_call.1} parent=1 // pred_check
      _
    $region19: #{tpu_custom_call.1} parent=1 // pred_check_branch
      %62 = sbr.rel (0) target = $region21
    $region20: #{tpu_custom_call.1} parent=1 // pred_region
      %s64 = ssub.s32 64, 64
      %65 = vsyncadd [#allocation11], %s64
      %s67 = sshll.u32 [#allocation12], 4
      %s68 = int_to_ptr.vmem [resolvable:$true] %s67
      %70 = dma.hbm_to_vmem [thread:$0]  %s5, 64, %s68, [#allocation11]
    $region21: #{tpu_custom_call.1} parent=1 // pred_fallthru
      _
    // Predicated region
    $region22: #{tpu_custom_call.1} parent=1 // pred_check
      _
    $region23: #{tpu_custom_call.1} parent=1 // pred_check_branch
      %72 = sbr.rel (0) target = $region25
    $region24: #{tpu_custom_call.1} parent=1 // pred_region
      _
    $region25: #{tpu_custom_call.1} parent=1 // pred_fallthru
      _
    // Predicated region
    $region26: #{tpu_custom_call.1} parent=1 // pred_check
      _
    $region27: #{tpu_custom_call.1} parent=1 // pred_check_branch
      %74 = sbr.rel (0) target = $region29
    $region28: #{tpu_custom_call.1} parent=1 // pred_region
      %75 = dma.done [#allocation6], 64
    $region29: #{tpu_custom_call.1} parent=1 // pred_fallthru
      _
    // Predicated region
    $region30: #{tpu_custom_call.1} parent=1 // pred_check
      _
    $region31: #{tpu_custom_call.1} parent=1 // pred_check_branch
      %77 = sbr.rel (0) target = $region33
    $region32: #{tpu_custom_call.1} parent=1 // pred_region
      %78 = dma.done [#allocation8], 1024
    $region33: #{tpu_custom_call.1} parent=1 // pred_fallthru
      _
    // Predicated region
    $region34: #{tpu_custom_call.1} parent=1 // pred_check
      _
    $region35: #{tpu_custom_call.1} parent=1 // pred_check_branch
      %80 = sbr.rel (0) target = $region37
    $region36: #{tpu_custom_call.1} parent=1 // pred_region
      %81 = dma.done [#allocation8], 64
    $region37: #{tpu_custom_call.1} parent=1 // pred_fallthru
      _
    // Predicated region
    $region38: #{tpu_custom_call.1} parent=1 // pred_check
      _
    $region39: #{tpu_custom_call.1} parent=1 // pred_check_branch
      %83 = sbr.rel (0) target = $region41
    $region40: #{tpu_custom_call.1} parent=1 // pred_region
      %84 = dma.done [#allocation11], 448
    $region41: #{tpu_custom_call.1} parent=1 // pred_fallthru
      _
    // Predicated region
    $region42: #{tpu_custom_call.1} parent=1 // pred_check
      _
    $region43: #{tpu_custom_call.1} parent=1 // pred_check_branch
      %86 = sbr.rel (0) target = $region45
    $region44: #{tpu_custom_call.1} parent=1 // pred_region
      %87 = dma.done [#allocation11], 64
    $region45: #{tpu_custom_call.1} parent=1 // pred_fallthru
      _
    // Predicated region
    $region46: #{tpu_custom_call.1} parent=1 // pred_check
      _
    $region47: #{tpu_custom_call.1} parent=1 // pred_check_branch
      %90 = sbr.rel target = $region49
    $region48: #{tpu_custom_call.1} parent=1 // pred_region
      %91 = sst [smem:[#allocation15]] [#allocation14]
      %92 = sst [smem:[#allocation16]] [#allocation13]
    $region49: #{tpu_custom_call.1} parent=1 // pred_fallthru
      _
    %94 = shalt.err (0)
    %s96 = sshll.u32 [#allocation2], 4
    %s97 = int_to_ptr.vmem [resolvable:$true] %s96
    %99 = dma.hbm_to_vmem [thread:$0]  %s3, 16384, %s97, [#allocation3]
    %v100 = vld [vmem:[#allocation5] sm:$0xf]
    %v101 = vld [vmem:[#allocation7] sm:$0xff]
    %v102 = vld [vmem:[#allocation7 + $0x8] sm:$0xff]
    %v103 = vld [vmem:[#allocation7 + $0x10] sm:$0xff]
    %v104 = vld [vmem:[#allocation7 + $0x18] sm:$0xff]
    %v105 = vld [vmem:[#allocation7 + $0x20] sm:$0xff]
    %v106 = vld [vmem:[#allocation7 + $0x28] sm:$0xff]
    %v107 = vld [vmem:[#allocation7 + $0x30] sm:$0xff]
    %v108 = vld [vmem:[#allocation7 + $0x38] sm:$0xff]
    %v109 = vld [vmem:[#allocation9] sm:$0xf]
    %v111 = vlaneseq
    %v112 = vshrl.u32 %v111, 7
    %v113 = vsub.s32 0, %v112
    %v114 = vrot.slane %v109, %v113
    %v115 = vlaneseq
    %v116 = vshrl.u32 %v115, 7
    %v117 = vsub.s32 1, %v116
    %v118 = vrot.slane %v109, %v117
    %v119 = vlaneseq
    %v120 = vshrl.u32 %v119, 7
    %v121 = vsub.s32 2, %v120
    %v122 = vrot.slane %v109, %v121
    %v123 = vlaneseq
    %v124 = vshrl.u32 %v123, 7
    %v125 = vsub.s32 3, %v124
    %v126 = vrot.slane %v109, %v125
    %v139 = vunpack.c.l.b16 %v101
    %v140 = vunpack.c.h.b16 %v101
    %v141 = vunpack.c.l.b16 %v102
    %v142 = vunpack.c.h.b16 %v102
    %v143 = vunpack.c.l.b16 %v103
    %v144 = vunpack.c.h.b16 %v103
    %v145 = vunpack.c.l.b16 %v104
    %v146 = vunpack.c.h.b16 %v104
    %v147 = vunpack.c.l.b16 %v105
    %v148 = vunpack.c.h.b16 %v105
    %v149 = vunpack.c.l.b16 %v106
    %v150 = vunpack.c.h.b16 %v106
    %v151 = vunpack.c.l.b16 %v107
    %v152 = vunpack.c.h.b16 %v107
    %v153 = vunpack.c.l.b16 %v108
    %v154 = vunpack.c.h.b16 %v108
    %v155 = vpack.c.b16 %v143, %v139
    %v156 = vpack.c.b16 %v144, %v140
    %v157 = vpack.c.b16 %v145, %v141
    %v158 = vpack.c.b16 %v146, %v142
    %v159 = vpack.c.b16 %v151, %v147
    %v160 = vpack.c.b16 %v152, %v148
    %v161 = vpack.c.b16 %v153, %v149
    %v162 = vpack.c.b16 %v154, %v150
    %vm171 = vcmask 261120
    %v173 = vsel %vm171, %v100, 0
    %175 = vmatprep.subr.bf16.mxu0 0
    %176 = vmatpush1.bf16.msra.mxu0 0
    %177 = vmatprep.subr.bf16.mxu0 0
    %178 = vmatpush1.bf16.msra.mxu0 0
    %179 = vmatprep.subr.bf16.mxu0 0
    %180 = vmatpush1.bf16.msra.mxu0 0
    %181 = vmatprep.subr.bf16.mxu0 0
    %182 = vmatpush1.bf16.msra.mxu0 0
    %183 = vmatprep.subr.bf16.mxu0 0
    %184 = vmatpush1.bf16.msra.mxu0 0
    %185 = vmatprep.subr.bf16.mxu0 0
    %186 = vmatpush1.bf16.msra.mxu0 0
    %187 = vmatprep.subr.bf16.mxu0 %v160
    %188 = vmatpush1.bf16.msra.mxu0 %v159
    %189 = vmatprep.subr.bf16.mxu0 %v156
    %190 = vmatpush1.bf16.msra.mxu0 %v155
    %191 = vmatprep.subr.bf16.mxu0 0
    %192 = vmatpush2.bf16.msra.mxu0 0
    %193 = vmatprep.subr.bf16.mxu0 0
    %194 = vmatpush2.bf16.msra.mxu0 0
    %195 = vmatprep.subr.bf16.mxu0 0
    %196 = vmatpush2.bf16.msra.mxu0 0
    %197 = vmatprep.subr.bf16.mxu0 0
    %198 = vmatpush2.bf16.msra.mxu0 0
    %199 = vmatprep.subr.bf16.mxu0 0
    %200 = vmatpush2.bf16.msra.mxu0 0
    %201 = vmatprep.subr.bf16.mxu0 0
    %202 = vmatpush2.bf16.msra.mxu0 0
    %203 = vmatprep.subr.bf16.mxu0 0
    %204 = vmatpush2.bf16.msra.mxu0 0
    %205 = vmatprep.subr.bf16.mxu0 0
    %206 = vmatpush2.bf16.msra.mxu0 0
    %207 = vmatprep.mubr.bf16.mxu0 0
    %208 = vmatmul.mubr.bf16.gmra.mxu0 %v173
    %v209 = vpop.f32.mrf.mxu0
    %v210 = vadd.f32 %v114, %v209
    %v211 = vpop.f32.mrf.mxu0
    %v212 = vadd.f32 %v118, %v211
    %v213 = vpop.f32.mrf.mxu0
    %v214 = vpop.f32.mrf.mxu0
    %215 = vdwg.mxu0
    %216 = vmatprep.subr.bf16.mxu0 0
    %217 = vmatpush1.bf16.msra.mxu0 0
    %218 = vmatprep.subr.bf16.mxu0 0
    %219 = vmatpush1.bf16.msra.mxu0 0
    %220 = vmatprep.subr.bf16.mxu0 0
    %221 = vmatpush1.bf16.msra.mxu0 0
    %222 = vmatprep.subr.bf16.mxu0 0
    %223 = vmatpush1.bf16.msra.mxu0 0
    %224 = vmatprep.subr.bf16.mxu0 0
    %225 = vmatpush1.bf16.msra.mxu0 0
    %226 = vmatprep.subr.bf16.mxu0 0
    %227 = vmatpush1.bf16.msra.mxu0 0
    %228 = vmatprep.subr.bf16.mxu0 %v162
    %229 = vmatpush1.bf16.msra.mxu0 %v161
    %230 = vmatprep.subr.bf16.mxu0 %v158
    %231 = vmatpush1.bf16.msra.mxu0 %v157
    %232 = vmatprep.subr.bf16.mxu0 0
    %233 = vmatpush2.bf16.msra.mxu0 0
    %234 = vmatprep.subr.bf16.mxu0 0
    %235 = vmatpush2.bf16.msra.mxu0 0
    %236 = vmatprep.subr.bf16.mxu0 0
    %237 = vmatpush2.bf16.msra.mxu0 0
    %238 = vmatprep.subr.bf16.mxu0 0
    %239 = vmatpush2.bf16.msra.mxu0 0
    %240 = vmatprep.subr.bf16.mxu0 0
    %241 = vmatpush2.bf16.msra.mxu0 0
    %242 = vmatprep.subr.bf16.mxu0 0
    %243 = vmatpush2.bf16.msra.mxu0 0
    %244 = vmatprep.subr.bf16.mxu0 0
    %245 = vmatpush2.bf16.msra.mxu0 0
    %246 = vmatprep.subr.bf16.mxu0 0
    %247 = vmatpush2.bf16.msra.mxu0 0
    %248 = vmatprep.mubr.bf16.mxu0 0
    %249 = vmatmul.mubr.bf16.gmra.mxu0 %v173
    %v250 = vpop.f32.mrf.mxu0
    %v251 = vadd.f32 %v122, %v250
    %v252 = vpop.f32.mrf.mxu0
    %v253 = vadd.f32 %v126, %v252
    %v254 = vpop.f32.mrf.mxu0
    %v255 = vpop.f32.mrf.mxu0
    %256 = vdwg.mxu0
    %v257 = vmax.f32 %v210, 0.0
    %v258 = vmax.f32 %v212, 0.0
    %v259 = vmax.f32 %v251, 0.0
    %v260 = vmax.f32 %v253, 0.0
    %v261 = vpack.c.bf16 %v257, %v257
    %v262 = vpack.c.bf16 %v258, %v258
    %v263 = vpack.c.bf16 %v259, %v259
    %v264 = vpack.c.bf16 %v260, %v260
    %s265 = smul.u32 4, 64
    %s266 = smul.u32 %s265, 4
    %s267 = sshll.u32 %s266, 4
    %268 = dma.done [#allocation3], %s267
    %s269 = scalar_lea.hbm %s3, 16384
    %s270 = scalar_lea.vmem [#allocation2], 1024
    %s271 = scalar_lea.sflag [#allocation3], 1
    // Predicated region
    $region50: #{tpu_custom_call.1} parent=1 // pred_check
      _
    $region51: #{tpu_custom_call.1} parent=1 // pred_check_branch
      %273 = sbr.rel target = $region53
    $region52: #{tpu_custom_call.1} parent=1 // pred_region
      %274 = sst [smem:[#allocation15]] [#allocation18]
      %275 = sst [smem:[#allocation16]] [#allocation17]
    $region53: #{tpu_custom_call.1} parent=1 // pred_fallthru
      _
    %277 = shalt.err (0)
    %s279 = sshll.u32 %s270, 4
    %s280 = int_to_ptr.vmem [resolvable:$true] %s279
    %282 = dma.hbm_to_vmem [thread:$0]  %s269, 16384, %s280, %s271
    %v283 = vld [vmem:[#allocation2] sm:$0xff]
    %v284 = vld [vmem:[#allocation2 + $0x8] sm:$0xff]
    %v285 = vld [vmem:[#allocation2 + $0x10] sm:$0xff]
    %v286 = vld [vmem:[#allocation2 + $0x18] sm:$0xff]
    %v287 = vld [vmem:[#allocation2 + $0x20] sm:$0xff]
    %v288 = vld [vmem:[#allocation2 + $0x28] sm:$0xff]
    %v289 = vld [vmem:[#allocation2 + $0x30] sm:$0xff]
    %v290 = vld [vmem:[#allocation2 + $0x38] sm:$0xff]
    %v291 = vld [vmem:[#allocation2 + $0x40] sm:$0xff]
    %v292 = vld [vmem:[#allocation2 + $0x48] sm:$0xff]
    %v293 = vld [vmem:[#allocation2 + $0x50] sm:$0xff]
    %v294 = vld [vmem:[#allocation2 + $0x58] sm:$0xff]
    %v295 = vld [vmem:[#allocation2 + $0x60] sm:$0xff]
    %v296 = vld [vmem:[#allocation2 + $0x68] sm:$0xff]
    %v297 = vld [vmem:[#allocation2 + $0x70] sm:$0xff]
    %v298 = vld [vmem:[#allocation2 + $0x78] sm:$0xff]
    %v299 = vld [vmem:[#allocation2 + $0x80] sm:$0xff]
    %v300 = vld [vmem:[#allocation2 + $0x88] sm:$0xff]
    %v301 = vld [vmem:[#allocation2 + $0x90] sm:$0xff]
    %v302 = vld [vmem:[#allocation2 + $0x98] sm:$0xff]
    %v303 = vld [vmem:[#allocation2 + $0xa0] sm:$0xff]
    %v304 = vld [vmem:[#allocation2 + $0xa8] sm:$0xff]
    %v305 = vld [vmem:[#allocation2 + $0xb0] sm:$0xff]
    %v306 = vld [vmem:[#allocation2 + $0xb8] sm:$0xff]
    %v307 = vld [vmem:[#allocation2 + $0xc0] sm:$0xff]
    %v308 = vld [vmem:[#allocation2 + $0xc8] sm:$0xff]
    %v309 = vld [vmem:[#allocation2 + $0xd0] sm:$0xff]
    %v310 = vld [vmem:[#allocation2 + $0xd8] sm:$0xff]
    %v311 = vld [vmem:[#allocation2 + $0xe0] sm:$0xff]
    %v312 = vld [vmem:[#allocation2 + $0xe8] sm:$0xff]
    %v313 = vld [vmem:[#allocation2 + $0xf0] sm:$0xff]
    %v314 = vld [vmem:[#allocation2 + $0xf8] sm:$0xff]
    %v315 = vld [vmem:[#allocation2 + $0x100] sm:$0xff]
    %v316 = vld [vmem:[#allocation2 + $0x108] sm:$0xff]
    %v317 = vld [vmem:[#allocation2 + $0x110] sm:$0xff]
    %v318 = vld [vmem:[#allocation2 + $0x118] sm:$0xff]
    %v319 = vld [vmem:[#allocation2 + $0x120] sm:$0xff]
    %v320 = vld [vmem:[#allocation2 + $0x128] sm:$0xff]
    %v321 = vld [vmem:[#allocation2 + $0x130] sm:$0xff]
    %v322 = vld [vmem:[#allocation2 + $0x138] sm:$0xff]
    %v323 = vld [vmem:[#allocation2 + $0x140] sm:$0xff]
    %v324 = vld [vmem:[#allocation2 + $0x148] sm:$0xff]
    %v325 = vld [vmem:[#allocation2 + $0x150] sm:$0xff]
    %v326 = vld [vmem:[#allocation2 + $0x158] sm:$0xff]
    %v327 = vld [vmem:[#allocation2 + $0x160] sm:$0xff]
    %v328 = vld [vmem:[#allocation2 + $0x168] sm:$0xff]
    %v329 = vld [vmem:[#allocation2 + $0x170] sm:$0xff]
    %v330 = vld [vmem:[#allocation2 + $0x178] sm:$0xff]
    %v331 = vld [vmem:[#allocation2 + $0x180] sm:$0xff]
    %v332 = vld [vmem:[#allocation2 + $0x188] sm:$0xff]
    %v333 = vld [vmem:[#allocation2 + $0x190] sm:$0xff]
    %v334 = vld [vmem:[#allocation2 + $0x198] sm:$0xff]
    %v335 = vld [vmem:[#allocation2 + $0x1a0] sm:$0xff]
    %v336 = vld [vmem:[#allocation2 + $0x1a8] sm:$0xff]
    %v337 = vld [vmem:[#allocation2 + $0x1b0] sm:$0xff]
    %v338 = vld [vmem:[#allocation2 + $0x1b8] sm:$0xff]
    %v339 = vld [vmem:[#allocation2 + $0x1c0] sm:$0xff]
    %v340 = vld [vmem:[#allocation2 + $0x1c8] sm:$0xff]
    %v341 = vld [vmem:[#allocation2 + $0x1d0] sm:$0xff]
    %v342 = vld [vmem:[#allocation2 + $0x1d8] sm:$0xff]
    %v343 = vld [vmem:[#allocation2 + $0x1e0] sm:$0xff]
    %v344 = vld [vmem:[#allocation2 + $0x1e8] sm:$0xff]
    %v345 = vld [vmem:[#allocation2 + $0x1f0] sm:$0xff]
    %v346 = vld [vmem:[#allocation2 + $0x1f8] sm:$0xff]
    %v347 = vld [vmem:[#allocation2 + $0x200] sm:$0xff]
    %v348 = vld [vmem:[#allocation2 + $0x208] sm:$0xff]
    %v349 = vld [vmem:[#allocation2 + $0x210] sm:$0xff]
    %v350 = vld [vmem:[#allocation2 + $0x218] sm:$0xff]
    %v351 = vld [vmem:[#allocation2 + $0x220] sm:$0xff]
    %v352 = vld [vmem:[#allocation2 + $0x228] sm:$0xff]
    %v353 = vld [vmem:[#allocation2 + $0x230] sm:$0xff]
    %v354 = vld [vmem:[#allocation2 + $0x238] sm:$0xff]
    %v355 = vld [vmem:[#allocation2 + $0x240] sm:$0xff]
    %v356 = vld [vmem:[#allocation2 + $0x248] sm:$0xff]
    %v357 = vld [vmem:[#allocation2 + $0x250] sm:$0xff]
    %v358 = vld [vmem:[#allocation2 + $0x258] sm:$0xff]
    %v359 = vld [vmem:[#allocation2 + $0x260] sm:$0xff]
    %v360 = vld [vmem:[#allocation2 + $0x268] sm:$0xff]
    %v361 = vld [vmem:[#allocation2 + $0x270] sm:$0xff]
    %v362 = vld [vmem:[#allocation2 + $0x278] sm:$0xff]
    %v363 = vld [vmem:[#allocation2 + $0x280] sm:$0xff]
    %v364 = vld [vmem:[#allocation2 + $0x288] sm:$0xff]
    %v365 = vld [vmem:[#allocation2 + $0x290] sm:$0xff]
    %v366 = vld [vmem:[#allocation2 + $0x298] sm:$0xff]
    %v367 = vld [vmem:[#allocation2 + $0x2a0] sm:$0xff]
    %v368 = vld [vmem:[#allocation2 + $0x2a8] sm:$0xff]
    %v369 = vld [vmem:[#allocation2 + $0x2b0] sm:$0xff]
    %v370 = vld [vmem:[#allocation2 + $0x2b8] sm:$0xff]
    %v371 = vld [vmem:[#allocation2 + $0x2c0] sm:$0xff]
    %v372 = vld [vmem:[#allocation2 + $0x2c8] sm:$0xff]
    %v373 = vld [vmem:[#allocation2 + $0x2d0] sm:$0xff]
    %v374 = vld [vmem:[#allocation2 + $0x2d8] sm:$0xff]
    %v375 = vld [vmem:[#allocation2 + $0x2e0] sm:$0xff]
    %v376 = vld [vmem:[#allocation2 + $0x2e8] sm:$0xff]
    %v377 = vld [vmem:[#allocation2 + $0x2f0] sm:$0xff]
    %v378 = vld [vmem:[#allocation2 + $0x2f8] sm:$0xff]
    %v379 = vld [vmem:[#allocation2 + $0x300] sm:$0xff]
    %v380 = vld [vmem:[#allocation2 + $0x308] sm:$0xff]
    %v381 = vld [vmem:[#allocation2 + $0x310] sm:$0xff]
    %v382 = vld [vmem:[#allocation2 + $0x318] sm:$0xff]
    %v383 = vld [vmem:[#allocation2 + $0x320] sm:$0xff]
    %v384 = vld [vmem:[#allocation2 + $0x328] sm:$0xff]
    %v385 = vld [vmem:[#allocation2 + $0x330] sm:$0xff]
    %v386 = vld [vmem:[#allocation2 + $0x338] sm:$0xff]
    %v387 = vld [vmem:[#allocation2 + $0x340] sm:$0xff]
    %v388 = vld [vmem:[#allocation2 + $0x348] sm:$0xff]
    %v389 = vld [vmem:[#allocation2 + $0x350] sm:$0xff]
    %v390 = vld [vmem:[#allocation2 + $0x358] sm:$0xff]
    %v391 = vld [vmem:[#allocation2 + $0x360] sm:$0xff]
    %v392 = vld [vmem:[#allocation2 + $0x368] sm:$0xff]
    %v393 = vld [vmem:[#allocation2 + $0x370] sm:$0xff]
    %v394 = vld [vmem:[#allocation2 + $0x378] sm:$0xff]
    %v395 = vld [vmem:[#allocation2 + $0x380] sm:$0xff]
    %v396 = vld [vmem:[#allocation2 + $0x388] sm:$0xff]
    %v397 = vld [vmem:[#allocation2 + $0x390] sm:$0xff]
    %v398 = vld [vmem:[#allocation2 + $0x398] sm:$0xff]
    %v399 = vld [vmem:[#allocation2 + $0x3a0] sm:$0xff]
    %v400 = vld [vmem:[#allocation2 + $0x3a8] sm:$0xff]
    %v401 = vld [vmem:[#allocation2 + $0x3b0] sm:$0xff]
    %v402 = vld [vmem:[#allocation2 + $0x3b8] sm:$0xff]
    %v403 = vld [vmem:[#allocation2 + $0x3c0] sm:$0xff]
    %v404 = vld [vmem:[#allocation2 + $0x3c8] sm:$0xff]
    %v405 = vld [vmem:[#allocation2 + $0x3d0] sm:$0xff]
    %v406 = vld [vmem:[#allocation2 + $0x3d8] sm:$0xff]
    %v407 = vld [vmem:[#allocation2 + $0x3e0] sm:$0xff]
    %v408 = vld [vmem:[#allocation2 + $0x3e8] sm:$0xff]
    %v409 = vld [vmem:[#allocation2 + $0x3f0] sm:$0xff]
    %v410 = vld [vmem:[#allocation2 + $0x3f8] sm:$0xff]
    %v411 = vld [vmem:[#allocation10] sm:$0xf]
    %v413 = vlaneseq
    %v414 = vshrl.u32 %v413, 7
    %v415 = vsub.s32 0, %v414
    %v416 = vrot.slane %v411, %v415
    %v417 = vlaneseq
    %v418 = vshrl.u32 %v417, 7
    %v419 = vsub.s32 1, %v418
    %v420 = vrot.slane %v411, %v419
    %v421 = vlaneseq
    %v422 = vshrl.u32 %v421, 7
    %v423 = vsub.s32 2, %v422
    %v424 = vrot.slane %v411, %v423
    %v425 = vlaneseq
    %v426 = vshrl.u32 %v425, 7
    %v427 = vsub.s32 3, %v426
    %v428 = vrot.slane %v411, %v427
    %v561 = vunpack.c.l.b16 %v283
    %v562 = vunpack.c.h.b16 %v283
    %v563 = vunpack.c.l.b16 %v284
    %v564 = vunpack.c.h.b16 %v284
    %v565 = vunpack.c.l.b16 %v285
    %v566 = vunpack.c.h.b16 %v285
    %v567 = vunpack.c.l.b16 %v286
    %v568 = vunpack.c.h.b16 %v286
    %v569 = vunpack.c.l.b16 %v287
    %v570 = vunpack.c.h.b16 %v287
    %v571 = vunpack.c.l.b16 %v288
    %v572 = vunpack.c.h.b16 %v288
    %v573 = vunpack.c.l.b16 %v289
    %v574 = vunpack.c.h.b16 %v289
    %v575 = vunpack.c.l.b16 %v290
    %v576 = vunpack.c.h.b16 %v290
    %v577 = vunpack.c.l.b16 %v291
    %v578 = vunpack.c.h.b16 %v291
    %v579 = vunpack.c.l.b16 %v292
    %v580 = vunpack.c.h.b16 %v292
    %v581 = vunpack.c.l.b16 %v293
    %v582 = vunpack.c.h.b16 %v293
    %v583 = vunpack.c.l.b16 %v294
    %v584 = vunpack.c.h.b16 %v294
    %v585 = vunpack.c.l.b16 %v295
    %v586 = vunpack.c.h.b16 %v295
    %v587 = vunpack.c.l.b16 %v296
    %v588 = vunpack.c.h.b16 %v296
    %v589 = vunpack.c.l.b16 %v297
    %v590 = vunpack.c.h.b16 %v297
    %v591 = vunpack.c.l.b16 %v298
    %v592 = vunpack.c.h.b16 %v298
    %v593 = vunpack.c.l.b16 %v299
    %v594 = vunpack.c.h.b16 %v299
    %v595 = vunpack.c.l.b16 %v300
    %v596 = vunpack.c.h.b16 %v300
    %v597 = vunpack.c.l.b16 %v301
    %v598 = vunpack.c.h.b16 %v301
    %v599 = vunpack.c.l.b16 %v302
    %v600 = vunpack.c.h.b16 %v302
    %v601 = vunpack.c.l.b16 %v303
    %v602 = vunpack.c.h.b16 %v303
    %v603 = vunpack.c.l.b16 %v304
    %v604 = vunpack.c.h.b16 %v304
    %v605 = vunpack.c.l.b16 %v305
    %v606 = vunpack.c.h.b16 %v305
    %v607 = vunpack.c.l.b16 %v306
    %v608 = vunpack.c.h.b16 %v306
    %v609 = vunpack.c.l.b16 %v307
    %v610 = vunpack.c.h.b16 %v307
    %v611 = vunpack.c.l.b16 %v308
    %v612 = vunpack.c.h.b16 %v308
    %v613 = vunpack.c.l.b16 %v309
    %v614 = vunpack.c.h.b16 %v309
    %v615 = vunpack.c.l.b16 %v310
    %v616 = vunpack.c.h.b16 %v310
    %v617 = vunpack.c.l.b16 %v311
    %v618 = vunpack.c.h.b16 %v311
    %v619 = vunpack.c.l.b16 %v312
    %v620 = vunpack.c.h.b16 %v312
    %v621 = vunpack.c.l.b16 %v313
    %v622 = vunpack.c.h.b16 %v313
    %v623 = vunpack.c.l.b16 %v314
    %v624 = vunpack.c.h.b16 %v314
    %v625 = vunpack.c.l.b16 %v315
    %v626 = vunpack.c.h.b16 %v315
    %v627 = vunpack.c.l.b16 %v316
    %v628 = vunpack.c.h.b16 %v316
    %v629 = vunpack.c.l.b16 %v317
    %v630 = vunpack.c.h.b16 %v317
    %v631 = vunpack.c.l.b16 %v318
    %v632 = vunpack.c.h.b16 %v318
    %v633 = vunpack.c.l.b16 %v319
    %v634 = vunpack.c.h.b16 %v319
    %v635 = vunpack.c.l.b16 %v320
    %v636 = vunpack.c.h.b16 %v320
    %v637 = vunpack.c.l.b16 %v321
    %v638 = vunpack.c.h.b16 %v321
    %v639 = vunpack.c.l.b16 %v322
    %v640 = vunpack.c.h.b16 %v322
    %v641 = vunpack.c.l.b16 %v323
    %v642 = vunpack.c.h.b16 %v323
    %v643 = vunpack.c.l.b16 %v324
    %v644 = vunpack.c.h.b16 %v324
    %v645 = vunpack.c.l.b16 %v325
    %v646 = vunpack.c.h.b16 %v325
    %v647 = vunpack.c.l.b16 %v326
    %v648 = vunpack.c.h.b16 %v326
    %v649 = vunpack.c.l.b16 %v327
    %v650 = vunpack.c.h.b16 %v327
    %v651 = vunpack.c.l.b16 %v328
    %v652 = vunpack.c.h.b16 %v328
    %v653 = vunpack.c.l.b16 %v329
    %v654 = vunpack.c.h.b16 %v329
    %v655 = vunpack.c.l.b16 %v330
    %v656 = vunpack.c.h.b16 %v330
    %v657 = vunpack.c.l.b16 %v331
    %v658 = vunpack.c.h.b16 %v331
    %v659 = vunpack.c.l.b16 %v332
    %v660 = vunpack.c.h.b16 %v332
    %v661 = vunpack.c.l.b16 %v333
    %v662 = vunpack.c.h.b16 %v333
    %v663 = vunpack.c.l.b16 %v334
    %v664 = vunpack.c.h.b16 %v334
    %v665 = vunpack.c.l.b16 %v335
    %v666 = vunpack.c.h.b16 %v335
    %v667 = vunpack.c.l.b16 %v336
    %v668 = vunpack.c.h.b16 %v336
    %v669 = vunpack.c.l.b16 %v337
    %v670 = vunpack.c.h.b16 %v337
    %v671 = vunpack.c.l.b16 %v338
    %v672 = vunpack.c.h.b16 %v338
    %v673 = vunpack.c.l.b16 %v339
    %v674 = vunpack.c.h.b16 %v339
    %v675 = vunpack.c.l.b16 %v340
    %v676 = vunpack.c.h.b16 %v340
    %v677 = vunpack.c.l.b16 %v341
    %v678 = vunpack.c.h.b16 %v341
    %v679 = vunpack.c.l.b16 %v342
    %v680 = vunpack.c.h.b16 %v342
    %v681 = vunpack.c.l.b16 %v343
    %v682 = vunpack.c.h.b16 %v343
    %v683 = vunpack.c.l.b16 %v344
    %v684 = vunpack.c.h.b16 %v344
    %v685 = vunpack.c.l.b16 %v345
    %v686 = vunpack.c.h.b16 %v345
    %v687 = vunpack.c.l.b16 %v346
    %v688 = vunpack.c.h.b16 %v346
    %v689 = vunpack.c.l.b16 %v347
    %v690 = vunpack.c.h.b16 %v347
    %v691 = vunpack.c.l.b16 %v348
    %v692 = vunpack.c.h.b16 %v348
    %v693 = vunpack.c.l.b16 %v349
    %v694 = vunpack.c.h.b16 %v349
    %v695 = vunpack.c.l.b16 %v350
    %v696 = vunpack.c.h.b16 %v350
    %v697 = vunpack.c.l.b16 %v351
    %v698 = vunpack.c.h.b16 %v351
    %v699 = vunpack.c.l.b16 %v352
    %v700 = vunpack.c.h.b16 %v352
    %v701 = vunpack.c.l.b16 %v353
    %v702 = vunpack.c.h.b16 %v353
    %v703 = vunpack.c.l.b16 %v354
    %v704 = vunpack.c.h.b16 %v354
    %v705 = vunpack.c.l.b16 %v355
    %v706 = vunpack.c.h.b16 %v355
    %v707 = vunpack.c.l.b16 %v356
    %v708 = vunpack.c.h.b16 %v356
    %v709 = vunpack.c.l.b16 %v357
    %v710 = vunpack.c.h.b16 %v357
    %v711 = vunpack.c.l.b16 %v358
    %v712 = vunpack.c.h.b16 %v358
    %v713 = vunpack.c.l.b16 %v359
    %v714 = vunpack.c.h.b16 %v359
    %v715 = vunpack.c.l.b16 %v360
    %v716 = vunpack.c.h.b16 %v360
    %v717 = vunpack.c.l.b16 %v361
    %v718 = vunpack.c.h.b16 %v361
    %v719 = vunpack.c.l.b16 %v362
    %v720 = vunpack.c.h.b16 %v362
    %v721 = vunpack.c.l.b16 %v363
    %v722 = vunpack.c.h.b16 %v363
    %v723 = vunpack.c.l.b16 %v364
    %v724 = vunpack.c.h.b16 %v364
    %v725 = vunpack.c.l.b16 %v365
    %v726 = vunpack.c.h.b16 %v365
    %v727 = vunpack.c.l.b16 %v366
    %v728 = vunpack.c.h.b16 %v366
    %v729 = vunpack.c.l.b16 %v367
    %v730 = vunpack.c.h.b16 %v367
    %v731 = vunpack.c.l.b16 %v368
    %v732 = vunpack.c.h.b16 %v368
    %v733 = vunpack.c.l.b16 %v369
    %v734 = vunpack.c.h.b16 %v369
    %v735 = vunpack.c.l.b16 %v370
    %v736 = vunpack.c.h.b16 %v370
    %v737 = vunpack.c.l.b16 %v371
    %v738 = vunpack.c.h.b16 %v371
    %v739 = vunpack.c.l.b16 %v372
    %v740 = vunpack.c.h.b16 %v372
    %v741 = vunpack.c.l.b16 %v373
    %v742 = vunpack.c.h.b16 %v373
    %v743 = vunpack.c.l.b16 %v374
    %v744 = vunpack.c.h.b16 %v374
    %v745 = vunpack.c.l.b16 %v375
    %v746 = vunpack.c.h.b16 %v375
    %v747 = vunpack.c.l.b16 %v376
    %v748 = vunpack.c.h.b16 %v376
    %v749 = vunpack.c.l.b16 %v377
    %v750 = vunpack.c.h.b16 %v377
    %v751 = vunpack.c.l.b16 %v378
    %v752 = vunpack.c.h.b16 %v378
    %v753 = vunpack.c.l.b16 %v379
    %v754 = vunpack.c.h.b16 %v379
    %v755 = vunpack.c.l.b16 %v380
    %v756 = vunpack.c.h.b16 %v380
    %v757 = vunpack.c.l.b16 %v381
    %v758 = vunpack.c.h.b16 %v381
    %v759 = vunpack.c.l.b16 %v382
    %v760 = vunpack.c.h.b16 %v382
    %v761 = vunpack.c.l.b16 %v383
    %v762 = vunpack.c.h.b16 %v383
    %v763 = vunpack.c.l.b16 %v384
    %v764 = vunpack.c.h.b16 %v384
    %v765 = vunpack.c.l.b16 %v385
    %v766 = vunpack.c.h.b16 %v385
    %v767 = vunpack.c.l.b16 %v386
    %v768 = vunpack.c.h.b16 %v386
    %v769 = vunpack.c.l.b16 %v387
    %v770 = vunpack.c.h.b16 %v387
    %v771 = vunpack.c.l.b16 %v388
    %v772 = vunpack.c.h.b16 %v388
    %v773 = vunpack.c.l.b16 %v389
    %v774 = vunpack.c.h.b16 %v389
    %v775 = vunpack.c.l.b16 %v390
    %v776 = vunpack.c.h.b16 %v390
    %v777 = vunpack.c.l.b16 %v391
    %v778 = vunpack.c.h.b16 %v391
    %v779 = vunpack.c.l.b16 %v392
    %v780 = vunpack.c.h.b16 %v392
    %v781 = vunpack.c.l.b16 %v393
    %v782 = vunpack.c.h.b16 %v393
    %v783 = vunpack.c.l.b16 %v394
    %v784 = vunpack.c.h.b16 %v394
    %v785 = vunpack.c.l.b16 %v395
    %v786 = vunpack.c.h.b16 %v395
    %v787 = vunpack.c.l.b16 %v396
    %v788 = vunpack.c.h.b16 %v396
    %v789 = vunpack.c.l.b16 %v397
    %v790 = vunpack.c.h.b16 %v397
    %v791 = vunpack.c.l.b16 %v398
    %v792 = vunpack.c.h.b16 %v398
    %v793 = vunpack.c.l.b16 %v399
    %v794 = vunpack.c.h.b16 %v399
    %v795 = vunpack.c.l.b16 %v400
    %v796 = vunpack.c.h.b16 %v400
    %v797 = vunpack.c.l.b16 %v401
    %v798 = vunpack.c.h.b16 %v401
    %v799 = vunpack.c.l.b16 %v402
    %v800 = vunpack.c.h.b16 %v402
    %v801 = vunpack.c.l.b16 %v403
    %v802 = vunpack.c.h.b16 %v403
    %v803 = vunpack.c.l.b16 %v404
    %v804 = vunpack.c.h.b16 %v404
    %v805 = vunpack.c.l.b16 %v405
    %v806 = vunpack.c.h.b16 %v405
    %v807 = vunpack.c.l.b16 %v406
    %v808 = vunpack.c.h.b16 %v406
    %v809 = vunpack.c.l.b16 %v407
    %v810 = vunpack.c.h.b16 %v407
    %v811 = vunpack.c.l.b16 %v408
    %v812 = vunpack.c.h.b16 %v408
    %v813 = vunpack.c.l.b16 %v409
    %v814 = vunpack.c.h.b16 %v409
    %v815 = vunpack.c.l.b16 %v410
    %v816 = vunpack.c.h.b16 %v410
    %v817 = vpack.c.b16 %v565, %v561
    %v818 = vpack.c.b16 %v566, %v562
    %v819 = vpack.c.b16 %v567, %v563
    %v820 = vpack.c.b16 %v568, %v564
    %v821 = vpack.c.b16 %v573, %v569
    %v822 = vpack.c.b16 %v574, %v570
    %v823 = vpack.c.b16 %v575, %v571
    %v824 = vpack.c.b16 %v576, %v572
    %v825 = vpack.c.b16 %v581, %v577
    %v826 = vpack.c.b16 %v582, %v578
    %v827 = vpack.c.b16 %v583, %v579
    %v828 = vpack.c.b16 %v584, %v580
    %v829 = vpack.c.b16 %v589, %v585
    %v830 = vpack.c.b16 %v590, %v586
    %v831 = vpack.c.b16 %v591, %v587
    %v832 = vpack.c.b16 %v592, %v588
    %v833 = vpack.c.b16 %v597, %v593
    %v834 = vpack.c.b16 %v598, %v594
    %v835 = vpack.c.b16 %v599, %v595
    %v836 = vpack.c.b16 %v600, %v596
    %v837 = vpack.c.b16 %v605, %v601
    %v838 = vpack.c.b16 %v606, %v602
    %v839 = vpack.c.b16 %v607, %v603
    %v840 = vpack.c.b16 %v608, %v604
    %v841 = vpack.c.b16 %v613, %v609
    %v842 = vpack.c.b16 %v614, %v610
    %v843 = vpack.c.b16 %v615, %v611
    %v844 = vpack.c.b16 %v616, %v612
    %v845 = vpack.c.b16 %v621, %v617
    %v846 = vpack.c.b16 %v622, %v618
    %v847 = vpack.c.b16 %v623, %v619
    %v848 = vpack.c.b16 %v624, %v620
    %v849 = vpack.c.b16 %v629, %v625
    %v850 = vpack.c.b16 %v630, %v626
    %v851 = vpack.c.b16 %v631, %v627
    %v852 = vpack.c.b16 %v632, %v628
    %v853 = vpack.c.b16 %v637, %v633
    %v854 = vpack.c.b16 %v638, %v634
    %v855 = vpack.c.b16 %v639, %v635
    %v856 = vpack.c.b16 %v640, %v636
    %v857 = vpack.c.b16 %v645, %v641
    %v858 = vpack.c.b16 %v646, %v642
    %v859 = vpack.c.b16 %v647, %v643
    %v860 = vpack.c.b16 %v648, %v644
    %v861 = vpack.c.b16 %v653, %v649
    %v862 = vpack.c.b16 %v654, %v650
    %v863 = vpack.c.b16 %v655, %v651
    %v864 = vpack.c.b16 %v656, %v652
    %v865 = vpack.c.b16 %v661, %v657
    %v866 = vpack.c.b16 %v662, %v658
    %v867 = vpack.c.b16 %v663, %v659
    %v868 = vpack.c.b16 %v664, %v660
    %v869 = vpack.c.b16 %v669, %v665
    %v870 = vpack.c.b16 %v670, %v666
    %v871 = vpack.c.b16 %v671, %v667
    %v872 = vpack.c.b16 %v672, %v668
    %v873 = vpack.c.b16 %v677, %v673
    %v874 = vpack.c.b16 %v678, %v674
    %v875 = vpack.c.b16 %v679, %v675
    %v876 = vpack.c.b16 %v680, %v676
    %v877 = vpack.c.b16 %v685, %v681
    %v878 = vpack.c.b16 %v686, %v682
    %v879 = vpack.c.b16 %v687, %v683
    %v880 = vpack.c.b16 %v688, %v684
    %v881 = vpack.c.b16 %v693, %v689
    %v882 = vpack.c.b16 %v694, %v690
    %v883 = vpack.c.b16 %v695, %v691
    %v884 = vpack.c.b16 %v696, %v692
    %v885 = vpack.c.b16 %v701, %v697
    %v886 = vpack.c.b16 %v702, %v698
    %v887 = vpack.c.b16 %v703, %v699
    %v888 = vpack.c.b16 %v704, %v700
    %v889 = vpack.c.b16 %v709, %v705
    %v890 = vpack.c.b16 %v710, %v706
    %v891 = vpack.c.b16 %v711, %v707
    %v892 = vpack.c.b16 %v712, %v708
    %v893 = vpack.c.b16 %v717, %v713
    %v894 = vpack.c.b16 %v718, %v714
    %v895 = vpack.c.b16 %v719, %v715
    %v896 = vpack.c.b16 %v720, %v716
    %v897 = vpack.c.b16 %v725, %v721
    %v898 = vpack.c.b16 %v726, %v722
    %v899 = vpack.c.b16 %v727, %v723
    %v900 = vpack.c.b16 %v728, %v724
    %v901 = vpack.c.b16 %v733, %v729
    %v902 = vpack.c.b16 %v734, %v730
    %v903 = vpack.c.b16 %v735, %v731
    %v904 = vpack.c.b16 %v736, %v732
    %v905 = vpack.c.b16 %v741, %v737
    %v906 = vpack.c.b16 %v742, %v738
    %v907 = vpack.c.b16 %v743, %v739
    %v908 = vpack.c.b16 %v744, %v740
    %v909 = vpack.c.b16 %v749, %v745
    %v910 = vpack.c.b16 %v750, %v746
    %v911 = vpack.c.b16 %v751, %v747
    %v912 = vpack.c.b16 %v752, %v748
    %v913 = vpack.c.b16 %v757, %v753
    %v914 = vpack.c.b16 %v758, %v754
    %v915 = vpack.c.b16 %v759, %v755
    %v916 = vpack.c.b16 %v760, %v756
    %v917 = vpack.c.b16 %v765, %v761
    %v918 = vpack.c.b16 %v766, %v762
    %v919 = vpack.c.b16 %v767, %v763
    %v920 = vpack.c.b16 %v768, %v764
    %v921 = vpack.c.b16 %v773, %v769
    %v922 = vpack.c.b16 %v774, %v770
    %v923 = vpack.c.b16 %v775, %v771
    %v924 = vpack.c.b16 %v776, %v772
    %v925 = vpack.c.b16 %v781, %v777
    %v926 = vpack.c.b16 %v782, %v778
    %v927 = vpack.c.b16 %v783, %v779
    %v928 = vpack.c.b16 %v784, %v780
    %v929 = vpack.c.b16 %v789, %v785
    %v930 = vpack.c.b16 %v790, %v786
    %v931 = vpack.c.b16 %v791, %v787
    %v932 = vpack.c.b16 %v792, %v788
    %v933 = vpack.c.b16 %v797, %v793
    %v934 = vpack.c.b16 %v798, %v794
    %v935 = vpack.c.b16 %v799, %v795
    %v936 = vpack.c.b16 %v800, %v796
    %v937 = vpack.c.b16 %v805, %v801
    %v938 = vpack.c.b16 %v806, %v802
    %v939 = vpack.c.b16 %v807, %v803
    %v940 = vpack.c.b16 %v808, %v804
    %v941 = vpack.c.b16 %v813, %v809
    %v942 = vpack.c.b16 %v814, %v810
    %v943 = vpack.c.b16 %v815, %v811
    %v944 = vpack.c.b16 %v816, %v812
    %1073 = vmatprep.subr.bf16.mxu0 %v846
    %1074 = vmatpush1.bf16.msra.mxu0 %v845
    %1075 = vmatprep.subr.bf16.mxu0 %v842
    %1076 = vmatpush1.bf16.msra.mxu0 %v841
    %1077 = vmatprep.subr.bf16.mxu0 %v838
    %1078 = vmatpush1.bf16.msra.mxu0 %v837
    %1079 = vmatprep.subr.bf16.mxu0 %v834
    %1080 = vmatpush1.bf16.msra.mxu0 %v833
    %1081 = vmatprep.subr.bf16.mxu0 %v830
    %1082 = vmatpush1.bf16.msra.mxu0 %v829
    %1083 = vmatprep.subr.bf16.mxu0 %v826
    %1084 = vmatpush1.bf16.msra.mxu0 %v825
    %1085 = vmatprep.subr.bf16.mxu0 %v822
    %1086 = vmatpush1.bf16.msra.mxu0 %v821
    %1087 = vmatprep.subr.bf16.mxu0 %v818
    %1088 = vmatpush1.bf16.msra.mxu0 %v817
    %1089 = vmatprep.subr.bf16.mxu0 %v878
    %1090 = vmatpush2.bf16.msra.mxu0 %v877
    %1091 = vmatprep.subr.bf16.mxu0 %v874
    %1092 = vmatpush2.bf16.msra.mxu0 %v873
    %1093 = vmatprep.subr.bf16.mxu0 %v870
    %1094 = vmatpush2.bf16.msra.mxu0 %v869
    %1095 = vmatprep.subr.bf16.mxu0 %v866
    %1096 = vmatpush2.bf16.msra.mxu0 %v865
    %1097 = vmatprep.subr.bf16.mxu0 %v862
    %1098 = vmatpush2.bf16.msra.mxu0 %v861
    %1099 = vmatprep.subr.bf16.mxu0 %v858
    %1100 = vmatpush2.bf16.msra.mxu0 %v857
    %1101 = vmatprep.subr.bf16.mxu0 %v854
    %1102 = vmatpush2.bf16.msra.mxu0 %v853
    %1103 = vmatprep.subr.bf16.mxu0 %v850
    %1104 = vmatpush2.bf16.msra.mxu0 %v849
    %1105 = vmatprep.mubr.bf16.mxu0 %v262
    %1106 = vmatmul.mubr.bf16.gmra.mxu0 %v261
    %v1107 = vpop.f32.mrf.mxu0
    %v1108 = vadd.f32 %v416, %v1107
    %v1109 = vpop.f32.mrf.mxu0
    %v1110 = vadd.f32 %v420, %v1109
    %v1111 = vpop.f32.mrf.mxu0
    %v1112 = vpop.f32.mrf.mxu0
    %1113 = vdwg.mxu0
    %1114 = vmatprep.subr.bf16.mxu0 %v910
    %1115 = vmatpush1.bf16.msra.mxu0 %v909
    %1116 = vmatprep.subr.bf16.mxu0 %v906
    %1117 = vmatpush1.bf16.msra.mxu0 %v905
    %1118 = vmatprep.subr.bf16.mxu0 %v902
    %1119 = vmatpush1.bf16.msra.mxu0 %v901
    %1120 = vmatprep.subr.bf16.mxu0 %v898
    %1121 = vmatpush1.bf16.msra.mxu0 %v897
    %1122 = vmatprep.subr.bf16.mxu0 %v894
    %1123 = vmatpush1.bf16.msra.mxu0 %v893
    %1124 = vmatprep.subr.bf16.mxu0 %v890
    %1125 = vmatpush1.bf16.msra.mxu0 %v889
    %1126 = vmatprep.subr.bf16.mxu0 %v886
    %1127 = vmatpush1.bf16.msra.mxu0 %v885
    %1128 = vmatprep.subr.bf16.mxu0 %v882
    %1129 = vmatpush1.bf16.msra.mxu0 %v881
    %1130 = vmatprep.subr.bf16.mxu0 %v942
    %1131 = vmatpush2.bf16.msra.mxu0 %v941
    %1132 = vmatprep.subr.bf16.mxu0 %v938
    %1133 = vmatpush2.bf16.msra.mxu0 %v937
    %1134 = vmatprep.subr.bf16.mxu0 %v934
    %1135 = vmatpush2.bf16.msra.mxu0 %v933
    %1136 = vmatprep.subr.bf16.mxu0 %v930
    %1137 = vmatpush2.bf16.msra.mxu0 %v929
    %1138 = vmatprep.subr.bf16.mxu0 %v926
    %1139 = vmatpush2.bf16.msra.mxu0 %v925
    %1140 = vmatprep.subr.bf16.mxu0 %v922
    %1141 = vmatpush2.bf16.msra.mxu0 %v921
    %1142 = vmatprep.subr.bf16.mxu0 %v918
    %1143 = vmatpush2.bf16.msra.mxu0 %v917
    %1144 = vmatprep.subr.bf16.mxu0 %v914
    %1145 = vmatpush2.bf16.msra.mxu0 %v913
    %1146 = vmatprep.mubr.bf16.mxu0 %v264
    %1147 = vmatmul.mubr.bf16.gmra.mxu0 %v263
    %v1148 = vpop.f32.mrf.mxu0
    %v1149 = vadd.f32 %v1108, %v1148
    %v1150 = vpop.f32.mrf.mxu0
    %v1151 = vadd.f32 %v1110, %v1150
    %v1152 = vpop.f32.mrf.mxu0
    %v1153 = vpop.f32.mrf.mxu0
    %1154 = vdwg.mxu0
    %1155 = vmatprep.subr.bf16.mxu0 %v848
    %1156 = vmatpush1.bf16.msra.mxu0 %v847
    %1157 = vmatprep.subr.bf16.mxu0 %v844
    %1158 = vmatpush1.bf16.msra.mxu0 %v843
    %1159 = vmatprep.subr.bf16.mxu0 %v840
    %1160 = vmatpush1.bf16.msra.mxu0 %v839
    %1161 = vmatprep.subr.bf16.mxu0 %v836
    %1162 = vmatpush1.bf16.msra.mxu0 %v835
    %1163 = vmatprep.subr.bf16.mxu0 %v832
    %1164 = vmatpush1.bf16.msra.mxu0 %v831
    %1165 = vmatprep.subr.bf16.mxu0 %v828
    %1166 = vmatpush1.bf16.msra.mxu0 %v827
    %1167 = vmatprep.subr.bf16.mxu0 %v824
    %1168 = vmatpush1.bf16.msra.mxu0 %v823
    %1169 = vmatprep.subr.bf16.mxu0 %v820
    %1170 = vmatpush1.bf16.msra.mxu0 %v819
    %1171 = vmatprep.subr.bf16.mxu0 %v880
    %1172 = vmatpush2.bf16.msra.mxu0 %v879
    %1173 = vmatprep.subr.bf16.mxu0 %v876
    %1174 = vmatpush2.bf16.msra.mxu0 %v875
    %1175 = vmatprep.subr.bf16.mxu0 %v872
    %1176 = vmatpush2.bf16.msra.mxu0 %v871
    %1177 = vmatprep.subr.bf16.mxu0 %v868
    %1178 = vmatpush2.bf16.msra.mxu0 %v867
    %1179 = vmatprep.subr.bf16.mxu0 %v864
    %1180 = vmatpush2.bf16.msra.mxu0 %v863
    %1181 = vmatprep.subr.bf16.mxu0 %v860
    %1182 = vmatpush2.bf16.msra.mxu0 %v859
    %1183 = vmatprep.subr.bf16.mxu0 %v856
    %1184 = vmatpush2.bf16.msra.mxu0 %v855
    %1185 = vmatprep.subr.bf16.mxu0 %v852
    %1186 = vmatpush2.bf16.msra.mxu0 %v851
    %1187 = vmatprep.mubr.bf16.mxu0 %v262
    %1188 = vmatmul.mubr.bf16.gmra.mxu0 %v261
    %v1189 = vpop.f32.mrf.mxu0
    %v1190 = vadd.f32 %v424, %v1189
    %v1191 = vpop.f32.mrf.mxu0
    %v1192 = vadd.f32 %v428, %v1191
    %v1193 = vpop.f32.mrf.mxu0
    %v1194 = vpop.f32.mrf.mxu0
    %1195 = vdwg.mxu0
    %1196 = vmatprep.subr.bf16.mxu0 %v912
    %1197 = vmatpush1.bf16.msra.mxu0 %v911
    %1198 = vmatprep.subr.bf16.mxu0 %v908
    %1199 = vmatpush1.bf16.msra.mxu0 %v907
    %1200 = vmatprep.subr.bf16.mxu0 %v904
    %1201 = vmatpush1.bf16.msra.mxu0 %v903
    %1202 = vmatprep.subr.bf16.mxu0 %v900
    %1203 = vmatpush1.bf16.msra.mxu0 %v899
    %1204 = vmatprep.subr.bf16.mxu0 %v896
    %1205 = vmatpush1.bf16.msra.mxu0 %v895
    %1206 = vmatprep.subr.bf16.mxu0 %v892
    %1207 = vmatpush1.bf16.msra.mxu0 %v891
    %1208 = vmatprep.subr.bf16.mxu0 %v888
    %1209 = vmatpush1.bf16.msra.mxu0 %v887
    %1210 = vmatprep.subr.bf16.mxu0 %v884
    %1211 = vmatpush1.bf16.msra.mxu0 %v883
    %1212 = vmatprep.subr.bf16.mxu0 %v944
    %1213 = vmatpush2.bf16.msra.mxu0 %v943
    %1214 = vmatprep.subr.bf16.mxu0 %v940
    %1215 = vmatpush2.bf16.msra.mxu0 %v939
    %1216 = vmatprep.subr.bf16.mxu0 %v936
    %1217 = vmatpush2.bf16.msra.mxu0 %v935
    %1218 = vmatprep.subr.bf16.mxu0 %v932
    %1219 = vmatpush2.bf16.msra.mxu0 %v931
    %1220 = vmatprep.subr.bf16.mxu0 %v928
    %1221 = vmatpush2.bf16.msra.mxu0 %v927
    %1222 = vmatprep.subr.bf16.mxu0 %v924
    %1223 = vmatpush2.bf16.msra.mxu0 %v923
    %1224 = vmatprep.subr.bf16.mxu0 %v920
    %1225 = vmatpush2.bf16.msra.mxu0 %v919
    %1226 = vmatprep.subr.bf16.mxu0 %v916
    %1227 = vmatpush2.bf16.msra.mxu0 %v915
    %1228 = vmatprep.mubr.bf16.mxu0 %v264
    %1229 = vmatmul.mubr.bf16.gmra.mxu0 %v263
    %v1230 = vpop.f32.mrf.mxu0
    %v1231 = vadd.f32 %v1190, %v1230
    %v1232 = vpop.f32.mrf.mxu0
    %v1233 = vadd.f32 %v1192, %v1232
    %v1234 = vpop.f32.mrf.mxu0
    %v1235 = vpop.f32.mrf.mxu0
    %1236 = vdwg.mxu0
    %v1237 = vmax.f32 %v1149, 0.0
    %v1238 = vmax.f32 %v1151, 0.0
    %v1239 = vmax.f32 %v1231, 0.0
    %v1240 = vmax.f32 %v1233, 0.0
    %v1241 = vpack.c.bf16 %v1237, %v1237
    %v1242 = vpack.c.bf16 %v1238, %v1238
    %v1243 = vpack.c.bf16 %v1239, %v1239
    %v1244 = vpack.c.bf16 %v1240, %v1240
    %s1245 = sshll.u32 %s266, 4
    %1246 = dma.done %s271, %s1245
    %s1247 = scalar_lea.hbm %s3, 32768
    // Predicated region
    $region54: #{tpu_custom_call.1} parent=1 // pred_check
      _
    $region55: #{tpu_custom_call.1} parent=1 // pred_check_branch
      %1249 = sbr.rel target = $region57
    $region56: #{tpu_custom_call.1} parent=1 // pred_region
      %1250 = sst [smem:[#allocation15]] [#allocation20]
      %1251 = sst [smem:[#allocation16]] [#allocation19]
    $region57: #{tpu_custom_call.1} parent=1 // pred_fallthru
      _
    %1253 = shalt.err (0)
    %s1255 = sshll.u32 [#allocation2], 4
    %s1256 = int_to_ptr.vmem [resolvable:$true] %s1255
    %1258 = dma.hbm_to_vmem [thread:$0]  %s1247, 16384, %s1256, [#allocation3]
    %v1259 = vld [vmem:[%s270] sm:$0xff]
    %v1260 = vld [vmem:[%s270 + $0x8] sm:$0xff]
    %v1261 = vld [vmem:[%s270 + $0x10] sm:$0xff]
    %v1262 = vld [vmem:[%s270 + $0x18] sm:$0xff]
    %v1263 = vld [vmem:[%s270 + $0x20] sm:$0xff]
    %v1264 = vld [vmem:[%s270 + $0x28] sm:$0xff]
    %v1265 = vld [vmem:[%s270 + $0x30] sm:$0xff]
    %v1266 = vld [vmem:[%s270 + $0x38] sm:$0xff]
    %v1267 = vld [vmem:[%s270 + $0x40] sm:$0xff]
    %v1268 = vld [vmem:[%s270 + $0x48] sm:$0xff]
    %v1269 = vld [vmem:[%s270 + $0x50] sm:$0xff]
    %v1270 = vld [vmem:[%s270 + $0x58] sm:$0xff]
    %v1271 = vld [vmem:[%s270 + $0x60] sm:$0xff]
    %v1272 = vld [vmem:[%s270 + $0x68] sm:$0xff]
    %v1273 = vld [vmem:[%s270 + $0x70] sm:$0xff]
    %v1274 = vld [vmem:[%s270 + $0x78] sm:$0xff]
    %v1275 = vld [vmem:[%s270 + $0x80] sm:$0xff]
    %v1276 = vld [vmem:[%s270 + $0x88] sm:$0xff]
    %v1277 = vld [vmem:[%s270 + $0x90] sm:$0xff]
    %v1278 = vld [vmem:[%s270 + $0x98] sm:$0xff]
    %v1279 = vld [vmem:[%s270 + $0xa0] sm:$0xff]
    %v1280 = vld [vmem:[%s270 + $0xa8] sm:$0xff]
    %v1281 = vld [vmem:[%s270 + $0xb0] sm:$0xff]
    %v1282 = vld [vmem:[%s270 + $0xb8] sm:$0xff]
    %v1283 = vld [vmem:[%s270 + $0xc0] sm:$0xff]
    %v1284 = vld [vmem:[%s270 + $0xc8] sm:$0xff]
    %v1285 = vld [vmem:[%s270 + $0xd0] sm:$0xff]
    %v1286 = vld [vmem:[%s270 + $0xd8] sm:$0xff]
    %v1287 = vld [vmem:[%s270 + $0xe0] sm:$0xff]
    %v1288 = vld [vmem:[%s270 + $0xe8] sm:$0xff]
    %v1289 = vld [vmem:[%s270 + $0xf0] sm:$0xff]
    %v1290 = vld [vmem:[%s270 + $0xf8] sm:$0xff]
    %v1291 = vld [vmem:[%s270 + $0x100] sm:$0xff]
    %v1292 = vld [vmem:[%s270 + $0x108] sm:$0xff]
    %v1293 = vld [vmem:[%s270 + $0x110] sm:$0xff]
    %v1294 = vld [vmem:[%s270 + $0x118] sm:$0xff]
    %v1295 = vld [vmem:[%s270 + $0x120] sm:$0xff]
    %v1296 = vld [vmem:[%s270 + $0x128] sm:$0xff]
    %v1297 = vld [vmem:[%s270 + $0x130] sm:$0xff]
    %v1298 = vld [vmem:[%s270 + $0x138] sm:$0xff]
    %v1299 = vld [vmem:[%s270 + $0x140] sm:$0xff]
    %v1300 = vld [vmem:[%s270 + $0x148] sm:$0xff]
    %v1301 = vld [vmem:[%s270 + $0x150] sm:$0xff]
    %v1302 = vld [vmem:[%s270 + $0x158] sm:$0xff]
    %v1303 = vld [vmem:[%s270 + $0x160] sm:$0xff]
    %v1304 = vld [vmem:[%s270 + $0x168] sm:$0xff]
    %v1305 = vld [vmem:[%s270 + $0x170] sm:$0xff]
    %v1306 = vld [vmem:[%s270 + $0x178] sm:$0xff]
    %v1307 = vld [vmem:[%s270 + $0x180] sm:$0xff]
    %v1308 = vld [vmem:[%s270 + $0x188] sm:$0xff]
    %v1309 = vld [vmem:[%s270 + $0x190] sm:$0xff]
    %v1310 = vld [vmem:[%s270 + $0x198] sm:$0xff]
    %v1311 = vld [vmem:[%s270 + $0x1a0] sm:$0xff]
    %v1312 = vld [vmem:[%s270 + $0x1a8] sm:$0xff]
    %v1313 = vld [vmem:[%s270 + $0x1b0] sm:$0xff]
    %v1314 = vld [vmem:[%s270 + $0x1b8] sm:$0xff]
    %v1315 = vld [vmem:[%s270 + $0x1c0] sm:$0xff]
    %v1316 = vld [vmem:[%s270 + $0x1c8] sm:$0xff]
    %v1317 = vld [vmem:[%s270 + $0x1d0] sm:$0xff]
    %v1318 = vld [vmem:[%s270 + $0x1d8] sm:$0xff]
    %v1319 = vld [vmem:[%s270 + $0x1e0] sm:$0xff]
    %v1320 = vld [vmem:[%s270 + $0x1e8] sm:$0xff]
    %v1321 = vld [vmem:[%s270 + $0x1f0] sm:$0xff]
    %v1322 = vld [vmem:[%s270 + $0x1f8] sm:$0xff]
    %v1323 = vld [vmem:[%s270 + $0x200] sm:$0xff]
    %v1324 = vld [vmem:[%s270 + $0x208] sm:$0xff]
    %v1325 = vld [vmem:[%s270 + $0x210] sm:$0xff]
    %v1326 = vld [vmem:[%s270 + $0x218] sm:$0xff]
    %v1327 = vld [vmem:[%s270 + $0x220] sm:$0xff]
    %v1328 = vld [vmem:[%s270 + $0x228] sm:$0xff]
    %v1329 = vld [vmem:[%s270 + $0x230] sm:$0xff]
    %v1330 = vld [vmem:[%s270 + $0x238] sm:$0xff]
    %v1331 = vld [vmem:[%s270 + $0x240] sm:$0xff]
    %v1332 = vld [vmem:[%s270 + $0x248] sm:$0xff]
    %v1333 = vld [vmem:[%s270 + $0x250] sm:$0xff]
    %v1334 = vld [vmem:[%s270 + $0x258] sm:$0xff]
    %v1335 = vld [vmem:[%s270 + $0x260] sm:$0xff]
    %v1336 = vld [vmem:[%s270 + $0x268] sm:$0xff]
    %v1337 = vld [vmem:[%s270 + $0x270] sm:$0xff]
    %v1338 = vld [vmem:[%s270 + $0x278] sm:$0xff]
    %v1339 = vld [vmem:[%s270 + $0x280] sm:$0xff]
    %v1340 = vld [vmem:[%s270 + $0x288] sm:$0xff]
    %v1341 = vld [vmem:[%s270 + $0x290] sm:$0xff]
    %v1342 = vld [vmem:[%s270 + $0x298] sm:$0xff]
    %v1343 = vld [vmem:[%s270 + $0x2a0] sm:$0xff]
    %v1344 = vld [vmem:[%s270 + $0x2a8] sm:$0xff]
    %v1345 = vld [vmem:[%s270 + $0x2b0] sm:$0xff]
    %v1346 = vld [vmem:[%s270 + $0x2b8] sm:$0xff]
    %v1347 = vld [vmem:[%s270 + $0x2c0] sm:$0xff]
    %v1348 = vld [vmem:[%s270 + $0x2c8] sm:$0xff]
    %v1349 = vld [vmem:[%s270 + $0x2d0] sm:$0xff]
    %v1350 = vld [vmem:[%s270 + $0x2d8] sm:$0xff]
    %v1351 = vld [vmem:[%s270 + $0x2e0] sm:$0xff]
    %v1352 = vld [vmem:[%s270 + $0x2e8] sm:$0xff]
    %v1353 = vld [vmem:[%s270 + $0x2f0] sm:$0xff]
    %v1354 = vld [vmem:[%s270 + $0x2f8] sm:$0xff]
    %v1355 = vld [vmem:[%s270 + $0x300] sm:$0xff]
    %v1356 = vld [vmem:[%s270 + $0x308] sm:$0xff]
    %v1357 = vld [vmem:[%s270 + $0x310] sm:$0xff]
    %v1358 = vld [vmem:[%s270 + $0x318] sm:$0xff]
    %v1359 = vld [vmem:[%s270 + $0x320] sm:$0xff]
    %v1360 = vld [vmem:[%s270 + $0x328] sm:$0xff]
    %v1361 = vld [vmem:[%s270 + $0x330] sm:$0xff]
    %v1362 = vld [vmem:[%s270 + $0x338] sm:$0xff]
    %v1363 = vld [vmem:[%s270 + $0x340] sm:$0xff]
    %v1364 = vld [vmem:[%s270 + $0x348] sm:$0xff]
    %v1365 = vld [vmem:[%s270 + $0x350] sm:$0xff]
    %v1366 = vld [vmem:[%s270 + $0x358] sm:$0xff]
    %v1367 = vld [vmem:[%s270 + $0x360] sm:$0xff]
    %v1368 = vld [vmem:[%s270 + $0x368] sm:$0xff]
    %v1369 = vld [vmem:[%s270 + $0x370] sm:$0xff]
    %v1370 = vld [vmem:[%s270 + $0x378] sm:$0xff]
    %v1371 = vld [vmem:[%s270 + $0x380] sm:$0xff]
    %v1372 = vld [vmem:[%s270 + $0x388] sm:$0xff]
    %v1373 = vld [vmem:[%s270 + $0x390] sm:$0xff]
    %v1374 = vld [vmem:[%s270 + $0x398] sm:$0xff]
    %v1375 = vld [vmem:[%s270 + $0x3a0] sm:$0xff]
    %v1376 = vld [vmem:[%s270 + $0x3a8] sm:$0xff]
    %v1377 = vld [vmem:[%s270 + $0x3b0] sm:$0xff]
    %v1378 = vld [vmem:[%s270 + $0x3b8] sm:$0xff]
    %v1379 = vld [vmem:[%s270 + $0x3c0] sm:$0xff]
    %v1380 = vld [vmem:[%s270 + $0x3c8] sm:$0xff]
    %v1381 = vld [vmem:[%s270 + $0x3d0] sm:$0xff]
    %v1382 = vld [vmem:[%s270 + $0x3d8] sm:$0xff]
    %v1383 = vld [vmem:[%s270 + $0x3e0] sm:$0xff]
    %v1384 = vld [vmem:[%s270 + $0x3e8] sm:$0xff]
    %v1385 = vld [vmem:[%s270 + $0x3f0] sm:$0xff]
    %v1386 = vld [vmem:[%s270 + $0x3f8] sm:$0xff]
    %s1387 = scalar_lea.vmem [#allocation10], 4
    %v1388 = vld [vmem:[%s1387] sm:$0xf]
    %v1390 = vlaneseq
    %v1391 = vshrl.u32 %v1390, 7
    %v1392 = vsub.s32 0, %v1391
    %v1393 = vrot.slane %v1388, %v1392
    %v1394 = vlaneseq
    %v1395 = vshrl.u32 %v1394, 7
    %v1396 = vsub.s32 1, %v1395
    %v1397 = vrot.slane %v1388, %v1396
    %v1398 = vlaneseq
    %v1399 = vshrl.u32 %v1398, 7
    %v1400 = vsub.s32 2, %v1399
    %v1401 = vrot.slane %v1388, %v1400
    %v1402 = vlaneseq
    %v1403 = vshrl.u32 %v1402, 7
    %v1404 = vsub.s32 3, %v1403
    %v1405 = vrot.slane %v1388, %v1404
    %v1538 = vunpack.c.l.b16 %v1259
    %v1539 = vunpack.c.h.b16 %v1259
    %v1540 = vunpack.c.l.b16 %v1260
    %v1541 = vunpack.c.h.b16 %v1260
    %v1542 = vunpack.c.l.b16 %v1261
    %v1543 = vunpack.c.h.b16 %v1261
    %v1544 = vunpack.c.l.b16 %v1262
    %v1545 = vunpack.c.h.b16 %v1262
    %v1546 = vunpack.c.l.b16 %v1263
    %v1547 = vunpack.c.h.b16 %v1263
    %v1548 = vunpack.c.l.b16 %v1264
    %v1549 = vunpack.c.h.b16 %v1264
    %v1550 = vunpack.c.l.b16 %v1265
    %v1551 = vunpack.c.h.b16 %v1265
    %v1552 = vunpack.c.l.b16 %v1266
    %v1553 = vunpack.c.h.b16 %v1266
    %v1554 = vunpack.c.l.b16 %v1267
    %v1555 = vunpack.c.h.b16 %v1267
    %v1556 = vunpack.c.l.b16 %v1268
    %v1557 = vunpack.c.h.b16 %v1268
    %v1558 = vunpack.c.l.b16 %v1269
    %v1559 = vunpack.c.h.b16 %v1269
    %v1560 = vunpack.c.l.b16 %v1270
    %v1561 = vunpack.c.h.b16 %v1270
    %v1562 = vunpack.c.l.b16 %v1271
    %v1563 = vunpack.c.h.b16 %v1271
    %v1564 = vunpack.c.l.b16 %v1272
    %v1565 = vunpack.c.h.b16 %v1272
    %v1566 = vunpack.c.l.b16 %v1273
    %v1567 = vunpack.c.h.b16 %v1273
    %v1568 = vunpack.c.l.b16 %v1274
    %v1569 = vunpack.c.h.b16 %v1274
    %v1570 = vunpack.c.l.b16 %v1275
    %v1571 = vunpack.c.h.b16 %v1275
    %v1572 = vunpack.c.l.b16 %v1276
    %v1573 = vunpack.c.h.b16 %v1276
    %v1574 = vunpack.c.l.b16 %v1277
    %v1575 = vunpack.c.h.b16 %v1277
    %v1576 = vunpack.c.l.b16 %v1278
    %v1577 = vunpack.c.h.b16 %v1278
    %v1578 = vunpack.c.l.b16 %v1279
    %v1579 = vunpack.c.h.b16 %v1279
    %v1580 = vunpack.c.l.b16 %v1280
    %v1581 = vunpack.c.h.b16 %v1280
    %v1582 = vunpack.c.l.b16 %v1281
    %v1583 = vunpack.c.h.b16 %v1281
    %v1584 = vunpack.c.l.b16 %v1282
    %v1585 = vunpack.c.h.b16 %v1282
    %v1586 = vunpack.c.l.b16 %v1283
    %v1587 = vunpack.c.h.b16 %v1283
    %v1588 = vunpack.c.l.b16 %v1284
    %v1589 = vunpack.c.h.b16 %v1284
    %v1590 = vunpack.c.l.b16 %v1285
    %v1591 = vunpack.c.h.b16 %v1285
    %v1592 = vunpack.c.l.b16 %v1286
    %v1593 = vunpack.c.h.b16 %v1286
    %v1594 = vunpack.c.l.b16 %v1287
    %v1595 = vunpack.c.h.b16 %v1287
    %v1596 = vunpack.c.l.b16 %v1288
    %v1597 = vunpack.c.h.b16 %v1288
    %v1598 = vunpack.c.l.b16 %v1289
    %v1599 = vunpack.c.h.b16 %v1289
    %v1600 = vunpack.c.l.b16 %v1290
    %v1601 = vunpack.c.h.b16 %v1290
    %v1602 = vunpack.c.l.b16 %v1291
    %v1603 = vunpack.c.h.b16 %v1291
    %v1604 = vunpack.c.l.b16 %v1292
    %v1605 = vunpack.c.h.b16 %v1292
    %v1606 = vunpack.c.l.b16 %v1293
    %v1607 = vunpack.c.h.b16 %v1293
    %v1608 = vunpack.c.l.b16 %v1294
    %v1609 = vunpack.c.h.b16 %v1294
    %v1610 = vunpack.c.l.b16 %v1295
    %v1611 = vunpack.c.h.b16 %v1295
    %v1612 = vunpack.c.l.b16 %v1296
    %v1613 = vunpack.c.h.b16 %v1296
    %v1614 = vunpack.c.l.b16 %v1297
    %v1615 = vunpack.c.h.b16 %v1297
    %v1616 = vunpack.c.l.b16 %v1298
    %v1617 = vunpack.c.h.b16 %v1298
    %v1618 = vunpack.c.l.b16 %v1299
    %v1619 = vunpack.c.h.b16 %v1299
    %v1620 = vunpack.c.l.b16 %v1300
    %v1621 = vunpack.c.h.b16 %v1300
    %v1622 = vunpack.c.l.b16 %v1301
    %v1623 = vunpack.c.h.b16 %v1301
    %v1624 = vunpack.c.l.b16 %v1302
    %v1625 = vunpack.c.h.b16 %v1302
    %v1626 = vunpack.c.l.b16 %v1303
    %v1627 = vunpack.c.h.b16 %v1303
    %v1628 = vunpack.c.l.b16 %v1304
    %v1629 = vunpack.c.h.b16 %v1304
    %v1630 = vunpack.c.l.b16 %v1305
    %v1631 = vunpack.c.h.b16 %v1305
    %v1632 = vunpack.c.l.b16 %v1306
    %v1633 = vunpack.c.h.b16 %v1306
    %v1634 = vunpack.c.l.b16 %v1307
    %v1635 = vunpack.c.h.b16 %v1307
    %v1636 = vunpack.c.l.b16 %v1308
    %v1637 = vunpack.c.h.b16 %v1308
    %v1638 = vunpack.c.l.b16 %v1309
    %v1639 = vunpack.c.h.b16 %v1309
    %v1640 = vunpack.c.l.b16 %v1310
    %v1641 = vunpack.c.h.b16 %v1310
    %v1642 = vunpack.c.l.b16 %v1311
    %v1643 = vunpack.c.h.b16 %v1311
    %v1644 = vunpack.c.l.b16 %v1312
    %v1645 = vunpack.c.h.b16 %v1312
    %v1646 = vunpack.c.l.b16 %v1313
    %v1647 = vunpack.c.h.b16 %v1313
    %v1648 = vunpack.c.l.b16 %v1314
    %v1649 = vunpack.c.h.b16 %v1314
    %v1650 = vunpack.c.l.b16 %v1315
    %v1651 = vunpack.c.h.b16 %v1315
    %v1652 = vunpack.c.l.b16 %v1316
    %v1653 = vunpack.c.h.b16 %v1316
    %v1654 = vunpack.c.l.b16 %v1317
    %v1655 = vunpack.c.h.b16 %v1317
    %v1656 = vunpack.c.l.b16 %v1318
    %v1657 = vunpack.c.h.b16 %v1318
    %v1658 = vunpack.c.l.b16 %v1319
    %v1659 = vunpack.c.h.b16 %v1319
    %v1660 = vunpack.c.l.b16 %v1320
    %v1661 = vunpack.c.h.b16 %v1320
    %v1662 = vunpack.c.l.b16 %v1321
    %v1663 = vunpack.c.h.b16 %v1321
    %v1664 = vunpack.c.l.b16 %v1322
    %v1665 = vunpack.c.h.b16 %v1322
    %v1666 = vunpack.c.l.b16 %v1323
    %v1667 = vunpack.c.h.b16 %v1323
    %v1668 = vunpack.c.l.b16 %v1324
    %v1669 = vunpack.c.h.b16 %v1324
    %v1670 = vunpack.c.l.b16 %v1325
    %v1671 = vunpack.c.h.b16 %v1325
    %v1672 = vunpack.c.l.b16 %v1326
    %v1673 = vunpack.c.h.b16 %v1326
    %v1674 = vunpack.c.l.b16 %v1327
    %v1675 = vunpack.c.h.b16 %v1327
    %v1676 = vunpack.c.l.b16 %v1328
    %v1677 = vunpack.c.h.b16 %v1328
    %v1678 = vunpack.c.l.b16 %v1329
    %v1679 = vunpack.c.h.b16 %v1329
    %v1680 = vunpack.c.l.b16 %v1330
    %v1681 = vunpack.c.h.b16 %v1330
    %v1682 = vunpack.c.l.b16 %v1331
    %v1683 = vunpack.c.h.b16 %v1331
    %v1684 = vunpack.c.l.b16 %v1332
    %v1685 = vunpack.c.h.b16 %v1332
    %v1686 = vunpack.c.l.b16 %v1333
    %v1687 = vunpack.c.h.b16 %v1333
    %v1688 = vunpack.c.l.b16 %v1334
    %v1689 = vunpack.c.h.b16 %v1334
    %v1690 = vunpack.c.l.b16 %v1335
    %v1691 = vunpack.c.h.b16 %v1335
    %v1692 = vunpack.c.l.b16 %v1336
    %v1693 = vunpack.c.h.b16 %v1336
    %v1694 = vunpack.c.l.b16 %v1337
    %v1695 = vunpack.c.h.b16 %v1337
    %v1696 = vunpack.c.l.b16 %v1338
    %v1697 = vunpack.c.h.b16 %v1338
    %v1698 = vunpack.c.l.b16 %v1339
    %v1699 = vunpack.c.h.b16 %v1339
    %v1700 = vunpack.c.l.b16 %v1340
    %v1701 = vunpack.c.h.b16 %v1340
    %v1702 = vunpack.c.l.b16 %v1341
    %v1703 = vunpack.c.h.b16 %v1341
    %v1704 = vunpack.c.l.b16 %v1342
    %v1705 = vunpack.c.h.b16 %v1342
    %v1706 = vunpack.c.l.b16 %v1343
    %v1707 = vunpack.c.h.b16 %v1343
    %v1708 = vunpack.c.l.b16 %v1344
    %v1709 = vunpack.c.h.b16 %v1344
    %v1710 = vunpack.c.l.b16 %v1345
    %v1711 = vunpack.c.h.b16 %v1345
    %v1712 = vunpack.c.l.b16 %v1346
    %v1713 = vunpack.c.h.b16 %v1346
    %v1714 = vunpack.c.l.b16 %v1347
    %v1715 = vunpack.c.h.b16 %v1347
    %v1716 = vunpack.c.l.b16 %v1348
    %v1717 = vunpack.c.h.b16 %v1348
    %v1718 = vunpack.c.l.b16 %v1349
    %v1719 = vunpack.c.h.b16 %v1349
    %v1720 = vunpack.c.l.b16 %v1350
    %v1721 = vunpack.c.h.b16 %v1350
    %v1722 = vunpack.c.l.b16 %v1351
    %v1723 = vunpack.c.h.b16 %v1351
    %v1724 = vunpack.c.l.b16 %v1352
    %v1725 = vunpack.c.h.b16 %v1352
    %v1726 = vunpack.c.l.b16 %v1353
    %v1727 = vunpack.c.h.b16 %v1353
    %v1728 = vunpack.c.l.b16 %v1354
    %v1729 = vunpack.c.h.b16 %v1354
    %v1730 = vunpack.c.l.b16 %v1355
    %v1731 = vunpack.c.h.b16 %v1355
    %v1732 = vunpack.c.l.b16 %v1356
    %v1733 = vunpack.c.h.b16 %v1356
    %v1734 = vunpack.c.l.b16 %v1357
    %v1735 = vunpack.c.h.b16 %v1357
    %v1736 = vunpack.c.l.b16 %v1358
    %v1737 = vunpack.c.h.b16 %v1358
    %v1738 = vunpack.c.l.b16 %v1359
    %v1739 = vunpack.c.h.b16 %v1359
    %v1740 = vunpack.c.l.b16 %v1360
    %v1741 = vunpack.c.h.b16 %v1360
    %v1742 = vunpack.c.l.b16 %v1361
    %v1743 = vunpack.c.h.b16 %v1361
    %v1744 = vunpack.c.l.b16 %v1362
    %v1745 = vunpack.c.h.b16 %v1362
    %v1746 = vunpack.c.l.b16 %v1363
    %v1747 = vunpack.c.h.b16 %v1363
    %v1748 = vunpack.c.l.b16 %v1364
    %v1749 = vunpack.c.h.b16 %v1364
    %v1750 = vunpack.c.l.b16 %v1365
    %v1751 = vunpack.c.h.b16 %v1365
    %v1752 = vunpack.c.l.b16 %v1366
    %v1753 = vunpack.c.h.b16 %v1366
    %v1754 = vunpack.c.l.b16 %v1367
    %v1755 = vunpack.c.h.b16 %v1367
    %v1756 = vunpack.c.l.b16 %v1368
    %v1757 = vunpack.c.h.b16 %v1368
    %v1758 = vunpack.c.l.b16 %v1369
    %v1759 = vunpack.c.h.b16 %v1369
    %v1760 = vunpack.c.l.b16 %v1370
    %v1761 = vunpack.c.h.b16 %v1370
    %v1762 = vunpack.c.l.b16 %v1371
    %v1763 = vunpack.c.h.b16 %v1371
    %v1764 = vunpack.c.l.b16 %v1372
    %v1765 = vunpack.c.h.b16 %v1372
    %v1766 = vunpack.c.l.b16 %v1373
    %v1767 = vunpack.c.h.b16 %v1373
    %v1768 = vunpack.c.l.b16 %v1374
    %v1769 = vunpack.c.h.b16 %v1374
    %v1770 = vunpack.c.l.b16 %v1375
    %v1771 = vunpack.c.h.b16 %v1375
    %v1772 = vunpack.c.l.b16 %v1376
    %v1773 = vunpack.c.h.b16 %v1376
    %v1774 = vunpack.c.l.b16 %v1377
    %v1775 = vunpack.c.h.b16 %v1377
    %v1776 = vunpack.c.l.b16 %v1378
    %v1777 = vunpack.c.h.b16 %v1378
    %v1778 = vunpack.c.l.b16 %v1379
    %v1779 = vunpack.c.h.b16 %v1379
    %v1780 = vunpack.c.l.b16 %v1380
    %v1781 = vunpack.c.h.b16 %v1380
    %v1782 = vunpack.c.l.b16 %v1381
    %v1783 = vunpack.c.h.b16 %v1381
    %v1784 = vunpack.c.l.b16 %v1382
    %v1785 = vunpack.c.h.b16 %v1382
    %v1786 = vunpack.c.l.b16 %v1383
    %v1787 = vunpack.c.h.b16 %v1383
    %v1788 = vunpack.c.l.b16 %v1384
    %v1789 = vunpack.c.h.b16 %v1384
    %v1790 = vunpack.c.l.b16 %v1385
    %v1791 = vunpack.c.h.b16 %v1385
    %v1792 = vunpack.c.l.b16 %v1386
    %v1793 = vunpack.c.h.b16 %v1386
    %v1794 = vpack.c.b16 %v1542, %v1538
    %v1795 = vpack.c.b16 %v1543, %v1539
    %v1796 = vpack.c.b16 %v1544, %v1540
    %v1797 = vpack.c.b16 %v1545, %v1541
    %v1798 = vpack.c.b16 %v1550, %v1546
    %v1799 = vpack.c.b16 %v1551, %v1547
    %v1800 = vpack.c.b16 %v1552, %v1548
    %v1801 = vpack.c.b16 %v1553, %v1549
    %v1802 = vpack.c.b16 %v1558, %v1554
    %v1803 = vpack.c.b16 %v1559, %v1555
    %v1804 = vpack.c.b16 %v1560, %v1556
    %v1805 = vpack.c.b16 %v1561, %v1557
    %v1806 = vpack.c.b16 %v1566, %v1562
    %v1807 = vpack.c.b16 %v1567, %v1563
    %v1808 = vpack.c.b16 %v1568, %v1564
    %v1809 = vpack.c.b16 %v1569, %v1565
    %v1810 = vpack.c.b16 %v1574, %v1570
    %v1811 = vpack.c.b16 %v1575, %v1571
    %v1812 = vpack.c.b16 %v1576, %v1572
    %v1813 = vpack.c.b16 %v1577, %v1573
    %v1814 = vpack.c.b16 %v1582, %v1578
    %v1815 = vpack.c.b16 %v1583, %v1579
    %v1816 = vpack.c.b16 %v1584, %v1580
    %v1817 = vpack.c.b16 %v1585, %v1581
    %v1818 = vpack.c.b16 %v1590, %v1586
    %v1819 = vpack.c.b16 %v1591, %v1587
    %v1820 = vpack.c.b16 %v1592, %v1588
    %v1821 = vpack.c.b16 %v1593, %v1589
    %v1822 = vpack.c.b16 %v1598, %v1594
    %v1823 = vpack.c.b16 %v1599, %v1595
    %v1824 = vpack.c.b16 %v1600, %v1596
    %v1825 = vpack.c.b16 %v1601, %v1597
    %v1826 = vpack.c.b16 %v1606, %v1602
    %v1827 = vpack.c.b16 %v1607, %v1603
    %v1828 = vpack.c.b16 %v1608, %v1604
    %v1829 = vpack.c.b16 %v1609, %v1605
    %v1830 = vpack.c.b16 %v1614, %v1610
    %v1831 = vpack.c.b16 %v1615, %v1611
    %v1832 = vpack.c.b16 %v1616, %v1612
    %v1833 = vpack.c.b16 %v1617, %v1613
    %v1834 = vpack.c.b16 %v1622, %v1618
    %v1835 = vpack.c.b16 %v1623, %v1619
    %v1836 = vpack.c.b16 %v1624, %v1620
    %v1837 = vpack.c.b16 %v1625, %v1621
    %v1838 = vpack.c.b16 %v1630, %v1626
    %v1839 = vpack.c.b16 %v1631, %v1627
    %v1840 = vpack.c.b16 %v1632, %v1628
    %v1841 = vpack.c.b16 %v1633, %v1629
    %v1842 = vpack.c.b16 %v1638, %v1634
    %v1843 = vpack.c.b16 %v1639, %v1635
    %v1844 = vpack.c.b16 %v1640, %v1636
    %v1845 = vpack.c.b16 %v1641, %v1637
    %v1846 = vpack.c.b16 %v1646, %v1642
    %v1847 = vpack.c.b16 %v1647, %v1643
    %v1848 = vpack.c.b16 %v1648, %v1644
    %v1849 = vpack.c.b16 %v1649, %v1645
    %v1850 = vpack.c.b16 %v1654, %v1650
    %v1851 = vpack.c.b16 %v1655, %v1651
    %v1852 = vpack.c.b16 %v1656, %v1652
    %v1853 = vpack.c.b16 %v1657, %v1653
    %v1854 = vpack.c.b16 %v1662, %v1658
    %v1855 = vpack.c.b16 %v1663, %v1659
    %v1856 = vpack.c.b16 %v1664, %v1660
    %v1857 = vpack.c.b16 %v1665, %v1661
    %v1858 = vpack.c.b16 %v1670, %v1666
    %v1859 = vpack.c.b16 %v1671, %v1667
    %v1860 = vpack.c.b16 %v1672, %v1668
    %v1861 = vpack.c.b16 %v1673, %v1669
    %v1862 = vpack.c.b16 %v1678, %v1674
    %v1863 = vpack.c.b16 %v1679, %v1675
    %v1864 = vpack.c.b16 %v1680, %v1676
    %v1865 = vpack.c.b16 %v1681, %v1677
    %v1866 = vpack.c.b16 %v1686, %v1682
    %v1867 = vpack.c.b16 %v1687, %v1683
    %v1868 = vpack.c.b16 %v1688, %v1684
    %v1869 = vpack.c.b16 %v1689, %v1685
    %v1870 = vpack.c.b16 %v1694, %v1690
    %v1871 = vpack.c.b16 %v1695, %v1691
    %v1872 = vpack.c.b16 %v1696, %v1692
    %v1873 = vpack.c.b16 %v1697, %v1693
    %v1874 = vpack.c.b16 %v1702, %v1698
    %v1875 = vpack.c.b16 %v1703, %v1699
    %v1876 = vpack.c.b16 %v1704, %v1700
    %v1877 = vpack.c.b16 %v1705, %v1701
    %v1878 = vpack.c.b16 %v1710, %v1706
    %v1879 = vpack.c.b16 %v1711, %v1707
    %v1880 = vpack.c.b16 %v1712, %v1708
    %v1881 = vpack.c.b16 %v1713, %v1709
    %v1882 = vpack.c.b16 %v1718, %v1714
    %v1883 = vpack.c.b16 %v1719, %v1715
    %v1884 = vpack.c.b16 %v1720, %v1716
    %v1885 = vpack.c.b16 %v1721, %v1717
    %v1886 = vpack.c.b16 %v1726, %v1722
    %v1887 = vpack.c.b16 %v1727, %v1723
    %v1888 = vpack.c.b16 %v1728, %v1724
    %v1889 = vpack.c.b16 %v1729, %v1725
    %v1890 = vpack.c.b16 %v1734, %v1730
    %v1891 = vpack.c.b16 %v1735, %v1731
    %v1892 = vpack.c.b16 %v1736, %v1732
    %v1893 = vpack.c.b16 %v1737, %v1733
    %v1894 = vpack.c.b16 %v1742, %v1738
    %v1895 = vpack.c.b16 %v1743, %v1739
    %v1896 = vpack.c.b16 %v1744, %v1740
    %v1897 = vpack.c.b16 %v1745, %v1741
    %v1898 = vpack.c.b16 %v1750, %v1746
    %v1899 = vpack.c.b16 %v1751, %v1747
    %v1900 = vpack.c.b16 %v1752, %v1748
    %v1901 = vpack.c.b16 %v1753, %v1749
    %v1902 = vpack.c.b16 %v1758, %v1754
    %v1903 = vpack.c.b16 %v1759, %v1755
    %v1904 = vpack.c.b16 %v1760, %v1756
    %v1905 = vpack.c.b16 %v1761, %v1757
    %v1906 = vpack.c.b16 %v1766, %v1762
    %v1907 = vpack.c.b16 %v1767, %v1763
    %v1908 = vpack.c.b16 %v1768, %v1764
    %v1909 = vpack.c.b16 %v1769, %v1765
    %v1910 = vpack.c.b16 %v1774, %v1770
    %v1911 = vpack.c.b16 %v1775, %v1771
    %v1912 = vpack.c.b16 %v1776, %v1772
    %v1913 = vpack.c.b16 %v1777, %v1773
    %v1914 = vpack.c.b16 %v1782, %v1778
    %v1915 = vpack.c.b16 %v1783, %v1779
    %v1916 = vpack.c.b16 %v1784, %v1780
    %v1917 = vpack.c.b16 %v1785, %v1781
    %v1918 = vpack.c.b16 %v1790, %v1786
    %v1919 = vpack.c.b16 %v1791, %v1787
    %v1920 = vpack.c.b16 %v1792, %v1788
    %v1921 = vpack.c.b16 %v1793, %v1789
    %2050 = vmatprep.subr.bf16.mxu0 %v1823
    %2051 = vmatpush1.bf16.msra.mxu0 %v1822
    %2052 = vmatprep.subr.bf16.mxu0 %v1819
    %2053 = vmatpush1.bf16.msra.mxu0 %v1818
    %2054 = vmatprep.subr.bf16.mxu0 %v1815
    %2055 = vmatpush1.bf16.msra.mxu0 %v1814
    %2056 = vmatprep.subr.bf16.mxu0 %v1811
    %2057 = vmatpush1.bf16.msra.mxu0 %v1810
    %2058 = vmatprep.subr.bf16.mxu0 %v1807
    %2059 = vmatpush1.bf16.msra.mxu0 %v1806
    %2060 = vmatprep.subr.bf16.mxu0 %v1803
    %2061 = vmatpush1.bf16.msra.mxu0 %v1802
    %2062 = vmatprep.subr.bf16.mxu0 %v1799
    %2063 = vmatpush1.bf16.msra.mxu0 %v1798
    %2064 = vmatprep.subr.bf16.mxu0 %v1795
    %2065 = vmatpush1.bf16.msra.mxu0 %v1794
    %2066 = vmatprep.subr.bf16.mxu0 %v1855
    %2067 = vmatpush2.bf16.msra.mxu0 %v1854
    %2068 = vmatprep.subr.bf16.mxu0 %v1851
    %2069 = vmatpush2.bf16.msra.mxu0 %v1850
    %2070 = vmatprep.subr.bf16.mxu0 %v1847
    %2071 = vmatpush2.bf16.msra.mxu0 %v1846
    %2072 = vmatprep.subr.bf16.mxu0 %v1843
    %2073 = vmatpush2.bf16.msra.mxu0 %v1842
    %2074 = vmatprep.subr.bf16.mxu0 %v1839
    %2075 = vmatpush2.bf16.msra.mxu0 %v1838
    %2076 = vmatprep.subr.bf16.mxu0 %v1835
    %2077 = vmatpush2.bf16.msra.mxu0 %v1834
    %2078 = vmatprep.subr.bf16.mxu0 %v1831
    %2079 = vmatpush2.bf16.msra.mxu0 %v1830
    %2080 = vmatprep.subr.bf16.mxu0 %v1827
    %2081 = vmatpush2.bf16.msra.mxu0 %v1826
    %2082 = vmatprep.mubr.bf16.mxu0 %v1242
    %2083 = vmatmul.mubr.bf16.gmra.mxu0 %v1241
    %v2084 = vpop.f32.mrf.mxu0
    %v2085 = vadd.f32 %v1393, %v2084
    %v2086 = vpop.f32.mrf.mxu0
    %v2087 = vadd.f32 %v1397, %v2086
    %v2088 = vpop.f32.mrf.mxu0
    %v2089 = vpop.f32.mrf.mxu0
    %2090 = vdwg.mxu0
    %2091 = vmatprep.subr.bf16.mxu0 %v1887
    %2092 = vmatpush1.bf16.msra.mxu0 %v1886
    %2093 = vmatprep.subr.bf16.mxu0 %v1883
    %2094 = vmatpush1.bf16.msra.mxu0 %v1882
    %2095 = vmatprep.subr.bf16.mxu0 %v1879
    %2096 = vmatpush1.bf16.msra.mxu0 %v1878
    %2097 = vmatprep.subr.bf16.mxu0 %v1875
    %2098 = vmatpush1.bf16.msra.mxu0 %v1874
    %2099 = vmatprep.subr.bf16.mxu0 %v1871
    %2100 = vmatpush1.bf16.msra.mxu0 %v1870
    %2101 = vmatprep.subr.bf16.mxu0 %v1867
    %2102 = vmatpush1.bf16.msra.mxu0 %v1866
    %2103 = vmatprep.subr.bf16.mxu0 %v1863
    %2104 = vmatpush1.bf16.msra.mxu0 %v1862
    %2105 = vmatprep.subr.bf16.mxu0 %v1859
    %2106 = vmatpush1.bf16.msra.mxu0 %v1858
    %2107 = vmatprep.subr.bf16.mxu0 %v1919
    %2108 = vmatpush2.bf16.msra.mxu0 %v1918
    %2109 = vmatprep.subr.bf16.mxu0 %v1915
    %2110 = vmatpush2.bf16.msra.mxu0 %v1914
    %2111 = vmatprep.subr.bf16.mxu0 %v1911
    %2112 = vmatpush2.bf16.msra.mxu0 %v1910
    %2113 = vmatprep.subr.bf16.mxu0 %v1907
    %2114 = vmatpush2.bf16.msra.mxu0 %v1906
    %2115 = vmatprep.subr.bf16.mxu0 %v1903
    %2116 = vmatpush2.bf16.msra.mxu0 %v1902
    %2117 = vmatprep.subr.bf16.mxu0 %v1899
    %2118 = vmatpush2.bf16.msra.mxu0 %v1898
    %2119 = vmatprep.subr.bf16.mxu0 %v1895
    %2120 = vmatpush2.bf16.msra.mxu0 %v1894
    %2121 = vmatprep.subr.bf16.mxu0 %v1891
    %2122 = vmatpush2.bf16.msra.mxu0 %v1890
    %2123 = vmatprep.mubr.bf16.mxu0 %v1244
    %2124 = vmatmul.mubr.bf16.gmra.mxu0 %v1243
    %v2125 = vpop.f32.mrf.mxu0
    %v2126 = vadd.f32 %v2085, %v2125
    %v2127 = vpop.f32.mrf.mxu0
    %v2128 = vadd.f32 %v2087, %v2127
    %v2129 = vpop.f32.mrf.mxu0
    %v2130 = vpop.f32.mrf.mxu0
    %2131 = vdwg.mxu0
    %2132 = vmatprep.subr.bf16.mxu0 %v1825
    %2133 = vmatpush1.bf16.msra.mxu0 %v1824
    %2134 = vmatprep.subr.bf16.mxu0 %v1821
    %2135 = vmatpush1.bf16.msra.mxu0 %v1820
    %2136 = vmatprep.subr.bf16.mxu0 %v1817
    %2137 = vmatpush1.bf16.msra.mxu0 %v1816
    %2138 = vmatprep.subr.bf16.mxu0 %v1813
    %2139 = vmatpush1.bf16.msra.mxu0 %v1812
    %2140 = vmatprep.subr.bf16.mxu0 %v1809
    %2141 = vmatpush1.bf16.msra.mxu0 %v1808
    %2142 = vmatprep.subr.bf16.mxu0 %v1805
    %2143 = vmatpush1.bf16.msra.mxu0 %v1804
    %2144 = vmatprep.subr.bf16.mxu0 %v1801
    %2145 = vmatpush1.bf16.msra.mxu0 %v1800
    %2146 = vmatprep.subr.bf16.mxu0 %v1797
    %2147 = vmatpush1.bf16.msra.mxu0 %v1796
    %2148 = vmatprep.subr.bf16.mxu0 %v1857
    %2149 = vmatpush2.bf16.msra.mxu0 %v1856
    %2150 = vmatprep.subr.bf16.mxu0 %v1853
    %2151 = vmatpush2.bf16.msra.mxu0 %v1852
    %2152 = vmatprep.subr.bf16.mxu0 %v1849
    %2153 = vmatpush2.bf16.msra.mxu0 %v1848
    %2154 = vmatprep.subr.bf16.mxu0 %v1845
    %2155 = vmatpush2.bf16.msra.mxu0 %v1844
    %2156 = vmatprep.subr.bf16.mxu0 %v1841
    %2157 = vmatpush2.bf16.msra.mxu0 %v1840
    %2158 = vmatprep.subr.bf16.mxu0 %v1837
    %2159 = vmatpush2.bf16.msra.mxu0 %v1836
    %2160 = vmatprep.subr.bf16.mxu0 %v1833
    %2161 = vmatpush2.bf16.msra.mxu0 %v1832
    %2162 = vmatprep.subr.bf16.mxu0 %v1829
    %2163 = vmatpush2.bf16.msra.mxu0 %v1828
    %2164 = vmatprep.mubr.bf16.mxu0 %v1242
    %2165 = vmatmul.mubr.bf16.gmra.mxu0 %v1241
    %v2166 = vpop.f32.mrf.mxu0
    %v2167 = vadd.f32 %v1401, %v2166
    %v2168 = vpop.f32.mrf.mxu0
    %v2169 = vadd.f32 %v1405, %v2168
    %v2170 = vpop.f32.mrf.mxu0
    %v2171 = vpop.f32.mrf.mxu0
    %2172 = vdwg.mxu0
    %2173 = vmatprep.subr.bf16.mxu0 %v1889
    %2174 = vmatpush1.bf16.msra.mxu0 %v1888
    %2175 = vmatprep.subr.bf16.mxu0 %v1885
    %2176 = vmatpush1.bf16.msra.mxu0 %v1884
    %2177 = vmatprep.subr.bf16.mxu0 %v1881
    %2178 = vmatpush1.bf16.msra.mxu0 %v1880
    %2179 = vmatprep.subr.bf16.mxu0 %v1877
    %2180 = vmatpush1.bf16.msra.mxu0 %v1876
    %2181 = vmatprep.subr.bf16.mxu0 %v1873
    %2182 = vmatpush1.bf16.msra.mxu0 %v1872
    %2183 = vmatprep.subr.bf16.mxu0 %v1869
    %2184 = vmatpush1.bf16.msra.mxu0 %v1868
    %2185 = vmatprep.subr.bf16.mxu0 %v1865
    %2186 = vmatpush1.bf16.msra.mxu0 %v1864
    %2187 = vmatprep.subr.bf16.mxu0 %v1861
    %2188 = vmatpush1.bf16.msra.mxu0 %v1860
    %2189 = vmatprep.subr.bf16.mxu0 %v1921
    %2190 = vmatpush2.bf16.msra.mxu0 %v1920
    %2191 = vmatprep.subr.bf16.mxu0 %v1917
    %2192 = vmatpush2.bf16.msra.mxu0 %v1916
    %2193 = vmatprep.subr.bf16.mxu0 %v1913
    %2194 = vmatpush2.bf16.msra.mxu0 %v1912
    %2195 = vmatprep.subr.bf16.mxu0 %v1909
    %2196 = vmatpush2.bf16.msra.mxu0 %v1908
    %2197 = vmatprep.subr.bf16.mxu0 %v1905
    %2198 = vmatpush2.bf16.msra.mxu0 %v1904
    %2199 = vmatprep.subr.bf16.mxu0 %v1901
    %2200 = vmatpush2.bf16.msra.mxu0 %v1900
    %2201 = vmatprep.subr.bf16.mxu0 %v1897
    %2202 = vmatpush2.bf16.msra.mxu0 %v1896
    %2203 = vmatprep.subr.bf16.mxu0 %v1893
    %2204 = vmatpush2.bf16.msra.mxu0 %v1892
    %2205 = vmatprep.mubr.bf16.mxu0 %v1244
    %2206 = vmatmul.mubr.bf16.gmra.mxu0 %v1243
    %v2207 = vpop.f32.mrf.mxu0
    %v2208 = vadd.f32 %v2167, %v2207
    %v2209 = vpop.f32.mrf.mxu0
    %v2210 = vadd.f32 %v2169, %v2209
    %v2211 = vpop.f32.mrf.mxu0
    %v2212 = vpop.f32.mrf.mxu0
    %2213 = vdwg.mxu0
    %v2214 = vmax.f32 %v2126, 0.0
    %v2215 = vmax.f32 %v2128, 0.0
    %v2216 = vmax.f32 %v2208, 0.0
    %v2217 = vmax.f32 %v2210, 0.0
    %v2218 = vpack.c.bf16 %v2214, %v2214
    %v2219 = vpack.c.bf16 %v2215, %v2215
    %v2220 = vpack.c.bf16 %v2216, %v2216
    %v2221 = vpack.c.bf16 %v2217, %v2217
    %s2222 = sshll.u32 %s266, 4
    %2223 = dma.done [#allocation3], %s2222
    %s2224 = scalar_lea.hbm %s3, 49152
    // Predicated region
    $region58: #{tpu_custom_call.1} parent=1 // pred_check
      _
    $region59: #{tpu_custom_call.1} parent=1 // pred_check_branch
      %2226 = sbr.rel target = $region61
    $region60: #{tpu_custom_call.1} parent=1 // pred_region
      %2227 = sst [smem:[#allocation15]] [#allocation22]
      %2228 = sst [smem:[#allocation16]] [#allocation21]
    $region61: #{tpu_custom_call.1} parent=1 // pred_fallthru
      _
    %2230 = shalt.err (0)
    %s2232 = sshll.u32 %s270, 4
    %s2233 = int_to_ptr.vmem [resolvable:$true] %s2232
    %2235 = dma.hbm_to_vmem [thread:$0]  %s2224, 16384, %s2233, %s271
    %v2236 = vld [vmem:[#allocation2] sm:$0xff]
    %v2237 = vld [vmem:[#allocation2 + $0x8] sm:$0xff]
    %v2238 = vld [vmem:[#allocation2 + $0x10] sm:$0xff]
    %v2239 = vld [vmem:[#allocation2 + $0x18] sm:$0xff]
    %v2240 = vld [vmem:[#allocation2 + $0x20] sm:$0xff]
    %v2241 = vld [vmem:[#allocation2 + $0x28] sm:$0xff]
    %v2242 = vld [vmem:[#allocation2 + $0x30] sm:$0xff]
    %v2243 = vld [vmem:[#allocation2 + $0x38] sm:$0xff]
    %v2244 = vld [vmem:[#allocation2 + $0x40] sm:$0xff]
    %v2245 = vld [vmem:[#allocation2 + $0x48] sm:$0xff]
    %v2246 = vld [vmem:[#allocation2 + $0x50] sm:$0xff]
    %v2247 = vld [vmem:[#allocation2 + $0x58] sm:$0xff]
    %v2248 = vld [vmem:[#allocation2 + $0x60] sm:$0xff]
    %v2249 = vld [vmem:[#allocation2 + $0x68] sm:$0xff]
    %v2250 = vld [vmem:[#allocation2 + $0x70] sm:$0xff]
    %v2251 = vld [vmem:[#allocation2 + $0x78] sm:$0xff]
    %v2252 = vld [vmem:[#allocation2 + $0x80] sm:$0xff]
    %v2253 = vld [vmem:[#allocation2 + $0x88] sm:$0xff]
    %v2254 = vld [vmem:[#allocation2 + $0x90] sm:$0xff]
    %v2255 = vld [vmem:[#allocation2 + $0x98] sm:$0xff]
    %v2256 = vld [vmem:[#allocation2 + $0xa0] sm:$0xff]
    %v2257 = vld [vmem:[#allocation2 + $0xa8] sm:$0xff]
    %v2258 = vld [vmem:[#allocation2 + $0xb0] sm:$0xff]
    %v2259 = vld [vmem:[#allocation2 + $0xb8] sm:$0xff]
    %v2260 = vld [vmem:[#allocation2 + $0xc0] sm:$0xff]
    %v2261 = vld [vmem:[#allocation2 + $0xc8] sm:$0xff]
    %v2262 = vld [vmem:[#allocation2 + $0xd0] sm:$0xff]
    %v2263 = vld [vmem:[#allocation2 + $0xd8] sm:$0xff]
    %v2264 = vld [vmem:[#allocation2 + $0xe0] sm:$0xff]
    %v2265 = vld [vmem:[#allocation2 + $0xe8] sm:$0xff]
    %v2266 = vld [vmem:[#allocation2 + $0xf0] sm:$0xff]
    %v2267 = vld [vmem:[#allocation2 + $0xf8] sm:$0xff]
    %v2268 = vld [vmem:[#allocation2 + $0x100] sm:$0xff]
    %v2269 = vld [vmem:[#allocation2 + $0x108] sm:$0xff]
    %v2270 = vld [vmem:[#allocation2 + $0x110] sm:$0xff]
    %v2271 = vld [vmem:[#allocation2 + $0x118] sm:$0xff]
    %v2272 = vld [vmem:[#allocation2 + $0x120] sm:$0xff]
    %v2273 = vld [vmem:[#allocation2 + $0x128] sm:$0xff]
    %v2274 = vld [vmem:[#allocation2 + $0x130] sm:$0xff]
    %v2275 = vld [vmem:[#allocation2 + $0x138] sm:$0xff]
    %v2276 = vld [vmem:[#allocation2 + $0x140] sm:$0xff]
    %v2277 = vld [vmem:[#allocation2 + $0x148] sm:$0xff]
    %v2278 = vld [vmem:[#allocation2 + $0x150] sm:$0xff]
    %v2279 = vld [vmem:[#allocation2 + $0x158] sm:$0xff]
    %v2280 = vld [vmem:[#allocation2 + $0x160] sm:$0xff]
    %v2281 = vld [vmem:[#allocation2 + $0x168] sm:$0xff]
    %v2282 = vld [vmem:[#allocation2 + $0x170] sm:$0xff]
    %v2283 = vld [vmem:[#allocation2 + $0x178] sm:$0xff]
    %v2284 = vld [vmem:[#allocation2 + $0x180] sm:$0xff]
    %v2285 = vld [vmem:[#allocation2 + $0x188] sm:$0xff]
    %v2286 = vld [vmem:[#allocation2 + $0x190] sm:$0xff]
    %v2287 = vld [vmem:[#allocation2 + $0x198] sm:$0xff]
    %v2288 = vld [vmem:[#allocation2 + $0x1a0] sm:$0xff]
    %v2289 = vld [vmem:[#allocation2 + $0x1a8] sm:$0xff]
    %v2290 = vld [vmem:[#allocation2 + $0x1b0] sm:$0xff]
    %v2291 = vld [vmem:[#allocation2 + $0x1b8] sm:$0xff]
    %v2292 = vld [vmem:[#allocation2 + $0x1c0] sm:$0xff]
    %v2293 = vld [vmem:[#allocation2 + $0x1c8] sm:$0xff]
    %v2294 = vld [vmem:[#allocation2 + $0x1d0] sm:$0xff]
    %v2295 = vld [vmem:[#allocation2 + $0x1d8] sm:$0xff]
    %v2296 = vld [vmem:[#allocation2 + $0x1e0] sm:$0xff]
    %v2297 = vld [vmem:[#allocation2 + $0x1e8] sm:$0xff]
    %v2298 = vld [vmem:[#allocation2 + $0x1f0] sm:$0xff]
    %v2299 = vld [vmem:[#allocation2 + $0x1f8] sm:$0xff]
    %v2300 = vld [vmem:[#allocation2 + $0x200] sm:$0xff]
    %v2301 = vld [vmem:[#allocation2 + $0x208] sm:$0xff]
    %v2302 = vld [vmem:[#allocation2 + $0x210] sm:$0xff]
    %v2303 = vld [vmem:[#allocation2 + $0x218] sm:$0xff]
    %v2304 = vld [vmem:[#allocation2 + $0x220] sm:$0xff]
    %v2305 = vld [vmem:[#allocation2 + $0x228] sm:$0xff]
    %v2306 = vld [vmem:[#allocation2 + $0x230] sm:$0xff]
    %v2307 = vld [vmem:[#allocation2 + $0x238] sm:$0xff]
    %v2308 = vld [vmem:[#allocation2 + $0x240] sm:$0xff]
    %v2309 = vld [vmem:[#allocation2 + $0x248] sm:$0xff]
    %v2310 = vld [vmem:[#allocation2 + $0x250] sm:$0xff]
    %v2311 = vld [vmem:[#allocation2 + $0x258] sm:$0xff]
    %v2312 = vld [vmem:[#allocation2 + $0x260] sm:$0xff]
    %v2313 = vld [vmem:[#allocation2 + $0x268] sm:$0xff]
    %v2314 = vld [vmem:[#allocation2 + $0x270] sm:$0xff]
    %v2315 = vld [vmem:[#allocation2 + $0x278] sm:$0xff]
    %v2316 = vld [vmem:[#allocation2 + $0x280] sm:$0xff]
    %v2317 = vld [vmem:[#allocation2 + $0x288] sm:$0xff]
    %v2318 = vld [vmem:[#allocation2 + $0x290] sm:$0xff]
    %v2319 = vld [vmem:[#allocation2 + $0x298] sm:$0xff]
    %v2320 = vld [vmem:[#allocation2 + $0x2a0] sm:$0xff]
    %v2321 = vld [vmem:[#allocation2 + $0x2a8] sm:$0xff]
    %v2322 = vld [vmem:[#allocation2 + $0x2b0] sm:$0xff]
    %v2323 = vld [vmem:[#allocation2 + $0x2b8] sm:$0xff]
    %v2324 = vld [vmem:[#allocation2 + $0x2c0] sm:$0xff]
    %v2325 = vld [vmem:[#allocation2 + $0x2c8] sm:$0xff]
    %v2326 = vld [vmem:[#allocation2 + $0x2d0] sm:$0xff]
    %v2327 = vld [vmem:[#allocation2 + $0x2d8] sm:$0xff]
    %v2328 = vld [vmem:[#allocation2 + $0x2e0] sm:$0xff]
    %v2329 = vld [vmem:[#allocation2 + $0x2e8] sm:$0xff]
    %v2330 = vld [vmem:[#allocation2 + $0x2f0] sm:$0xff]
    %v2331 = vld [vmem:[#allocation2 + $0x2f8] sm:$0xff]
    %v2332 = vld [vmem:[#allocation2 + $0x300] sm:$0xff]
    %v2333 = vld [vmem:[#allocation2 + $0x308] sm:$0xff]
    %v2334 = vld [vmem:[#allocation2 + $0x310] sm:$0xff]
    %v2335 = vld [vmem:[#allocation2 + $0x318] sm:$0xff]
    %v2336 = vld [vmem:[#allocation2 + $0x320] sm:$0xff]
    %v2337 = vld [vmem:[#allocation2 + $0x328] sm:$0xff]
    %v2338 = vld [vmem:[#allocation2 + $0x330] sm:$0xff]
    %v2339 = vld [vmem:[#allocation2 + $0x338] sm:$0xff]
    %v2340 = vld [vmem:[#allocation2 + $0x340] sm:$0xff]
    %v2341 = vld [vmem:[#allocation2 + $0x348] sm:$0xff]
    %v2342 = vld [vmem:[#allocation2 + $0x350] sm:$0xff]
    %v2343 = vld [vmem:[#allocation2 + $0x358] sm:$0xff]
    %v2344 = vld [vmem:[#allocation2 + $0x360] sm:$0xff]
    %v2345 = vld [vmem:[#allocation2 + $0x368] sm:$0xff]
    %v2346 = vld [vmem:[#allocation2 + $0x370] sm:$0xff]
    %v2347 = vld [vmem:[#allocation2 + $0x378] sm:$0xff]
    %v2348 = vld [vmem:[#allocation2 + $0x380] sm:$0xff]
    %v2349 = vld [vmem:[#allocation2 + $0x388] sm:$0xff]
    %v2350 = vld [vmem:[#allocation2 + $0x390] sm:$0xff]
    %v2351 = vld [vmem:[#allocation2 + $0x398] sm:$0xff]
    %v2352 = vld [vmem:[#allocation2 + $0x3a0] sm:$0xff]
    %v2353 = vld [vmem:[#allocation2 + $0x3a8] sm:$0xff]
    %v2354 = vld [vmem:[#allocation2 + $0x3b0] sm:$0xff]
    %v2355 = vld [vmem:[#allocation2 + $0x3b8] sm:$0xff]
    %v2356 = vld [vmem:[#allocation2 + $0x3c0] sm:$0xff]
    %v2357 = vld [vmem:[#allocation2 + $0x3c8] sm:$0xff]
    %v2358 = vld [vmem:[#allocation2 + $0x3d0] sm:$0xff]
    %v2359 = vld [vmem:[#allocation2 + $0x3d8] sm:$0xff]
    %v2360 = vld [vmem:[#allocation2 + $0x3e0] sm:$0xff]
    %v2361 = vld [vmem:[#allocation2 + $0x3e8] sm:$0xff]
    %v2362 = vld [vmem:[#allocation2 + $0x3f0] sm:$0xff]
    %v2363 = vld [vmem:[#allocation2 + $0x3f8] sm:$0xff]
    %s2364 = scalar_lea.vmem [#allocation10], 8
    %v2365 = vld [vmem:[%s2364] sm:$0xf]
    %v2367 = vlaneseq
    %v2368 = vshrl.u32 %v2367, 7
    %v2369 = vsub.s32 0, %v2368
    %v2370 = vrot.slane %v2365, %v2369
    %v2371 = vlaneseq
    %v2372 = vshrl.u32 %v2371, 7
    %v2373 = vsub.s32 1, %v2372
    %v2374 = vrot.slane %v2365, %v2373
    %v2375 = vlaneseq
    %v2376 = vshrl.u32 %v2375, 7
    %v2377 = vsub.s32 2, %v2376
    %v2378 = vrot.slane %v2365, %v2377
    %v2379 = vlaneseq
    %v2380 = vshrl.u32 %v2379, 7
    %v2381 = vsub.s32 3, %v2380
    %v2382 = vrot.slane %v2365, %v2381
    %v2515 = vunpack.c.l.b16 %v2236
    %v2516 = vunpack.c.h.b16 %v2236
    %v2517 = vunpack.c.l.b16 %v2237
    %v2518 = vunpack.c.h.b16 %v2237
    %v2519 = vunpack.c.l.b16 %v2238
    %v2520 = vunpack.c.h.b16 %v2238
    %v2521 = vunpack.c.l.b16 %v2239
    %v2522 = vunpack.c.h.b16 %v2239
    %v2523 = vunpack.c.l.b16 %v2240
    %v2524 = vunpack.c.h.b16 %v2240
    %v2525 = vunpack.c.l.b16 %v2241
    %v2526 = vunpack.c.h.b16 %v2241
    %v2527 = vunpack.c.l.b16 %v2242
    %v2528 = vunpack.c.h.b16 %v2242
    %v2529 = vunpack.c.l.b16 %v2243
    %v2530 = vunpack.c.h.b16 %v2243
    %v2531 = vunpack.c.l.b16 %v2244
    %v2532 = vunpack.c.h.b16 %v2244
    %v2533 = vunpack.c.l.b16 %v2245
    %v2534 = vunpack.c.h.b16 %v2245
    %v2535 = vunpack.c.l.b16 %v2246
    %v2536 = vunpack.c.h.b16 %v2246
    %v2537 = vunpack.c.l.b16 %v2247
    %v2538 = vunpack.c.h.b16 %v2247
    %v2539 = vunpack.c.l.b16 %v2248
    %v2540 = vunpack.c.h.b16 %v2248
    %v2541 = vunpack.c.l.b16 %v2249
    %v2542 = vunpack.c.h.b16 %v2249
    %v2543 = vunpack.c.l.b16 %v2250
    %v2544 = vunpack.c.h.b16 %v2250
    %v2545 = vunpack.c.l.b16 %v2251
    %v2546 = vunpack.c.h.b16 %v2251
    %v2547 = vunpack.c.l.b16 %v2252
    %v2548 = vunpack.c.h.b16 %v2252
    %v2549 = vunpack.c.l.b16 %v2253
    %v2550 = vunpack.c.h.b16 %v2253
    %v2551 = vunpack.c.l.b16 %v2254
    %v2552 = vunpack.c.h.b16 %v2254
    %v2553 = vunpack.c.l.b16 %v2255
    %v2554 = vunpack.c.h.b16 %v2255
    %v2555 = vunpack.c.l.b16 %v2256
    %v2556 = vunpack.c.h.b16 %v2256
    %v2557 = vunpack.c.l.b16 %v2257
    %v2558 = vunpack.c.h.b16 %v2257
    %v2559 = vunpack.c.l.b16 %v2258
    %v2560 = vunpack.c.h.b16 %v2258
    %v2561 = vunpack.c.l.b16 %v2259
    %v2562 = vunpack.c.h.b16 %v2259
    %v2563 = vunpack.c.l.b16 %v2260
    %v2564 = vunpack.c.h.b16 %v2260
    %v2565 = vunpack.c.l.b16 %v2261
    %v2566 = vunpack.c.h.b16 %v2261
    %v2567 = vunpack.c.l.b16 %v2262
    %v2568 = vunpack.c.h.b16 %v2262
    %v2569 = vunpack.c.l.b16 %v2263
    %v2570 = vunpack.c.h.b16 %v2263
    %v2571 = vunpack.c.l.b16 %v2264
    %v2572 = vunpack.c.h.b16 %v2264
    %v2573 = vunpack.c.l.b16 %v2265
    %v2574 = vunpack.c.h.b16 %v2265
    %v2575 = vunpack.c.l.b16 %v2266
    %v2576 = vunpack.c.h.b16 %v2266
    %v2577 = vunpack.c.l.b16 %v2267
    %v2578 = vunpack.c.h.b16 %v2267
    %v2579 = vunpack.c.l.b16 %v2268
    %v2580 = vunpack.c.h.b16 %v2268
    %v2581 = vunpack.c.l.b16 %v2269
    %v2582 = vunpack.c.h.b16 %v2269
    %v2583 = vunpack.c.l.b16 %v2270
    %v2584 = vunpack.c.h.b16 %v2270
    %v2585 = vunpack.c.l.b16 %v2271
    %v2586 = vunpack.c.h.b16 %v2271
    %v2587 = vunpack.c.l.b16 %v2272
    %v2588 = vunpack.c.h.b16 %v2272
    %v2589 = vunpack.c.l.b16 %v2273
    %v2590 = vunpack.c.h.b16 %v2273
    %v2591 = vunpack.c.l.b16 %v2274
    %v2592 = vunpack.c.h.b16 %v2274
    %v2593 = vunpack.c.l.b16 %v2275
    %v2594 = vunpack.c.h.b16 %v2275
    %v2595 = vunpack.c.l.b16 %v2276
    %v2596 = vunpack.c.h.b16 %v2276
    %v2597 = vunpack.c.l.b16 %v2277
    %v2598 = vunpack.c.h.b16 %v2277
    %v2599 = vunpack.c.l.b16 %v2278
    %v2600 = vunpack.c.h.b16 %v2278
    %v2601 = vunpack.c.l.b16 %v2279
    %v2602 = vunpack.c.h.b16 %v2279
    %v2603 = vunpack.c.l.b16 %v2280
    %v2604 = vunpack.c.h.b16 %v2280
    %v2605 = vunpack.c.l.b16 %v2281
    %v2606 = vunpack.c.h.b16 %v2281
    %v2607 = vunpack.c.l.b16 %v2282
    %v2608 = vunpack.c.h.b16 %v2282
    %v2609 = vunpack.c.l.b16 %v2283
    %v2610 = vunpack.c.h.b16 %v2283
    %v2611 = vunpack.c.l.b16 %v2284
    %v2612 = vunpack.c.h.b16 %v2284
    %v2613 = vunpack.c.l.b16 %v2285
    %v2614 = vunpack.c.h.b16 %v2285
    %v2615 = vunpack.c.l.b16 %v2286
    %v2616 = vunpack.c.h.b16 %v2286
    %v2617 = vunpack.c.l.b16 %v2287
    %v2618 = vunpack.c.h.b16 %v2287
    %v2619 = vunpack.c.l.b16 %v2288
    %v2620 = vunpack.c.h.b16 %v2288
    %v2621 = vunpack.c.l.b16 %v2289
    %v2622 = vunpack.c.h.b16 %v2289
    %v2623 = vunpack.c.l.b16 %v2290
    %v2624 = vunpack.c.h.b16 %v2290
    %v2625 = vunpack.c.l.b16 %v2291
    %v2626 = vunpack.c.h.b16 %v2291
    %v2627 = vunpack.c.l.b16 %v2292
    %v2628 = vunpack.c.h.b16 %v2292
    %v2629 = vunpack.c.l.b16 %v2293
    %v2630 = vunpack.c.h.b16 %v2293
    %v2631 = vunpack.c.l.b16 %v2294
    %v2632 = vunpack.c.h.b16 %v2294
    %v2633 = vunpack.c.l.b16 %v2295
    %v2634 = vunpack.c.h.b16 %v2295
    %v2635 = vunpack.c.l.b16 %v2296
    %v2636 = vunpack.c.h.b16 %v2296
    %v2637 = vunpack.c.l.b16 %v2297
    %v2638 = vunpack.c.h.b16 %v2297
    %v2639 = vunpack.c.l.b16 %v2298
    %v2640 = vunpack.c.h.b16 %v2298
    %v2641 = vunpack.c.l.b16 %v2299
    %v2642 = vunpack.c.h.b16 %v2299
    %v2643 = vunpack.c.l.b16 %v2300
    %v2644 = vunpack.c.h.b16 %v2300
    %v2645 = vunpack.c.l.b16 %v2301
    %v2646 = vunpack.c.h.b16 %v2301
    %v2647 = vunpack.c.l.b16 %v2302
    %v2648 = vunpack.c.h.b16 %v2302
    %v2649 = vunpack.c.l.b16 %v2303
    %v2650 = vunpack.c.h.b16 %v2303
    %v2651 = vunpack.c.l.b16 %v2304
    %v2652 = vunpack.c.h.b16 %v2304
    %v2653 = vunpack.c.l.b16 %v2305
    %v2654 = vunpack.c.h.b16 %v2305
    %v2655 = vunpack.c.l.b16 %v2306
    %v2656 = vunpack.c.h.b16 %v2306
    %v2657 = vunpack.c.l.b16 %v2307
    %v2658 = vunpack.c.h.b16 %v2307
    %v2659 = vunpack.c.l.b16 %v2308
    %v2660 = vunpack.c.h.b16 %v2308
    %v2661 = vunpack.c.l.b16 %v2309
    %v2662 = vunpack.c.h.b16 %v2309
    %v2663 = vunpack.c.l.b16 %v2310
    %v2664 = vunpack.c.h.b16 %v2310
    %v2665 = vunpack.c.l.b16 %v2311
    %v2666 = vunpack.c.h.b16 %v2311
    %v2667 = vunpack.c.l.b16 %v2312
    %v2668 = vunpack.c.h.b16 %v2312
    %v2669 = vunpack.c.l.b16 %v2313
    %v2670 = vunpack.c.h.b16 %v2313
    %v2671 = vunpack.c.l.b16 %v2314
    %v2672 = vunpack.c.h.b16 %v2314
    %v2673 = vunpack.c.l.b16 %v2315
    %v2674 = vunpack.c.h.b16 %v2315
    %v2675 = vunpack.c.l.b16 %v2316
    %v2676 = vunpack.c.h.b16 %v2316
    %v2677 = vunpack.c.l.b16 %v2317
    %v2678 = vunpack.c.h.b16 %v2317
    %v2679 = vunpack.c.l.b16 %v2318
    %v2680 = vunpack.c.h.b16 %v2318
    %v2681 = vunpack.c.l.b16 %v2319
    %v2682 = vunpack.c.h.b16 %v2319
    %v2683 = vunpack.c.l.b16 %v2320
    %v2684 = vunpack.c.h.b16 %v2320
    %v2685 = vunpack.c.l.b16 %v2321
    %v2686 = vunpack.c.h.b16 %v2321
    %v2687 = vunpack.c.l.b16 %v2322
    %v2688 = vunpack.c.h.b16 %v2322
    %v2689 = vunpack.c.l.b16 %v2323
    %v2690 = vunpack.c.h.b16 %v2323
    %v2691 = vunpack.c.l.b16 %v2324
    %v2692 = vunpack.c.h.b16 %v2324
    %v2693 = vunpack.c.l.b16 %v2325
    %v2694 = vunpack.c.h.b16 %v2325
    %v2695 = vunpack.c.l.b16 %v2326
    %v2696 = vunpack.c.h.b16 %v2326
    %v2697 = vunpack.c.l.b16 %v2327
    %v2698 = vunpack.c.h.b16 %v2327
    %v2699 = vunpack.c.l.b16 %v2328
    %v2700 = vunpack.c.h.b16 %v2328
    %v2701 = vunpack.c.l.b16 %v2329
    %v2702 = vunpack.c.h.b16 %v2329
    %v2703 = vunpack.c.l.b16 %v2330
    %v2704 = vunpack.c.h.b16 %v2330
    %v2705 = vunpack.c.l.b16 %v2331
    %v2706 = vunpack.c.h.b16 %v2331
    %v2707 = vunpack.c.l.b16 %v2332
    %v2708 = vunpack.c.h.b16 %v2332
    %v2709 = vunpack.c.l.b16 %v2333
    %v2710 = vunpack.c.h.b16 %v2333
    %v2711 = vunpack.c.l.b16 %v2334
    %v2712 = vunpack.c.h.b16 %v2334
    %v2713 = vunpack.c.l.b16 %v2335
    %v2714 = vunpack.c.h.b16 %v2335
    %v2715 = vunpack.c.l.b16 %v2336
    %v2716 = vunpack.c.h.b16 %v2336
    %v2717 = vunpack.c.l.b16 %v2337
    %v2718 = vunpack.c.h.b16 %v2337
    %v2719 = vunpack.c.l.b16 %v2338
    %v2720 = vunpack.c.h.b16 %v2338
    %v2721 = vunpack.c.l.b16 %v2339
    %v2722 = vunpack.c.h.b16 %v2339
    %v2723 = vunpack.c.l.b16 %v2340
    %v2724 = vunpack.c.h.b16 %v2340
    %v2725 = vunpack.c.l.b16 %v2341
    %v2726 = vunpack.c.h.b16 %v2341
    %v2727 = vunpack.c.l.b16 %v2342
    %v2728 = vunpack.c.h.b16 %v2342
    %v2729 = vunpack.c.l.b16 %v2343
    %v2730 = vunpack.c.h.b16 %v2343
    %v2731 = vunpack.c.l.b16 %v2344
    %v2732 = vunpack.c.h.b16 %v2344
    %v2733 = vunpack.c.l.b16 %v2345
    %v2734 = vunpack.c.h.b16 %v2345
    %v2735 = vunpack.c.l.b16 %v2346
    %v2736 = vunpack.c.h.b16 %v2346
    %v2737 = vunpack.c.l.b16 %v2347
    %v2738 = vunpack.c.h.b16 %v2347
    %v2739 = vunpack.c.l.b16 %v2348
    %v2740 = vunpack.c.h.b16 %v2348
    %v2741 = vunpack.c.l.b16 %v2349
    %v2742 = vunpack.c.h.b16 %v2349
    %v2743 = vunpack.c.l.b16 %v2350
    %v2744 = vunpack.c.h.b16 %v2350
    %v2745 = vunpack.c.l.b16 %v2351
    %v2746 = vunpack.c.h.b16 %v2351
    %v2747 = vunpack.c.l.b16 %v2352
    %v2748 = vunpack.c.h.b16 %v2352
    %v2749 = vunpack.c.l.b16 %v2353
    %v2750 = vunpack.c.h.b16 %v2353
    %v2751 = vunpack.c.l.b16 %v2354
    %v2752 = vunpack.c.h.b16 %v2354
    %v2753 = vunpack.c.l.b16 %v2355
    %v2754 = vunpack.c.h.b16 %v2355
    %v2755 = vunpack.c.l.b16 %v2356
    %v2756 = vunpack.c.h.b16 %v2356
    %v2757 = vunpack.c.l.b16 %v2357
    %v2758 = vunpack.c.h.b16 %v2357
    %v2759 = vunpack.c.l.b16 %v2358
    %v2760 = vunpack.c.h.b16 %v2358
    %v2761 = vunpack.c.l.b16 %v2359
    %v2762 = vunpack.c.h.b16 %v2359
    %v2763 = vunpack.c.l.b16 %v2360
    %v2764 = vunpack.c.h.b16 %v2360
    %v2765 = vunpack.c.l.b16 %v2361
    %v2766 = vunpack.c.h.b16 %v2361
    %v2767 = vunpack.c.l.b16 %v2362
    %v2768 = vunpack.c.h.b16 %v2362
    %v2769 = vunpack.c.l.b16 %v2363
    %v2770 = vunpack.c.h.b16 %v2363
    %v2771 = vpack.c.b16 %v2519, %v2515
    %v2772 = vpack.c.b16 %v2520, %v2516
    %v2773 = vpack.c.b16 %v2521, %v2517
    %v2774 = vpack.c.b16 %v2522, %v2518
    %v2775 = vpack.c.b16 %v2527, %v2523
    %v2776 = vpack.c.b16 %v2528, %v2524
    %v2777 = vpack.c.b16 %v2529, %v2525
    %v2778 = vpack.c.b16 %v2530, %v2526
    %v2779 = vpack.c.b16 %v2535, %v2531
    %v2780 = vpack.c.b16 %v2536, %v2532
    %v2781 = vpack.c.b16 %v2537, %v2533
    %v2782 = vpack.c.b16 %v2538, %v2534
    %v2783 = vpack.c.b16 %v2543, %v2539
    %v2784 = vpack.c.b16 %v2544, %v2540
    %v2785 = vpack.c.b16 %v2545, %v2541
    %v2786 = vpack.c.b16 %v2546, %v2542
    %v2787 = vpack.c.b16 %v2551, %v2547
    %v2788 = vpack.c.b16 %v2552, %v2548
    %v2789 = vpack.c.b16 %v2553, %v2549
    %v2790 = vpack.c.b16 %v2554, %v2550
    %v2791 = vpack.c.b16 %v2559, %v2555
    %v2792 = vpack.c.b16 %v2560, %v2556
    %v2793 = vpack.c.b16 %v2561, %v2557
    %v2794 = vpack.c.b16 %v2562, %v2558
    %v2795 = vpack.c.b16 %v2567, %v2563
    %v2796 = vpack.c.b16 %v2568, %v2564
    %v2797 = vpack.c.b16 %v2569, %v2565
    %v2798 = vpack.c.b16 %v2570, %v2566
    %v2799 = vpack.c.b16 %v2575, %v2571
    %v2800 = vpack.c.b16 %v2576, %v2572
    %v2801 = vpack.c.b16 %v2577, %v2573
    %v2802 = vpack.c.b16 %v2578, %v2574
    %v2803 = vpack.c.b16 %v2583, %v2579
    %v2804 = vpack.c.b16 %v2584, %v2580
    %v2805 = vpack.c.b16 %v2585, %v2581
    %v2806 = vpack.c.b16 %v2586, %v2582
    %v2807 = vpack.c.b16 %v2591, %v2587
    %v2808 = vpack.c.b16 %v2592, %v2588
    %v2809 = vpack.c.b16 %v2593, %v2589
    %v2810 = vpack.c.b16 %v2594, %v2590
    %v2811 = vpack.c.b16 %v2599, %v2595
    %v2812 = vpack.c.b16 %v2600, %v2596
    %v2813 = vpack.c.b16 %v2601, %v2597
    %v2814 = vpack.c.b16 %v2602, %v2598
    %v2815 = vpack.c.b16 %v2607, %v2603
    %v2816 = vpack.c.b16 %v2608, %v2604
    %v2817 = vpack.c.b16 %v2609, %v2605
    %v2818 = vpack.c.b16 %v2610, %v2606
    %v2819 = vpack.c.b16 %v2615, %v2611
    %v2820 = vpack.c.b16 %v2616, %v2612
    %v2821 = vpack.c.b16 %v2617, %v2613
    %v2822 = vpack.c.b16 %v2618, %v2614
    %v2823 = vpack.c.b16 %v2623, %v2619
    %v2824 = vpack.c.b16 %v2624, %v2620
    %v2825 = vpack.c.b16 %v2625, %v2621
    %v2826 = vpack.c.b16 %v2626, %v2622
    %v2827 = vpack.c.b16 %v2631, %v2627
    %v2828 = vpack.c.b16 %v2632, %v2628
    %v2829 = vpack.c.b16 %v2633, %v2629
    %v2830 = vpack.c.b16 %v2634, %v2630
    %v2831 = vpack.c.b16 %v2639, %v2635
    %v2832 = vpack.c.b16 %v2640, %v2636
    %v2833 = vpack.c.b16 %v2641, %v2637
    %v2834 = vpack.c.b16 %v2642, %v2638
    %v2835 = vpack.c.b16 %v2647, %v2643
    %v2836 = vpack.c.b16 %v2648, %v2644
    %v2837 = vpack.c.b16 %v2649, %v2645
    %v2838 = vpack.c.b16 %v2650, %v2646
    %v2839 = vpack.c.b16 %v2655, %v2651
    %v2840 = vpack.c.b16 %v2656, %v2652
    %v2841 = vpack.c.b16 %v2657, %v2653
    %v2842 = vpack.c.b16 %v2658, %v2654
    %v2843 = vpack.c.b16 %v2663, %v2659
    %v2844 = vpack.c.b16 %v2664, %v2660
    %v2845 = vpack.c.b16 %v2665, %v2661
    %v2846 = vpack.c.b16 %v2666, %v2662
    %v2847 = vpack.c.b16 %v2671, %v2667
    %v2848 = vpack.c.b16 %v2672, %v2668
    %v2849 = vpack.c.b16 %v2673, %v2669
    %v2850 = vpack.c.b16 %v2674, %v2670
    %v2851 = vpack.c.b16 %v2679, %v2675
    %v2852 = vpack.c.b16 %v2680, %v2676
    %v2853 = vpack.c.b16 %v2681, %v2677
    %v2854 = vpack.c.b16 %v2682, %v2678
    %v2855 = vpack.c.b16 %v2687, %v2683
    %v2856 = vpack.c.b16 %v2688, %v2684
    %v2857 = vpack.c.b16 %v2689, %v2685
    %v2858 = vpack.c.b16 %v2690, %v2686
    %v2859 = vpack.c.b16 %v2695, %v2691
    %v2860 = vpack.c.b16 %v2696, %v2692
    %v2861 = vpack.c.b16 %v2697, %v2693
    %v2862 = vpack.c.b16 %v2698, %v2694
    %v2863 = vpack.c.b16 %v2703, %v2699
    %v2864 = vpack.c.b16 %v2704, %v2700
    %v2865 = vpack.c.b16 %v2705, %v2701
    %v2866 = vpack.c.b16 %v2706, %v2702
    %v2867 = vpack.c.b16 %v2711, %v2707
    %v2868 = vpack.c.b16 %v2712, %v2708
    %v2869 = vpack.c.b16 %v2713, %v2709
    %v2870 = vpack.c.b16 %v2714, %v2710
    %v2871 = vpack.c.b16 %v2719, %v2715
    %v2872 = vpack.c.b16 %v2720, %v2716
    %v2873 = vpack.c.b16 %v2721, %v2717
    %v2874 = vpack.c.b16 %v2722, %v2718
    %v2875 = vpack.c.b16 %v2727, %v2723
    %v2876 = vpack.c.b16 %v2728, %v2724
    %v2877 = vpack.c.b16 %v2729, %v2725
    %v2878 = vpack.c.b16 %v2730, %v2726
    %v2879 = vpack.c.b16 %v2735, %v2731
    %v2880 = vpack.c.b16 %v2736, %v2732
    %v2881 = vpack.c.b16 %v2737, %v2733
    %v2882 = vpack.c.b16 %v2738, %v2734
    %v2883 = vpack.c.b16 %v2743, %v2739
    %v2884 = vpack.c.b16 %v2744, %v2740
    %v2885 = vpack.c.b16 %v2745, %v2741
    %v2886 = vpack.c.b16 %v2746, %v2742
    %v2887 = vpack.c.b16 %v2751, %v2747
    %v2888 = vpack.c.b16 %v2752, %v2748
    %v2889 = vpack.c.b16 %v2753, %v2749
    %v2890 = vpack.c.b16 %v2754, %v2750
    %v2891 = vpack.c.b16 %v2759, %v2755
    %v2892 = vpack.c.b16 %v2760, %v2756
    %v2893 = vpack.c.b16 %v2761, %v2757
    %v2894 = vpack.c.b16 %v2762, %v2758
    %v2895 = vpack.c.b16 %v2767, %v2763
    %v2896 = vpack.c.b16 %v2768, %v2764
    %v2897 = vpack.c.b16 %v2769, %v2765
    %v2898 = vpack.c.b16 %v2770, %v2766
    %3027 = vmatprep.subr.bf16.mxu0 %v2800
    %3028 = vmatpush1.bf16.msra.mxu0 %v2799
    %3029 = vmatprep.subr.bf16.mxu0 %v2796
    %3030 = vmatpush1.bf16.msra.mxu0 %v2795
    %3031 = vmatprep.subr.bf16.mxu0 %v2792
    %3032 = vmatpush1.bf16.msra.mxu0 %v2791
    %3033 = vmatprep.subr.bf16.mxu0 %v2788
    %3034 = vmatpush1.bf16.msra.mxu0 %v2787
    %3035 = vmatprep.subr.bf16.mxu0 %v2784
    %3036 = vmatpush1.bf16.msra.mxu0 %v2783
    %3037 = vmatprep.subr.bf16.mxu0 %v2780
    %3038 = vmatpush1.bf16.msra.mxu0 %v2779
    %3039 = vmatprep.subr.bf16.mxu0 %v2776
    %3040 = vmatpush1.bf16.msra.mxu0 %v2775
    %3041 = vmatprep.subr.bf16.mxu0 %v2772
    %3042 = vmatpush1.bf16.msra.mxu0 %v2771
    %3043 = vmatprep.subr.bf16.mxu0 %v2832
    %3044 = vmatpush2.bf16.msra.mxu0 %v2831
    %3045 = vmatprep.subr.bf16.mxu0 %v2828
    %3046 = vmatpush2.bf16.msra.mxu0 %v2827
    %3047 = vmatprep.subr.bf16.mxu0 %v2824
    %3048 = vmatpush2.bf16.msra.mxu0 %v2823
    %3049 = vmatprep.subr.bf16.mxu0 %v2820
    %3050 = vmatpush2.bf16.msra.mxu0 %v2819
    %3051 = vmatprep.subr.bf16.mxu0 %v2816
    %3052 = vmatpush2.bf16.msra.mxu0 %v2815
    %3053 = vmatprep.subr.bf16.mxu0 %v2812
    %3054 = vmatpush2.bf16.msra.mxu0 %v2811
    %3055 = vmatprep.subr.bf16.mxu0 %v2808
    %3056 = vmatpush2.bf16.msra.mxu0 %v2807
    %3057 = vmatprep.subr.bf16.mxu0 %v2804
    %3058 = vmatpush2.bf16.msra.mxu0 %v2803
    %3059 = vmatprep.mubr.bf16.mxu0 %v2219
    %3060 = vmatmul.mubr.bf16.gmra.mxu0 %v2218
    %v3061 = vpop.f32.mrf.mxu0
    %v3062 = vadd.f32 %v2370, %v3061
    %v3063 = vpop.f32.mrf.mxu0
    %v3064 = vadd.f32 %v2374, %v3063
    %v3065 = vpop.f32.mrf.mxu0
    %v3066 = vpop.f32.mrf.mxu0
    %3067 = vdwg.mxu0
    %3068 = vmatprep.subr.bf16.mxu0 %v2864
    %3069 = vmatpush1.bf16.msra.mxu0 %v2863
    %3070 = vmatprep.subr.bf16.mxu0 %v2860
    %3071 = vmatpush1.bf16.msra.mxu0 %v2859
    %3072 = vmatprep.subr.bf16.mxu0 %v2856
    %3073 = vmatpush1.bf16.msra.mxu0 %v2855
    %3074 = vmatprep.subr.bf16.mxu0 %v2852
    %3075 = vmatpush1.bf16.msra.mxu0 %v2851
    %3076 = vmatprep.subr.bf16.mxu0 %v2848
    %3077 = vmatpush1.bf16.msra.mxu0 %v2847
    %3078 = vmatprep.subr.bf16.mxu0 %v2844
    %3079 = vmatpush1.bf16.msra.mxu0 %v2843
    %3080 = vmatprep.subr.bf16.mxu0 %v2840
    %3081 = vmatpush1.bf16.msra.mxu0 %v2839
    %3082 = vmatprep.subr.bf16.mxu0 %v2836
    %3083 = vmatpush1.bf16.msra.mxu0 %v2835
    %3084 = vmatprep.subr.bf16.mxu0 %v2896
    %3085 = vmatpush2.bf16.msra.mxu0 %v2895
    %3086 = vmatprep.subr.bf16.mxu0 %v2892
    %3087 = vmatpush2.bf16.msra.mxu0 %v2891
    %3088 = vmatprep.subr.bf16.mxu0 %v2888
    %3089 = vmatpush2.bf16.msra.mxu0 %v2887
    %3090 = vmatprep.subr.bf16.mxu0 %v2884
    %3091 = vmatpush2.bf16.msra.mxu0 %v2883
    %3092 = vmatprep.subr.bf16.mxu0 %v2880
    %3093 = vmatpush2.bf16.msra.mxu0 %v2879
    %3094 = vmatprep.subr.bf16.mxu0 %v2876
    %3095 = vmatpush2.bf16.msra.mxu0 %v2875
    %3096 = vmatprep.subr.bf16.mxu0 %v2872
    %3097 = vmatpush2.bf16.msra.mxu0 %v2871
    %3098 = vmatprep.subr.bf16.mxu0 %v2868
    %3099 = vmatpush2.bf16.msra.mxu0 %v2867
    %3100 = vmatprep.mubr.bf16.mxu0 %v2221
    %3101 = vmatmul.mubr.bf16.gmra.mxu0 %v2220
    %v3102 = vpop.f32.mrf.mxu0
    %v3103 = vadd.f32 %v3062, %v3102
    %v3104 = vpop.f32.mrf.mxu0
    %v3105 = vadd.f32 %v3064, %v3104
    %v3106 = vpop.f32.mrf.mxu0
    %v3107 = vpop.f32.mrf.mxu0
    %3108 = vdwg.mxu0
    %3109 = vmatprep.subr.bf16.mxu0 %v2802
    %3110 = vmatpush1.bf16.msra.mxu0 %v2801
    %3111 = vmatprep.subr.bf16.mxu0 %v2798
    %3112 = vmatpush1.bf16.msra.mxu0 %v2797
    %3113 = vmatprep.subr.bf16.mxu0 %v2794
    %3114 = vmatpush1.bf16.msra.mxu0 %v2793
    %3115 = vmatprep.subr.bf16.mxu0 %v2790
    %3116 = vmatpush1.bf16.msra.mxu0 %v2789
    %3117 = vmatprep.subr.bf16.mxu0 %v2786
    %3118 = vmatpush1.bf16.msra.mxu0 %v2785
    %3119 = vmatprep.subr.bf16.mxu0 %v2782
    %3120 = vmatpush1.bf16.msra.mxu0 %v2781
    %3121 = vmatprep.subr.bf16.mxu0 %v2778
    %3122 = vmatpush1.bf16.msra.mxu0 %v2777
    %3123 = vmatprep.subr.bf16.mxu0 %v2774
    %3124 = vmatpush1.bf16.msra.mxu0 %v2773
    %3125 = vmatprep.subr.bf16.mxu0 %v2834
    %3126 = vmatpush2.bf16.msra.mxu0 %v2833
    %3127 = vmatprep.subr.bf16.mxu0 %v2830
    %3128 = vmatpush2.bf16.msra.mxu0 %v2829
    %3129 = vmatprep.subr.bf16.mxu0 %v2826
    %3130 = vmatpush2.bf16.msra.mxu0 %v2825
    %3131 = vmatprep.subr.bf16.mxu0 %v2822
    %3132 = vmatpush2.bf16.msra.mxu0 %v2821
    %3133 = vmatprep.subr.bf16.mxu0 %v2818
    %3134 = vmatpush2.bf16.msra.mxu0 %v2817
    %3135 = vmatprep.subr.bf16.mxu0 %v2814
    %3136 = vmatpush2.bf16.msra.mxu0 %v2813
    %3137 = vmatprep.subr.bf16.mxu0 %v2810
    %3138 = vmatpush2.bf16.msra.mxu0 %v2809
    %3139 = vmatprep.subr.bf16.mxu0 %v2806
    %3140 = vmatpush2.bf16.msra.mxu0 %v2805
    %3141 = vmatprep.mubr.bf16.mxu0 %v2219
    %3142 = vmatmul.mubr.bf16.gmra.mxu0 %v2218
    %v3143 = vpop.f32.mrf.mxu0
    %v3144 = vadd.f32 %v2378, %v3143
    %v3145 = vpop.f32.mrf.mxu0
    %v3146 = vadd.f32 %v2382, %v3145
    %v3147 = vpop.f32.mrf.mxu0
    %v3148 = vpop.f32.mrf.mxu0
    %3149 = vdwg.mxu0
    %3150 = vmatprep.subr.bf16.mxu0 %v2866
    %3151 = vmatpush1.bf16.msra.mxu0 %v2865
    %3152 = vmatprep.subr.bf16.mxu0 %v2862
    %3153 = vmatpush1.bf16.msra.mxu0 %v2861
    %3154 = vmatprep.subr.bf16.mxu0 %v2858
    %3155 = vmatpush1.bf16.msra.mxu0 %v2857
    %3156 = vmatprep.subr.bf16.mxu0 %v2854
    %3157 = vmatpush1.bf16.msra.mxu0 %v2853
    %3158 = vmatprep.subr.bf16.mxu0 %v2850
    %3159 = vmatpush1.bf16.msra.mxu0 %v2849
    %3160 = vmatprep.subr.bf16.mxu0 %v2846
    %3161 = vmatpush1.bf16.msra.mxu0 %v2845
    %3162 = vmatprep.subr.bf16.mxu0 %v2842
    %3163 = vmatpush1.bf16.msra.mxu0 %v2841
    %3164 = vmatprep.subr.bf16.mxu0 %v2838
    %3165 = vmatpush1.bf16.msra.mxu0 %v2837
    %3166 = vmatprep.subr.bf16.mxu0 %v2898
    %3167 = vmatpush2.bf16.msra.mxu0 %v2897
    %3168 = vmatprep.subr.bf16.mxu0 %v2894
    %3169 = vmatpush2.bf16.msra.mxu0 %v2893
    %3170 = vmatprep.subr.bf16.mxu0 %v2890
    %3171 = vmatpush2.bf16.msra.mxu0 %v2889
    %3172 = vmatprep.subr.bf16.mxu0 %v2886
    %3173 = vmatpush2.bf16.msra.mxu0 %v2885
    %3174 = vmatprep.subr.bf16.mxu0 %v2882
    %3175 = vmatpush2.bf16.msra.mxu0 %v2881
    %3176 = vmatprep.subr.bf16.mxu0 %v2878
    %3177 = vmatpush2.bf16.msra.mxu0 %v2877
    %3178 = vmatprep.subr.bf16.mxu0 %v2874
    %3179 = vmatpush2.bf16.msra.mxu0 %v2873
    %3180 = vmatprep.subr.bf16.mxu0 %v2870
    %3181 = vmatpush2.bf16.msra.mxu0 %v2869
    %3182 = vmatprep.mubr.bf16.mxu0 %v2221
    %3183 = vmatmul.mubr.bf16.gmra.mxu0 %v2220
    %v3184 = vpop.f32.mrf.mxu0
    %v3185 = vadd.f32 %v3144, %v3184
    %v3186 = vpop.f32.mrf.mxu0
    %v3187 = vadd.f32 %v3146, %v3186
    %v3188 = vpop.f32.mrf.mxu0
    %v3189 = vpop.f32.mrf.mxu0
    %3190 = vdwg.mxu0
    %v3191 = vmax.f32 %v3103, 0.0
    %v3192 = vmax.f32 %v3105, 0.0
    %v3193 = vmax.f32 %v3185, 0.0
    %v3194 = vmax.f32 %v3187, 0.0
    %v3195 = vpack.c.bf16 %v3191, %v3191
    %v3196 = vpack.c.bf16 %v3192, %v3192
    %v3197 = vpack.c.bf16 %v3193, %v3193
    %v3198 = vpack.c.bf16 %v3194, %v3194
    %s3199 = sshll.u32 %s266, 4
    %3200 = dma.done %s271, %s3199
    %s3201 = scalar_lea.hbm %s3, 65536
    // Predicated region
    $region62: #{tpu_custom_call.1} parent=1 // pred_check
      _
    $region63: #{tpu_custom_call.1} parent=1 // pred_check_branch
      %3203 = sbr.rel target = $region65
    $region64: #{tpu_custom_call.1} parent=1 // pred_region
      %3204 = sst [smem:[#allocation15]] [#allocation24]
      %3205 = sst [smem:[#allocation16]] [#allocation23]
    $region65: #{tpu_custom_call.1} parent=1 // pred_fallthru
      _
    %3207 = shalt.err (0)
    %s3209 = sshll.u32 [#allocation2], 4
    %s3210 = int_to_ptr.vmem [resolvable:$true] %s3209
    %3212 = dma.hbm_to_vmem [thread:$0]  %s3201, 16384, %s3210, [#allocation3]
    %v3213 = vld [vmem:[%s270] sm:$0xff]
    %v3214 = vld [vmem:[%s270 + $0x8] sm:$0xff]
    %v3215 = vld [vmem:[%s270 + $0x10] sm:$0xff]
    %v3216 = vld [vmem:[%s270 + $0x18] sm:$0xff]
    %v3217 = vld [vmem:[%s270 + $0x20] sm:$0xff]
    %v3218 = vld [vmem:[%s270 + $0x28] sm:$0xff]
    %v3219 = vld [vmem:[%s270 + $0x30] sm:$0xff]
    %v3220 = vld [vmem:[%s270 + $0x38] sm:$0xff]
    %v3221 = vld [vmem:[%s270 + $0x40] sm:$0xff]
    %v3222 = vld [vmem:[%s270 + $0x48] sm:$0xff]
    %v3223 = vld [vmem:[%s270 + $0x50] sm:$0xff]
    %v3224 = vld [vmem:[%s270 + $0x58] sm:$0xff]
    %v3225 = vld [vmem:[%s270 + $0x60] sm:$0xff]
    %v3226 = vld [vmem:[%s270 + $0x68] sm:$0xff]
    %v3227 = vld [vmem:[%s270 + $0x70] sm:$0xff]
    %v3228 = vld [vmem:[%s270 + $0x78] sm:$0xff]
    %v3229 = vld [vmem:[%s270 + $0x80] sm:$0xff]
    %v3230 = vld [vmem:[%s270 + $0x88] sm:$0xff]
    %v3231 = vld [vmem:[%s270 + $0x90] sm:$0xff]
    %v3232 = vld [vmem:[%s270 + $0x98] sm:$0xff]
    %v3233 = vld [vmem:[%s270 + $0xa0] sm:$0xff]
    %v3234 = vld [vmem:[%s270 + $0xa8] sm:$0xff]
    %v3235 = vld [vmem:[%s270 + $0xb0] sm:$0xff]
    %v3236 = vld [vmem:[%s270 + $0xb8] sm:$0xff]
    %v3237 = vld [vmem:[%s270 + $0xc0] sm:$0xff]
    %v3238 = vld [vmem:[%s270 + $0xc8] sm:$0xff]
    %v3239 = vld [vmem:[%s270 + $0xd0] sm:$0xff]
    %v3240 = vld [vmem:[%s270 + $0xd8] sm:$0xff]
    %v3241 = vld [vmem:[%s270 + $0xe0] sm:$0xff]
    %v3242 = vld [vmem:[%s270 + $0xe8] sm:$0xff]
    %v3243 = vld [vmem:[%s270 + $0xf0] sm:$0xff]
    %v3244 = vld [vmem:[%s270 + $0xf8] sm:$0xff]
    %v3245 = vld [vmem:[%s270 + $0x100] sm:$0xff]
    %v3246 = vld [vmem:[%s270 + $0x108] sm:$0xff]
    %v3247 = vld [vmem:[%s270 + $0x110] sm:$0xff]
    %v3248 = vld [vmem:[%s270 + $0x118] sm:$0xff]
    %v3249 = vld [vmem:[%s270 + $0x120] sm:$0xff]
    %v3250 = vld [vmem:[%s270 + $0x128] sm:$0xff]
    %v3251 = vld [vmem:[%s270 + $0x130] sm:$0xff]
    %v3252 = vld [vmem:[%s270 + $0x138] sm:$0xff]
    %v3253 = vld [vmem:[%s270 + $0x140] sm:$0xff]
    %v3254 = vld [vmem:[%s270 + $0x148] sm:$0xff]
    %v3255 = vld [vmem:[%s270 + $0x150] sm:$0xff]
    %v3256 = vld [vmem:[%s270 + $0x158] sm:$0xff]
    %v3257 = vld [vmem:[%s270 + $0x160] sm:$0xff]
    %v3258 = vld [vmem:[%s270 + $0x168] sm:$0xff]
    %v3259 = vld [vmem:[%s270 + $0x170] sm:$0xff]
    %v3260 = vld [vmem:[%s270 + $0x178] sm:$0xff]
    %v3261 = vld [vmem:[%s270 + $0x180] sm:$0xff]
    %v3262 = vld [vmem:[%s270 + $0x188] sm:$0xff]
    %v3263 = vld [vmem:[%s270 + $0x190] sm:$0xff]
    %v3264 = vld [vmem:[%s270 + $0x198] sm:$0xff]
    %v3265 = vld [vmem:[%s270 + $0x1a0] sm:$0xff]
    %v3266 = vld [vmem:[%s270 + $0x1a8] sm:$0xff]
    %v3267 = vld [vmem:[%s270 + $0x1b0] sm:$0xff]
    %v3268 = vld [vmem:[%s270 + $0x1b8] sm:$0xff]
    %v3269 = vld [vmem:[%s270 + $0x1c0] sm:$0xff]
    %v3270 = vld [vmem:[%s270 + $0x1c8] sm:$0xff]
    %v3271 = vld [vmem:[%s270 + $0x1d0] sm:$0xff]
    %v3272 = vld [vmem:[%s270 + $0x1d8] sm:$0xff]
    %v3273 = vld [vmem:[%s270 + $0x1e0] sm:$0xff]
    %v3274 = vld [vmem:[%s270 + $0x1e8] sm:$0xff]
    %v3275 = vld [vmem:[%s270 + $0x1f0] sm:$0xff]
    %v3276 = vld [vmem:[%s270 + $0x1f8] sm:$0xff]
    %v3277 = vld [vmem:[%s270 + $0x200] sm:$0xff]
    %v3278 = vld [vmem:[%s270 + $0x208] sm:$0xff]
    %v3279 = vld [vmem:[%s270 + $0x210] sm:$0xff]
    %v3280 = vld [vmem:[%s270 + $0x218] sm:$0xff]
    %v3281 = vld [vmem:[%s270 + $0x220] sm:$0xff]
    %v3282 = vld [vmem:[%s270 + $0x228] sm:$0xff]
    %v3283 = vld [vmem:[%s270 + $0x230] sm:$0xff]
    %v3284 = vld [vmem:[%s270 + $0x238] sm:$0xff]
    %v3285 = vld [vmem:[%s270 + $0x240] sm:$0xff]
    %v3286 = vld [vmem:[%s270 + $0x248] sm:$0xff]
    %v3287 = vld [vmem:[%s270 + $0x250] sm:$0xff]
    %v3288 = vld [vmem:[%s270 + $0x258] sm:$0xff]
    %v3289 = vld [vmem:[%s270 + $0x260] sm:$0xff]
    %v3290 = vld [vmem:[%s270 + $0x268] sm:$0xff]
    %v3291 = vld [vmem:[%s270 + $0x270] sm:$0xff]
    %v3292 = vld [vmem:[%s270 + $0x278] sm:$0xff]
    %v3293 = vld [vmem:[%s270 + $0x280] sm:$0xff]
    %v3294 = vld [vmem:[%s270 + $0x288] sm:$0xff]
    %v3295 = vld [vmem:[%s270 + $0x290] sm:$0xff]
    %v3296 = vld [vmem:[%s270 + $0x298] sm:$0xff]
    %v3297 = vld [vmem:[%s270 + $0x2a0] sm:$0xff]
    %v3298 = vld [vmem:[%s270 + $0x2a8] sm:$0xff]
    %v3299 = vld [vmem:[%s270 + $0x2b0] sm:$0xff]
    %v3300 = vld [vmem:[%s270 + $0x2b8] sm:$0xff]
    %v3301 = vld [vmem:[%s270 + $0x2c0] sm:$0xff]
    %v3302 = vld [vmem:[%s270 + $0x2c8] sm:$0xff]
    %v3303 = vld [vmem:[%s270 + $0x2d0] sm:$0xff]
    %v3304 = vld [vmem:[%s270 + $0x2d8] sm:$0xff]
    %v3305 = vld [vmem:[%s270 + $0x2e0] sm:$0xff]
    %v3306 = vld [vmem:[%s270 + $0x2e8] sm:$0xff]
    %v3307 = vld [vmem:[%s270 + $0x2f0] sm:$0xff]
    %v3308 = vld [vmem:[%s270 + $0x2f8] sm:$0xff]
    %v3309 = vld [vmem:[%s270 + $0x300] sm:$0xff]
    %v3310 = vld [vmem:[%s270 + $0x308] sm:$0xff]
    %v3311 = vld [vmem:[%s270 + $0x310] sm:$0xff]
    %v3312 = vld [vmem:[%s270 + $0x318] sm:$0xff]
    %v3313 = vld [vmem:[%s270 + $0x320] sm:$0xff]
    %v3314 = vld [vmem:[%s270 + $0x328] sm:$0xff]
    %v3315 = vld [vmem:[%s270 + $0x330] sm:$0xff]
    %v3316 = vld [vmem:[%s270 + $0x338] sm:$0xff]
    %v3317 = vld [vmem:[%s270 + $0x340] sm:$0xff]
    %v3318 = vld [vmem:[%s270 + $0x348] sm:$0xff]
    %v3319 = vld [vmem:[%s270 + $0x350] sm:$0xff]
    %v3320 = vld [vmem:[%s270 + $0x358] sm:$0xff]
    %v3321 = vld [vmem:[%s270 + $0x360] sm:$0xff]
    %v3322 = vld [vmem:[%s270 + $0x368] sm:$0xff]
    %v3323 = vld [vmem:[%s270 + $0x370] sm:$0xff]
    %v3324 = vld [vmem:[%s270 + $0x378] sm:$0xff]
    %v3325 = vld [vmem:[%s270 + $0x380] sm:$0xff]
    %v3326 = vld [vmem:[%s270 + $0x388] sm:$0xff]
    %v3327 = vld [vmem:[%s270 + $0x390] sm:$0xff]
    %v3328 = vld [vmem:[%s270 + $0x398] sm:$0xff]
    %v3329 = vld [vmem:[%s270 + $0x3a0] sm:$0xff]
    %v3330 = vld [vmem:[%s270 + $0x3a8] sm:$0xff]
    %v3331 = vld [vmem:[%s270 + $0x3b0] sm:$0xff]
    %v3332 = vld [vmem:[%s270 + $0x3b8] sm:$0xff]
    %v3333 = vld [vmem:[%s270 + $0x3c0] sm:$0xff]
    %v3334 = vld [vmem:[%s270 + $0x3c8] sm:$0xff]
    %v3335 = vld [vmem:[%s270 + $0x3d0] sm:$0xff]
    %v3336 = vld [vmem:[%s270 + $0x3d8] sm:$0xff]
    %v3337 = vld [vmem:[%s270 + $0x3e0] sm:$0xff]
    %v3338 = vld [vmem:[%s270 + $0x3e8] sm:$0xff]
    %v3339 = vld [vmem:[%s270 + $0x3f0] sm:$0xff]
    %v3340 = vld [vmem:[%s270 + $0x3f8] sm:$0xff]
    %s3341 = scalar_lea.vmem [#allocation10], 12
    %v3342 = vld [vmem:[%s3341] sm:$0xf]
    %v3344 = vlaneseq
    %v3345 = vshrl.u32 %v3344, 7
    %v3346 = vsub.s32 0, %v3345
    %v3347 = vrot.slane %v3342, %v3346
    %v3348 = vlaneseq
    %v3349 = vshrl.u32 %v3348, 7
    %v3350 = vsub.s32 1, %v3349
    %v3351 = vrot.slane %v3342, %v3350
    %v3352 = vlaneseq
    %v3353 = vshrl.u32 %v3352, 7
    %v3354 = vsub.s32 2, %v3353
    %v3355 = vrot.slane %v3342, %v3354
    %v3356 = vlaneseq
    %v3357 = vshrl.u32 %v3356, 7
    %v3358 = vsub.s32 3, %v3357
    %v3359 = vrot.slane %v3342, %v3358
    %v3492 = vunpack.c.l.b16 %v3213
    %v3493 = vunpack.c.h.b16 %v3213
    %v3494 = vunpack.c.l.b16 %v3214
    %v3495 = vunpack.c.h.b16 %v3214
    %v3496 = vunpack.c.l.b16 %v3215
    %v3497 = vunpack.c.h.b16 %v3215
    %v3498 = vunpack.c.l.b16 %v3216
    %v3499 = vunpack.c.h.b16 %v3216
    %v3500 = vunpack.c.l.b16 %v3217
    %v3501 = vunpack.c.h.b16 %v3217
    %v3502 = vunpack.c.l.b16 %v3218
    %v3503 = vunpack.c.h.b16 %v3218
    %v3504 = vunpack.c.l.b16 %v3219
    %v3505 = vunpack.c.h.b16 %v3219
    %v3506 = vunpack.c.l.b16 %v3220
    %v3507 = vunpack.c.h.b16 %v3220
    %v3508 = vunpack.c.l.b16 %v3221
    %v3509 = vunpack.c.h.b16 %v3221
    %v3510 = vunpack.c.l.b16 %v3222
    %v3511 = vunpack.c.h.b16 %v3222
    %v3512 = vunpack.c.l.b16 %v3223
    %v3513 = vunpack.c.h.b16 %v3223
    %v3514 = vunpack.c.l.b16 %v3224
    %v3515 = vunpack.c.h.b16 %v3224
    %v3516 = vunpack.c.l.b16 %v3225
    %v3517 = vunpack.c.h.b16 %v3225
    %v3518 = vunpack.c.l.b16 %v3226
    %v3519 = vunpack.c.h.b16 %v3226
    %v3520 = vunpack.c.l.b16 %v3227
    %v3521 = vunpack.c.h.b16 %v3227
    %v3522 = vunpack.c.l.b16 %v3228
    %v3523 = vunpack.c.h.b16 %v3228
    %v3524 = vunpack.c.l.b16 %v3229
    %v3525 = vunpack.c.h.b16 %v3229
    %v3526 = vunpack.c.l.b16 %v3230
    %v3527 = vunpack.c.h.b16 %v3230
    %v3528 = vunpack.c.l.b16 %v3231
    %v3529 = vunpack.c.h.b16 %v3231
    %v3530 = vunpack.c.l.b16 %v3232
    %v3531 = vunpack.c.h.b16 %v3232
    %v3532 = vunpack.c.l.b16 %v3233
    %v3533 = vunpack.c.h.b16 %v3233
    %v3534 = vunpack.c.l.b16 %v3234
    %v3535 = vunpack.c.h.b16 %v3234
    %v3536 = vunpack.c.l.b16 %v3235
    %v3537 = vunpack.c.h.b16 %v3235
    %v3538 = vunpack.c.l.b16 %v3236
    %v3539 = vunpack.c.h.b16 %v3236
    %v3540 = vunpack.c.l.b16 %v3237
    %v3541 = vunpack.c.h.b16 %v3237
    %v3542 = vunpack.c.l.b16 %v3238
    %v3543 = vunpack.c.h.b16 %v3238
    %v3544 = vunpack.c.l.b16 %v3239
    %v3545 = vunpack.c.h.b16 %v3239
    %v3546 = vunpack.c.l.b16 %v3240
    %v3547 = vunpack.c.h.b16 %v3240
    %v3548 = vunpack.c.l.b16 %v3241
    %v3549 = vunpack.c.h.b16 %v3241
    %v3550 = vunpack.c.l.b16 %v3242
    %v3551 = vunpack.c.h.b16 %v3242
    %v3552 = vunpack.c.l.b16 %v3243
    %v3553 = vunpack.c.h.b16 %v3243
    %v3554 = vunpack.c.l.b16 %v3244
    %v3555 = vunpack.c.h.b16 %v3244
    %v3556 = vunpack.c.l.b16 %v3245
    %v3557 = vunpack.c.h.b16 %v3245
    %v3558 = vunpack.c.l.b16 %v3246
    %v3559 = vunpack.c.h.b16 %v3246
    %v3560 = vunpack.c.l.b16 %v3247
    %v3561 = vunpack.c.h.b16 %v3247
    %v3562 = vunpack.c.l.b16 %v3248
    %v3563 = vunpack.c.h.b16 %v3248
    %v3564 = vunpack.c.l.b16 %v3249
    %v3565 = vunpack.c.h.b16 %v3249
    %v3566 = vunpack.c.l.b16 %v3250
    %v3567 = vunpack.c.h.b16 %v3250
    %v3568 = vunpack.c.l.b16 %v3251
    %v3569 = vunpack.c.h.b16 %v3251
    %v3570 = vunpack.c.l.b16 %v3252
    %v3571 = vunpack.c.h.b16 %v3252
    %v3572 = vunpack.c.l.b16 %v3253
    %v3573 = vunpack.c.h.b16 %v3253
    %v3574 = vunpack.c.l.b16 %v3254
    %v3575 = vunpack.c.h.b16 %v3254
    %v3576 = vunpack.c.l.b16 %v3255
    %v3577 = vunpack.c.h.b16 %v3255
    %v3578 = vunpack.c.l.b16 %v3256
    %v3579 = vunpack.c.h.b16 %v3256
    %v3580 = vunpack.c.l.b16 %v3257
    %v3581 = vunpack.c.h.b16 %v3257
    %v3582 = vunpack.c.l.b16 %v3258
    %v3583 = vunpack.c.h.b16 %v3258
    %v3584 = vunpack.c.l.b16 %v3259
    %v3585 = vunpack.c.h.b16 %v3259
    %v3586 = vunpack.c.l.b16 %v3260
    %v3587 = vunpack.c.h.b16 %v3260
    %v3588 = vunpack.c.l.b16 %v3261
    %v3589 = vunpack.c.h.b16 %v3261
    %v3590 = vunpack.c.l.b16 %v3262
    %v3591 = vunpack.c.h.b16 %v3262
    %v3592 = vunpack.c.l.b16 %v3263
    %v3593 = vunpack.c.h.b16 %v3263
    %v3594 = vunpack.c.l.b16 %v3264
    %v3595 = vunpack.c.h.b16 %v3264
    %v3596 = vunpack.c.l.b16 %v3265
    %v3597 = vunpack.c.h.b16 %v3265
    %v3598 = vunpack.c.l.b16 %v3266
    %v3599 = vunpack.c.h.b16 %v3266
    %v3600 = vunpack.c.l.b16 %v3267
    %v3601 = vunpack.c.h.b16 %v3267
    %v3602 = vunpack.c.l.b16 %v3268
    %v3603 = vunpack.c.h.b16 %v3268
    %v3604 = vunpack.c.l.b16 %v3269
    %v3605 = vunpack.c.h.b16 %v3269
    %v3606 = vunpack.c.l.b16 %v3270
    %v3607 = vunpack.c.h.b16 %v3270
    %v3608 = vunpack.c.l.b16 %v3271
    %v3609 = vunpack.c.h.b16 %v3271
    %v3610 = vunpack.c.l.b16 %v3272
    %v3611 = vunpack.c.h.b16 %v3272
    %v3612 = vunpack.c.l.b16 %v3273
    %v3613 = vunpack.c.h.b16 %v3273
    %v3614 = vunpack.c.l.b16 %v3274
    %v3615 = vunpack.c.h.b16 %v3274
    %v3616 = vunpack.c.l.b16 %v3275
    %v3617 = vunpack.c.h.b16 %v3275
    %v3618 = vunpack.c.l.b16 %v3276
    %v3619 = vunpack.c.h.b16 %v3276
    %v3620 = vunpack.c.l.b16 %v3277
    %v3621 = vunpack.c.h.b16 %v3277
    %v3622 = vunpack.c.l.b16 %v3278
    %v3623 = vunpack.c.h.b16 %v3278
    %v3624 = vunpack.c.l.b16 %v3279
    %v3625 = vunpack.c.h.b16 %v3279
    %v3626 = vunpack.c.l.b16 %v3280
    %v3627 = vunpack.c.h.b16 %v3280
    %v3628 = vunpack.c.l.b16 %v3281
    %v3629 = vunpack.c.h.b16 %v3281
    %v3630 = vunpack.c.l.b16 %v3282
    %v3631 = vunpack.c.h.b16 %v3282
    %v3632 = vunpack.c.l.b16 %v3283
    %v3633 = vunpack.c.h.b16 %v3283
    %v3634 = vunpack.c.l.b16 %v3284
    %v3635 = vunpack.c.h.b16 %v3284
    %v3636 = vunpack.c.l.b16 %v3285
    %v3637 = vunpack.c.h.b16 %v3285
    %v3638 = vunpack.c.l.b16 %v3286
    %v3639 = vunpack.c.h.b16 %v3286
    %v3640 = vunpack.c.l.b16 %v3287
    %v3641 = vunpack.c.h.b16 %v3287
    %v3642 = vunpack.c.l.b16 %v3288
    %v3643 = vunpack.c.h.b16 %v3288
    %v3644 = vunpack.c.l.b16 %v3289
    %v3645 = vunpack.c.h.b16 %v3289
    %v3646 = vunpack.c.l.b16 %v3290
    %v3647 = vunpack.c.h.b16 %v3290
    %v3648 = vunpack.c.l.b16 %v3291
    %v3649 = vunpack.c.h.b16 %v3291
    %v3650 = vunpack.c.l.b16 %v3292
    %v3651 = vunpack.c.h.b16 %v3292
    %v3652 = vunpack.c.l.b16 %v3293
    %v3653 = vunpack.c.h.b16 %v3293
    %v3654 = vunpack.c.l.b16 %v3294
    %v3655 = vunpack.c.h.b16 %v3294
    %v3656 = vunpack.c.l.b16 %v3295
    %v3657 = vunpack.c.h.b16 %v3295
    %v3658 = vunpack.c.l.b16 %v3296
    %v3659 = vunpack.c.h.b16 %v3296
    %v3660 = vunpack.c.l.b16 %v3297
    %v3661 = vunpack.c.h.b16 %v3297
    %v3662 = vunpack.c.l.b16 %v3298
    %v3663 = vunpack.c.h.b16 %v3298
    %v3664 = vunpack.c.l.b16 %v3299
    %v3665 = vunpack.c.h.b16 %v3299
    %v3666 = vunpack.c.l.b16 %v3300
    %v3667 = vunpack.c.h.b16 %v3300
    %v3668 = vunpack.c.l.b16 %v3301
    %v3669 = vunpack.c.h.b16 %v3301
    %v3670 = vunpack.c.l.b16 %v3302
    %v3671 = vunpack.c.h.b16 %v3302
    %v3672 = vunpack.c.l.b16 %v3303
    %v3673 = vunpack.c.h.b16 %v3303
    %v3674 = vunpack.c.l.b16 %v3304
    %v3675 = vunpack.c.h.b16 %v3304
    %v3676 = vunpack.c.l.b16 %v3305
    %v3677 = vunpack.c.h.b16 %v3305
    %v3678 = vunpack.c.l.b16 %v3306
    %v3679 = vunpack.c.h.b16 %v3306
    %v3680 = vunpack.c.l.b16 %v3307
    %v3681 = vunpack.c.h.b16 %v3307
    %v3682 = vunpack.c.l.b16 %v3308
    %v3683 = vunpack.c.h.b16 %v3308
    %v3684 = vunpack.c.l.b16 %v3309
    %v3685 = vunpack.c.h.b16 %v3309
    %v3686 = vunpack.c.l.b16 %v3310
    %v3687 = vunpack.c.h.b16 %v3310
    %v3688 = vunpack.c.l.b16 %v3311
    %v3689 = vunpack.c.h.b16 %v3311
    %v3690 = vunpack.c.l.b16 %v3312
    %v3691 = vunpack.c.h.b16 %v3312
    %v3692 = vunpack.c.l.b16 %v3313
    %v3693 = vunpack.c.h.b16 %v3313
    %v3694 = vunpack.c.l.b16 %v3314
    %v3695 = vunpack.c.h.b16 %v3314
    %v3696 = vunpack.c.l.b16 %v3315
    %v3697 = vunpack.c.h.b16 %v3315
    %v3698 = vunpack.c.l.b16 %v3316
    %v3699 = vunpack.c.h.b16 %v3316
    %v3700 = vunpack.c.l.b16 %v3317
    %v3701 = vunpack.c.h.b16 %v3317
    %v3702 = vunpack.c.l.b16 %v3318
    %v3703 = vunpack.c.h.b16 %v3318
    %v3704 = vunpack.c.l.b16 %v3319
    %v3705 = vunpack.c.h.b16 %v3319
    %v3706 = vunpack.c.l.b16 %v3320
    %v3707 = vunpack.c.h.b16 %v3320
    %v3708 = vunpack.c.l.b16 %v3321
    %v3709 = vunpack.c.h.b16 %v3321
    %v3710 = vunpack.c.l.b16 %v3322
    %v3711 = vunpack.c.h.b16 %v3322
    %v3712 = vunpack.c.l.b16 %v3323
    %v3713 = vunpack.c.h.b16 %v3323
    %v3714 = vunpack.c.l.b16 %v3324
    %v3715 = vunpack.c.h.b16 %v3324
    %v3716 = vunpack.c.l.b16 %v3325
    %v3717 = vunpack.c.h.b16 %v3325
    %v3718 = vunpack.c.l.b16 %v3326
    %v3719 = vunpack.c.h.b16 %v3326
    %v3720 = vunpack.c.l.b16 %v3327
    %v3721 = vunpack.c.h.b16 %v3327
    %v3722 = vunpack.c.l.b16 %v3328
    %v3723 = vunpack.c.h.b16 %v3328
    %v3724 = vunpack.c.l.b16 %v3329
    %v3725 = vunpack.c.h.b16 %v3329
    %v3726 = vunpack.c.l.b16 %v3330
    %v3727 = vunpack.c.h.b16 %v3330
    %v3728 = vunpack.c.l.b16 %v3331
    %v3729 = vunpack.c.h.b16 %v3331
    %v3730 = vunpack.c.l.b16 %v3332
    %v3731 = vunpack.c.h.b16 %v3332
    %v3732 = vunpack.c.l.b16 %v3333
    %v3733 = vunpack.c.h.b16 %v3333
    %v3734 = vunpack.c.l.b16 %v3334
    %v3735 = vunpack.c.h.b16 %v3334
    %v3736 = vunpack.c.l.b16 %v3335
    %v3737 = vunpack.c.h.b16 %v3335
    %v3738 = vunpack.c.l.b16 %v3336
    %v3739 = vunpack.c.h.b16 %v3336
    %v3740 = vunpack.c.l.b16 %v3337
    %v3741 = vunpack.c.h.b16 %v3337
    %v3742 = vunpack.c.l.b16 %v3338
    %v3743 = vunpack.c.h.b16 %v3338
    %v3744 = vunpack.c.l.b16 %v3339
    %v3745 = vunpack.c.h.b16 %v3339
    %v3746 = vunpack.c.l.b16 %v3340
    %v3747 = vunpack.c.h.b16 %v3340
    %v3748 = vpack.c.b16 %v3496, %v3492
    %v3749 = vpack.c.b16 %v3497, %v3493
    %v3750 = vpack.c.b16 %v3498, %v3494
    %v3751 = vpack.c.b16 %v3499, %v3495
    %v3752 = vpack.c.b16 %v3504, %v3500
    %v3753 = vpack.c.b16 %v3505, %v3501
    %v3754 = vpack.c.b16 %v3506, %v3502
    %v3755 = vpack.c.b16 %v3507, %v3503
    %v3756 = vpack.c.b16 %v3512, %v3508
    %v3757 = vpack.c.b16 %v3513, %v3509
    %v3758 = vpack.c.b16 %v3514, %v3510
    %v3759 = vpack.c.b16 %v3515, %v3511
    %v3760 = vpack.c.b16 %v3520, %v3516
    %v3761 = vpack.c.b16 %v3521, %v3517
    %v3762 = vpack.c.b16 %v3522, %v3518
    %v3763 = vpack.c.b16 %v3523, %v3519
    %v3764 = vpack.c.b16 %v3528, %v3524
    %v3765 = vpack.c.b16 %v3529, %v3525
    %v3766 = vpack.c.b16 %v3530, %v3526
    %v3767 = vpack.c.b16 %v3531, %v3527
    %v3768 = vpack.c.b16 %v3536, %v3532
    %v3769 = vpack.c.b16 %v3537, %v3533
    %v3770 = vpack.c.b16 %v3538, %v3534
    %v3771 = vpack.c.b16 %v3539, %v3535
    %v3772 = vpack.c.b16 %v3544, %v3540
    %v3773 = vpack.c.b16 %v3545, %v3541
    %v3774 = vpack.c.b16 %v3546, %v3542
    %v3775 = vpack.c.b16 %v3547, %v3543
    %v3776 = vpack.c.b16 %v3552, %v3548
    %v3777 = vpack.c.b16 %v3553, %v3549
    %v3778 = vpack.c.b16 %v3554, %v3550
    %v3779 = vpack.c.b16 %v3555, %v3551
    %v3780 = vpack.c.b16 %v3560, %v3556
    %v3781 = vpack.c.b16 %v3561, %v3557
    %v3782 = vpack.c.b16 %v3562, %v3558
    %v3783 = vpack.c.b16 %v3563, %v3559
    %v3784 = vpack.c.b16 %v3568, %v3564
    %v3785 = vpack.c.b16 %v3569, %v3565
    %v3786 = vpack.c.b16 %v3570, %v3566
    %v3787 = vpack.c.b16 %v3571, %v3567
    %v3788 = vpack.c.b16 %v3576, %v3572
    %v3789 = vpack.c.b16 %v3577, %v3573
    %v3790 = vpack.c.b16 %v3578, %v3574
    %v3791 = vpack.c.b16 %v3579, %v3575
    %v3792 = vpack.c.b16 %v3584, %v3580
    %v3793 = vpack.c.b16 %v3585, %v3581
    %v3794 = vpack.c.b16 %v3586, %v3582
    %v3795 = vpack.c.b16 %v3587, %v3583
    %v3796 = vpack.c.b16 %v3592, %v3588
    %v3797 = vpack.c.b16 %v3593, %v3589
    %v3798 = vpack.c.b16 %v3594, %v3590
    %v3799 = vpack.c.b16 %v3595, %v3591
    %v3800 = vpack.c.b16 %v3600, %v3596
    %v3801 = vpack.c.b16 %v3601, %v3597
    %v3802 = vpack.c.b16 %v3602, %v3598
    %v3803 = vpack.c.b16 %v3603, %v3599
    %v3804 = vpack.c.b16 %v3608, %v3604
    %v3805 = vpack.c.b16 %v3609, %v3605
    %v3806 = vpack.c.b16 %v3610, %v3606
    %v3807 = vpack.c.b16 %v3611, %v3607
    %v3808 = vpack.c.b16 %v3616, %v3612
    %v3809 = vpack.c.b16 %v3617, %v3613
    %v3810 = vpack.c.b16 %v3618, %v3614
    %v3811 = vpack.c.b16 %v3619, %v3615
    %v3812 = vpack.c.b16 %v3624, %v3620
    %v3813 = vpack.c.b16 %v3625, %v3621
    %v3814 = vpack.c.b16 %v3626, %v3622
    %v3815 = vpack.c.b16 %v3627, %v3623
    %v3816 = vpack.c.b16 %v3632, %v3628
    %v3817 = vpack.c.b16 %v3633, %v3629
    %v3818 = vpack.c.b16 %v3634, %v3630
    %v3819 = vpack.c.b16 %v3635, %v3631
    %v3820 = vpack.c.b16 %v3640, %v3636
    %v3821 = vpack.c.b16 %v3641, %v3637
    %v3822 = vpack.c.b16 %v3642, %v3638
    %v3823 = vpack.c.b16 %v3643, %v3639
    %v3824 = vpack.c.b16 %v3648, %v3644
    %v3825 = vpack.c.b16 %v3649, %v3645
    %v3826 = vpack.c.b16 %v3650, %v3646
    %v3827 = vpack.c.b16 %v3651, %v3647
    %v3828 = vpack.c.b16 %v3656, %v3652
    %v3829 = vpack.c.b16 %v3657, %v3653
    %v3830 = vpack.c.b16 %v3658, %v3654
    %v3831 = vpack.c.b16 %v3659, %v3655
    %v3832 = vpack.c.b16 %v3664, %v3660
    %v3833 = vpack.c.b16 %v3665, %v3661
    %v3834 = vpack.c.b16 %v3666, %v3662
    %v3835 = vpack.c.b16 %v3667, %v3663
    %v3836 = vpack.c.b16 %v3672, %v3668
    %v3837 = vpack.c.b16 %v3673, %v3669
    %v3838 = vpack.c.b16 %v3674, %v3670
    %v3839 = vpack.c.b16 %v3675, %v3671
    %v3840 = vpack.c.b16 %v3680, %v3676
    %v3841 = vpack.c.b16 %v3681, %v3677
    %v3842 = vpack.c.b16 %v3682, %v3678
    %v3843 = vpack.c.b16 %v3683, %v3679
    %v3844 = vpack.c.b16 %v3688, %v3684
    %v3845 = vpack.c.b16 %v3689, %v3685
    %v3846 = vpack.c.b16 %v3690, %v3686
    %v3847 = vpack.c.b16 %v3691, %v3687
    %v3848 = vpack.c.b16 %v3696, %v3692
    %v3849 = vpack.c.b16 %v3697, %v3693
    %v3850 = vpack.c.b16 %v3698, %v3694
    %v3851 = vpack.c.b16 %v3699, %v3695
    %v3852 = vpack.c.b16 %v3704, %v3700
    %v3853 = vpack.c.b16 %v3705, %v3701
    %v3854 = vpack.c.b16 %v3706, %v3702
    %v3855 = vpack.c.b16 %v3707, %v3703
    %v3856 = vpack.c.b16 %v3712, %v3708
    %v3857 = vpack.c.b16 %v3713, %v3709
    %v3858 = vpack.c.b16 %v3714, %v3710
    %v3859 = vpack.c.b16 %v3715, %v3711
    %v3860 = vpack.c.b16 %v3720, %v3716
    %v3861 = vpack.c.b16 %v3721, %v3717
    %v3862 = vpack.c.b16 %v3722, %v3718
    %v3863 = vpack.c.b16 %v3723, %v3719
    %v3864 = vpack.c.b16 %v3728, %v3724
    %v3865 = vpack.c.b16 %v3729, %v3725
    %v3866 = vpack.c.b16 %v3730, %v3726
    %v3867 = vpack.c.b16 %v3731, %v3727
    %v3868 = vpack.c.b16 %v3736, %v3732
    %v3869 = vpack.c.b16 %v3737, %v3733
    %v3870 = vpack.c.b16 %v3738, %v3734
    %v3871 = vpack.c.b16 %v3739, %v3735
    %v3872 = vpack.c.b16 %v3744, %v3740
    %v3873 = vpack.c.b16 %v3745, %v3741
    %v3874 = vpack.c.b16 %v3746, %v3742
    %v3875 = vpack.c.b16 %v3747, %v3743
    %4004 = vmatprep.subr.bf16.mxu0 %v3777
    %4005 = vmatpush1.bf16.msra.mxu0 %v3776
    %4006 = vmatprep.subr.bf16.mxu0 %v3773
    %4007 = vmatpush1.bf16.msra.mxu0 %v3772
    %4008 = vmatprep.subr.bf16.mxu0 %v3769
    %4009 = vmatpush1.bf16.msra.mxu0 %v3768
    %4010 = vmatprep.subr.bf16.mxu0 %v3765
    %4011 = vmatpush1.bf16.msra.mxu0 %v3764
    %4012 = vmatprep.subr.bf16.mxu0 %v3761
    %4013 = vmatpush1.bf16.msra.mxu0 %v3760
    %4014 = vmatprep.subr.bf16.mxu0 %v3757
    %4015 = vmatpush1.bf16.msra.mxu0 %v3756
    %4016 = vmatprep.subr.bf16.mxu0 %v3753
    %4017 = vmatpush1.bf16.msra.mxu0 %v3752
    %4018 = vmatprep.subr.bf16.mxu0 %v3749
    %4019 = vmatpush1.bf16.msra.mxu0 %v3748
    %4020 = vmatprep.subr.bf16.mxu0 %v3809
    %4021 = vmatpush2.bf16.msra.mxu0 %v3808
    %4022 = vmatprep.subr.bf16.mxu0 %v3805
    %4023 = vmatpush2.bf16.msra.mxu0 %v3804
    %4024 = vmatprep.subr.bf16.mxu0 %v3801
    %4025 = vmatpush2.bf16.msra.mxu0 %v3800
    %4026 = vmatprep.subr.bf16.mxu0 %v3797
    %4027 = vmatpush2.bf16.msra.mxu0 %v3796
    %4028 = vmatprep.subr.bf16.mxu0 %v3793
    %4029 = vmatpush2.bf16.msra.mxu0 %v3792
    %4030 = vmatprep.subr.bf16.mxu0 %v3789
    %4031 = vmatpush2.bf16.msra.mxu0 %v3788
    %4032 = vmatprep.subr.bf16.mxu0 %v3785
    %4033 = vmatpush2.bf16.msra.mxu0 %v3784
    %4034 = vmatprep.subr.bf16.mxu0 %v3781
    %4035 = vmatpush2.bf16.msra.mxu0 %v3780
    %4036 = vmatprep.mubr.bf16.mxu0 %v3196
    %4037 = vmatmul.mubr.bf16.gmra.mxu0 %v3195
    %v4038 = vpop.f32.mrf.mxu0
    %v4039 = vadd.f32 %v3347, %v4038
    %v4040 = vpop.f32.mrf.mxu0
    %v4041 = vadd.f32 %v3351, %v4040
    %v4042 = vpop.f32.mrf.mxu0
    %v4043 = vpop.f32.mrf.mxu0
    %4044 = vdwg.mxu0
    %4045 = vmatprep.subr.bf16.mxu0 %v3841
    %4046 = vmatpush1.bf16.msra.mxu0 %v3840
    %4047 = vmatprep.subr.bf16.mxu0 %v3837
    %4048 = vmatpush1.bf16.msra.mxu0 %v3836
    %4049 = vmatprep.subr.bf16.mxu0 %v3833
    %4050 = vmatpush1.bf16.msra.mxu0 %v3832
    %4051 = vmatprep.subr.bf16.mxu0 %v3829
    %4052 = vmatpush1.bf16.msra.mxu0 %v3828
    %4053 = vmatprep.subr.bf16.mxu0 %v3825
    %4054 = vmatpush1.bf16.msra.mxu0 %v3824
    %4055 = vmatprep.subr.bf16.mxu0 %v3821
    %4056 = vmatpush1.bf16.msra.mxu0 %v3820
    %4057 = vmatprep.subr.bf16.mxu0 %v3817
    %4058 = vmatpush1.bf16.msra.mxu0 %v3816
    %4059 = vmatprep.subr.bf16.mxu0 %v3813
    %4060 = vmatpush1.bf16.msra.mxu0 %v3812
    %4061 = vmatprep.subr.bf16.mxu0 %v3873
    %4062 = vmatpush2.bf16.msra.mxu0 %v3872
    %4063 = vmatprep.subr.bf16.mxu0 %v3869
    %4064 = vmatpush2.bf16.msra.mxu0 %v3868
    %4065 = vmatprep.subr.bf16.mxu0 %v3865
    %4066 = vmatpush2.bf16.msra.mxu0 %v3864
    %4067 = vmatprep.subr.bf16.mxu0 %v3861
    %4068 = vmatpush2.bf16.msra.mxu0 %v3860
    %4069 = vmatprep.subr.bf16.mxu0 %v3857
    %4070 = vmatpush2.bf16.msra.mxu0 %v3856
    %4071 = vmatprep.subr.bf16.mxu0 %v3853
    %4072 = vmatpush2.bf16.msra.mxu0 %v3852
    %4073 = vmatprep.subr.bf16.mxu0 %v3849
    %4074 = vmatpush2.bf16.msra.mxu0 %v3848
    %4075 = vmatprep.subr.bf16.mxu0 %v3845
    %4076 = vmatpush2.bf16.msra.mxu0 %v3844
    %4077 = vmatprep.mubr.bf16.mxu0 %v3198
    %4078 = vmatmul.mubr.bf16.gmra.mxu0 %v3197
    %v4079 = vpop.f32.mrf.mxu0
    %v4080 = vadd.f32 %v4039, %v4079
    %v4081 = vpop.f32.mrf.mxu0
    %v4082 = vadd.f32 %v4041, %v4081
    %v4083 = vpop.f32.mrf.mxu0
    %v4084 = vpop.f32.mrf.mxu0
    %4085 = vdwg.mxu0
    %4086 = vmatprep.subr.bf16.mxu0 %v3779
    %4087 = vmatpush1.bf16.msra.mxu0 %v3778
    %4088 = vmatprep.subr.bf16.mxu0 %v3775
    %4089 = vmatpush1.bf16.msra.mxu0 %v3774
    %4090 = vmatprep.subr.bf16.mxu0 %v3771
    %4091 = vmatpush1.bf16.msra.mxu0 %v3770
    %4092 = vmatprep.subr.bf16.mxu0 %v3767
    %4093 = vmatpush1.bf16.msra.mxu0 %v3766
    %4094 = vmatprep.subr.bf16.mxu0 %v3763
    %4095 = vmatpush1.bf16.msra.mxu0 %v3762
    %4096 = vmatprep.subr.bf16.mxu0 %v3759
    %4097 = vmatpush1.bf16.msra.mxu0 %v3758
    %4098 = vmatprep.subr.bf16.mxu0 %v3755
    %4099 = vmatpush1.bf16.msra.mxu0 %v3754
    %4100 = vmatprep.subr.bf16.mxu0 %v3751
    %4101 = vmatpush1.bf16.msra.mxu0 %v3750
    %4102 = vmatprep.subr.bf16.mxu0 %v3811
    %4103 = vmatpush2.bf16.msra.mxu0 %v3810
    %4104 = vmatprep.subr.bf16.mxu0 %v3807
    %4105 = vmatpush2.bf16.msra.mxu0 %v3806
    %4106 = vmatprep.subr.bf16.mxu0 %v3803
    %4107 = vmatpush2.bf16.msra.mxu0 %v3802
    %4108 = vmatprep.subr.bf16.mxu0 %v3799
    %4109 = vmatpush2.bf16.msra.mxu0 %v3798
    %4110 = vmatprep.subr.bf16.mxu0 %v3795
    %4111 = vmatpush2.bf16.msra.mxu0 %v3794
    %4112 = vmatprep.subr.bf16.mxu0 %v3791
    %4113 = vmatpush2.bf16.msra.mxu0 %v3790
    %4114 = vmatprep.subr.bf16.mxu0 %v3787
    %4115 = vmatpush2.bf16.msra.mxu0 %v3786
    %4116 = vmatprep.subr.bf16.mxu0 %v3783
    %4117 = vmatpush2.bf16.msra.mxu0 %v3782
    %4118 = vmatprep.mubr.bf16.mxu0 %v3196
    %4119 = vmatmul.mubr.bf16.gmra.mxu0 %v3195
    %v4120 = vpop.f32.mrf.mxu0
    %v4121 = vadd.f32 %v3355, %v4120
    %v4122 = vpop.f32.mrf.mxu0
    %v4123 = vadd.f32 %v3359, %v4122
    %v4124 = vpop.f32.mrf.mxu0
    %v4125 = vpop.f32.mrf.mxu0
    %4126 = vdwg.mxu0
    %4127 = vmatprep.subr.bf16.mxu0 %v3843
    %4128 = vmatpush1.bf16.msra.mxu0 %v3842
    %4129 = vmatprep.subr.bf16.mxu0 %v3839
    %4130 = vmatpush1.bf16.msra.mxu0 %v3838
    %4131 = vmatprep.subr.bf16.mxu0 %v3835
    %4132 = vmatpush1.bf16.msra.mxu0 %v3834
    %4133 = vmatprep.subr.bf16.mxu0 %v3831
    %4134 = vmatpush1.bf16.msra.mxu0 %v3830
    %4135 = vmatprep.subr.bf16.mxu0 %v3827
    %4136 = vmatpush1.bf16.msra.mxu0 %v3826
    %4137 = vmatprep.subr.bf16.mxu0 %v3823
    %4138 = vmatpush1.bf16.msra.mxu0 %v3822
    %4139 = vmatprep.subr.bf16.mxu0 %v3819
    %4140 = vmatpush1.bf16.msra.mxu0 %v3818
    %4141 = vmatprep.subr.bf16.mxu0 %v3815
    %4142 = vmatpush1.bf16.msra.mxu0 %v3814
    %4143 = vmatprep.subr.bf16.mxu0 %v3875
    %4144 = vmatpush2.bf16.msra.mxu0 %v3874
    %4145 = vmatprep.subr.bf16.mxu0 %v3871
    %4146 = vmatpush2.bf16.msra.mxu0 %v3870
    %4147 = vmatprep.subr.bf16.mxu0 %v3867
    %4148 = vmatpush2.bf16.msra.mxu0 %v3866
    %4149 = vmatprep.subr.bf16.mxu0 %v3863
    %4150 = vmatpush2.bf16.msra.mxu0 %v3862
    %4151 = vmatprep.subr.bf16.mxu0 %v3859
    %4152 = vmatpush2.bf16.msra.mxu0 %v3858
    %4153 = vmatprep.subr.bf16.mxu0 %v3855
    %4154 = vmatpush2.bf16.msra.mxu0 %v3854
    %4155 = vmatprep.subr.bf16.mxu0 %v3851
    %4156 = vmatpush2.bf16.msra.mxu0 %v3850
    %4157 = vmatprep.subr.bf16.mxu0 %v3847
    %4158 = vmatpush2.bf16.msra.mxu0 %v3846
    %4159 = vmatprep.mubr.bf16.mxu0 %v3198
    %4160 = vmatmul.mubr.bf16.gmra.mxu0 %v3197
    %v4161 = vpop.f32.mrf.mxu0
    %v4162 = vadd.f32 %v4121, %v4161
    %v4163 = vpop.f32.mrf.mxu0
    %v4164 = vadd.f32 %v4123, %v4163
    %v4165 = vpop.f32.mrf.mxu0
    %v4166 = vpop.f32.mrf.mxu0
    %4167 = vdwg.mxu0
    %v4168 = vmax.f32 %v4080, 0.0
    %v4169 = vmax.f32 %v4082, 0.0
    %v4170 = vmax.f32 %v4162, 0.0
    %v4171 = vmax.f32 %v4164, 0.0
    %v4172 = vpack.c.bf16 %v4168, %v4168
    %v4173 = vpack.c.bf16 %v4169, %v4169
    %v4174 = vpack.c.bf16 %v4170, %v4170
    %v4175 = vpack.c.bf16 %v4171, %v4171
    %s4176 = sshll.u32 %s266, 4
    %4177 = dma.done [#allocation3], %s4176
    %s4178 = scalar_lea.hbm %s3, 81920
    // Predicated region
    $region66: #{tpu_custom_call.1} parent=1 // pred_check
      _
    $region67: #{tpu_custom_call.1} parent=1 // pred_check_branch
      %4180 = sbr.rel target = $region69
    $region68: #{tpu_custom_call.1} parent=1 // pred_region
      %4181 = sst [smem:[#allocation15]] [#allocation26]
      %4182 = sst [smem:[#allocation16]] [#allocation25]
    $region69: #{tpu_custom_call.1} parent=1 // pred_fallthru
      _
    %4184 = shalt.err (0)
    %s4186 = sshll.u32 %s270, 4
    %s4187 = int_to_ptr.vmem [resolvable:$true] %s4186
    %4189 = dma.hbm_to_vmem [thread:$0]  %s4178, 16384, %s4187, %s271
    %v4190 = vld [vmem:[#allocation2] sm:$0xff]
    %v4191 = vld [vmem:[#allocation2 + $0x8] sm:$0xff]
    %v4192 = vld [vmem:[#allocation2 + $0x10] sm:$0xff]
    %v4193 = vld [vmem:[#allocation2 + $0x18] sm:$0xff]
    %v4194 = vld [vmem:[#allocation2 + $0x20] sm:$0xff]
    %v4195 = vld [vmem:[#allocation2 + $0x28] sm:$0xff]
    %v4196 = vld [vmem:[#allocation2 + $0x30] sm:$0xff]
    %v4197 = vld [vmem:[#allocation2 + $0x38] sm:$0xff]
    %v4198 = vld [vmem:[#allocation2 + $0x40] sm:$0xff]
    %v4199 = vld [vmem:[#allocation2 + $0x48] sm:$0xff]
    %v4200 = vld [vmem:[#allocation2 + $0x50] sm:$0xff]
    %v4201 = vld [vmem:[#allocation2 + $0x58] sm:$0xff]
    %v4202 = vld [vmem:[#allocation2 + $0x60] sm:$0xff]
    %v4203 = vld [vmem:[#allocation2 + $0x68] sm:$0xff]
    %v4204 = vld [vmem:[#allocation2 + $0x70] sm:$0xff]
    %v4205 = vld [vmem:[#allocation2 + $0x78] sm:$0xff]
    %v4206 = vld [vmem:[#allocation2 + $0x80] sm:$0xff]
    %v4207 = vld [vmem:[#allocation2 + $0x88] sm:$0xff]
    %v4208 = vld [vmem:[#allocation2 + $0x90] sm:$0xff]
    %v4209 = vld [vmem:[#allocation2 + $0x98] sm:$0xff]
    %v4210 = vld [vmem:[#allocation2 + $0xa0] sm:$0xff]
    %v4211 = vld [vmem:[#allocation2 + $0xa8] sm:$0xff]
    %v4212 = vld [vmem:[#allocation2 + $0xb0] sm:$0xff]
    %v4213 = vld [vmem:[#allocation2 + $0xb8] sm:$0xff]
    %v4214 = vld [vmem:[#allocation2 + $0xc0] sm:$0xff]
    %v4215 = vld [vmem:[#allocation2 + $0xc8] sm:$0xff]
    %v4216 = vld [vmem:[#allocation2 + $0xd0] sm:$0xff]
    %v4217 = vld [vmem:[#allocation2 + $0xd8] sm:$0xff]
    %v4218 = vld [vmem:[#allocation2 + $0xe0] sm:$0xff]
    %v4219 = vld [vmem:[#allocation2 + $0xe8] sm:$0xff]
    %v4220 = vld [vmem:[#allocation2 + $0xf0] sm:$0xff]
    %v4221 = vld [vmem:[#allocation2 + $0xf8] sm:$0xff]
    %v4222 = vld [vmem:[#allocation2 + $0x100] sm:$0xff]
    %v4223 = vld [vmem:[#allocation2 + $0x108] sm:$0xff]
    %v4224 = vld [vmem:[#allocation2 + $0x110] sm:$0xff]
    %v4225 = vld [vmem:[#allocation2 + $0x118] sm:$0xff]
    %v4226 = vld [vmem:[#allocation2 + $0x120] sm:$0xff]
    %v4227 = vld [vmem:[#allocation2 + $0x128] sm:$0xff]
    %v4228 = vld [vmem:[#allocation2 + $0x130] sm:$0xff]
    %v4229 = vld [vmem:[#allocation2 + $0x138] sm:$0xff]
    %v4230 = vld [vmem:[#allocation2 + $0x140] sm:$0xff]
    %v4231 = vld [vmem:[#allocation2 + $0x148] sm:$0xff]
    %v4232 = vld [vmem:[#allocation2 + $0x150] sm:$0xff]
    %v4233 = vld [vmem:[#allocation2 + $0x158] sm:$0xff]
    %v4234 = vld [vmem:[#allocation2 + $0x160] sm:$0xff]
    %v4235 = vld [vmem:[#allocation2 + $0x168] sm:$0xff]
    %v4236 = vld [vmem:[#allocation2 + $0x170] sm:$0xff]
    %v4237 = vld [vmem:[#allocation2 + $0x178] sm:$0xff]
    %v4238 = vld [vmem:[#allocation2 + $0x180] sm:$0xff]
    %v4239 = vld [vmem:[#allocation2 + $0x188] sm:$0xff]
    %v4240 = vld [vmem:[#allocation2 + $0x190] sm:$0xff]
    %v4241 = vld [vmem:[#allocation2 + $0x198] sm:$0xff]
    %v4242 = vld [vmem:[#allocation2 + $0x1a0] sm:$0xff]
    %v4243 = vld [vmem:[#allocation2 + $0x1a8] sm:$0xff]
    %v4244 = vld [vmem:[#allocation2 + $0x1b0] sm:$0xff]
    %v4245 = vld [vmem:[#allocation2 + $0x1b8] sm:$0xff]
    %v4246 = vld [vmem:[#allocation2 + $0x1c0] sm:$0xff]
    %v4247 = vld [vmem:[#allocation2 + $0x1c8] sm:$0xff]
    %v4248 = vld [vmem:[#allocation2 + $0x1d0] sm:$0xff]
    %v4249 = vld [vmem:[#allocation2 + $0x1d8] sm:$0xff]
    %v4250 = vld [vmem:[#allocation2 + $0x1e0] sm:$0xff]
    %v4251 = vld [vmem:[#allocation2 + $0x1e8] sm:$0xff]
    %v4252 = vld [vmem:[#allocation2 + $0x1f0] sm:$0xff]
    %v4253 = vld [vmem:[#allocation2 + $0x1f8] sm:$0xff]
    %v4254 = vld [vmem:[#allocation2 + $0x200] sm:$0xff]
    %v4255 = vld [vmem:[#allocation2 + $0x208] sm:$0xff]
    %v4256 = vld [vmem:[#allocation2 + $0x210] sm:$0xff]
    %v4257 = vld [vmem:[#allocation2 + $0x218] sm:$0xff]
    %v4258 = vld [vmem:[#allocation2 + $0x220] sm:$0xff]
    %v4259 = vld [vmem:[#allocation2 + $0x228] sm:$0xff]
    %v4260 = vld [vmem:[#allocation2 + $0x230] sm:$0xff]
    %v4261 = vld [vmem:[#allocation2 + $0x238] sm:$0xff]
    %v4262 = vld [vmem:[#allocation2 + $0x240] sm:$0xff]
    %v4263 = vld [vmem:[#allocation2 + $0x248] sm:$0xff]
    %v4264 = vld [vmem:[#allocation2 + $0x250] sm:$0xff]
    %v4265 = vld [vmem:[#allocation2 + $0x258] sm:$0xff]
    %v4266 = vld [vmem:[#allocation2 + $0x260] sm:$0xff]
    %v4267 = vld [vmem:[#allocation2 + $0x268] sm:$0xff]
    %v4268 = vld [vmem:[#allocation2 + $0x270] sm:$0xff]
    %v4269 = vld [vmem:[#allocation2 + $0x278] sm:$0xff]
    %v4270 = vld [vmem:[#allocation2 + $0x280] sm:$0xff]
    %v4271 = vld [vmem:[#allocation2 + $0x288] sm:$0xff]
    %v4272 = vld [vmem:[#allocation2 + $0x290] sm:$0xff]
    %v4273 = vld [vmem:[#allocation2 + $0x298] sm:$0xff]
    %v4274 = vld [vmem:[#allocation2 + $0x2a0] sm:$0xff]
    %v4275 = vld [vmem:[#allocation2 + $0x2a8] sm:$0xff]
    %v4276 = vld [vmem:[#allocation2 + $0x2b0] sm:$0xff]
    %v4277 = vld [vmem:[#allocation2 + $0x2b8] sm:$0xff]
    %v4278 = vld [vmem:[#allocation2 + $0x2c0] sm:$0xff]
    %v4279 = vld [vmem:[#allocation2 + $0x2c8] sm:$0xff]
    %v4280 = vld [vmem:[#allocation2 + $0x2d0] sm:$0xff]
    %v4281 = vld [vmem:[#allocation2 + $0x2d8] sm:$0xff]
    %v4282 = vld [vmem:[#allocation2 + $0x2e0] sm:$0xff]
    %v4283 = vld [vmem:[#allocation2 + $0x2e8] sm:$0xff]
    %v4284 = vld [vmem:[#allocation2 + $0x2f0] sm:$0xff]
    %v4285 = vld [vmem:[#allocation2 + $0x2f8] sm:$0xff]
    %v4286 = vld [vmem:[#allocation2 + $0x300] sm:$0xff]
    %v4287 = vld [vmem:[#allocation2 + $0x308] sm:$0xff]
    %v4288 = vld [vmem:[#allocation2 + $0x310] sm:$0xff]
    %v4289 = vld [vmem:[#allocation2 + $0x318] sm:$0xff]
    %v4290 = vld [vmem:[#allocation2 + $0x320] sm:$0xff]
    %v4291 = vld [vmem:[#allocation2 + $0x328] sm:$0xff]
    %v4292 = vld [vmem:[#allocation2 + $0x330] sm:$0xff]
    %v4293 = vld [vmem:[#allocation2 + $0x338] sm:$0xff]
    %v4294 = vld [vmem:[#allocation2 + $0x340] sm:$0xff]
    %v4295 = vld [vmem:[#allocation2 + $0x348] sm:$0xff]
    %v4296 = vld [vmem:[#allocation2 + $0x350] sm:$0xff]
    %v4297 = vld [vmem:[#allocation2 + $0x358] sm:$0xff]
    %v4298 = vld [vmem:[#allocation2 + $0x360] sm:$0xff]
    %v4299 = vld [vmem:[#allocation2 + $0x368] sm:$0xff]
    %v4300 = vld [vmem:[#allocation2 + $0x370] sm:$0xff]
    %v4301 = vld [vmem:[#allocation2 + $0x378] sm:$0xff]
    %v4302 = vld [vmem:[#allocation2 + $0x380] sm:$0xff]
    %v4303 = vld [vmem:[#allocation2 + $0x388] sm:$0xff]
    %v4304 = vld [vmem:[#allocation2 + $0x390] sm:$0xff]
    %v4305 = vld [vmem:[#allocation2 + $0x398] sm:$0xff]
    %v4306 = vld [vmem:[#allocation2 + $0x3a0] sm:$0xff]
    %v4307 = vld [vmem:[#allocation2 + $0x3a8] sm:$0xff]
    %v4308 = vld [vmem:[#allocation2 + $0x3b0] sm:$0xff]
    %v4309 = vld [vmem:[#allocation2 + $0x3b8] sm:$0xff]
    %v4310 = vld [vmem:[#allocation2 + $0x3c0] sm:$0xff]
    %v4311 = vld [vmem:[#allocation2 + $0x3c8] sm:$0xff]
    %v4312 = vld [vmem:[#allocation2 + $0x3d0] sm:$0xff]
    %v4313 = vld [vmem:[#allocation2 + $0x3d8] sm:$0xff]
    %v4314 = vld [vmem:[#allocation2 + $0x3e0] sm:$0xff]
    %v4315 = vld [vmem:[#allocation2 + $0x3e8] sm:$0xff]
    %v4316 = vld [vmem:[#allocation2 + $0x3f0] sm:$0xff]
    %v4317 = vld [vmem:[#allocation2 + $0x3f8] sm:$0xff]
    %s4318 = scalar_lea.vmem [#allocation10], 16
    %v4319 = vld [vmem:[%s4318] sm:$0xf]
    %v4321 = vlaneseq
    %v4322 = vshrl.u32 %v4321, 7
    %v4323 = vsub.s32 0, %v4322
    %v4324 = vrot.slane %v4319, %v4323
    %v4325 = vlaneseq
    %v4326 = vshrl.u32 %v4325, 7
    %v4327 = vsub.s32 1, %v4326
    %v4328 = vrot.slane %v4319, %v4327
    %v4329 = vlaneseq
    %v4330 = vshrl.u32 %v4329, 7
    %v4331 = vsub.s32 2, %v4330
    %v4332 = vrot.slane %v4319, %v4331
    %v4333 = vlaneseq
    %v4334 = vshrl.u32 %v4333, 7
    %v4335 = vsub.s32 3, %v4334
    %v4336 = vrot.slane %v4319, %v4335
    %v4469 = vunpack.c.l.b16 %v4190
    %v4470 = vunpack.c.h.b16 %v4190
    %v4471 = vunpack.c.l.b16 %v4191
    %v4472 = vunpack.c.h.b16 %v4191
    %v4473 = vunpack.c.l.b16 %v4192
    %v4474 = vunpack.c.h.b16 %v4192
    %v4475 = vunpack.c.l.b16 %v4193
    %v4476 = vunpack.c.h.b16 %v4193
    %v4477 = vunpack.c.l.b16 %v4194
    %v4478 = vunpack.c.h.b16 %v4194
    %v4479 = vunpack.c.l.b16 %v4195
    %v4480 = vunpack.c.h.b16 %v4195
    %v4481 = vunpack.c.l.b16 %v4196
    %v4482 = vunpack.c.h.b16 %v4196
    %v4483 = vunpack.c.l.b16 %v4197
    %v4484 = vunpack.c.h.b16 %v4197
    %v4485 = vunpack.c.l.b16 %v4198
    %v4486 = vunpack.c.h.b16 %v4198
    %v4487 = vunpack.c.l.b16 %v4199
    %v4488 = vunpack.c.h.b16 %v4199
    %v4489 = vunpack.c.l.b16 %v4200
    %v4490 = vunpack.c.h.b16 %v4200
    %v4491 = vunpack.c.l.b16 %v4201
    %v4492 = vunpack.c.h.b16 %v4201
    %v4493 = vunpack.c.l.b16 %v4202
    %v4494 = vunpack.c.h.b16 %v4202
    %v4495 = vunpack.c.l.b16 %v4203
    %v4496 = vunpack.c.h.b16 %v4203
    %v4497 = vunpack.c.l.b16 %v4204
    %v4498 = vunpack.c.h.b16 %v4204
    %v4499 = vunpack.c.l.b16 %v4205
    %v4500 = vunpack.c.h.b16 %v4205
    %v4501 = vunpack.c.l.b16 %v4206
    %v4502 = vunpack.c.h.b16 %v4206
    %v4503 = vunpack.c.l.b16 %v4207
    %v4504 = vunpack.c.h.b16 %v4207
    %v4505 = vunpack.c.l.b16 %v4208
    %v4506 = vunpack.c.h.b16 %v4208
    %v4507 = vunpack.c.l.b16 %v4209
    %v4508 = vunpack.c.h.b16 %v4209
    %v4509 = vunpack.c.l.b16 %v4210
    %v4510 = vunpack.c.h.b16 %v4210
    %v4511 = vunpack.c.l.b16 %v4211
    %v4512 = vunpack.c.h.b16 %v4211
    %v4513 = vunpack.c.l.b16 %v4212
    %v4514 = vunpack.c.h.b16 %v4212
    %v4515 = vunpack.c.l.b16 %v4213
    %v4516 = vunpack.c.h.b16 %v4213
    %v4517 = vunpack.c.l.b16 %v4214
    %v4518 = vunpack.c.h.b16 %v4214
    %v4519 = vunpack.c.l.b16 %v4215
    %v4520 = vunpack.c.h.b16 %v4215
    %v4521 = vunpack.c.l.b16 %v4216
    %v4522 = vunpack.c.h.b16 %v4216
    %v4523 = vunpack.c.l.b16 %v4217
    %v4524 = vunpack.c.h.b16 %v4217
    %v4525 = vunpack.c.l.b16 %v4218
    %v4526 = vunpack.c.h.b16 %v4218
    %v4527 = vunpack.c.l.b16 %v4219
    %v4528 = vunpack.c.h.b16 %v4219
    %v4529 = vunpack.c.l.b16 %v4220
    %v4530 = vunpack.c.h.b16 %v4220
    %v4531 = vunpack.c.l.b16 %v4221
    %v4532 = vunpack.c.h.b16 %v4221
    %v4533 = vunpack.c.l.b16 %v4222
    %v4534 = vunpack.c.h.b16 %v4222
    %v4535 = vunpack.c.l.b16 %v4223
    %v4536 = vunpack.c.h.b16 %v4223
    %v4537 = vunpack.c.l.b16 %v4224
    %v4538 = vunpack.c.h.b16 %v4224
    %v4539 = vunpack.c.l.b16 %v4225
    %v4540 = vunpack.c.h.b16 %v4225
    %v4541 = vunpack.c.l.b16 %v4226
    %v4542 = vunpack.c.h.b16 %v4226
    %v4543 = vunpack.c.l.b16 %v4227
    %v4544 = vunpack.c.h.b16 %v4227
    %v4545 = vunpack.c.l.b16 %v4228
    %v4546 = vunpack.c.h.b16 %v4228
    %v4547 = vunpack.c.l.b16 %v4229
    %v4548 = vunpack.c.h.b16 %v4229
    %v4549 = vunpack.c.l.b16 %v4230
    %v4550 = vunpack.c.h.b16 %v4230
    %v4551 = vunpack.c.l.b16 %v4231
    %v4552 = vunpack.c.h.b16 %v4231
    %v4553 = vunpack.c.l.b16 %v4232
    %v4554 = vunpack.c.h.b16 %v4232
    %v4555 = vunpack.c.l.b16 %v4233
    %v4556 = vunpack.c.h.b16 %v4233
    %v4557 = vunpack.c.l.b16 %v4234
    %v4558 = vunpack.c.h.b16 %v4234
    %v4559 = vunpack.c.l.b16 %v4235
    %v4560 = vunpack.c.h.b16 %v4235
    %v4561 = vunpack.c.l.b16 %v4236
    %v4562 = vunpack.c.h.b16 %v4236
    %v4563 = vunpack.c.l.b16 %v4237
    %v4564 = vunpack.c.h.b16 %v4237
    %v4565 = vunpack.c.l.b16 %v4238
    %v4566 = vunpack.c.h.b16 %v4238
    %v4567 = vunpack.c.l.b16 %v4239
    %v4568 = vunpack.c.h.b16 %v4239
    %v4569 = vunpack.c.l.b16 %v4240
    %v4570 = vunpack.c.h.b16 %v4240
    %v4571 = vunpack.c.l.b16 %v4241
    %v4572 = vunpack.c.h.b16 %v4241
    %v4573 = vunpack.c.l.b16 %v4242
    %v4574 = vunpack.c.h.b16 %v4242
    %v4575 = vunpack.c.l.b16 %v4243
    %v4576 = vunpack.c.h.b16 %v4243
    %v4577 = vunpack.c.l.b16 %v4244
    %v4578 = vunpack.c.h.b16 %v4244
    %v4579 = vunpack.c.l.b16 %v4245
    %v4580 = vunpack.c.h.b16 %v4245
    %v4581 = vunpack.c.l.b16 %v4246
    %v4582 = vunpack.c.h.b16 %v4246
    %v4583 = vunpack.c.l.b16 %v4247
    %v4584 = vunpack.c.h.b16 %v4247
    %v4585 = vunpack.c.l.b16 %v4248
    %v4586 = vunpack.c.h.b16 %v4248
    %v4587 = vunpack.c.l.b16 %v4249
    %v4588 = vunpack.c.h.b16 %v4249
    %v4589 = vunpack.c.l.b16 %v4250
    %v4590 = vunpack.c.h.b16 %v4250
    %v4591 = vunpack.c.l.b16 %v4251
    %v4592 = vunpack.c.h.b16 %v4251
    %v4593 = vunpack.c.l.b16 %v4252
    %v4594 = vunpack.c.h.b16 %v4252
    %v4595 = vunpack.c.l.b16 %v4253
    %v4596 = vunpack.c.h.b16 %v4253
    %v4597 = vunpack.c.l.b16 %v4254
    %v4598 = vunpack.c.h.b16 %v4254
    %v4599 = vunpack.c.l.b16 %v4255
    %v4600 = vunpack.c.h.b16 %v4255
    %v4601 = vunpack.c.l.b16 %v4256
    %v4602 = vunpack.c.h.b16 %v4256
    %v4603 = vunpack.c.l.b16 %v4257
    %v4604 = vunpack.c.h.b16 %v4257
    %v4605 = vunpack.c.l.b16 %v4258
    %v4606 = vunpack.c.h.b16 %v4258
    %v4607 = vunpack.c.l.b16 %v4259
    %v4608 = vunpack.c.h.b16 %v4259
    %v4609 = vunpack.c.l.b16 %v4260
    %v4610 = vunpack.c.h.b16 %v4260
    %v4611 = vunpack.c.l.b16 %v4261
    %v4612 = vunpack.c.h.b16 %v4261
    %v4613 = vunpack.c.l.b16 %v4262
    %v4614 = vunpack.c.h.b16 %v4262
    %v4615 = vunpack.c.l.b16 %v4263
    %v4616 = vunpack.c.h.b16 %v4263
    %v4617 = vunpack.c.l.b16 %v4264
    %v4618 = vunpack.c.h.b16 %v4264
    %v4619 = vunpack.c.l.b16 %v4265
    %v4620 = vunpack.c.h.b16 %v4265
    %v4621 = vunpack.c.l.b16 %v4266
    %v4622 = vunpack.c.h.b16 %v4266
    %v4623 = vunpack.c.l.b16 %v4267
    %v4624 = vunpack.c.h.b16 %v4267
    %v4625 = vunpack.c.l.b16 %v4268
    %v4626 = vunpack.c.h.b16 %v4268
    %v4627 = vunpack.c.l.b16 %v4269
    %v4628 = vunpack.c.h.b16 %v4269
    %v4629 = vunpack.c.l.b16 %v4270
    %v4630 = vunpack.c.h.b16 %v4270
    %v4631 = vunpack.c.l.b16 %v4271
    %v4632 = vunpack.c.h.b16 %v4271
    %v4633 = vunpack.c.l.b16 %v4272
    %v4634 = vunpack.c.h.b16 %v4272
    %v4635 = vunpack.c.l.b16 %v4273
    %v4636 = vunpack.c.h.b16 %v4273
    %v4637 = vunpack.c.l.b16 %v4274
    %v4638 = vunpack.c.h.b16 %v4274
    %v4639 = vunpack.c.l.b16 %v4275
    %v4640 = vunpack.c.h.b16 %v4275
    %v4641 = vunpack.c.l.b16 %v4276
    %v4642 = vunpack.c.h.b16 %v4276
    %v4643 = vunpack.c.l.b16 %v4277
    %v4644 = vunpack.c.h.b16 %v4277
    %v4645 = vunpack.c.l.b16 %v4278
    %v4646 = vunpack.c.h.b16 %v4278
    %v4647 = vunpack.c.l.b16 %v4279
    %v4648 = vunpack.c.h.b16 %v4279
    %v4649 = vunpack.c.l.b16 %v4280
    %v4650 = vunpack.c.h.b16 %v4280
    %v4651 = vunpack.c.l.b16 %v4281
    %v4652 = vunpack.c.h.b16 %v4281
    %v4653 = vunpack.c.l.b16 %v4282
    %v4654 = vunpack.c.h.b16 %v4282
    %v4655 = vunpack.c.l.b16 %v4283
    %v4656 = vunpack.c.h.b16 %v4283
    %v4657 = vunpack.c.l.b16 %v4284
    %v4658 = vunpack.c.h.b16 %v4284
    %v4659 = vunpack.c.l.b16 %v4285
    %v4660 = vunpack.c.h.b16 %v4285
    %v4661 = vunpack.c.l.b16 %v4286
    %v4662 = vunpack.c.h.b16 %v4286
    %v4663 = vunpack.c.l.b16 %v4287
    %v4664 = vunpack.c.h.b16 %v4287
    %v4665 = vunpack.c.l.b16 %v4288
    %v4666 = vunpack.c.h.b16 %v4288
    %v4667 = vunpack.c.l.b16 %v4289
    %v4668 = vunpack.c.h.b16 %v4289
    %v4669 = vunpack.c.l.b16 %v4290
    %v4670 = vunpack.c.h.b16 %v4290
    %v4671 = vunpack.c.l.b16 %v4291
    %v4672 = vunpack.c.h.b16 %v4291
    %v4673 = vunpack.c.l.b16 %v4292
    %v4674 = vunpack.c.h.b16 %v4292
    %v4675 = vunpack.c.l.b16 %v4293
    %v4676 = vunpack.c.h.b16 %v4293
    %v4677 = vunpack.c.l.b16 %v4294
    %v4678 = vunpack.c.h.b16 %v4294
    %v4679 = vunpack.c.l.b16 %v4295
    %v4680 = vunpack.c.h.b16 %v4295
    %v4681 = vunpack.c.l.b16 %v4296
    %v4682 = vunpack.c.h.b16 %v4296
    %v4683 = vunpack.c.l.b16 %v4297
    %v4684 = vunpack.c.h.b16 %v4297
    %v4685 = vunpack.c.l.b16 %v4298
    %v4686 = vunpack.c.h.b16 %v4298
    %v4687 = vunpack.c.l.b16 %v4299
    %v4688 = vunpack.c.h.b16 %v4299
    %v4689 = vunpack.c.l.b16 %v4300
    %v4690 = vunpack.c.h.b16 %v4300
    %v4691 = vunpack.c.l.b16 %v4301
    %v4692 = vunpack.c.h.b16 %v4301
    %v4693 = vunpack.c.l.b16 %v4302
    %v4694 = vunpack.c.h.b16 %v4302
    %v4695 = vunpack.c.l.b16 %v4303
    %v4696 = vunpack.c.h.b16 %v4303
    %v4697 = vunpack.c.l.b16 %v4304
    %v4698 = vunpack.c.h.b16 %v4304
    %v4699 = vunpack.c.l.b16 %v4305
    %v4700 = vunpack.c.h.b16 %v4305
    %v4701 = vunpack.c.l.b16 %v4306
    %v4702 = vunpack.c.h.b16 %v4306
    %v4703 = vunpack.c.l.b16 %v4307
    %v4704 = vunpack.c.h.b16 %v4307
    %v4705 = vunpack.c.l.b16 %v4308
    %v4706 = vunpack.c.h.b16 %v4308
    %v4707 = vunpack.c.l.b16 %v4309
    %v4708 = vunpack.c.h.b16 %v4309
    %v4709 = vunpack.c.l.b16 %v4310
    %v4710 = vunpack.c.h.b16 %v4310
    %v4711 = vunpack.c.l.b16 %v4311
    %v4712 = vunpack.c.h.b16 %v4311
    %v4713 = vunpack.c.l.b16 %v4312
    %v4714 = vunpack.c.h.b16 %v4312
    %v4715 = vunpack.c.l.b16 %v4313
    %v4716 = vunpack.c.h.b16 %v4313
    %v4717 = vunpack.c.l.b16 %v4314
    %v4718 = vunpack.c.h.b16 %v4314
    %v4719 = vunpack.c.l.b16 %v4315
    %v4720 = vunpack.c.h.b16 %v4315
    %v4721 = vunpack.c.l.b16 %v4316
    %v4722 = vunpack.c.h.b16 %v4316
    %v4723 = vunpack.c.l.b16 %v4317
    %v4724 = vunpack.c.h.b16 %v4317
    %v4725 = vpack.c.b16 %v4473, %v4469
    %v4726 = vpack.c.b16 %v4474, %v4470
    %v4727 = vpack.c.b16 %v4475, %v4471
    %v4728 = vpack.c.b16 %v4476, %v4472
    %v4729 = vpack.c.b16 %v4481, %v4477
    %v4730 = vpack.c.b16 %v4482, %v4478
    %v4731 = vpack.c.b16 %v4483, %v4479
    %v4732 = vpack.c.b16 %v4484, %v4480
    %v4733 = vpack.c.b16 %v4489, %v4485
    %v4734 = vpack.c.b16 %v4490, %v4486
    %v4735 = vpack.c.b16 %v4491, %v4487
    %v4736 = vpack.c.b16 %v4492, %v4488
    %v4737 = vpack.c.b16 %v4497, %v4493
    %v4738 = vpack.c.b16 %v4498, %v4494
    %v4739 = vpack.c.b16 %v4499, %v4495
    %v4740 = vpack.c.b16 %v4500, %v4496
    %v4741 = vpack.c.b16 %v4505, %v4501
    %v4742 = vpack.c.b16 %v4506, %v4502
    %v4743 = vpack.c.b16 %v4507, %v4503
    %v4744 = vpack.c.b16 %v4508, %v4504
    %v4745 = vpack.c.b16 %v4513, %v4509
    %v4746 = vpack.c.b16 %v4514, %v4510
    %v4747 = vpack.c.b16 %v4515, %v4511
    %v4748 = vpack.c.b16 %v4516, %v4512
    %v4749 = vpack.c.b16 %v4521, %v4517
    %v4750 = vpack.c.b16 %v4522, %v4518
    %v4751 = vpack.c.b16 %v4523, %v4519
    %v4752 = vpack.c.b16 %v4524, %v4520
    %v4753 = vpack.c.b16 %v4529, %v4525
    %v4754 = vpack.c.b16 %v4530, %v4526
    %v4755 = vpack.c.b16 %v4531, %v4527
    %v4756 = vpack.c.b16 %v4532, %v4528
    %v4757 = vpack.c.b16 %v4537, %v4533
    %v4758 = vpack.c.b16 %v4538, %v4534
    %v4759 = vpack.c.b16 %v4539, %v4535
    %v4760 = vpack.c.b16 %v4540, %v4536
    %v4761 = vpack.c.b16 %v4545, %v4541
    %v4762 = vpack.c.b16 %v4546, %v4542
    %v4763 = vpack.c.b16 %v4547, %v4543
    %v4764 = vpack.c.b16 %v4548, %v4544
    %v4765 = vpack.c.b16 %v4553, %v4549
    %v4766 = vpack.c.b16 %v4554, %v4550
    %v4767 = vpack.c.b16 %v4555, %v4551
    %v4768 = vpack.c.b16 %v4556, %v4552
    %v4769 = vpack.c.b16 %v4561, %v4557
    %v4770 = vpack.c.b16 %v4562, %v4558
    %v4771 = vpack.c.b16 %v4563, %v4559
    %v4772 = vpack.c.b16 %v4564, %v4560
    %v4773 = vpack.c.b16 %v4569, %v4565
    %v4774 = vpack.c.b16 %v4570, %v4566
    %v4775 = vpack.c.b16 %v4571, %v4567
    %v4776 = vpack.c.b16 %v4572, %v4568
    %v4777 = vpack.c.b16 %v4577, %v4573
    %v4778 = vpack.c.b16 %v4578, %v4574
    %v4779 = vpack.c.b16 %v4579, %v4575
    %v4780 = vpack.c.b16 %v4580, %v4576
    %v4781 = vpack.c.b16 %v4585, %v4581
    %v4782 = vpack.c.b16 %v4586, %v4582
    %v4783 = vpack.c.b16 %v4587, %v4583
    %v4784 = vpack.c.b16 %v4588, %v4584
    %v4785 = vpack.c.b16 %v4593, %v4589
    %v4786 = vpack.c.b16 %v4594, %v4590
    %v4787 = vpack.c.b16 %v4595, %v4591
    %v4788 = vpack.c.b16 %v4596, %v4592
    %v4789 = vpack.c.b16 %v4601, %v4597
    %v4790 = vpack.c.b16 %v4602, %v4598
    %v4791 = vpack.c.b16 %v4603, %v4599
    %v4792 = vpack.c.b16 %v4604, %v4600
    %v4793 = vpack.c.b16 %v4609, %v4605
    %v4794 = vpack.c.b16 %v4610, %v4606
    %v4795 = vpack.c.b16 %v4611, %v4607
    %v4796 = vpack.c.b16 %v4612, %v4608
    %v4797 = vpack.c.b16 %v4617, %v4613
    %v4798 = vpack.c.b16 %v4618, %v4614
    %v4799 = vpack.c.b16 %v4619, %v4615
    %v4800 = vpack.c.b16 %v4620, %v4616
    %v4801 = vpack.c.b16 %v4625, %v4621
    %v4802 = vpack.c.b16 %v4626, %v4622
    %v4803 = vpack.c.b16 %v4627, %v4623
    %v4804 = vpack.c.b16 %v4628, %v4624
    %v4805 = vpack.c.b16 %v4633, %v4629
    %v4806 = vpack.c.b16 %v4634, %v4630
    %v4807 = vpack.c.b16 %v4635, %v4631
    %v4808 = vpack.c.b16 %v4636, %v4632
    %v4809 = vpack.c.b16 %v4641, %v4637
    %v4810 = vpack.c.b16 %v4642, %v4638
    %v4811 = vpack.c.b16 %v4643, %v4639
    %v4812 = vpack.c.b16 %v4644, %v4640
    %v4813 = vpack.c.b16 %v4649, %v4645
    %v4814 = vpack.c.b16 %v4650, %v4646
    %v4815 = vpack.c.b16 %v4651, %v4647
    %v4816 = vpack.c.b16 %v4652, %v4648
    %v4817 = vpack.c.b16 %v4657, %v4653
    %v4818 = vpack.c.b16 %v4658, %v4654
    %v4819 = vpack.c.b16 %v4659, %v4655
    %v4820 = vpack.c.b16 %v4660, %v4656
    %v4821 = vpack.c.b16 %v4665, %v4661
    %v4822 = vpack.c.b16 %v4666, %v4662
    %v4823 = vpack.c.b16 %v4667, %v4663
    %v4824 = vpack.c.b16 %v4668, %v4664
    %v4825 = vpack.c.b16 %v4673, %v4669
    %v4826 = vpack.c.b16 %v4674, %v4670
    %v4827 = vpack.c.b16 %v4675, %v4671
    %v4828 = vpack.c.b16 %v4676, %v4672
    %v4829 = vpack.c.b16 %v4681, %v4677
    %v4830 = vpack.c.b16 %v4682, %v4678
    %v4831 = vpack.c.b16 %v4683, %v4679
    %v4832 = vpack.c.b16 %v4684, %v4680
    %v4833 = vpack.c.b16 %v4689, %v4685
    %v4834 = vpack.c.b16 %v4690, %v4686
    %v4835 = vpack.c.b16 %v4691, %v4687
    %v4836 = vpack.c.b16 %v4692, %v4688
    %v4837 = vpack.c.b16 %v4697, %v4693
    %v4838 = vpack.c.b16 %v4698, %v4694
    %v4839 = vpack.c.b16 %v4699, %v4695
    %v4840 = vpack.c.b16 %v4700, %v4696
    %v4841 = vpack.c.b16 %v4705, %v4701
    %v4842 = vpack.c.b16 %v4706, %v4702
    %v4843 = vpack.c.b16 %v4707, %v4703
    %v4844 = vpack.c.b16 %v4708, %v4704
    %v4845 = vpack.c.b16 %v4713, %v4709
    %v4846 = vpack.c.b16 %v4714, %v4710
    %v4847 = vpack.c.b16 %v4715, %v4711
    %v4848 = vpack.c.b16 %v4716, %v4712
    %v4849 = vpack.c.b16 %v4721, %v4717
    %v4850 = vpack.c.b16 %v4722, %v4718
    %v4851 = vpack.c.b16 %v4723, %v4719
    %v4852 = vpack.c.b16 %v4724, %v4720
    %4981 = vmatprep.subr.bf16.mxu0 %v4754
    %4982 = vmatpush1.bf16.msra.mxu0 %v4753
    %4983 = vmatprep.subr.bf16.mxu0 %v4750
    %4984 = vmatpush1.bf16.msra.mxu0 %v4749
    %4985 = vmatprep.subr.bf16.mxu0 %v4746
    %4986 = vmatpush1.bf16.msra.mxu0 %v4745
    %4987 = vmatprep.subr.bf16.mxu0 %v4742
    %4988 = vmatpush1.bf16.msra.mxu0 %v4741
    %4989 = vmatprep.subr.bf16.mxu0 %v4738
    %4990 = vmatpush1.bf16.msra.mxu0 %v4737
    %4991 = vmatprep.subr.bf16.mxu0 %v4734
    %4992 = vmatpush1.bf16.msra.mxu0 %v4733
    %4993 = vmatprep.subr.bf16.mxu0 %v4730
    %4994 = vmatpush1.bf16.msra.mxu0 %v4729
    %4995 = vmatprep.subr.bf16.mxu0 %v4726
    %4996 = vmatpush1.bf16.msra.mxu0 %v4725
    %4997 = vmatprep.subr.bf16.mxu0 %v4786
    %4998 = vmatpush2.bf16.msra.mxu0 %v4785
    %4999 = vmatprep.subr.bf16.mxu0 %v4782
    %5000 = vmatpush2.bf16.msra.mxu0 %v4781
    %5001 = vmatprep.subr.bf16.mxu0 %v4778
    %5002 = vmatpush2.bf16.msra.mxu0 %v4777
    %5003 = vmatprep.subr.bf16.mxu0 %v4774
    %5004 = vmatpush2.bf16.msra.mxu0 %v4773
    %5005 = vmatprep.subr.bf16.mxu0 %v4770
    %5006 = vmatpush2.bf16.msra.mxu0 %v4769
    %5007 = vmatprep.subr.bf16.mxu0 %v4766
    %5008 = vmatpush2.bf16.msra.mxu0 %v4765
    %5009 = vmatprep.subr.bf16.mxu0 %v4762
    %5010 = vmatpush2.bf16.msra.mxu0 %v4761
    %5011 = vmatprep.subr.bf16.mxu0 %v4758
    %5012 = vmatpush2.bf16.msra.mxu0 %v4757
    %5013 = vmatprep.mubr.bf16.mxu0 %v4173
    %5014 = vmatmul.mubr.bf16.gmra.mxu0 %v4172
    %v5015 = vpop.f32.mrf.mxu0
    %v5016 = vadd.f32 %v4324, %v5015
    %v5017 = vpop.f32.mrf.mxu0
    %v5018 = vadd.f32 %v4328, %v5017
    %v5019 = vpop.f32.mrf.mxu0
    %v5020 = vpop.f32.mrf.mxu0
    %5021 = vdwg.mxu0
    %5022 = vmatprep.subr.bf16.mxu0 %v4818
    %5023 = vmatpush1.bf16.msra.mxu0 %v4817
    %5024 = vmatprep.subr.bf16.mxu0 %v4814
    %5025 = vmatpush1.bf16.msra.mxu0 %v4813
    %5026 = vmatprep.subr.bf16.mxu0 %v4810
    %5027 = vmatpush1.bf16.msra.mxu0 %v4809
    %5028 = vmatprep.subr.bf16.mxu0 %v4806
    %5029 = vmatpush1.bf16.msra.mxu0 %v4805
    %5030 = vmatprep.subr.bf16.mxu0 %v4802
    %5031 = vmatpush1.bf16.msra.mxu0 %v4801
    %5032 = vmatprep.subr.bf16.mxu0 %v4798
    %5033 = vmatpush1.bf16.msra.mxu0 %v4797
    %5034 = vmatprep.subr.bf16.mxu0 %v4794
    %5035 = vmatpush1.bf16.msra.mxu0 %v4793
    %5036 = vmatprep.subr.bf16.mxu0 %v4790
    %5037 = vmatpush1.bf16.msra.mxu0 %v4789
    %5038 = vmatprep.subr.bf16.mxu0 %v4850
    %5039 = vmatpush2.bf16.msra.mxu0 %v4849
    %5040 = vmatprep.subr.bf16.mxu0 %v4846
    %5041 = vmatpush2.bf16.msra.mxu0 %v4845
    %5042 = vmatprep.subr.bf16.mxu0 %v4842
    %5043 = vmatpush2.bf16.msra.mxu0 %v4841
    %5044 = vmatprep.subr.bf16.mxu0 %v4838
    %5045 = vmatpush2.bf16.msra.mxu0 %v4837
    %5046 = vmatprep.subr.bf16.mxu0 %v4834
    %5047 = vmatpush2.bf16.msra.mxu0 %v4833
    %5048 = vmatprep.subr.bf16.mxu0 %v4830
    %5049 = vmatpush2.bf16.msra.mxu0 %v4829
    %5050 = vmatprep.subr.bf16.mxu0 %v4826
    %5051 = vmatpush2.bf16.msra.mxu0 %v4825
    %5052 = vmatprep.subr.bf16.mxu0 %v4822
    %5053 = vmatpush2.bf16.msra.mxu0 %v4821
    %5054 = vmatprep.mubr.bf16.mxu0 %v4175
    %5055 = vmatmul.mubr.bf16.gmra.mxu0 %v4174
    %v5056 = vpop.f32.mrf.mxu0
    %v5057 = vadd.f32 %v5016, %v5056
    %v5058 = vpop.f32.mrf.mxu0
    %v5059 = vadd.f32 %v5018, %v5058
    %v5060 = vpop.f32.mrf.mxu0
    %v5061 = vpop.f32.mrf.mxu0
    %5062 = vdwg.mxu0
    %5063 = vmatprep.subr.bf16.mxu0 %v4756
    %5064 = vmatpush1.bf16.msra.mxu0 %v4755
    %5065 = vmatprep.subr.bf16.mxu0 %v4752
    %5066 = vmatpush1.bf16.msra.mxu0 %v4751
    %5067 = vmatprep.subr.bf16.mxu0 %v4748
    %5068 = vmatpush1.bf16.msra.mxu0 %v4747
    %5069 = vmatprep.subr.bf16.mxu0 %v4744
    %5070 = vmatpush1.bf16.msra.mxu0 %v4743
    %5071 = vmatprep.subr.bf16.mxu0 %v4740
    %5072 = vmatpush1.bf16.msra.mxu0 %v4739
    %5073 = vmatprep.subr.bf16.mxu0 %v4736
    %5074 = vmatpush1.bf16.msra.mxu0 %v4735
    %5075 = vmatprep.subr.bf16.mxu0 %v4732
    %5076 = vmatpush1.bf16.msra.mxu0 %v4731
    %5077 = vmatprep.subr.bf16.mxu0 %v4728
    %5078 = vmatpush1.bf16.msra.mxu0 %v4727
    %5079 = vmatprep.subr.bf16.mxu0 %v4788
    %5080 = vmatpush2.bf16.msra.mxu0 %v4787
    %5081 = vmatprep.subr.bf16.mxu0 %v4784
    %5082 = vmatpush2.bf16.msra.mxu0 %v4783
    %5083 = vmatprep.subr.bf16.mxu0 %v4780
    %5084 = vmatpush2.bf16.msra.mxu0 %v4779
    %5085 = vmatprep.subr.bf16.mxu0 %v4776
    %5086 = vmatpush2.bf16.msra.mxu0 %v4775
    %5087 = vmatprep.subr.bf16.mxu0 %v4772
    %5088 = vmatpush2.bf16.msra.mxu0 %v4771
    %5089 = vmatprep.subr.bf16.mxu0 %v4768
    %5090 = vmatpush2.bf16.msra.mxu0 %v4767
    %5091 = vmatprep.subr.bf16.mxu0 %v4764
    %5092 = vmatpush2.bf16.msra.mxu0 %v4763
    %5093 = vmatprep.subr.bf16.mxu0 %v4760
    %5094 = vmatpush2.bf16.msra.mxu0 %v4759
    %5095 = vmatprep.mubr.bf16.mxu0 %v4173
    %5096 = vmatmul.mubr.bf16.gmra.mxu0 %v4172
    %v5097 = vpop.f32.mrf.mxu0
    %v5098 = vadd.f32 %v4332, %v5097
    %v5099 = vpop.f32.mrf.mxu0
    %v5100 = vadd.f32 %v4336, %v5099
    %v5101 = vpop.f32.mrf.mxu0
    %v5102 = vpop.f32.mrf.mxu0
    %5103 = vdwg.mxu0
    %5104 = vmatprep.subr.bf16.mxu0 %v4820
    %5105 = vmatpush1.bf16.msra.mxu0 %v4819
    %5106 = vmatprep.subr.bf16.mxu0 %v4816
    %5107 = vmatpush1.bf16.msra.mxu0 %v4815
    %5108 = vmatprep.subr.bf16.mxu0 %v4812
    %5109 = vmatpush1.bf16.msra.mxu0 %v4811
    %5110 = vmatprep.subr.bf16.mxu0 %v4808
    %5111 = vmatpush1.bf16.msra.mxu0 %v4807
    %5112 = vmatprep.subr.bf16.mxu0 %v4804
    %5113 = vmatpush1.bf16.msra.mxu0 %v4803
    %5114 = vmatprep.subr.bf16.mxu0 %v4800
    %5115 = vmatpush1.bf16.msra.mxu0 %v4799
    %5116 = vmatprep.subr.bf16.mxu0 %v4796
    %5117 = vmatpush1.bf16.msra.mxu0 %v4795
    %5118 = vmatprep.subr.bf16.mxu0 %v4792
    %5119 = vmatpush1.bf16.msra.mxu0 %v4791
    %5120 = vmatprep.subr.bf16.mxu0 %v4852
    %5121 = vmatpush2.bf16.msra.mxu0 %v4851
    %5122 = vmatprep.subr.bf16.mxu0 %v4848
    %5123 = vmatpush2.bf16.msra.mxu0 %v4847
    %5124 = vmatprep.subr.bf16.mxu0 %v4844
    %5125 = vmatpush2.bf16.msra.mxu0 %v4843
    %5126 = vmatprep.subr.bf16.mxu0 %v4840
    %5127 = vmatpush2.bf16.msra.mxu0 %v4839
    %5128 = vmatprep.subr.bf16.mxu0 %v4836
    %5129 = vmatpush2.bf16.msra.mxu0 %v4835
    %5130 = vmatprep.subr.bf16.mxu0 %v4832
    %5131 = vmatpush2.bf16.msra.mxu0 %v4831
    %5132 = vmatprep.subr.bf16.mxu0 %v4828
    %5133 = vmatpush2.bf16.msra.mxu0 %v4827
    %5134 = vmatprep.subr.bf16.mxu0 %v4824
    %5135 = vmatpush2.bf16.msra.mxu0 %v4823
    %5136 = vmatprep.mubr.bf16.mxu0 %v4175
    %5137 = vmatmul.mubr.bf16.gmra.mxu0 %v4174
    %v5138 = vpop.f32.mrf.mxu0
    %v5139 = vadd.f32 %v5098, %v5138
    %v5140 = vpop.f32.mrf.mxu0
    %v5141 = vadd.f32 %v5100, %v5140
    %v5142 = vpop.f32.mrf.mxu0
    %v5143 = vpop.f32.mrf.mxu0
    %5144 = vdwg.mxu0
    %v5145 = vmax.f32 %v5057, 0.0
    %v5146 = vmax.f32 %v5059, 0.0
    %v5147 = vmax.f32 %v5139, 0.0
    %v5148 = vmax.f32 %v5141, 0.0
    %v5149 = vpack.c.bf16 %v5145, %v5145
    %v5150 = vpack.c.bf16 %v5146, %v5146
    %v5151 = vpack.c.bf16 %v5147, %v5147
    %v5152 = vpack.c.bf16 %v5148, %v5148
    %s5153 = sshll.u32 %s266, 4
    %5154 = dma.done %s271, %s5153
    %s5155 = scalar_lea.hbm %s3, 98304
    // Predicated region
    $region70: #{tpu_custom_call.1} parent=1 // pred_check
      _
    $region71: #{tpu_custom_call.1} parent=1 // pred_check_branch
      %5157 = sbr.rel target = $region73
    $region72: #{tpu_custom_call.1} parent=1 // pred_region
      %5158 = sst [smem:[#allocation15]] [#allocation28]
      %5159 = sst [smem:[#allocation16]] [#allocation27]
    $region73: #{tpu_custom_call.1} parent=1 // pred_fallthru
      _
    %5161 = shalt.err (0)
    %s5163 = sshll.u32 [#allocation2], 4
    %s5164 = int_to_ptr.vmem [resolvable:$true] %s5163
    %5166 = dma.hbm_to_vmem [thread:$0]  %s5155, 16384, %s5164, [#allocation3]
    %v5167 = vld [vmem:[%s270] sm:$0xff]
    %v5168 = vld [vmem:[%s270 + $0x8] sm:$0xff]
    %v5169 = vld [vmem:[%s270 + $0x10] sm:$0xff]
    %v5170 = vld [vmem:[%s270 + $0x18] sm:$0xff]
    %v5171 = vld [vmem:[%s270 + $0x20] sm:$0xff]
    %v5172 = vld [vmem:[%s270 + $0x28] sm:$0xff]
    %v5173 = vld [vmem:[%s270 + $0x30] sm:$0xff]
    %v5174 = vld [vmem:[%s270 + $0x38] sm:$0xff]
    %v5175 = vld [vmem:[%s270 + $0x40] sm:$0xff]
    %v5176 = vld [vmem:[%s270 + $0x48] sm:$0xff]
    %v5177 = vld [vmem:[%s270 + $0x50] sm:$0xff]
    %v5178 = vld [vmem:[%s270 + $0x58] sm:$0xff]
    %v5179 = vld [vmem:[%s270 + $0x60] sm:$0xff]
    %v5180 = vld [vmem:[%s270 + $0x68] sm:$0xff]
    %v5181 = vld [vmem:[%s270 + $0x70] sm:$0xff]
    %v5182 = vld [vmem:[%s270 + $0x78] sm:$0xff]
    %v5183 = vld [vmem:[%s270 + $0x80] sm:$0xff]
    %v5184 = vld [vmem:[%s270 + $0x88] sm:$0xff]
    %v5185 = vld [vmem:[%s270 + $0x90] sm:$0xff]
    %v5186 = vld [vmem:[%s270 + $0x98] sm:$0xff]
    %v5187 = vld [vmem:[%s270 + $0xa0] sm:$0xff]
    %v5188 = vld [vmem:[%s270 + $0xa8] sm:$0xff]
    %v5189 = vld [vmem:[%s270 + $0xb0] sm:$0xff]
    %v5190 = vld [vmem:[%s270 + $0xb8] sm:$0xff]
    %v5191 = vld [vmem:[%s270 + $0xc0] sm:$0xff]
    %v5192 = vld [vmem:[%s270 + $0xc8] sm:$0xff]
    %v5193 = vld [vmem:[%s270 + $0xd0] sm:$0xff]
    %v5194 = vld [vmem:[%s270 + $0xd8] sm:$0xff]
    %v5195 = vld [vmem:[%s270 + $0xe0] sm:$0xff]
    %v5196 = vld [vmem:[%s270 + $0xe8] sm:$0xff]
    %v5197 = vld [vmem:[%s270 + $0xf0] sm:$0xff]
    %v5198 = vld [vmem:[%s270 + $0xf8] sm:$0xff]
    %v5199 = vld [vmem:[%s270 + $0x100] sm:$0xff]
    %v5200 = vld [vmem:[%s270 + $0x108] sm:$0xff]
    %v5201 = vld [vmem:[%s270 + $0x110] sm:$0xff]
    %v5202 = vld [vmem:[%s270 + $0x118] sm:$0xff]
    %v5203 = vld [vmem:[%s270 + $0x120] sm:$0xff]
    %v5204 = vld [vmem:[%s270 + $0x128] sm:$0xff]
    %v5205 = vld [vmem:[%s270 + $0x130] sm:$0xff]
    %v5206 = vld [vmem:[%s270 + $0x138] sm:$0xff]
    %v5207 = vld [vmem:[%s270 + $0x140] sm:$0xff]
    %v5208 = vld [vmem:[%s270 + $0x148] sm:$0xff]
    %v5209 = vld [vmem:[%s270 + $0x150] sm:$0xff]
    %v5210 = vld [vmem:[%s270 + $0x158] sm:$0xff]
    %v5211 = vld [vmem:[%s270 + $0x160] sm:$0xff]
    %v5212 = vld [vmem:[%s270 + $0x168] sm:$0xff]
    %v5213 = vld [vmem:[%s270 + $0x170] sm:$0xff]
    %v5214 = vld [vmem:[%s270 + $0x178] sm:$0xff]
    %v5215 = vld [vmem:[%s270 + $0x180] sm:$0xff]
    %v5216 = vld [vmem:[%s270 + $0x188] sm:$0xff]
    %v5217 = vld [vmem:[%s270 + $0x190] sm:$0xff]
    %v5218 = vld [vmem:[%s270 + $0x198] sm:$0xff]
    %v5219 = vld [vmem:[%s270 + $0x1a0] sm:$0xff]
    %v5220 = vld [vmem:[%s270 + $0x1a8] sm:$0xff]
    %v5221 = vld [vmem:[%s270 + $0x1b0] sm:$0xff]
    %v5222 = vld [vmem:[%s270 + $0x1b8] sm:$0xff]
    %v5223 = vld [vmem:[%s270 + $0x1c0] sm:$0xff]
    %v5224 = vld [vmem:[%s270 + $0x1c8] sm:$0xff]
    %v5225 = vld [vmem:[%s270 + $0x1d0] sm:$0xff]
    %v5226 = vld [vmem:[%s270 + $0x1d8] sm:$0xff]
    %v5227 = vld [vmem:[%s270 + $0x1e0] sm:$0xff]
    %v5228 = vld [vmem:[%s270 + $0x1e8] sm:$0xff]
    %v5229 = vld [vmem:[%s270 + $0x1f0] sm:$0xff]
    %v5230 = vld [vmem:[%s270 + $0x1f8] sm:$0xff]
    %v5231 = vld [vmem:[%s270 + $0x200] sm:$0xff]
    %v5232 = vld [vmem:[%s270 + $0x208] sm:$0xff]
    %v5233 = vld [vmem:[%s270 + $0x210] sm:$0xff]
    %v5234 = vld [vmem:[%s270 + $0x218] sm:$0xff]
    %v5235 = vld [vmem:[%s270 + $0x220] sm:$0xff]
    %v5236 = vld [vmem:[%s270 + $0x228] sm:$0xff]
    %v5237 = vld [vmem:[%s270 + $0x230] sm:$0xff]
    %v5238 = vld [vmem:[%s270 + $0x238] sm:$0xff]
    %v5239 = vld [vmem:[%s270 + $0x240] sm:$0xff]
    %v5240 = vld [vmem:[%s270 + $0x248] sm:$0xff]
    %v5241 = vld [vmem:[%s270 + $0x250] sm:$0xff]
    %v5242 = vld [vmem:[%s270 + $0x258] sm:$0xff]
    %v5243 = vld [vmem:[%s270 + $0x260] sm:$0xff]
    %v5244 = vld [vmem:[%s270 + $0x268] sm:$0xff]
    %v5245 = vld [vmem:[%s270 + $0x270] sm:$0xff]
    %v5246 = vld [vmem:[%s270 + $0x278] sm:$0xff]
    %v5247 = vld [vmem:[%s270 + $0x280] sm:$0xff]
    %v5248 = vld [vmem:[%s270 + $0x288] sm:$0xff]
    %v5249 = vld [vmem:[%s270 + $0x290] sm:$0xff]
    %v5250 = vld [vmem:[%s270 + $0x298] sm:$0xff]
    %v5251 = vld [vmem:[%s270 + $0x2a0] sm:$0xff]
    %v5252 = vld [vmem:[%s270 + $0x2a8] sm:$0xff]
    %v5253 = vld [vmem:[%s270 + $0x2b0] sm:$0xff]
    %v5254 = vld [vmem:[%s270 + $0x2b8] sm:$0xff]
    %v5255 = vld [vmem:[%s270 + $0x2c0] sm:$0xff]
    %v5256 = vld [vmem:[%s270 + $0x2c8] sm:$0xff]
    %v5257 = vld [vmem:[%s270 + $0x2d0] sm:$0xff]
    %v5258 = vld [vmem:[%s270 + $0x2d8] sm:$0xff]
    %v5259 = vld [vmem:[%s270 + $0x2e0] sm:$0xff]
    %v5260 = vld [vmem:[%s270 + $0x2e8] sm:$0xff]
    %v5261 = vld [vmem:[%s270 + $0x2f0] sm:$0xff]
    %v5262 = vld [vmem:[%s270 + $0x2f8] sm:$0xff]
    %v5263 = vld [vmem:[%s270 + $0x300] sm:$0xff]
    %v5264 = vld [vmem:[%s270 + $0x308] sm:$0xff]
    %v5265 = vld [vmem:[%s270 + $0x310] sm:$0xff]
    %v5266 = vld [vmem:[%s270 + $0x318] sm:$0xff]
    %v5267 = vld [vmem:[%s270 + $0x320] sm:$0xff]
    %v5268 = vld [vmem:[%s270 + $0x328] sm:$0xff]
    %v5269 = vld [vmem:[%s270 + $0x330] sm:$0xff]
    %v5270 = vld [vmem:[%s270 + $0x338] sm:$0xff]
    %v5271 = vld [vmem:[%s270 + $0x340] sm:$0xff]
    %v5272 = vld [vmem:[%s270 + $0x348] sm:$0xff]
    %v5273 = vld [vmem:[%s270 + $0x350] sm:$0xff]
    %v5274 = vld [vmem:[%s270 + $0x358] sm:$0xff]
    %v5275 = vld [vmem:[%s270 + $0x360] sm:$0xff]
    %v5276 = vld [vmem:[%s270 + $0x368] sm:$0xff]
    %v5277 = vld [vmem:[%s270 + $0x370] sm:$0xff]
    %v5278 = vld [vmem:[%s270 + $0x378] sm:$0xff]
    %v5279 = vld [vmem:[%s270 + $0x380] sm:$0xff]
    %v5280 = vld [vmem:[%s270 + $0x388] sm:$0xff]
    %v5281 = vld [vmem:[%s270 + $0x390] sm:$0xff]
    %v5282 = vld [vmem:[%s270 + $0x398] sm:$0xff]
    %v5283 = vld [vmem:[%s270 + $0x3a0] sm:$0xff]
    %v5284 = vld [vmem:[%s270 + $0x3a8] sm:$0xff]
    %v5285 = vld [vmem:[%s270 + $0x3b0] sm:$0xff]
    %v5286 = vld [vmem:[%s270 + $0x3b8] sm:$0xff]
    %v5287 = vld [vmem:[%s270 + $0x3c0] sm:$0xff]
    %v5288 = vld [vmem:[%s270 + $0x3c8] sm:$0xff]
    %v5289 = vld [vmem:[%s270 + $0x3d0] sm:$0xff]
    %v5290 = vld [vmem:[%s270 + $0x3d8] sm:$0xff]
    %v5291 = vld [vmem:[%s270 + $0x3e0] sm:$0xff]
    %v5292 = vld [vmem:[%s270 + $0x3e8] sm:$0xff]
    %v5293 = vld [vmem:[%s270 + $0x3f0] sm:$0xff]
    %v5294 = vld [vmem:[%s270 + $0x3f8] sm:$0xff]
    %s5295 = scalar_lea.vmem [#allocation10], 20
    %v5296 = vld [vmem:[%s5295] sm:$0xf]
    %v5298 = vlaneseq
    %v5299 = vshrl.u32 %v5298, 7
    %v5300 = vsub.s32 0, %v5299
    %v5301 = vrot.slane %v5296, %v5300
    %v5302 = vlaneseq
    %v5303 = vshrl.u32 %v5302, 7
    %v5304 = vsub.s32 1, %v5303
    %v5305 = vrot.slane %v5296, %v5304
    %v5306 = vlaneseq
    %v5307 = vshrl.u32 %v5306, 7
    %v5308 = vsub.s32 2, %v5307
    %v5309 = vrot.slane %v5296, %v5308
    %v5310 = vlaneseq
    %v5311 = vshrl.u32 %v5310, 7
    %v5312 = vsub.s32 3, %v5311
    %v5313 = vrot.slane %v5296, %v5312
    %v5446 = vunpack.c.l.b16 %v5167
    %v5447 = vunpack.c.h.b16 %v5167
    %v5448 = vunpack.c.l.b16 %v5168
    %v5449 = vunpack.c.h.b16 %v5168
    %v5450 = vunpack.c.l.b16 %v5169
    %v5451 = vunpack.c.h.b16 %v5169
    %v5452 = vunpack.c.l.b16 %v5170
    %v5453 = vunpack.c.h.b16 %v5170
    %v5454 = vunpack.c.l.b16 %v5171
    %v5455 = vunpack.c.h.b16 %v5171
    %v5456 = vunpack.c.l.b16 %v5172
    %v5457 = vunpack.c.h.b16 %v5172
    %v5458 = vunpack.c.l.b16 %v5173
    %v5459 = vunpack.c.h.b16 %v5173
    %v5460 = vunpack.c.l.b16 %v5174
    %v5461 = vunpack.c.h.b16 %v5174
    %v5462 = vunpack.c.l.b16 %v5175
    %v5463 = vunpack.c.h.b16 %v5175
    %v5464 = vunpack.c.l.b16 %v5176
    %v5465 = vunpack.c.h.b16 %v5176
    %v5466 = vunpack.c.l.b16 %v5177
    %v5467 = vunpack.c.h.b16 %v5177
    %v5468 = vunpack.c.l.b16 %v5178
    %v5469 = vunpack.c.h.b16 %v5178
    %v5470 = vunpack.c.l.b16 %v5179
    %v5471 = vunpack.c.h.b16 %v5179
    %v5472 = vunpack.c.l.b16 %v5180
    %v5473 = vunpack.c.h.b16 %v5180
    %v5474 = vunpack.c.l.b16 %v5181
    %v5475 = vunpack.c.h.b16 %v5181
    %v5476 = vunpack.c.l.b16 %v5182
    %v5477 = vunpack.c.h.b16 %v5182
    %v5478 = vunpack.c.l.b16 %v5183
    %v5479 = vunpack.c.h.b16 %v5183
    %v5480 = vunpack.c.l.b16 %v5184
    %v5481 = vunpack.c.h.b16 %v5184
    %v5482 = vunpack.c.l.b16 %v5185
    %v5483 = vunpack.c.h.b16 %v5185
    %v5484 = vunpack.c.l.b16 %v5186
    %v5485 = vunpack.c.h.b16 %v5186
    %v5486 = vunpack.c.l.b16 %v5187
    %v5487 = vunpack.c.h.b16 %v5187
    %v5488 = vunpack.c.l.b16 %v5188
    %v5489 = vunpack.c.h.b16 %v5188
    %v5490 = vunpack.c.l.b16 %v5189
    %v5491 = vunpack.c.h.b16 %v5189
    %v5492 = vunpack.c.l.b16 %v5190
    %v5493 = vunpack.c.h.b16 %v5190
    %v5494 = vunpack.c.l.b16 %v5191
    %v5495 = vunpack.c.h.b16 %v5191
    %v5496 = vunpack.c.l.b16 %v5192
    %v5497 = vunpack.c.h.b16 %v5192
    %v5498 = vunpack.c.l.b16 %v5193
    %v5499 = vunpack.c.h.b16 %v5193
    %v5500 = vunpack.c.l.b16 %v5194
    %v5501 = vunpack.c.h.b16 %v5194
    %v5502 = vunpack.c.l.b16 %v5195
    %v5503 = vunpack.c.h.b16 %v5195
    %v5504 = vunpack.c.l.b16 %v5196
    %v5505 = vunpack.c.h.b16 %v5196
    %v5506 = vunpack.c.l.b16 %v5197
    %v5507 = vunpack.c.h.b16 %v5197
    %v5508 = vunpack.c.l.b16 %v5198
    %v5509 = vunpack.c.h.b16 %v5198
    %v5510 = vunpack.c.l.b16 %v5199
    %v5511 = vunpack.c.h.b16 %v5199
    %v5512 = vunpack.c.l.b16 %v5200
    %v5513 = vunpack.c.h.b16 %v5200
    %v5514 = vunpack.c.l.b16 %v5201
    %v5515 = vunpack.c.h.b16 %v5201
    %v5516 = vunpack.c.l.b16 %v5202
    %v5517 = vunpack.c.h.b16 %v5202
    %v5518 = vunpack.c.l.b16 %v5203
    %v5519 = vunpack.c.h.b16 %v5203
    %v5520 = vunpack.c.l.b16 %v5204
    %v5521 = vunpack.c.h.b16 %v5204
    %v5522 = vunpack.c.l.b16 %v5205
    %v5523 = vunpack.c.h.b16 %v5205
    %v5524 = vunpack.c.l.b16 %v5206
    %v5525 = vunpack.c.h.b16 %v5206
    %v5526 = vunpack.c.l.b16 %v5207
    %v5527 = vunpack.c.h.b16 %v5207
    %v5528 = vunpack.c.l.b16 %v5208
    %v5529 = vunpack.c.h.b16 %v5208
    %v5530 = vunpack.c.l.b16 %v5209
    %v5531 = vunpack.c.h.b16 %v5209
    %v5532 = vunpack.c.l.b16 %v5210
    %v5533 = vunpack.c.h.b16 %v5210
    %v5534 = vunpack.c.l.b16 %v5211
    %v5535 = vunpack.c.h.b16 %v5211
    %v5536 = vunpack.c.l.b16 %v5212
    %v5537 = vunpack.c.h.b16 %v5212
    %v5538 = vunpack.c.l.b16 %v5213
    %v5539 = vunpack.c.h.b16 %v5213
    %v5540 = vunpack.c.l.b16 %v5214
    %v5541 = vunpack.c.h.b16 %v5214
    %v5542 = vunpack.c.l.b16 %v5215
    %v5543 = vunpack.c.h.b16 %v5215
    %v5544 = vunpack.c.l.b16 %v5216
    %v5545 = vunpack.c.h.b16 %v5216
    %v5546 = vunpack.c.l.b16 %v5217
    %v5547 = vunpack.c.h.b16 %v5217
    %v5548 = vunpack.c.l.b16 %v5218
    %v5549 = vunpack.c.h.b16 %v5218
    %v5550 = vunpack.c.l.b16 %v5219
    %v5551 = vunpack.c.h.b16 %v5219
    %v5552 = vunpack.c.l.b16 %v5220
    %v5553 = vunpack.c.h.b16 %v5220
    %v5554 = vunpack.c.l.b16 %v5221
    %v5555 = vunpack.c.h.b16 %v5221
    %v5556 = vunpack.c.l.b16 %v5222
    %v5557 = vunpack.c.h.b16 %v5222
    %v5558 = vunpack.c.l.b16 %v5223
    %v5559 = vunpack.c.h.b16 %v5223
    %v5560 = vunpack.c.l.b16 %v5224
    %v5561 = vunpack.c.h.b16 %v5224
    %v5562 = vunpack.c.l.b16 %v5225
    %v5563 = vunpack.c.h.b16 %v5225
    %v5564 = vunpack.c.l.b16 %v5226
    %v5565 = vunpack.c.h.b16 %v5226
    %v5566 = vunpack.c.l.b16 %v5227
    %v5567 = vunpack.c.h.b16 %v5227
    %v5568 = vunpack.c.l.b16 %v5228
    %v5569 = vunpack.c.h.b16 %v5228
    %v5570 = vunpack.c.l.b16 %v5229
    %v5571 = vunpack.c.h.b16 %v5229
    %v5572 = vunpack.c.l.b16 %v5230
    %v5573 = vunpack.c.h.b16 %v5230
    %v5574 = vunpack.c.l.b16 %v5231
    %v5575 = vunpack.c.h.b16 %v5231
    %v5576 = vunpack.c.l.b16 %v5232
    %v5577 = vunpack.c.h.b16 %v5232
    %v5578 = vunpack.c.l.b16 %v5233
    %v5579 = vunpack.c.h.b16 %v5233
    %v5580 = vunpack.c.l.b16 %v5234
    %v5581 = vunpack.c.h.b16 %v5234
    %v5582 = vunpack.c.l.b16 %v5235
    %v5583 = vunpack.c.h.b16 %v5235
    %v5584 = vunpack.c.l.b16 %v5236
    %v5585 = vunpack.c.h.b16 %v5236
    %v5586 = vunpack.c.l.b16 %v5237
    %v5587 = vunpack.c.h.b16 %v5237
    %v5588 = vunpack.c.l.b16 %v5238
    %v5589 = vunpack.c.h.b16 %v5238
    %v5590 = vunpack.c.l.b16 %v5239
    %v5591 = vunpack.c.h.b16 %v5239
    %v5592 = vunpack.c.l.b16 %v5240
    %v5593 = vunpack.c.h.b16 %v5240
    %v5594 = vunpack.c.l.b16 %v5241
    %v5595 = vunpack.c.h.b16 %v5241
    %v5596 = vunpack.c.l.b16 %v5242
    %v5597 = vunpack.c.h.b16 %v5242
    %v5598 = vunpack.c.l.b16 %v5243
    %v5599 = vunpack.c.h.b16 %v5243
    %v5600 = vunpack.c.l.b16 %v5244
    %v5601 = vunpack.c.h.b16 %v5244
    %v5602 = vunpack.c.l.b16 %v5245
    %v5603 = vunpack.c.h.b16 %v5245
    %v5604 = vunpack.c.l.b16 %v5246
    %v5605 = vunpack.c.h.b16 %v5246
    %v5606 = vunpack.c.l.b16 %v5247
    %v5607 = vunpack.c.h.b16 %v5247
    %v5608 = vunpack.c.l.b16 %v5248
    %v5609 = vunpack.c.h.b16 %v5248
    %v5610 = vunpack.c.l.b16 %v5249
    %v5611 = vunpack.c.h.b16 %v5249
    %v5612 = vunpack.c.l.b16 %v5250
    %v5613 = vunpack.c.h.b16 %v5250
    %v5614 = vunpack.c.l.b16 %v5251
    %v5615 = vunpack.c.h.b16 %v5251
    %v5616 = vunpack.c.l.b16 %v5252
    %v5617 = vunpack.c.h.b16 %v5252
    %v5618 = vunpack.c.l.b16 %v5253
    %v5619 = vunpack.c.h.b16 %v5253
    %v5620 = vunpack.c.l.b16 %v5254
    %v5621 = vunpack.c.h.b16 %v5254
    %v5622 = vunpack.c.l.b16 %v5255
    %v5623 = vunpack.c.h.b16 %v5255
    %v5624 = vunpack.c.l.b16 %v5256
    %v5625 = vunpack.c.h.b16 %v5256
    %v5626 = vunpack.c.l.b16 %v5257
    %v5627 = vunpack.c.h.b16 %v5257
    %v5628 = vunpack.c.l.b16 %v5258
    %v5629 = vunpack.c.h.b16 %v5258
    %v5630 = vunpack.c.l.b16 %v5259
    %v5631 = vunpack.c.h.b16 %v5259
    %v5632 = vunpack.c.l.b16 %v5260
    %v5633 = vunpack.c.h.b16 %v5260
    %v5634 = vunpack.c.l.b16 %v5261
    %v5635 = vunpack.c.h.b16 %v5261
    %v5636 = vunpack.c.l.b16 %v5262
    %v5637 = vunpack.c.h.b16 %v5262
    %v5638 = vunpack.c.l.b16 %v5263
    %v5639 = vunpack.c.h.b16 %v5263
    %v5640 = vunpack.c.l.b16 %v5264
    %v5641 = vunpack.c.h.b16 %v5264
    %v5642 = vunpack.c.l.b16 %v5265
    %v5643 = vunpack.c.h.b16 %v5265
    %v5644 = vunpack.c.l.b16 %v5266
    %v5645 = vunpack.c.h.b16 %v5266
    %v5646 = vunpack.c.l.b16 %v5267
    %v5647 = vunpack.c.h.b16 %v5267
    %v5648 = vunpack.c.l.b16 %v5268
    %v5649 = vunpack.c.h.b16 %v5268
    %v5650 = vunpack.c.l.b16 %v5269
    %v5651 = vunpack.c.h.b16 %v5269
    %v5652 = vunpack.c.l.b16 %v5270
    %v5653 = vunpack.c.h.b16 %v5270
    %v5654 = vunpack.c.l.b16 %v5271
    %v5655 = vunpack.c.h.b16 %v5271
    %v5656 = vunpack.c.l.b16 %v5272
    %v5657 = vunpack.c.h.b16 %v5272
    %v5658 = vunpack.c.l.b16 %v5273
    %v5659 = vunpack.c.h.b16 %v5273
    %v5660 = vunpack.c.l.b16 %v5274
    %v5661 = vunpack.c.h.b16 %v5274
    %v5662 = vunpack.c.l.b16 %v5275
    %v5663 = vunpack.c.h.b16 %v5275
    %v5664 = vunpack.c.l.b16 %v5276
    %v5665 = vunpack.c.h.b16 %v5276
    %v5666 = vunpack.c.l.b16 %v5277
    %v5667 = vunpack.c.h.b16 %v5277
    %v5668 = vunpack.c.l.b16 %v5278
    %v5669 = vunpack.c.h.b16 %v5278
    %v5670 = vunpack.c.l.b16 %v5279
    %v5671 = vunpack.c.h.b16 %v5279
    %v5672 = vunpack.c.l.b16 %v5280
    %v5673 = vunpack.c.h.b16 %v5280
    %v5674 = vunpack.c.l.b16 %v5281
    %v5675 = vunpack.c.h.b16 %v5281
    %v5676 = vunpack.c.l.b16 %v5282
    %v5677 = vunpack.c.h.b16 %v5282
    %v5678 = vunpack.c.l.b16 %v5283
    %v5679 = vunpack.c.h.b16 %v5283
    %v5680 = vunpack.c.l.b16 %v5284
    %v5681 = vunpack.c.h.b16 %v5284
    %v5682 = vunpack.c.l.b16 %v5285
    %v5683 = vunpack.c.h.b16 %v5285
    %v5684 = vunpack.c.l.b16 %v5286
    %v5685 = vunpack.c.h.b16 %v5286
    %v5686 = vunpack.c.l.b16 %v5287
    %v5687 = vunpack.c.h.b16 %v5287
    %v5688 = vunpack.c.l.b16 %v5288
    %v5689 = vunpack.c.h.b16 %v5288
    %v5690 = vunpack.c.l.b16 %v5289
    %v5691 = vunpack.c.h.b16 %v5289
    %v5692 = vunpack.c.l.b16 %v5290
    %v5693 = vunpack.c.h.b16 %v5290
    %v5694 = vunpack.c.l.b16 %v5291
    %v5695 = vunpack.c.h.b16 %v5291
    %v5696 = vunpack.c.l.b16 %v5292
    %v5697 = vunpack.c.h.b16 %v5292
    %v5698 = vunpack.c.l.b16 %v5293
    %v5699 = vunpack.c.h.b16 %v5293
    %v5700 = vunpack.c.l.b16 %v5294
    %v5701 = vunpack.c.h.b16 %v5294
    %v5702 = vpack.c.b16 %v5450, %v5446
    %v5703 = vpack.c.b16 %v5451, %v5447
    %v5704 = vpack.c.b16 %v5452, %v5448
    %v5705 = vpack.c.b16 %v5453, %v5449
    %v5706 = vpack.c.b16 %v5458, %v5454
    %v5707 = vpack.c.b16 %v5459, %v5455
    %v5708 = vpack.c.b16 %v5460, %v5456
    %v5709 = vpack.c.b16 %v5461, %v5457
    %v5710 = vpack.c.b16 %v5466, %v5462
    %v5711 = vpack.c.b16 %v5467, %v5463
    %v5712 = vpack.c.b16 %v5468, %v5464
    %v5713 = vpack.c.b16 %v5469, %v5465
    %v5714 = vpack.c.b16 %v5474, %v5470
    %v5715 = vpack.c.b16 %v5475, %v5471
    %v5716 = vpack.c.b16 %v5476, %v5472
    %v5717 = vpack.c.b16 %v5477, %v5473
    %v5718 = vpack.c.b16 %v5482, %v5478
    %v5719 = vpack.c.b16 %v5483, %v5479
    %v5720 = vpack.c.b16 %v5484, %v5480
    %v5721 = vpack.c.b16 %v5485, %v5481
    %v5722 = vpack.c.b16 %v5490, %v5486
    %v5723 = vpack.c.b16 %v5491, %v5487
    %v5724 = vpack.c.b16 %v5492, %v5488
    %v5725 = vpack.c.b16 %v5493, %v5489
    %v5726 = vpack.c.b16 %v5498, %v5494
    %v5727 = vpack.c.b16 %v5499, %v5495
    %v5728 = vpack.c.b16 %v5500, %v5496
    %v5729 = vpack.c.b16 %v5501, %v5497
    %v5730 = vpack.c.b16 %v5506, %v5502
    %v5731 = vpack.c.b16 %v5507, %v5503
    %v5732 = vpack.c.b16 %v5508, %v5504
    %v5733 = vpack.c.b16 %v5509, %v5505
    %v5734 = vpack.c.b16 %v5514, %v5510
    %v5735 = vpack.c.b16 %v5515, %v5511
    %v5736 = vpack.c.b16 %v5516, %v5512
    %v5737 = vpack.c.b16 %v5517, %v5513
    %v5738 = vpack.c.b16 %v5522, %v5518
    %v5739 = vpack.c.b16 %v5523, %v5519
    %v5740 = vpack.c.b16 %v5524, %v5520
    %v5741 = vpack.c.b16 %v5525, %v5521
    %v5742 = vpack.c.b16 %v5530, %v5526
    %v5743 = vpack.c.b16 %v5531, %v5527
    %v5744 = vpack.c.b16 %v5532, %v5528
    %v5745 = vpack.c.b16 %v5533, %v5529
    %v5746 = vpack.c.b16 %v5538, %v5534
    %v5747 = vpack.c.b16 %v5539, %v5535
    %v5748 = vpack.c.b16 %v5540, %v5536
    %v5749 = vpack.c.b16 %v5541, %v5537
    %v5750 = vpack.c.b16 %v5546, %v5542
    %v5751 = vpack.c.b16 %v5547, %v5543
    %v5752 = vpack.c.b16 %v5548, %v5544
    %v5753 = vpack.c.b16 %v5549, %v5545
    %v5754 = vpack.c.b16 %v5554, %v5550
    %v5755 = vpack.c.b16 %v5555, %v5551
    %v5756 = vpack.c.b16 %v5556, %v5552
    %v5757 = vpack.c.b16 %v5557, %v5553
    %v5758 = vpack.c.b16 %v5562, %v5558
    %v5759 = vpack.c.b16 %v5563, %v5559
    %v5760 = vpack.c.b16 %v5564, %v5560
    %v5761 = vpack.c.b16 %v5565, %v5561
    %v5762 = vpack.c.b16 %v5570, %v5566
    %v5763 = vpack.c.b16 %v5571, %v5567
    %v5764 = vpack.c.b16 %v5572, %v5568
    %v5765 = vpack.c.b16 %v5573, %v5569
    %v5766 = vpack.c.b16 %v5578, %v5574
    %v5767 = vpack.c.b16 %v5579, %v5575
    %v5768 = vpack.c.b16 %v5580, %v5576
    %v5769 = vpack.c.b16 %v5581, %v5577
    %v5770 = vpack.c.b16 %v5586, %v5582
    %v5771 = vpack.c.b16 %v5587, %v5583
    %v5772 = vpack.c.b16 %v5588, %v5584
    %v5773 = vpack.c.b16 %v5589, %v5585
    %v5774 = vpack.c.b16 %v5594, %v5590
    %v5775 = vpack.c.b16 %v5595, %v5591
    %v5776 = vpack.c.b16 %v5596, %v5592
    %v5777 = vpack.c.b16 %v5597, %v5593
    %v5778 = vpack.c.b16 %v5602, %v5598
    %v5779 = vpack.c.b16 %v5603, %v5599
    %v5780 = vpack.c.b16 %v5604, %v5600
    %v5781 = vpack.c.b16 %v5605, %v5601
    %v5782 = vpack.c.b16 %v5610, %v5606
    %v5783 = vpack.c.b16 %v5611, %v5607
    %v5784 = vpack.c.b16 %v5612, %v5608
    %v5785 = vpack.c.b16 %v5613, %v5609
    %v5786 = vpack.c.b16 %v5618, %v5614
    %v5787 = vpack.c.b16 %v5619, %v5615
    %v5788 = vpack.c.b16 %v5620, %v5616
    %v5789 = vpack.c.b16 %v5621, %v5617
    %v5790 = vpack.c.b16 %v5626, %v5622
    %v5791 = vpack.c.b16 %v5627, %v5623
    %v5792 = vpack.c.b16 %v5628, %v5624
    %v5793 = vpack.c.b16 %v5629, %v5625
    %v5794 = vpack.c.b16 %v5634, %v5630
    %v5795 = vpack.c.b16 %v5635, %v5631
    %v5796 = vpack.c.b16 %v5636, %v5632
    %v5797 = vpack.c.b16 %v5637, %v5633
    %v5798 = vpack.c.b16 %v5642, %v5638
    %v5799 = vpack.c.b16 %v5643, %v5639
    %v5800 = vpack.c.b16 %v5644, %v5640
    %v5801 = vpack.c.b16 %v5645, %v5641
    %v5802 = vpack.c.b16 %v5650, %v5646
    %v5803 = vpack.c.b16 %v5651, %v5647
    %v5804 = vpack.c.b16 %v5652, %v5648
    %v5805 = vpack.c.b16 %v5653, %v5649
    %v5806 = vpack.c.b16 %v5658, %v5654
    %v5807 = vpack.c.b16 %v5659, %v5655
    %v5808 = vpack.c.b16 %v5660, %v5656
    %v5809 = vpack.c.b16 %v5661, %v5657
    %v5810 = vpack.c.b16 %v5666, %v5662
    %v5811 = vpack.c.b16 %v5667, %v5663
    %v5812 = vpack.c.b16 %v5668, %v5664
    %v5813 = vpack.c.b16 %v5669, %v5665
    %v5814 = vpack.c.b16 %v5674, %v5670
    %v5815 = vpack.c.b16 %v5675, %v5671
    %v5816 = vpack.c.b16 %v5676, %v5672
    %v5817 = vpack.c.b16 %v5677, %v5673
    %v5818 = vpack.c.b16 %v5682, %v5678
    %v5819 = vpack.c.b16 %v5683, %v5679
    %v5820 = vpack.c.b16 %v5684, %v5680
    %v5821 = vpack.c.b16 %v5685, %v5681
    %v5822 = vpack.c.b16 %v5690, %v5686
    %v5823 = vpack.c.b16 %v5691, %v5687
    %v5824 = vpack.c.b16 %v5692, %v5688
    %v5825 = vpack.c.b16 %v5693, %v5689
    %v5826 = vpack.c.b16 %v5698, %v5694
    %v5827 = vpack.c.b16 %v5699, %v5695
    %v5828 = vpack.c.b16 %v5700, %v5696
    %v5829 = vpack.c.b16 %v5701, %v5697
    %5958 = vmatprep.subr.bf16.mxu0 %v5731
    %5959 = vmatpush1.bf16.msra.mxu0 %v5730
    %5960 = vmatprep.subr.bf16.mxu0 %v5727
    %5961 = vmatpush1.bf16.msra.mxu0 %v5726
    %5962 = vmatprep.subr.bf16.mxu0 %v5723
    %5963 = vmatpush1.bf16.msra.mxu0 %v5722
    %5964 = vmatprep.subr.bf16.mxu0 %v5719
    %5965 = vmatpush1.bf16.msra.mxu0 %v5718
    %5966 = vmatprep.subr.bf16.mxu0 %v5715
    %5967 = vmatpush1.bf16.msra.mxu0 %v5714
    %5968 = vmatprep.subr.bf16.mxu0 %v5711
    %5969 = vmatpush1.bf16.msra.mxu0 %v5710
    %5970 = vmatprep.subr.bf16.mxu0 %v5707
    %5971 = vmatpush1.bf16.msra.mxu0 %v5706
    %5972 = vmatprep.subr.bf16.mxu0 %v5703
    %5973 = vmatpush1.bf16.msra.mxu0 %v5702
    %5974 = vmatprep.subr.bf16.mxu0 %v5763
    %5975 = vmatpush2.bf16.msra.mxu0 %v5762
    %5976 = vmatprep.subr.bf16.mxu0 %v5759
    %5977 = vmatpush2.bf16.msra.mxu0 %v5758
    %5978 = vmatprep.subr.bf16.mxu0 %v5755
    %5979 = vmatpush2.bf16.msra.mxu0 %v5754
    %5980 = vmatprep.subr.bf16.mxu0 %v5751
    %5981 = vmatpush2.bf16.msra.mxu0 %v5750
    %5982 = vmatprep.subr.bf16.mxu0 %v5747
    %5983 = vmatpush2.bf16.msra.mxu0 %v5746
    %5984 = vmatprep.subr.bf16.mxu0 %v5743
    %5985 = vmatpush2.bf16.msra.mxu0 %v5742
    %5986 = vmatprep.subr.bf16.mxu0 %v5739
    %5987 = vmatpush2.bf16.msra.mxu0 %v5738
    %5988 = vmatprep.subr.bf16.mxu0 %v5735
    %5989 = vmatpush2.bf16.msra.mxu0 %v5734
    %5990 = vmatprep.mubr.bf16.mxu0 %v5150
    %5991 = vmatmul.mubr.bf16.gmra.mxu0 %v5149
    %v5992 = vpop.f32.mrf.mxu0
    %v5993 = vadd.f32 %v5301, %v5992
    %v5994 = vpop.f32.mrf.mxu0
    %v5995 = vadd.f32 %v5305, %v5994
    %v5996 = vpop.f32.mrf.mxu0
    %v5997 = vpop.f32.mrf.mxu0
    %5998 = vdwg.mxu0
    %5999 = vmatprep.subr.bf16.mxu0 %v5795
    %6000 = vmatpush1.bf16.msra.mxu0 %v5794
    %6001 = vmatprep.subr.bf16.mxu0 %v5791
    %6002 = vmatpush1.bf16.msra.mxu0 %v5790
    %6003 = vmatprep.subr.bf16.mxu0 %v5787
    %6004 = vmatpush1.bf16.msra.mxu0 %v5786
    %6005 = vmatprep.subr.bf16.mxu0 %v5783
    %6006 = vmatpush1.bf16.msra.mxu0 %v5782
    %6007 = vmatprep.subr.bf16.mxu0 %v5779
    %6008 = vmatpush1.bf16.msra.mxu0 %v5778
    %6009 = vmatprep.subr.bf16.mxu0 %v5775
    %6010 = vmatpush1.bf16.msra.mxu0 %v5774
    %6011 = vmatprep.subr.bf16.mxu0 %v5771
    %6012 = vmatpush1.bf16.msra.mxu0 %v5770
    %6013 = vmatprep.subr.bf16.mxu0 %v5767
    %6014 = vmatpush1.bf16.msra.mxu0 %v5766
    %6015 = vmatprep.subr.bf16.mxu0 %v5827
    %6016 = vmatpush2.bf16.msra.mxu0 %v5826
    %6017 = vmatprep.subr.bf16.mxu0 %v5823
    %6018 = vmatpush2.bf16.msra.mxu0 %v5822
    %6019 = vmatprep.subr.bf16.mxu0 %v5819
    %6020 = vmatpush2.bf16.msra.mxu0 %v5818
    %6021 = vmatprep.subr.bf16.mxu0 %v5815
    %6022 = vmatpush2.bf16.msra.mxu0 %v5814
    %6023 = vmatprep.subr.bf16.mxu0 %v5811
    %6024 = vmatpush2.bf16.msra.mxu0 %v5810
    %6025 = vmatprep.subr.bf16.mxu0 %v5807
    %6026 = vmatpush2.bf16.msra.mxu0 %v5806
    %6027 = vmatprep.subr.bf16.mxu0 %v5803
    %6028 = vmatpush2.bf16.msra.mxu0 %v5802
    %6029 = vmatprep.subr.bf16.mxu0 %v5799
    %6030 = vmatpush2.bf16.msra.mxu0 %v5798
    %6031 = vmatprep.mubr.bf16.mxu0 %v5152
    %6032 = vmatmul.mubr.bf16.gmra.mxu0 %v5151
    %v6033 = vpop.f32.mrf.mxu0
    %v6034 = vadd.f32 %v5993, %v6033
    %v6035 = vpop.f32.mrf.mxu0
    %v6036 = vadd.f32 %v5995, %v6035
    %v6037 = vpop.f32.mrf.mxu0
    %v6038 = vpop.f32.mrf.mxu0
    %6039 = vdwg.mxu0
    %6040 = vmatprep.subr.bf16.mxu0 %v5733
    %6041 = vmatpush1.bf16.msra.mxu0 %v5732
    %6042 = vmatprep.subr.bf16.mxu0 %v5729
    %6043 = vmatpush1.bf16.msra.mxu0 %v5728
    %6044 = vmatprep.subr.bf16.mxu0 %v5725
    %6045 = vmatpush1.bf16.msra.mxu0 %v5724
    %6046 = vmatprep.subr.bf16.mxu0 %v5721
    %6047 = vmatpush1.bf16.msra.mxu0 %v5720
    %6048 = vmatprep.subr.bf16.mxu0 %v5717
    %6049 = vmatpush1.bf16.msra.mxu0 %v5716
    %6050 = vmatprep.subr.bf16.mxu0 %v5713
    %6051 = vmatpush1.bf16.msra.mxu0 %v5712
    %6052 = vmatprep.subr.bf16.mxu0 %v5709
    %6053 = vmatpush1.bf16.msra.mxu0 %v5708
    %6054 = vmatprep.subr.bf16.mxu0 %v5705
    %6055 = vmatpush1.bf16.msra.mxu0 %v5704
    %6056 = vmatprep.subr.bf16.mxu0 %v5765
    %6057 = vmatpush2.bf16.msra.mxu0 %v5764
    %6058 = vmatprep.subr.bf16.mxu0 %v5761
    %6059 = vmatpush2.bf16.msra.mxu0 %v5760
    %6060 = vmatprep.subr.bf16.mxu0 %v5757
    %6061 = vmatpush2.bf16.msra.mxu0 %v5756
    %6062 = vmatprep.subr.bf16.mxu0 %v5753
    %6063 = vmatpush2.bf16.msra.mxu0 %v5752
    %6064 = vmatprep.subr.bf16.mxu0 %v5749
    %6065 = vmatpush2.bf16.msra.mxu0 %v5748
    %6066 = vmatprep.subr.bf16.mxu0 %v5745
    %6067 = vmatpush2.bf16.msra.mxu0 %v5744
    %6068 = vmatprep.subr.bf16.mxu0 %v5741
    %6069 = vmatpush2.bf16.msra.mxu0 %v5740
    %6070 = vmatprep.subr.bf16.mxu0 %v5737
    %6071 = vmatpush2.bf16.msra.mxu0 %v5736
    %6072 = vmatprep.mubr.bf16.mxu0 %v5150
    %6073 = vmatmul.mubr.bf16.gmra.mxu0 %v5149
    %v6074 = vpop.f32.mrf.mxu0
    %v6075 = vadd.f32 %v5309, %v6074
    %v6076 = vpop.f32.mrf.mxu0
    %v6077 = vadd.f32 %v5313, %v6076
    %v6078 = vpop.f32.mrf.mxu0
    %v6079 = vpop.f32.mrf.mxu0
    %6080 = vdwg.mxu0
    %6081 = vmatprep.subr.bf16.mxu0 %v5797
    %6082 = vmatpush1.bf16.msra.mxu0 %v5796
    %6083 = vmatprep.subr.bf16.mxu0 %v5793
    %6084 = vmatpush1.bf16.msra.mxu0 %v5792
    %6085 = vmatprep.subr.bf16.mxu0 %v5789
    %6086 = vmatpush1.bf16.msra.mxu0 %v5788
    %6087 = vmatprep.subr.bf16.mxu0 %v5785
    %6088 = vmatpush1.bf16.msra.mxu0 %v5784
    %6089 = vmatprep.subr.bf16.mxu0 %v5781
    %6090 = vmatpush1.bf16.msra.mxu0 %v5780
    %6091 = vmatprep.subr.bf16.mxu0 %v5777
    %6092 = vmatpush1.bf16.msra.mxu0 %v5776
    %6093 = vmatprep.subr.bf16.mxu0 %v5773
    %6094 = vmatpush1.bf16.msra.mxu0 %v5772
    %6095 = vmatprep.subr.bf16.mxu0 %v5769
    %6096 = vmatpush1.bf16.msra.mxu0 %v5768
    %6097 = vmatprep.subr.bf16.mxu0 %v5829
    %6098 = vmatpush2.bf16.msra.mxu0 %v5828
    %6099 = vmatprep.subr.bf16.mxu0 %v5825
    %6100 = vmatpush2.bf16.msra.mxu0 %v5824
    %6101 = vmatprep.subr.bf16.mxu0 %v5821
    %6102 = vmatpush2.bf16.msra.mxu0 %v5820
    %6103 = vmatprep.subr.bf16.mxu0 %v5817
    %6104 = vmatpush2.bf16.msra.mxu0 %v5816
    %6105 = vmatprep.subr.bf16.mxu0 %v5813
    %6106 = vmatpush2.bf16.msra.mxu0 %v5812
    %6107 = vmatprep.subr.bf16.mxu0 %v5809
    %6108 = vmatpush2.bf16.msra.mxu0 %v5808
    %6109 = vmatprep.subr.bf16.mxu0 %v5805
    %6110 = vmatpush2.bf16.msra.mxu0 %v5804
    %6111 = vmatprep.subr.bf16.mxu0 %v5801
    %6112 = vmatpush2.bf16.msra.mxu0 %v5800
    %6113 = vmatprep.mubr.bf16.mxu0 %v5152
    %6114 = vmatmul.mubr.bf16.gmra.mxu0 %v5151
    %v6115 = vpop.f32.mrf.mxu0
    %v6116 = vadd.f32 %v6075, %v6115
    %v6117 = vpop.f32.mrf.mxu0
    %v6118 = vadd.f32 %v6077, %v6117
    %v6119 = vpop.f32.mrf.mxu0
    %v6120 = vpop.f32.mrf.mxu0
    %6121 = vdwg.mxu0
    %v6122 = vmax.f32 %v6034, 0.0
    %v6123 = vmax.f32 %v6036, 0.0
    %v6124 = vmax.f32 %v6116, 0.0
    %v6125 = vmax.f32 %v6118, 0.0
    %v6126 = vpack.c.bf16 %v6122, %v6122
    %v6127 = vpack.c.bf16 %v6123, %v6123
    %v6128 = vpack.c.bf16 %v6124, %v6124
    %v6129 = vpack.c.bf16 %v6125, %v6125
    %s6130 = sshll.u32 %s266, 4
    %6131 = dma.done [#allocation3], %s6130
    %v6132 = vld [vmem:[#allocation2] sm:$0xff]
    %v6133 = vld [vmem:[#allocation2 + $0x8] sm:$0xff]
    %v6134 = vld [vmem:[#allocation2 + $0x10] sm:$0xff]
    %v6135 = vld [vmem:[#allocation2 + $0x18] sm:$0xff]
    %v6136 = vld [vmem:[#allocation2 + $0x20] sm:$0xff]
    %v6137 = vld [vmem:[#allocation2 + $0x28] sm:$0xff]
    %v6138 = vld [vmem:[#allocation2 + $0x30] sm:$0xff]
    %v6139 = vld [vmem:[#allocation2 + $0x38] sm:$0xff]
    %v6140 = vld [vmem:[#allocation2 + $0x40] sm:$0xff]
    %v6141 = vld [vmem:[#allocation2 + $0x48] sm:$0xff]
    %v6142 = vld [vmem:[#allocation2 + $0x50] sm:$0xff]
    %v6143 = vld [vmem:[#allocation2 + $0x58] sm:$0xff]
    %v6144 = vld [vmem:[#allocation2 + $0x60] sm:$0xff]
    %v6145 = vld [vmem:[#allocation2 + $0x68] sm:$0xff]
    %v6146 = vld [vmem:[#allocation2 + $0x70] sm:$0xff]
    %v6147 = vld [vmem:[#allocation2 + $0x78] sm:$0xff]
    %v6148 = vld [vmem:[#allocation2 + $0x80] sm:$0xff]
    %v6149 = vld [vmem:[#allocation2 + $0x88] sm:$0xff]
    %v6150 = vld [vmem:[#allocation2 + $0x90] sm:$0xff]
    %v6151 = vld [vmem:[#allocation2 + $0x98] sm:$0xff]
    %v6152 = vld [vmem:[#allocation2 + $0xa0] sm:$0xff]
    %v6153 = vld [vmem:[#allocation2 + $0xa8] sm:$0xff]
    %v6154 = vld [vmem:[#allocation2 + $0xb0] sm:$0xff]
    %v6155 = vld [vmem:[#allocation2 + $0xb8] sm:$0xff]
    %v6156 = vld [vmem:[#allocation2 + $0xc0] sm:$0xff]
    %v6157 = vld [vmem:[#allocation2 + $0xc8] sm:$0xff]
    %v6158 = vld [vmem:[#allocation2 + $0xd0] sm:$0xff]
    %v6159 = vld [vmem:[#allocation2 + $0xd8] sm:$0xff]
    %v6160 = vld [vmem:[#allocation2 + $0xe0] sm:$0xff]
    %v6161 = vld [vmem:[#allocation2 + $0xe8] sm:$0xff]
    %v6162 = vld [vmem:[#allocation2 + $0xf0] sm:$0xff]
    %v6163 = vld [vmem:[#allocation2 + $0xf8] sm:$0xff]
    %v6164 = vld [vmem:[#allocation2 + $0x100] sm:$0xff]
    %v6165 = vld [vmem:[#allocation2 + $0x108] sm:$0xff]
    %v6166 = vld [vmem:[#allocation2 + $0x110] sm:$0xff]
    %v6167 = vld [vmem:[#allocation2 + $0x118] sm:$0xff]
    %v6168 = vld [vmem:[#allocation2 + $0x120] sm:$0xff]
    %v6169 = vld [vmem:[#allocation2 + $0x128] sm:$0xff]
    %v6170 = vld [vmem:[#allocation2 + $0x130] sm:$0xff]
    %v6171 = vld [vmem:[#allocation2 + $0x138] sm:$0xff]
    %v6172 = vld [vmem:[#allocation2 + $0x140] sm:$0xff]
    %v6173 = vld [vmem:[#allocation2 + $0x148] sm:$0xff]
    %v6174 = vld [vmem:[#allocation2 + $0x150] sm:$0xff]
    %v6175 = vld [vmem:[#allocation2 + $0x158] sm:$0xff]
    %v6176 = vld [vmem:[#allocation2 + $0x160] sm:$0xff]
    %v6177 = vld [vmem:[#allocation2 + $0x168] sm:$0xff]
    %v6178 = vld [vmem:[#allocation2 + $0x170] sm:$0xff]
    %v6179 = vld [vmem:[#allocation2 + $0x178] sm:$0xff]
    %v6180 = vld [vmem:[#allocation2 + $0x180] sm:$0xff]
    %v6181 = vld [vmem:[#allocation2 + $0x188] sm:$0xff]
    %v6182 = vld [vmem:[#allocation2 + $0x190] sm:$0xff]
    %v6183 = vld [vmem:[#allocation2 + $0x198] sm:$0xff]
    %v6184 = vld [vmem:[#allocation2 + $0x1a0] sm:$0xff]
    %v6185 = vld [vmem:[#allocation2 + $0x1a8] sm:$0xff]
    %v6186 = vld [vmem:[#allocation2 + $0x1b0] sm:$0xff]
    %v6187 = vld [vmem:[#allocation2 + $0x1b8] sm:$0xff]
    %v6188 = vld [vmem:[#allocation2 + $0x1c0] sm:$0xff]
    %v6189 = vld [vmem:[#allocation2 + $0x1c8] sm:$0xff]
    %v6190 = vld [vmem:[#allocation2 + $0x1d0] sm:$0xff]
    %v6191 = vld [vmem:[#allocation2 + $0x1d8] sm:$0xff]
    %v6192 = vld [vmem:[#allocation2 + $0x1e0] sm:$0xff]
    %v6193 = vld [vmem:[#allocation2 + $0x1e8] sm:$0xff]
    %v6194 = vld [vmem:[#allocation2 + $0x1f0] sm:$0xff]
    %v6195 = vld [vmem:[#allocation2 + $0x1f8] sm:$0xff]
    %v6196 = vld [vmem:[#allocation2 + $0x200] sm:$0xff]
    %v6197 = vld [vmem:[#allocation2 + $0x208] sm:$0xff]
    %v6198 = vld [vmem:[#allocation2 + $0x210] sm:$0xff]
    %v6199 = vld [vmem:[#allocation2 + $0x218] sm:$0xff]
    %v6200 = vld [vmem:[#allocation2 + $0x220] sm:$0xff]
    %v6201 = vld [vmem:[#allocation2 + $0x228] sm:$0xff]
    %v6202 = vld [vmem:[#allocation2 + $0x230] sm:$0xff]
    %v6203 = vld [vmem:[#allocation2 + $0x238] sm:$0xff]
    %v6204 = vld [vmem:[#allocation2 + $0x240] sm:$0xff]
    %v6205 = vld [vmem:[#allocation2 + $0x248] sm:$0xff]
    %v6206 = vld [vmem:[#allocation2 + $0x250] sm:$0xff]
    %v6207 = vld [vmem:[#allocation2 + $0x258] sm:$0xff]
    %v6208 = vld [vmem:[#allocation2 + $0x260] sm:$0xff]
    %v6209 = vld [vmem:[#allocation2 + $0x268] sm:$0xff]
    %v6210 = vld [vmem:[#allocation2 + $0x270] sm:$0xff]
    %v6211 = vld [vmem:[#allocation2 + $0x278] sm:$0xff]
    %v6212 = vld [vmem:[#allocation2 + $0x280] sm:$0xff]
    %v6213 = vld [vmem:[#allocation2 + $0x288] sm:$0xff]
    %v6214 = vld [vmem:[#allocation2 + $0x290] sm:$0xff]
    %v6215 = vld [vmem:[#allocation2 + $0x298] sm:$0xff]
    %v6216 = vld [vmem:[#allocation2 + $0x2a0] sm:$0xff]
    %v6217 = vld [vmem:[#allocation2 + $0x2a8] sm:$0xff]
    %v6218 = vld [vmem:[#allocation2 + $0x2b0] sm:$0xff]
    %v6219 = vld [vmem:[#allocation2 + $0x2b8] sm:$0xff]
    %v6220 = vld [vmem:[#allocation2 + $0x2c0] sm:$0xff]
    %v6221 = vld [vmem:[#allocation2 + $0x2c8] sm:$0xff]
    %v6222 = vld [vmem:[#allocation2 + $0x2d0] sm:$0xff]
    %v6223 = vld [vmem:[#allocation2 + $0x2d8] sm:$0xff]
    %v6224 = vld [vmem:[#allocation2 + $0x2e0] sm:$0xff]
    %v6225 = vld [vmem:[#allocation2 + $0x2e8] sm:$0xff]
    %v6226 = vld [vmem:[#allocation2 + $0x2f0] sm:$0xff]
    %v6227 = vld [vmem:[#allocation2 + $0x2f8] sm:$0xff]
    %v6228 = vld [vmem:[#allocation2 + $0x300] sm:$0xff]
    %v6229 = vld [vmem:[#allocation2 + $0x308] sm:$0xff]
    %v6230 = vld [vmem:[#allocation2 + $0x310] sm:$0xff]
    %v6231 = vld [vmem:[#allocation2 + $0x318] sm:$0xff]
    %v6232 = vld [vmem:[#allocation2 + $0x320] sm:$0xff]
    %v6233 = vld [vmem:[#allocation2 + $0x328] sm:$0xff]
    %v6234 = vld [vmem:[#allocation2 + $0x330] sm:$0xff]
    %v6235 = vld [vmem:[#allocation2 + $0x338] sm:$0xff]
    %v6236 = vld [vmem:[#allocation2 + $0x340] sm:$0xff]
    %v6237 = vld [vmem:[#allocation2 + $0x348] sm:$0xff]
    %v6238 = vld [vmem:[#allocation2 + $0x350] sm:$0xff]
    %v6239 = vld [vmem:[#allocation2 + $0x358] sm:$0xff]
    %v6240 = vld [vmem:[#allocation2 + $0x360] sm:$0xff]
    %v6241 = vld [vmem:[#allocation2 + $0x368] sm:$0xff]
    %v6242 = vld [vmem:[#allocation2 + $0x370] sm:$0xff]
    %v6243 = vld [vmem:[#allocation2 + $0x378] sm:$0xff]
    %v6244 = vld [vmem:[#allocation2 + $0x380] sm:$0xff]
    %v6245 = vld [vmem:[#allocation2 + $0x388] sm:$0xff]
    %v6246 = vld [vmem:[#allocation2 + $0x390] sm:$0xff]
    %v6247 = vld [vmem:[#allocation2 + $0x398] sm:$0xff]
    %v6248 = vld [vmem:[#allocation2 + $0x3a0] sm:$0xff]
    %v6249 = vld [vmem:[#allocation2 + $0x3a8] sm:$0xff]
    %v6250 = vld [vmem:[#allocation2 + $0x3b0] sm:$0xff]
    %v6251 = vld [vmem:[#allocation2 + $0x3b8] sm:$0xff]
    %v6252 = vld [vmem:[#allocation2 + $0x3c0] sm:$0xff]
    %v6253 = vld [vmem:[#allocation2 + $0x3c8] sm:$0xff]
    %v6254 = vld [vmem:[#allocation2 + $0x3d0] sm:$0xff]
    %v6255 = vld [vmem:[#allocation2 + $0x3d8] sm:$0xff]
    %v6256 = vld [vmem:[#allocation2 + $0x3e0] sm:$0xff]
    %v6257 = vld [vmem:[#allocation2 + $0x3e8] sm:$0xff]
    %v6258 = vld [vmem:[#allocation2 + $0x3f0] sm:$0xff]
    %v6259 = vld [vmem:[#allocation2 + $0x3f8] sm:$0xff]
    %s6260 = scalar_lea.vmem [#allocation10], 24
    %v6261 = vld [vmem:[%s6260] sm:$0xf]
    %v6263 = vlaneseq
    %v6264 = vshrl.u32 %v6263, 7
    %v6265 = vsub.s32 0, %v6264
    %v6266 = vrot.slane %v6261, %v6265
    %v6267 = vlaneseq
    %v6268 = vshrl.u32 %v6267, 7
    %v6269 = vsub.s32 1, %v6268
    %v6270 = vrot.slane %v6261, %v6269
    %v6271 = vlaneseq
    %v6272 = vshrl.u32 %v6271, 7
    %v6273 = vsub.s32 2, %v6272
    %v6274 = vrot.slane %v6261, %v6273
    %v6275 = vlaneseq
    %v6276 = vshrl.u32 %v6275, 7
    %v6277 = vsub.s32 3, %v6276
    %v6278 = vrot.slane %v6261, %v6277
    %v6411 = vunpack.c.l.b16 %v6132
    %v6412 = vunpack.c.h.b16 %v6132
    %v6413 = vunpack.c.l.b16 %v6133
    %v6414 = vunpack.c.h.b16 %v6133
    %v6415 = vunpack.c.l.b16 %v6134
    %v6416 = vunpack.c.h.b16 %v6134
    %v6417 = vunpack.c.l.b16 %v6135
    %v6418 = vunpack.c.h.b16 %v6135
    %v6419 = vunpack.c.l.b16 %v6136
    %v6420 = vunpack.c.h.b16 %v6136
    %v6421 = vunpack.c.l.b16 %v6137
    %v6422 = vunpack.c.h.b16 %v6137
    %v6423 = vunpack.c.l.b16 %v6138
    %v6424 = vunpack.c.h.b16 %v6138
    %v6425 = vunpack.c.l.b16 %v6139
    %v6426 = vunpack.c.h.b16 %v6139
    %v6427 = vunpack.c.l.b16 %v6140
    %v6428 = vunpack.c.h.b16 %v6140
    %v6429 = vunpack.c.l.b16 %v6141
    %v6430 = vunpack.c.h.b16 %v6141
    %v6431 = vunpack.c.l.b16 %v6142
    %v6432 = vunpack.c.h.b16 %v6142
    %v6433 = vunpack.c.l.b16 %v6143
    %v6434 = vunpack.c.h.b16 %v6143
    %v6435 = vunpack.c.l.b16 %v6144
    %v6436 = vunpack.c.h.b16 %v6144
    %v6437 = vunpack.c.l.b16 %v6145
    %v6438 = vunpack.c.h.b16 %v6145
    %v6439 = vunpack.c.l.b16 %v6146
    %v6440 = vunpack.c.h.b16 %v6146
    %v6441 = vunpack.c.l.b16 %v6147
    %v6442 = vunpack.c.h.b16 %v6147
    %v6443 = vunpack.c.l.b16 %v6148
    %v6444 = vunpack.c.h.b16 %v6148
    %v6445 = vunpack.c.l.b16 %v6149
    %v6446 = vunpack.c.h.b16 %v6149
    %v6447 = vunpack.c.l.b16 %v6150
    %v6448 = vunpack.c.h.b16 %v6150
    %v6449 = vunpack.c.l.b16 %v6151
    %v6450 = vunpack.c.h.b16 %v6151
    %v6451 = vunpack.c.l.b16 %v6152
    %v6452 = vunpack.c.h.b16 %v6152
    %v6453 = vunpack.c.l.b16 %v6153
    %v6454 = vunpack.c.h.b16 %v6153
    %v6455 = vunpack.c.l.b16 %v6154
    %v6456 = vunpack.c.h.b16 %v6154
    %v6457 = vunpack.c.l.b16 %v6155
    %v6458 = vunpack.c.h.b16 %v6155
    %v6459 = vunpack.c.l.b16 %v6156
    %v6460 = vunpack.c.h.b16 %v6156
    %v6461 = vunpack.c.l.b16 %v6157
    %v6462 = vunpack.c.h.b16 %v6157
    %v6463 = vunpack.c.l.b16 %v6158
    %v6464 = vunpack.c.h.b16 %v6158
    %v6465 = vunpack.c.l.b16 %v6159
    %v6466 = vunpack.c.h.b16 %v6159
    %v6467 = vunpack.c.l.b16 %v6160
    %v6468 = vunpack.c.h.b16 %v6160
    %v6469 = vunpack.c.l.b16 %v6161
    %v6470 = vunpack.c.h.b16 %v6161
    %v6471 = vunpack.c.l.b16 %v6162
    %v6472 = vunpack.c.h.b16 %v6162
    %v6473 = vunpack.c.l.b16 %v6163
    %v6474 = vunpack.c.h.b16 %v6163
    %v6475 = vunpack.c.l.b16 %v6164
    %v6476 = vunpack.c.h.b16 %v6164
    %v6477 = vunpack.c.l.b16 %v6165
    %v6478 = vunpack.c.h.b16 %v6165
    %v6479 = vunpack.c.l.b16 %v6166
    %v6480 = vunpack.c.h.b16 %v6166
    %v6481 = vunpack.c.l.b16 %v6167
    %v6482 = vunpack.c.h.b16 %v6167
    %v6483 = vunpack.c.l.b16 %v6168
    %v6484 = vunpack.c.h.b16 %v6168
    %v6485 = vunpack.c.l.b16 %v6169
    %v6486 = vunpack.c.h.b16 %v6169
    %v6487 = vunpack.c.l.b16 %v6170
    %v6488 = vunpack.c.h.b16 %v6170
    %v6489 = vunpack.c.l.b16 %v6171
    %v6490 = vunpack.c.h.b16 %v6171
    %v6491 = vunpack.c.l.b16 %v6172
    %v6492 = vunpack.c.h.b16 %v6172
    %v6493 = vunpack.c.l.b16 %v6173
    %v6494 = vunpack.c.h.b16 %v6173
    %v6495 = vunpack.c.l.b16 %v6174
    %v6496 = vunpack.c.h.b16 %v6174
    %v6497 = vunpack.c.l.b16 %v6175
    %v6498 = vunpack.c.h.b16 %v6175
    %v6499 = vunpack.c.l.b16 %v6176
    %v6500 = vunpack.c.h.b16 %v6176
    %v6501 = vunpack.c.l.b16 %v6177
    %v6502 = vunpack.c.h.b16 %v6177
    %v6503 = vunpack.c.l.b16 %v6178
    %v6504 = vunpack.c.h.b16 %v6178
    %v6505 = vunpack.c.l.b16 %v6179
    %v6506 = vunpack.c.h.b16 %v6179
    %v6507 = vunpack.c.l.b16 %v6180
    %v6508 = vunpack.c.h.b16 %v6180
    %v6509 = vunpack.c.l.b16 %v6181
    %v6510 = vunpack.c.h.b16 %v6181
    %v6511 = vunpack.c.l.b16 %v6182
    %v6512 = vunpack.c.h.b16 %v6182
    %v6513 = vunpack.c.l.b16 %v6183
    %v6514 = vunpack.c.h.b16 %v6183
    %v6515 = vunpack.c.l.b16 %v6184
    %v6516 = vunpack.c.h.b16 %v6184
    %v6517 = vunpack.c.l.b16 %v6185
    %v6518 = vunpack.c.h.b16 %v6185
    %v6519 = vunpack.c.l.b16 %v6186
    %v6520 = vunpack.c.h.b16 %v6186
    %v6521 = vunpack.c.l.b16 %v6187
    %v6522 = vunpack.c.h.b16 %v6187
    %v6523 = vunpack.c.l.b16 %v6188
    %v6524 = vunpack.c.h.b16 %v6188
    %v6525 = vunpack.c.l.b16 %v6189
    %v6526 = vunpack.c.h.b16 %v6189
    %v6527 = vunpack.c.l.b16 %v6190
    %v6528 = vunpack.c.h.b16 %v6190
    %v6529 = vunpack.c.l.b16 %v6191
    %v6530 = vunpack.c.h.b16 %v6191
    %v6531 = vunpack.c.l.b16 %v6192
    %v6532 = vunpack.c.h.b16 %v6192
    %v6533 = vunpack.c.l.b16 %v6193
    %v6534 = vunpack.c.h.b16 %v6193
    %v6535 = vunpack.c.l.b16 %v6194
    %v6536 = vunpack.c.h.b16 %v6194
    %v6537 = vunpack.c.l.b16 %v6195
    %v6538 = vunpack.c.h.b16 %v6195
    %v6539 = vunpack.c.l.b16 %v6196
    %v6540 = vunpack.c.h.b16 %v6196
    %v6541 = vunpack.c.l.b16 %v6197
    %v6542 = vunpack.c.h.b16 %v6197
    %v6543 = vunpack.c.l.b16 %v6198
    %v6544 = vunpack.c.h.b16 %v6198
    %v6545 = vunpack.c.l.b16 %v6199
    %v6546 = vunpack.c.h.b16 %v6199
    %v6547 = vunpack.c.l.b16 %v6200
    %v6548 = vunpack.c.h.b16 %v6200
    %v6549 = vunpack.c.l.b16 %v6201
    %v6550 = vunpack.c.h.b16 %v6201
    %v6551 = vunpack.c.l.b16 %v6202
    %v6552 = vunpack.c.h.b16 %v6202
    %v6553 = vunpack.c.l.b16 %v6203
    %v6554 = vunpack.c.h.b16 %v6203
    %v6555 = vunpack.c.l.b16 %v6204
    %v6556 = vunpack.c.h.b16 %v6204
    %v6557 = vunpack.c.l.b16 %v6205
    %v6558 = vunpack.c.h.b16 %v6205
    %v6559 = vunpack.c.l.b16 %v6206
    %v6560 = vunpack.c.h.b16 %v6206
    %v6561 = vunpack.c.l.b16 %v6207
    %v6562 = vunpack.c.h.b16 %v6207
    %v6563 = vunpack.c.l.b16 %v6208
    %v6564 = vunpack.c.h.b16 %v6208
    %v6565 = vunpack.c.l.b16 %v6209
    %v6566 = vunpack.c.h.b16 %v6209
    %v6567 = vunpack.c.l.b16 %v6210
    %v6568 = vunpack.c.h.b16 %v6210
    %v6569 = vunpack.c.l.b16 %v6211
    %v6570 = vunpack.c.h.b16 %v6211
    %v6571 = vunpack.c.l.b16 %v6212
    %v6572 = vunpack.c.h.b16 %v6212
    %v6573 = vunpack.c.l.b16 %v6213
    %v6574 = vunpack.c.h.b16 %v6213
    %v6575 = vunpack.c.l.b16 %v6214
    %v6576 = vunpack.c.h.b16 %v6214
    %v6577 = vunpack.c.l.b16 %v6215
    %v6578 = vunpack.c.h.b16 %v6215
    %v6579 = vunpack.c.l.b16 %v6216
    %v6580 = vunpack.c.h.b16 %v6216
    %v6581 = vunpack.c.l.b16 %v6217
    %v6582 = vunpack.c.h.b16 %v6217
    %v6583 = vunpack.c.l.b16 %v6218
    %v6584 = vunpack.c.h.b16 %v6218
    %v6585 = vunpack.c.l.b16 %v6219
    %v6586 = vunpack.c.h.b16 %v6219
    %v6587 = vunpack.c.l.b16 %v6220
    %v6588 = vunpack.c.h.b16 %v6220
    %v6589 = vunpack.c.l.b16 %v6221
    %v6590 = vunpack.c.h.b16 %v6221
    %v6591 = vunpack.c.l.b16 %v6222
    %v6592 = vunpack.c.h.b16 %v6222
    %v6593 = vunpack.c.l.b16 %v6223
    %v6594 = vunpack.c.h.b16 %v6223
    %v6595 = vunpack.c.l.b16 %v6224
    %v6596 = vunpack.c.h.b16 %v6224
    %v6597 = vunpack.c.l.b16 %v6225
    %v6598 = vunpack.c.h.b16 %v6225
    %v6599 = vunpack.c.l.b16 %v6226
    %v6600 = vunpack.c.h.b16 %v6226
    %v6601 = vunpack.c.l.b16 %v6227
    %v6602 = vunpack.c.h.b16 %v6227
    %v6603 = vunpack.c.l.b16 %v6228
    %v6604 = vunpack.c.h.b16 %v6228
    %v6605 = vunpack.c.l.b16 %v6229
    %v6606 = vunpack.c.h.b16 %v6229
    %v6607 = vunpack.c.l.b16 %v6230
    %v6608 = vunpack.c.h.b16 %v6230
    %v6609 = vunpack.c.l.b16 %v6231
    %v6610 = vunpack.c.h.b16 %v6231
    %v6611 = vunpack.c.l.b16 %v6232
    %v6612 = vunpack.c.h.b16 %v6232
    %v6613 = vunpack.c.l.b16 %v6233
    %v6614 = vunpack.c.h.b16 %v6233
    %v6615 = vunpack.c.l.b16 %v6234
    %v6616 = vunpack.c.h.b16 %v6234
    %v6617 = vunpack.c.l.b16 %v6235
    %v6618 = vunpack.c.h.b16 %v6235
    %v6619 = vunpack.c.l.b16 %v6236
    %v6620 = vunpack.c.h.b16 %v6236
    %v6621 = vunpack.c.l.b16 %v6237
    %v6622 = vunpack.c.h.b16 %v6237
    %v6623 = vunpack.c.l.b16 %v6238
    %v6624 = vunpack.c.h.b16 %v6238
    %v6625 = vunpack.c.l.b16 %v6239
    %v6626 = vunpack.c.h.b16 %v6239
    %v6627 = vunpack.c.l.b16 %v6240
    %v6628 = vunpack.c.h.b16 %v6240
    %v6629 = vunpack.c.l.b16 %v6241
    %v6630 = vunpack.c.h.b16 %v6241
    %v6631 = vunpack.c.l.b16 %v6242
    %v6632 = vunpack.c.h.b16 %v6242
    %v6633 = vunpack.c.l.b16 %v6243
    %v6634 = vunpack.c.h.b16 %v6243
    %v6635 = vunpack.c.l.b16 %v6244
    %v6636 = vunpack.c.h.b16 %v6244
    %v6637 = vunpack.c.l.b16 %v6245
    %v6638 = vunpack.c.h.b16 %v6245
    %v6639 = vunpack.c.l.b16 %v6246
    %v6640 = vunpack.c.h.b16 %v6246
    %v6641 = vunpack.c.l.b16 %v6247
    %v6642 = vunpack.c.h.b16 %v6247
    %v6643 = vunpack.c.l.b16 %v6248
    %v6644 = vunpack.c.h.b16 %v6248
    %v6645 = vunpack.c.l.b16 %v6249
    %v6646 = vunpack.c.h.b16 %v6249
    %v6647 = vunpack.c.l.b16 %v6250
    %v6648 = vunpack.c.h.b16 %v6250
    %v6649 = vunpack.c.l.b16 %v6251
    %v6650 = vunpack.c.h.b16 %v6251
    %v6651 = vunpack.c.l.b16 %v6252
    %v6652 = vunpack.c.h.b16 %v6252
    %v6653 = vunpack.c.l.b16 %v6253
    %v6654 = vunpack.c.h.b16 %v6253
    %v6655 = vunpack.c.l.b16 %v6254
    %v6656 = vunpack.c.h.b16 %v6254
    %v6657 = vunpack.c.l.b16 %v6255
    %v6658 = vunpack.c.h.b16 %v6255
    %v6659 = vunpack.c.l.b16 %v6256
    %v6660 = vunpack.c.h.b16 %v6256
    %v6661 = vunpack.c.l.b16 %v6257
    %v6662 = vunpack.c.h.b16 %v6257
    %v6663 = vunpack.c.l.b16 %v6258
    %v6664 = vunpack.c.h.b16 %v6258
    %v6665 = vunpack.c.l.b16 %v6259
    %v6666 = vunpack.c.h.b16 %v6259
    %v6667 = vpack.c.b16 %v6415, %v6411
    %v6668 = vpack.c.b16 %v6416, %v6412
    %v6669 = vpack.c.b16 %v6417, %v6413
    %v6670 = vpack.c.b16 %v6418, %v6414
    %v6671 = vpack.c.b16 %v6423, %v6419
    %v6672 = vpack.c.b16 %v6424, %v6420
    %v6673 = vpack.c.b16 %v6425, %v6421
    %v6674 = vpack.c.b16 %v6426, %v6422
    %v6675 = vpack.c.b16 %v6431, %v6427
    %v6676 = vpack.c.b16 %v6432, %v6428
    %v6677 = vpack.c.b16 %v6433, %v6429
    %v6678 = vpack.c.b16 %v6434, %v6430
    %v6679 = vpack.c.b16 %v6439, %v6435
    %v6680 = vpack.c.b16 %v6440, %v6436
    %v6681 = vpack.c.b16 %v6441, %v6437
    %v6682 = vpack.c.b16 %v6442, %v6438
    %v6683 = vpack.c.b16 %v6447, %v6443
    %v6684 = vpack.c.b16 %v6448, %v6444
    %v6685 = vpack.c.b16 %v6449, %v6445
    %v6686 = vpack.c.b16 %v6450, %v6446
    %v6687 = vpack.c.b16 %v6455, %v6451
    %v6688 = vpack.c.b16 %v6456, %v6452
    %v6689 = vpack.c.b16 %v6457, %v6453
    %v6690 = vpack.c.b16 %v6458, %v6454
    %v6691 = vpack.c.b16 %v6463, %v6459
    %v6692 = vpack.c.b16 %v6464, %v6460
    %v6693 = vpack.c.b16 %v6465, %v6461
    %v6694 = vpack.c.b16 %v6466, %v6462
    %v6695 = vpack.c.b16 %v6471, %v6467
    %v6696 = vpack.c.b16 %v6472, %v6468
    %v6697 = vpack.c.b16 %v6473, %v6469
    %v6698 = vpack.c.b16 %v6474, %v6470
    %v6699 = vpack.c.b16 %v6479, %v6475
    %v6700 = vpack.c.b16 %v6480, %v6476
    %v6701 = vpack.c.b16 %v6481, %v6477
    %v6702 = vpack.c.b16 %v6482, %v6478
    %v6703 = vpack.c.b16 %v6487, %v6483
    %v6704 = vpack.c.b16 %v6488, %v6484
    %v6705 = vpack.c.b16 %v6489, %v6485
    %v6706 = vpack.c.b16 %v6490, %v6486
    %v6707 = vpack.c.b16 %v6495, %v6491
    %v6708 = vpack.c.b16 %v6496, %v6492
    %v6709 = vpack.c.b16 %v6497, %v6493
    %v6710 = vpack.c.b16 %v6498, %v6494
    %v6711 = vpack.c.b16 %v6503, %v6499
    %v6712 = vpack.c.b16 %v6504, %v6500
    %v6713 = vpack.c.b16 %v6505, %v6501
    %v6714 = vpack.c.b16 %v6506, %v6502
    %v6715 = vpack.c.b16 %v6511, %v6507
    %v6716 = vpack.c.b16 %v6512, %v6508
    %v6717 = vpack.c.b16 %v6513, %v6509
    %v6718 = vpack.c.b16 %v6514, %v6510
    %v6719 = vpack.c.b16 %v6519, %v6515
    %v6720 = vpack.c.b16 %v6520, %v6516
    %v6721 = vpack.c.b16 %v6521, %v6517
    %v6722 = vpack.c.b16 %v6522, %v6518
    %v6723 = vpack.c.b16 %v6527, %v6523
    %v6724 = vpack.c.b16 %v6528, %v6524
    %v6725 = vpack.c.b16 %v6529, %v6525
    %v6726 = vpack.c.b16 %v6530, %v6526
    %v6727 = vpack.c.b16 %v6535, %v6531
    %v6728 = vpack.c.b16 %v6536, %v6532
    %v6729 = vpack.c.b16 %v6537, %v6533
    %v6730 = vpack.c.b16 %v6538, %v6534
    %v6731 = vpack.c.b16 %v6543, %v6539
    %v6732 = vpack.c.b16 %v6544, %v6540
    %v6733 = vpack.c.b16 %v6545, %v6541
    %v6734 = vpack.c.b16 %v6546, %v6542
    %v6735 = vpack.c.b16 %v6551, %v6547
    %v6736 = vpack.c.b16 %v6552, %v6548
    %v6737 = vpack.c.b16 %v6553, %v6549
    %v6738 = vpack.c.b16 %v6554, %v6550
    %v6739 = vpack.c.b16 %v6559, %v6555
    %v6740 = vpack.c.b16 %v6560, %v6556
    %v6741 = vpack.c.b16 %v6561, %v6557
    %v6742 = vpack.c.b16 %v6562, %v6558
    %v6743 = vpack.c.b16 %v6567, %v6563
    %v6744 = vpack.c.b16 %v6568, %v6564
    %v6745 = vpack.c.b16 %v6569, %v6565
    %v6746 = vpack.c.b16 %v6570, %v6566
    %v6747 = vpack.c.b16 %v6575, %v6571
    %v6748 = vpack.c.b16 %v6576, %v6572
    %v6749 = vpack.c.b16 %v6577, %v6573
    %v6750 = vpack.c.b16 %v6578, %v6574
    %v6751 = vpack.c.b16 %v6583, %v6579
    %v6752 = vpack.c.b16 %v6584, %v6580
    %v6753 = vpack.c.b16 %v6585, %v6581
    %v6754 = vpack.c.b16 %v6586, %v6582
    %v6755 = vpack.c.b16 %v6591, %v6587
    %v6756 = vpack.c.b16 %v6592, %v6588
    %v6757 = vpack.c.b16 %v6593, %v6589
    %v6758 = vpack.c.b16 %v6594, %v6590
    %v6759 = vpack.c.b16 %v6599, %v6595
    %v6760 = vpack.c.b16 %v6600, %v6596
    %v6761 = vpack.c.b16 %v6601, %v6597
    %v6762 = vpack.c.b16 %v6602, %v6598
    %v6763 = vpack.c.b16 %v6607, %v6603
    %v6764 = vpack.c.b16 %v6608, %v6604
    %v6765 = vpack.c.b16 %v6609, %v6605
    %v6766 = vpack.c.b16 %v6610, %v6606
    %v6767 = vpack.c.b16 %v6615, %v6611
    %v6768 = vpack.c.b16 %v6616, %v6612
    %v6769 = vpack.c.b16 %v6617, %v6613
    %v6770 = vpack.c.b16 %v6618, %v6614
    %v6771 = vpack.c.b16 %v6623, %v6619
    %v6772 = vpack.c.b16 %v6624, %v6620
    %v6773 = vpack.c.b16 %v6625, %v6621
    %v6774 = vpack.c.b16 %v6626, %v6622
    %v6775 = vpack.c.b16 %v6631, %v6627
    %v6776 = vpack.c.b16 %v6632, %v6628
    %v6777 = vpack.c.b16 %v6633, %v6629
    %v6778 = vpack.c.b16 %v6634, %v6630
    %v6779 = vpack.c.b16 %v6639, %v6635
    %v6780 = vpack.c.b16 %v6640, %v6636
    %v6781 = vpack.c.b16 %v6641, %v6637
    %v6782 = vpack.c.b16 %v6642, %v6638
    %v6783 = vpack.c.b16 %v6647, %v6643
    %v6784 = vpack.c.b16 %v6648, %v6644
    %v6785 = vpack.c.b16 %v6649, %v6645
    %v6786 = vpack.c.b16 %v6650, %v6646
    %v6787 = vpack.c.b16 %v6655, %v6651
    %v6788 = vpack.c.b16 %v6656, %v6652
    %v6789 = vpack.c.b16 %v6657, %v6653
    %v6790 = vpack.c.b16 %v6658, %v6654
    %v6791 = vpack.c.b16 %v6663, %v6659
    %v6792 = vpack.c.b16 %v6664, %v6660
    %v6793 = vpack.c.b16 %v6665, %v6661
    %v6794 = vpack.c.b16 %v6666, %v6662
    %6923 = vmatprep.subr.bf16.mxu0 %v6696
    %6924 = vmatpush1.bf16.msra.mxu0 %v6695
    %6925 = vmatprep.subr.bf16.mxu0 %v6692
    %6926 = vmatpush1.bf16.msra.mxu0 %v6691
    %6927 = vmatprep.subr.bf16.mxu0 %v6688
    %6928 = vmatpush1.bf16.msra.mxu0 %v6687
    %6929 = vmatprep.subr.bf16.mxu0 %v6684
    %6930 = vmatpush1.bf16.msra.mxu0 %v6683
    %6931 = vmatprep.subr.bf16.mxu0 %v6680
    %6932 = vmatpush1.bf16.msra.mxu0 %v6679
    %6933 = vmatprep.subr.bf16.mxu0 %v6676
    %6934 = vmatpush1.bf16.msra.mxu0 %v6675
    %6935 = vmatprep.subr.bf16.mxu0 %v6672
    %6936 = vmatpush1.bf16.msra.mxu0 %v6671
    %6937 = vmatprep.subr.bf16.mxu0 %v6668
    %6938 = vmatpush1.bf16.msra.mxu0 %v6667
    %6939 = vmatprep.subr.bf16.mxu0 %v6728
    %6940 = vmatpush2.bf16.msra.mxu0 %v6727
    %6941 = vmatprep.subr.bf16.mxu0 %v6724
    %6942 = vmatpush2.bf16.msra.mxu0 %v6723
    %6943 = vmatprep.subr.bf16.mxu0 %v6720
    %6944 = vmatpush2.bf16.msra.mxu0 %v6719
    %6945 = vmatprep.subr.bf16.mxu0 %v6716
    %6946 = vmatpush2.bf16.msra.mxu0 %v6715
    %6947 = vmatprep.subr.bf16.mxu0 %v6712
    %6948 = vmatpush2.bf16.msra.mxu0 %v6711
    %6949 = vmatprep.subr.bf16.mxu0 %v6708
    %6950 = vmatpush2.bf16.msra.mxu0 %v6707
    %6951 = vmatprep.subr.bf16.mxu0 %v6704
    %6952 = vmatpush2.bf16.msra.mxu0 %v6703
    %6953 = vmatprep.subr.bf16.mxu0 %v6700
    %6954 = vmatpush2.bf16.msra.mxu0 %v6699
    %6955 = vmatprep.mubr.bf16.mxu0 %v6127
    %6956 = vmatmul.mubr.bf16.gmra.mxu0 %v6126
    %v6957 = vpop.f32.mrf.mxu0
    %v6958 = vadd.f32 %v6266, %v6957
    %v6959 = vpop.f32.mrf.mxu0
    %v6960 = vadd.f32 %v6270, %v6959
    %v6961 = vpop.f32.mrf.mxu0
    %v6962 = vpop.f32.mrf.mxu0
    %6963 = vdwg.mxu0
    %6964 = vmatprep.subr.bf16.mxu0 %v6760
    %6965 = vmatpush1.bf16.msra.mxu0 %v6759
    %6966 = vmatprep.subr.bf16.mxu0 %v6756
    %6967 = vmatpush1.bf16.msra.mxu0 %v6755
    %6968 = vmatprep.subr.bf16.mxu0 %v6752
    %6969 = vmatpush1.bf16.msra.mxu0 %v6751
    %6970 = vmatprep.subr.bf16.mxu0 %v6748
    %6971 = vmatpush1.bf16.msra.mxu0 %v6747
    %6972 = vmatprep.subr.bf16.mxu0 %v6744
    %6973 = vmatpush1.bf16.msra.mxu0 %v6743
    %6974 = vmatprep.subr.bf16.mxu0 %v6740
    %6975 = vmatpush1.bf16.msra.mxu0 %v6739
    %6976 = vmatprep.subr.bf16.mxu0 %v6736
    %6977 = vmatpush1.bf16.msra.mxu0 %v6735
    %6978 = vmatprep.subr.bf16.mxu0 %v6732
    %6979 = vmatpush1.bf16.msra.mxu0 %v6731
    %6980 = vmatprep.subr.bf16.mxu0 %v6792
    %6981 = vmatpush2.bf16.msra.mxu0 %v6791
    %6982 = vmatprep.subr.bf16.mxu0 %v6788
    %6983 = vmatpush2.bf16.msra.mxu0 %v6787
    %6984 = vmatprep.subr.bf16.mxu0 %v6784
    %6985 = vmatpush2.bf16.msra.mxu0 %v6783
    %6986 = vmatprep.subr.bf16.mxu0 %v6780
    %6987 = vmatpush2.bf16.msra.mxu0 %v6779
    %6988 = vmatprep.subr.bf16.mxu0 %v6776
    %6989 = vmatpush2.bf16.msra.mxu0 %v6775
    %6990 = vmatprep.subr.bf16.mxu0 %v6772
    %6991 = vmatpush2.bf16.msra.mxu0 %v6771
    %6992 = vmatprep.subr.bf16.mxu0 %v6768
    %6993 = vmatpush2.bf16.msra.mxu0 %v6767
    %6994 = vmatprep.subr.bf16.mxu0 %v6764
    %6995 = vmatpush2.bf16.msra.mxu0 %v6763
    %6996 = vmatprep.mubr.bf16.mxu0 %v6129
    %6997 = vmatmul.mubr.bf16.gmra.mxu0 %v6128
    %v6998 = vpop.f32.mrf.mxu0
    %v6999 = vadd.f32 %v6958, %v6998
    %v7000 = vpop.f32.mrf.mxu0
    %v7001 = vadd.f32 %v6960, %v7000
    %v7002 = vpop.f32.mrf.mxu0
    %v7003 = vpop.f32.mrf.mxu0
    %7004 = vdwg.mxu0
    %7005 = vmatprep.subr.bf16.mxu0 %v6698
    %7006 = vmatpush1.bf16.msra.mxu0 %v6697
    %7007 = vmatprep.subr.bf16.mxu0 %v6694
    %7008 = vmatpush1.bf16.msra.mxu0 %v6693
    %7009 = vmatprep.subr.bf16.mxu0 %v6690
    %7010 = vmatpush1.bf16.msra.mxu0 %v6689
    %7011 = vmatprep.subr.bf16.mxu0 %v6686
    %7012 = vmatpush1.bf16.msra.mxu0 %v6685
    %7013 = vmatprep.subr.bf16.mxu0 %v6682
    %7014 = vmatpush1.bf16.msra.mxu0 %v6681
    %7015 = vmatprep.subr.bf16.mxu0 %v6678
    %7016 = vmatpush1.bf16.msra.mxu0 %v6677
    %7017 = vmatprep.subr.bf16.mxu0 %v6674
    %7018 = vmatpush1.bf16.msra.mxu0 %v6673
    %7019 = vmatprep.subr.bf16.mxu0 %v6670
    %7020 = vmatpush1.bf16.msra.mxu0 %v6669
    %7021 = vmatprep.subr.bf16.mxu0 %v6730
    %7022 = vmatpush2.bf16.msra.mxu0 %v6729
    %7023 = vmatprep.subr.bf16.mxu0 %v6726
    %7024 = vmatpush2.bf16.msra.mxu0 %v6725
    %7025 = vmatprep.subr.bf16.mxu0 %v6722
    %7026 = vmatpush2.bf16.msra.mxu0 %v6721
    %7027 = vmatprep.subr.bf16.mxu0 %v6718
    %7028 = vmatpush2.bf16.msra.mxu0 %v6717
    %7029 = vmatprep.subr.bf16.mxu0 %v6714
    %7030 = vmatpush2.bf16.msra.mxu0 %v6713
    %7031 = vmatprep.subr.bf16.mxu0 %v6710
    %7032 = vmatpush2.bf16.msra.mxu0 %v6709
    %7033 = vmatprep.subr.bf16.mxu0 %v6706
    %7034 = vmatpush2.bf16.msra.mxu0 %v6705
    %7035 = vmatprep.subr.bf16.mxu0 %v6702
    %7036 = vmatpush2.bf16.msra.mxu0 %v6701
    %7037 = vmatprep.mubr.bf16.mxu0 %v6127
    %7038 = vmatmul.mubr.bf16.gmra.mxu0 %v6126
    %v7039 = vpop.f32.mrf.mxu0
    %v7040 = vadd.f32 %v6274, %v7039
    %v7041 = vpop.f32.mrf.mxu0
    %v7042 = vadd.f32 %v6278, %v7041
    %v7043 = vpop.f32.mrf.mxu0
    %v7044 = vpop.f32.mrf.mxu0
    %7045 = vdwg.mxu0
    %7046 = vmatprep.subr.bf16.mxu0 %v6762
    %7047 = vmatpush1.bf16.msra.mxu0 %v6761
    %7048 = vmatprep.subr.bf16.mxu0 %v6758
    %7049 = vmatpush1.bf16.msra.mxu0 %v6757
    %7050 = vmatprep.subr.bf16.mxu0 %v6754
    %7051 = vmatpush1.bf16.msra.mxu0 %v6753
    %7052 = vmatprep.subr.bf16.mxu0 %v6750
    %7053 = vmatpush1.bf16.msra.mxu0 %v6749
    %7054 = vmatprep.subr.bf16.mxu0 %v6746
    %7055 = vmatpush1.bf16.msra.mxu0 %v6745
    %7056 = vmatprep.subr.bf16.mxu0 %v6742
    %7057 = vmatpush1.bf16.msra.mxu0 %v6741
    %7058 = vmatprep.subr.bf16.mxu0 %v6738
    %7059 = vmatpush1.bf16.msra.mxu0 %v6737
    %7060 = vmatprep.subr.bf16.mxu0 %v6734
    %7061 = vmatpush1.bf16.msra.mxu0 %v6733
    %7062 = vmatprep.subr.bf16.mxu0 %v6794
    %7063 = vmatpush2.bf16.msra.mxu0 %v6793
    %7064 = vmatprep.subr.bf16.mxu0 %v6790
    %7065 = vmatpush2.bf16.msra.mxu0 %v6789
    %7066 = vmatprep.subr.bf16.mxu0 %v6786
    %7067 = vmatpush2.bf16.msra.mxu0 %v6785
    %7068 = vmatprep.subr.bf16.mxu0 %v6782
    %7069 = vmatpush2.bf16.msra.mxu0 %v6781
    %7070 = vmatprep.subr.bf16.mxu0 %v6778
    %7071 = vmatpush2.bf16.msra.mxu0 %v6777
    %7072 = vmatprep.subr.bf16.mxu0 %v6774
    %7073 = vmatpush2.bf16.msra.mxu0 %v6773
    %7074 = vmatprep.subr.bf16.mxu0 %v6770
    %7075 = vmatpush2.bf16.msra.mxu0 %v6769
    %7076 = vmatprep.subr.bf16.mxu0 %v6766
    %7077 = vmatpush2.bf16.msra.mxu0 %v6765
    %7078 = vmatprep.mubr.bf16.mxu0 %v6129
    %7079 = vmatmul.mubr.bf16.gmra.mxu0 %v6128
    %v7080 = vpop.f32.mrf.mxu0
    %v7081 = vadd.f32 %v7040, %v7080
    %v7082 = vpop.f32.mrf.mxu0
    %v7083 = vadd.f32 %v7042, %v7082
    %v7084 = vpop.f32.mrf.mxu0
    %v7085 = vpop.f32.mrf.mxu0
    %7086 = vdwg.mxu0
    %v7087 = vmax.f32 %v6999, 0.0
    %v7088 = vmax.f32 %v7001, 0.0
    %v7089 = vmax.f32 %v7081, 0.0
    %v7090 = vmax.f32 %v7083, 0.0
    %v7091 = vpack.c.bf16 %v7087, %v7087
    %v7092 = vpack.c.bf16 %v7088, %v7088
    %v7093 = vpack.c.bf16 %v7089, %v7089
    %v7094 = vpack.c.bf16 %v7090, %v7090
    %v7095 = vunpack.c.l.bf16 %v7091
    %v7096 = vunpack.c.l.bf16 %v7092
    %v7097 = vunpack.c.l.bf16 %v7093
    %v7098 = vunpack.c.l.bf16 %v7094
    %v7099 = vld [vmem:[#allocation12] sm:$0xf]
    %v7101 = vlaneseq
    %v7102 = vshrl.u32 %v7101, 7
    %v7103 = vsub.s32 0, %v7102
    %v7104 = vrot.slane %v7099, %v7103
    %v7105 = vlaneseq
    %v7106 = vshrl.u32 %v7105, 7
    %v7107 = vsub.s32 1, %v7106
    %v7108 = vrot.slane %v7099, %v7107
    %v7109 = vlaneseq
    %v7110 = vshrl.u32 %v7109, 7
    %v7111 = vsub.s32 2, %v7110
    %v7112 = vrot.slane %v7099, %v7111
    %v7113 = vlaneseq
    %v7114 = vshrl.u32 %v7113, 7
    %v7115 = vsub.s32 3, %v7114
    %v7116 = vrot.slane %v7099, %v7115
    %v7121 = vmul.f32 %v7095, %v7104
    %v7122 = vmul.f32 %v7096, %v7108
    %v7123 = vmul.f32 %v7097, %v7112
    %v7124 = vmul.f32 %v7098, %v7116
    %v7125 = vadd.f32 %v7121, %v7122
    %v7126 = vadd.f32 %v7125, %v7123
    %v7127 = vadd.f32 %v7126, %v7124
    %7128 = vadd.xlane.f32.xlu0 %v7127
    %v7129 = vpop.xlane.xlu0 %7128
    %v7130 = vld [vmem:[#allocation4] sm:$0x1]
    %v7132 = vlaneseq
    %v7133 = vshrl.u32 %v7132, 7
    %v7134 = vsub.s32 0, %v7133
    %v7135 = vrot.slane %v7130, %v7134
    %v7137 = vadd.f32 %v7129, %v7135
    %vm7138 = vcmask 7168
    %7139 = vst.msk [vmem:[%s7] sm:$0xff] %vm7138, %v7137
    // Predicated region
    $region74: #{tpu_custom_call.1} parent=1 // pred_check
      _
    $region75: #{tpu_custom_call.1} parent=1 // pred_check_branch
      %7141 = sbr.rel (0) target = $region77
    $region76: #{tpu_custom_call.1} parent=1 // pred_region
      _
    $region77: #{tpu_custom_call.1} parent=1 // pred_fallthru
      _
    // Predicated region
    $region78: #{tpu_custom_call.1} parent=1 // pred_check
      _
    $region79: #{tpu_custom_call.1} parent=1 // pred_check_branch
      %7143 = sbr.rel (0) target = $region81
    $region80: #{tpu_custom_call.1} parent=1 // pred_region
      _
    $region81: #{tpu_custom_call.1} parent=1 // pred_fallthru
      _
    %7144 = vsyncpa [#allocation6], 1
    %7145 = vsyncpa [#allocation8], 1
    %7146 = vsyncpa [#allocation11], 1
  %7147 = vsyncmov [#allocation3]
  %s7148 = vpop.sfrf %7147
  %p7149 = scmp.eq.s32.totalorder %s7148, 0
  %p7150 = pneg %p7149
  %7152 = shalt.err (%p7150)
  %s7153 = scalar_lea.sflag [#allocation3], 1
  %7154 = vsyncmov %s7153
  %s7155 = vpop.sfrf %7154
  %p7156 = scmp.eq.s32.totalorder %s7155, 0
  %p7157 = pneg %p7156
  %7159 = shalt.err (%p7157)

</llo_original>
